<compile_context>
chip_gen: v7x
topology: tpu7x:2x2x1
jax: 0.10.0
libtpu: 0.0.40
codegen_flags: <defaults>
</compile_context>

<pallas_src>
import functools

import numpy as np
import jax
import jax.numpy as jnp
from jax.experimental import pallas as pl
from jax.experimental.pallas import tpu as pltpu

EPS = 1e-5
_VMEM = pl.BlockSpec(memory_space=pltpu.MemorySpace.VMEM)


# --------------------------------------------------------------------------- static layout

def _layout(n, h, w):
    """Static row layout of the padded activation scratch slab."""
    wp1, wp2 = w + 2, w // 2 + 2                    # padded widths (stage 1 / stage 2)
    rpi1 = (h + 2) * wp1                            # rows per image, stage-1 geometry
    rpi2 = (h // 2 + 2) * wp2                       # rows per image, stage-2 geometry
    base1, base2 = wp1 + 1, wp2 + 1                 # first conv-output row of a geometry
    r1 = (8 - base1 % 8) % 8                        # region 1: stage-1 activation (G1)
    r2 = -(-(r1 + n * rpi1) // 8) * 8               # region 2: stage-2 input (G2)
    r3 = r2 + n * rpi2                              # region 3: stage-2 activation (G2)
    r3 += (8 - (r3 + base2) % 8) % 8                # keep the big stores sublane-aligned
    total = -(-(r3 + n * rpi2) // 8) * 8
    return wp1, wp2, rpi1, rpi2, base1, base2, r1, r2, r3, total


# --------------------------------------------------------------------------- in-kernel helpers

def _valid_mask(first_row, rows, rows_per_img, wpad, w):
    """f32 (rows,1) mask of rows that are real pixels (not h/w padding).
    Exact small-integer float arithmetic only (no vector int div/mod)."""
    pr = jax.lax.broadcasted_iota(jnp.int32, (rows, 1), 0).astype(jnp.float32) + first_row
    img = jnp.floor((pr + 0.5) / rows_per_img)
    rem = pr - img * rows_per_img                          # row within the image (exact)
    wp = rem - jnp.floor((rem + 0.5) / wpad) * wpad        # column within the padded row
    ok = ((rem >= wpad) & (rem < rows_per_img - wpad) &    # not a top/bottom pad row
          (wp >= 1.0) & (wp <= float(w)))                  # not a left/right pad column
    return ok.astype(jnp.float32)


def _conv3x3_bn(src_ref, row0, rows, wpad, cin, wk, bias, gamma, beta, mask, count):
    """3x3 'same' conv as ONE im2col matmul over a zero-padded slab (mask-free
    taps), fused with bias + ReLU6 + single-pass batch-statistic BatchNorm."""
    taps = []
    for kh in range(3):
        for kw in range(3):
            off = (kh - 1) * wpad + (kw - 1)
            taps.append(src_ref[pl.ds(row0 + off, rows), 0:cin])
    patches = jnp.concatenate(taps, axis=1)                           # (rows, 9*cin)
    y = jnp.dot(patches, wk, preferred_element_type=jnp.float32) + bias
    y = jnp.clip(y, 0.0, 6.0) * mask                                  # ReLU6; zero pad rows
    inv_n = 1.0 / float(count)
    mean = jnp.sum(y, axis=0, keepdims=True) * inv_n
    var = jnp.sum(y * y, axis=0, keepdims=True) * inv_n - mean * mean
    scale = gamma * jax.lax.rsqrt(var + EPS)
    return y * scale + (beta - mean * scale)


def _pool2x2_row(e_ref, src, wpad, m, cin):
    """One pooled output row (m, cin): 2x2/stride-2 max over one image row pair,
    read with stride-2 row addressing (no selection matmul, no gather)."""
    def rd(off):
        return e_ref[pl.ds(src + off, m, stride=2), 0:cin]
    return jnp.maximum(jnp.maximum(rd(0), rd(1)),
                       jnp.maximum(rd(wpad), rd(wpad + 1)))


# --------------------------------------------------------------------------- fused forward kernel

def _mynet_kernel(n, h, w, x_ref, mats_ref, vecs_ref, o_ref, e_ref):
    f32 = jnp.float32
    h2, w2, h4, w4 = h // 2, w // 2, h // 4, w // 4
    wp1, wp2, rpi1, rpi2, base1, base2, r1, r2, r3, _ = _layout(n, h, w)
    rows1 = n * rpi1 - 2 * base1            # conv-1 output rows (incl. pad rows)
    rows2 = n * rpi2 - 2 * base2            # conv-2 output rows (incl. pad rows)

    # packed parameters: 2 carrier arrays instead of 16 tiny inputs
    wc1 = mats_ref[0:27, 0:16]              # conv1  (9*3, 16)   im2col layout
    wc2 = mats_ref[32:176, 0:4]             # conv2  (9*16, 4)
    wd1 = mats_ref[176:180, 0:64]           # deconv1 (4, 4*16)  lane = (a*2+b)*16+co
    wd2 = mats_ref[184:248, 0:48]           # deconv2 block-diag (4*16, 4*12)
    bc1, gc1, be1 = vecs_ref[0:1, 0:16], vecs_ref[1:2, 0:16], vecs_ref[2:3, 0:16]
    bc2, gc2, be2 = vecs_ref[3:4, 0:4], vecs_ref[4:5, 0:4], vecs_ref[5:6, 0:4]
    bd1 = vecs_ref[6:7, 0:64]
    g3, be3 = vecs_ref[7:8, 0:16], vecs_ref[8:9, 0:16]
    bd2 = vecs_ref[9:10, 0:48]

    # region 2 holds the zero-padded stage-2 input: clear it once (pad rows stay 0).
    e_ref[pl.ds(r2, n * rpi2), :] = jnp.zeros((n * rpi2, 16), f32)

    # ---- stage 1: Conv2d(3->16,3,pad=1) + ReLU6 + BN; taps read straight from padded x
    m1 = _valid_mask(base1, rows1, rpi1, wp1, w)
    y = _conv3x3_bn(x_ref, base1, rows1, wp1, 3, wc1, bc1, gc1, be1, m1, n * h * w)
    e_ref[pl.ds(r1 + base1, rows1), :] = y

    # ---- MaxPool(2,2) #1: strided-row compaction into region 2 (padded G2 layout)
    for img in range(n):
        for i in range(h2):
            src = r1 + img * rpi1 + (2 * i + 1) * wp1 + 1
            dst = r2 + img * rpi2 + (i + 1) * wp2 + 1
            e_ref[pl.ds(dst, w2), :] = _pool2x2_row(e_ref, src, wp1, w2, 16)

    # ---- stage 2: Conv2d(16->4,3,pad=1) + ReLU6 + BN
    m2 = _valid_mask(base2, rows2, rpi2, wp2, w2)
    y = _conv3x3_bn(e_ref, r2 + base2, rows2, wp2, 16, wc2, bc2, gc2, be2, m2,
                    n * h2 * w2)
    e_ref[pl.ds(r3 + base2, rows2), 0:4] = y

    # ---- MaxPool(2,2) #2: pooled encoder output stays in registers (n*h4*w4, 4)
    pieces = []
    for img in range(n):
        for i in range(h4):
            src = r3 + img * rpi2 + (2 * i + 1) * wp2 + 1
            pieces.append(_pool2x2_row(e_ref, src, wp2, w4, 4))
    p = jnp.concatenate(pieces, axis=0)

    # ---- decoder 1: ConvTranspose2d(4->16,2,stride=2) + ReLU6 + BN (lane-packed)
    y = jnp.clip(jnp.dot(p, wd1, preferred_element_type=f32) + bd1, 0.0, 6.0)  # (R,64)
    inv_n3 = 1.0 / float(4 * n * h4 * w4)
    s = jnp.sum(y, axis=0, keepdims=True)
    q = jnp.sum(y * y, axis=0, keepdims=True)
    s = s[:, 0:16] + s[:, 16:32] + s[:, 32:48] + s[:, 48:64]    # per-channel group sums
    q = q[:, 0:16] + q[:, 16:32] + q[:, 32:48] + q[:, 48:64]
    mean = s * inv_n3
    var = q * inv_n3 - mean * mean
    scale = g3 * jax.lax.rsqrt(var + EPS)
    shift = be3 - mean * scale
    y = y * jnp.concatenate([scale] * 4, axis=1) + jnp.concatenate([shift] * 4, axis=1)

    # ---- decoder 2: ConvTranspose2d(16->3,2,stride=2) + Sigmoid (exp + rcp on the EUP)
    z = jnp.dot(y, wd2, preferred_element_type=f32) + bd2                       # (R,48)
    d = 1.0 + jnp.exp(-z)
    rcp = pl.reciprocal(d, approx=True)
    o_ref[...] = rcp * (2.0 - d * rcp)      # one Newton step -> well inside 1e-3


# --------------------------------------------------------------------------- wrapper

def mynet_forward(x_nchw, params):
    n, c, h, w = x_nchw.shape
    # Zero-padded pixel-row layout (n, h+2, w+2, c) -> (n*(h+2)*(w+2), c); the
    # padding columns/rows do the conv boundary masking for free.
    x = jnp.transpose(x_nchw, (0, 2, 3, 1)).astype(jnp.float32)
    xp = jnp.pad(x, ((0, 0), (1, 1), (1, 1), (0, 0))).reshape(n * (h + 2) * (w + 2), c)

    total_rows = _layout(n, h, w)[-1]
    nrows_out = n * (h // 4) * (w // 4)

    out2d = pl.pallas_call(
        functools.partial(_mynet_kernel, n, h, w),
        out_shape=jax.ShapeDtypeStruct((nrows_out, 48), jnp.float32),
        in_specs=[_VMEM, _VMEM, _VMEM],
        out_specs=_VMEM,
        scratch_shapes=[pltpu.VMEM((total_rows, 16), jnp.float32)],
    )(xp, params["mats"], params["vecs"])

    # (R, 48) lanes = (a1, b1, a2, b2, c) -> NCHW pixel interleave (layout glue only).
    # TODO(synk): fold this interleave into an index_map'd out BlockSpec for big inputs.
    z = out2d.reshape(n, h // 4, w // 4, 2, 2, 2, 2, 3)
    z = z.transpose(0, 7, 1, 3, 5, 2, 4, 6)
    return z.reshape(n, 3, h, w)


# --------------------------------------------------------------------------- params

def init_raw_params(key):
    ks = jax.random.split(key, 14)
    f32 = jnp.float32
    return {
        "conv1_w": 0.2 * jax.random.normal(ks[0], (16, 3, 3, 3), f32),
        "conv1_b": 0.1 * jax.random.normal(ks[1], (16,), f32),
        "bn1_g": 1.0 + 0.1 * jax.random.normal(ks[2], (16,), f32),
        "bn1_b": 0.1 * jax.random.normal(ks[3], (16,), f32),
        "conv2_w": 0.2 * jax.random.normal(ks[4], (4, 16, 3, 3), f32),
        "conv2_b": 0.1 * jax.random.normal(ks[5], (4,), f32),
        "bn2_g": 1.0 + 0.1 * jax.random.normal(ks[6], (4,), f32),
        "bn2_b": 0.1 * jax.random.normal(ks[7], (4,), f32),
        "dec1_w": 0.2 * jax.random.normal(ks[8], (4, 16, 2, 2), f32),   # (Cin, Cout, kH, kW)
        "dec1_b": 0.1 * jax.random.normal(ks[9], (16,), f32),
        "bn3_g": 1.0 + 0.1 * jax.random.normal(ks[10], (16,), f32),
        "bn3_b": 0.1 * jax.random.normal(ks[11], (16,), f32),
        "dec2_w": 0.2 * jax.random.normal(ks[12], (16, 3, 2, 2), f32),
        "dec2_b": 0.1 * jax.random.normal(ks[13], (3,), f32),
    }


def prepare_params(raw):
    """Pack all weights/vectors into two lane-dense carrier arrays (done once)."""
    mats = np.zeros((256, 128), np.float32)
    # 3x3 convs: (Cout,Cin,3,3) -> (kh,kw,ci,co) -> (9*Cin, Cout); K index = (kh*3+kw)*Cin+ci
    mats[0:27, 0:16] = np.asarray(raw["conv1_w"]).transpose(2, 3, 1, 0).reshape(27, 16)
    mats[32:176, 0:4] = np.asarray(raw["conv2_w"]).transpose(2, 3, 1, 0).reshape(144, 4)
    # ConvT(4->16): (Cin,Cout,2,2) -> (Cin, 4*Cout), lane = (a*2+b)*16 + co
    mats[176:180, 0:64] = np.asarray(raw["dec1_w"]).transpose(0, 2, 3, 1).reshape(4, 64)
    # ConvT(16->3) per-offset weights -> block-diagonal (64, 48)
    blk = np.asarray(raw["dec2_w"]).transpose(0, 2, 3, 1).reshape(16, 12)
    for g in range(4):
        mats[184 + 16 * g:184 + 16 * (g + 1), 12 * g:12 * (g + 1)] = blk

    vecs = np.zeros((16, 128), np.float32)
    vecs[0, 0:16] = np.asarray(raw["conv1_b"])
    vecs[1, 0:16] = np.asarray(raw["bn1_g"])
    vecs[2, 0:16] = np.asarray(raw["bn1_b"])
    vecs[3, 0:4] = np.asarray(raw["conv2_b"])
    vecs[4, 0:4] = np.asarray(raw["bn2_g"])
    vecs[5, 0:4] = np.asarray(raw["bn2_b"])
    vecs[6, 0:64] = np.tile(np.asarray(raw["dec1_b"]), 4)
    vecs[7, 0:16] = np.asarray(raw["bn3_g"])
    vecs[8, 0:16] = np.asarray(raw["bn3_b"])
    vecs[9, 0:48] = np.tile(np.asarray(raw["dec2_b"]), 16)
    return {"mats": jnp.asarray(mats), "vecs": jnp.asarray(vecs)}


# --------------------------------------------------------------------------- reference (plain JAX)

def reference_forward(x_nchw, raw):
    x = jnp.transpose(x_nchw, (0, 2, 3, 1)).astype(jnp.float32)

    def bn(y, g, b):
        m = jnp.mean(y, axis=(0, 1, 2), keepdims=True)
        v = jnp.mean((y - m) ** 2, axis=(0, 1, 2), keepdims=True)
        return (y - m) / jnp.sqrt(v + EPS) * g + b

    def conv(y, w, b):
        out = jax.lax.conv_general_dilated(
            y, w, (1, 1), "SAME", dimension_numbers=("NHWC", "OIHW", "NHWC"),
            precision=jax.lax.Precision.HIGHEST)
        return out + b

    def pool(y):
        return jax.lax.reduce_window(y, -jnp.inf, jax.lax.max,
                                     (1, 2, 2, 1), (1, 2, 2, 1), "VALID")

    def deconv(y, w, b):
        # PyTorch ConvTranspose2d(k=2, stride=2): out[n,2i+a,2j+b,o] = x[n,i,j,:]@W[:,o,a,b]
        n, hh, ww, _ = y.shape
        co = w.shape[1]
        t = jnp.einsum("nhwi,ioab->nhwabo", y, w, precision=jax.lax.Precision.HIGHEST)
        return t.transpose(0, 1, 3, 2, 4, 5).reshape(n, 2 * hh, 2 * ww, co) + b

    y = bn(jnp.clip(conv(x, raw["conv1_w"], raw["conv1_b"]), 0.0, 6.0), raw["bn1_g"], raw["bn1_b"])
    y = pool(y)
    y = bn(jnp.clip(conv(y, raw["conv2_w"], raw["conv2_b"]), 0.0, 6.0), raw["bn2_g"], raw["bn2_b"])
    y = pool(y)
    y = bn(jnp.clip(deconv(y, raw["dec1_w"], raw["dec1_b"]), 0.0, 6.0), raw["bn3_g"], raw["bn3_b"])
    y = jax.nn.sigmoid(deconv(y, raw["dec2_w"], raw["dec2_b"]))
    return jnp.transpose(y, (0, 3, 1, 2))


# --------------------------------------------------------------------------- main

if __name__ == "__main__":
    key = jax.random.PRNGKey(0)
    kp, kx = jax.random.split(key)
    raw = init_raw_params(kp)

    x = jax.random.normal(kx, (2, 3, 16, 16), jnp.float32)     # NCHW, like PyTorch
    params = prepare_params(raw)

    fwd = jax.jit(mynet_forward)
    out = jax.block_until_ready(fwd(x, params))
    assert out.shape == (2, 3, 16, 16), out.shape

    ref = jax.block_until_ready(reference_forward(x, raw))
    if not jnp.allclose(out, ref, atol=1e-3, rtol=1e-3):
        raise AssertionError(
            f"mismatch vs reference: max abs err = {float(jnp.max(jnp.abs(out - ref)))}")

    print("KERNEL_OK")
</pallas_src>

<mosaic_0001>
module attributes {stable_mosaic.version = 11 : i64} {
  func.func @_mynet_kernel(%arg0: memref<648x3xf32, #tpu.memory_space<vmem>>, %arg1: memref<256x128xf32, #tpu.memory_space<vmem>>, %arg2: memref<16x128xf32, #tpu.memory_space<vmem>>, %arg3: memref<32x48xf32, #tpu.memory_space<vmem>>, %arg4: memref<1064x16xf32, #tpu.memory_space<vmem>>) attributes {dimension_semantics = [], scalar_prefetch = 0 : i64, scratch_operands = 1 : i64, tpu.core_type = #tpu.core_type<tc>} {
    %c0 = arith.constant 0 : index
    %c0_0 = arith.constant 0 : index
    %0 = vector.load %arg1[%c0, %c0_0] : memref<256x128xf32, #tpu.memory_space<vmem>>, vector<27x16xf32>
    %c32 = arith.constant 32 : index
    %c0_1 = arith.constant 0 : index
    %1 = vector.load %arg1[%c32, %c0_1] : memref<256x128xf32, #tpu.memory_space<vmem>>, vector<144x4xf32>
    %c176 = arith.constant 176 : index
    %c0_2 = arith.constant 0 : index
    %2 = vector.load %arg1[%c176, %c0_2] : memref<256x128xf32, #tpu.memory_space<vmem>>, vector<4x64xf32>
    %c184 = arith.constant 184 : index
    %c0_3 = arith.constant 0 : index
    %3 = vector.load %arg1[%c184, %c0_3] : memref<256x128xf32, #tpu.memory_space<vmem>>, vector<64x48xf32>
    %c0_4 = arith.constant 0 : index
    %c0_5 = arith.constant 0 : index
    %4 = vector.load %arg2[%c0_4, %c0_5] : memref<16x128xf32, #tpu.memory_space<vmem>>, vector<1x16xf32>
    %c1 = arith.constant 1 : index
    %c0_6 = arith.constant 0 : index
    %5 = vector.load %arg2[%c1, %c0_6] : memref<16x128xf32, #tpu.memory_space<vmem>>, vector<1x16xf32>
    %c2 = arith.constant 2 : index
    %c0_7 = arith.constant 0 : index
    %6 = vector.load %arg2[%c2, %c0_7] : memref<16x128xf32, #tpu.memory_space<vmem>>, vector<1x16xf32>
    %c3 = arith.constant 3 : index
    %c0_8 = arith.constant 0 : index
    %7 = vector.load %arg2[%c3, %c0_8] : memref<16x128xf32, #tpu.memory_space<vmem>>, vector<1x4xf32>
    %c4 = arith.constant 4 : index
    %c0_9 = arith.constant 0 : index
    %8 = vector.load %arg2[%c4, %c0_9] : memref<16x128xf32, #tpu.memory_space<vmem>>, vector<1x4xf32>
    %c5 = arith.constant 5 : index
    %c0_10 = arith.constant 0 : index
    %9 = vector.load %arg2[%c5, %c0_10] : memref<16x128xf32, #tpu.memory_space<vmem>>, vector<1x4xf32>
    %c6 = arith.constant 6 : index
    %c0_11 = arith.constant 0 : index
    %10 = vector.load %arg2[%c6, %c0_11] : memref<16x128xf32, #tpu.memory_space<vmem>>, vector<1x64xf32>
    %c7 = arith.constant 7 : index
    %c0_12 = arith.constant 0 : index
    %11 = vector.load %arg2[%c7, %c0_12] : memref<16x128xf32, #tpu.memory_space<vmem>>, vector<1x16xf32>
    %c8 = arith.constant 8 : index
    %c0_13 = arith.constant 0 : index
    %12 = vector.load %arg2[%c8, %c0_13] : memref<16x128xf32, #tpu.memory_space<vmem>>, vector<1x16xf32>
    %c9 = arith.constant 9 : index
    %c0_14 = arith.constant 0 : index
    %13 = vector.load %arg2[%c9, %c0_14] : memref<16x128xf32, #tpu.memory_space<vmem>>, vector<1x48xf32>
    %cst = arith.constant 0.000000e+00 : f32
    %14 = vector.broadcast %cst : f32 to vector<200x16xf32>
    %c656 = arith.constant 656 : index
    %c0_15 = arith.constant 0 : index
    %15 = vector.load %arg4[%c656, %c0_15] : memref<1064x16xf32, #tpu.memory_space<vmem>>, vector<200x16xf32>
    tpu.vector_store %arg4[%c656, %c0_15], %14 {strides = array<i32>} : memref<1064x16xf32, #tpu.memory_space<vmem>>, vector<200x16xf32>,
    %16 = tpu.iota {dimensions = array<i32: 0>} : vector<610x1xi32>
    %17 = arith.sitofp %16 : vector<610x1xi32> to vector<610x1xf32>
    %cst_16 = arith.constant 1.900000e+01 : f32
    %18 = vector.broadcast %cst_16 : f32 to vector<610x1xf32>
    %19 = arith.addf %17, %18 : vector<610x1xf32>
    %cst_17 = arith.constant 5.000000e-01 : f32
    %20 = vector.broadcast %cst_17 : f32 to vector<610x1xf32>
    %21 = arith.addf %19, %20 : vector<610x1xf32>
    %cst_18 = arith.constant 3.240000e+02 : f32
    %22 = vector.broadcast %cst_18 : f32 to vector<610x1xf32>
    %23 = arith.divf %21, %22 : vector<610x1xf32>
    %24 = math.floor %23 : vector<610x1xf32>
    %cst_19 = arith.constant 3.240000e+02 : f32
    %25 = vector.broadcast %cst_19 : f32 to vector<610x1xf32>
    %26 = arith.mulf %24, %25 : vector<610x1xf32>
    %27 = arith.subf %19, %26 : vector<610x1xf32>
    %cst_20 = arith.constant 5.000000e-01 : f32
    %28 = vector.broadcast %cst_20 : f32 to vector<610x1xf32>
    %29 = arith.addf %27, %28 : vector<610x1xf32>
    %cst_21 = arith.constant 1.800000e+01 : f32
    %30 = vector.broadcast %cst_21 : f32 to vector<610x1xf32>
    %31 = arith.divf %29, %30 : vector<610x1xf32>
    %32 = math.floor %31 : vector<610x1xf32>
    %cst_22 = arith.constant 1.800000e+01 : f32
    %33 = vector.broadcast %cst_22 : f32 to vector<610x1xf32>
    %34 = arith.mulf %32, %33 : vector<610x1xf32>
    %35 = arith.subf %27, %34 : vector<610x1xf32>
    %cst_23 = arith.constant 1.800000e+01 : f32
    %36 = vector.broadcast %cst_23 : f32 to vector<610x1xf32>
    %37 = arith.cmpf oge, %27, %36 : vector<610x1xf32>
    %cst_24 = arith.constant 3.060000e+02 : f32
    %38 = vector.broadcast %cst_24 : f32 to vector<610x1xf32>
    %39 = arith.cmpf olt, %27, %38 : vector<610x1xf32>
    %40 = arith.andi %37, %39 : vector<610x1xi1>
    %cst_25 = arith.constant 1.000000e+00 : f32
    %41 = vector.broadcast %cst_25 : f32 to vector<610x1xf32>
    %42 = arith.cmpf oge, %35, %41 : vector<610x1xf32>
    %43 = arith.andi %40, %42 : vector<610x1xi1>
    %cst_26 = arith.constant 1.600000e+01 : f32
    %44 = vector.broadcast %cst_26 : f32 to vector<610x1xf32>
    %45 = arith.cmpf ole, %35, %44 : vector<610x1xf32>
    %46 = arith.andi %43, %45 : vector<610x1xi1>
    %47 = arith.extui %46 : vector<610x1xi1> to vector<610x1xi32>
    %48 = arith.sitofp %47 : vector<610x1xi32> to vector<610x1xf32>
    %c0_27 = arith.constant 0 : index
    %c0_28 = arith.constant 0 : index
    %49 = vector.load %arg0[%c0_27, %c0_28] : memref<648x3xf32, #tpu.memory_space<vmem>>, vector<610x3xf32>
    %c1_29 = arith.constant 1 : index
    %c0_30 = arith.constant 0 : index
    %50 = vector.load %arg0[%c1_29, %c0_30] : memref<648x3xf32, #tpu.memory_space<vmem>>, vector<610x3xf32>
    %c2_31 = arith.constant 2 : index
    %c0_32 = arith.constant 0 : index
    %51 = vector.load %arg0[%c2_31, %c0_32] : memref<648x3xf32, #tpu.memory_space<vmem>>, vector<610x3xf32>
    %c18 = arith.constant 18 : index
    %c0_33 = arith.constant 0 : index
    %52 = vector.load %arg0[%c18, %c0_33] : memref<648x3xf32, #tpu.memory_space<vmem>>, vector<610x3xf32>
    %c19 = arith.constant 19 : index
    %c0_34 = arith.constant 0 : index
    %53 = vector.load %arg0[%c19, %c0_34] : memref<648x3xf32, #tpu.memory_space<vmem>>, vector<610x3xf32>
    %c20 = arith.constant 20 : index
    %c0_35 = arith.constant 0 : index
    %54 = vector.load %arg0[%c20, %c0_35] : memref<648x3xf32, #tpu.memory_space<vmem>>, vector<610x3xf32>
    %c36 = arith.constant 36 : index
    %c0_36 = arith.constant 0 : index
    %55 = vector.load %arg0[%c36, %c0_36] : memref<648x3xf32, #tpu.memory_space<vmem>>, vector<610x3xf32>
    %c37 = arith.constant 37 : index
    %c0_37 = arith.constant 0 : index
    %56 = vector.load %arg0[%c37, %c0_37] : memref<648x3xf32, #tpu.memory_space<vmem>>, vector<610x3xf32>
    %c38 = arith.constant 38 : index
    %c0_38 = arith.constant 0 : index
    %57 = vector.load %arg0[%c38, %c0_38] : memref<648x3xf32, #tpu.memory_space<vmem>>, vector<610x3xf32>
    %58 = tpu.concatenate %49, %50, %51, %52, %53, %54, %55, %56, %57 in 1 : vector<610x3xf32>, vector<610x3xf32>, vector<610x3xf32>, vector<610x3xf32>, vector<610x3xf32>, vector<610x3xf32>, vector<610x3xf32>, vector<610x3xf32>, vector<610x3xf32> -> vector<610x27xf32>
    %cst_39 = arith.constant dense<0.000000e+00> : vector<610x16xf32>
    %59 = tpu.matmul %58, %0, %cst_39 {dimension_numbers = #tpu.dot_dimension_numbers<[1], [0], [0], [1], [0, 0, 1, 1], [], []>} : vector<610x27xf32>, vector<27x16xf32>, vector<610x16xf32> -> vector<610x16xf32>
    %60 = vector.broadcast %4 : vector<1x16xf32> to vector<610x16xf32>
    %61 = arith.addf %59, %60 : vector<610x16xf32>
    %cst_40 = arith.constant 0.000000e+00 : f32
    %cst_41 = arith.constant 6.000000e+00 : f32
    %62 = vector.broadcast %cst_40 : f32 to vector<610x16xf32>
    %63 = arith.maximumf %62, %61 : vector<610x16xf32>
    %64 = vector.broadcast %cst_41 : f32 to vector<610x16xf32>
    %65 = arith.minimumf %64, %63 : vector<610x16xf32>
    %66 = vector.broadcast %48 : vector<610x1xf32> to vector<610x16xf32>
    %67 = arith.mulf %65, %66 : vector<610x16xf32>
    %cst_42 = arith.constant dense<0.000000e+00> : vector<16xf32>
    %68 = vector.multi_reduction <add>, %67, %cst_42 [0] : vector<610x16xf32> to vector<16xf32>
    %69 = vector.shape_cast %68 : vector<16xf32> to vector<1x16xf32>
    %cst_43 = arith.constant 0.001953125 : f32
    %70 = vector.broadcast %cst_43 : f32 to vector<1x16xf32>
    %71 = arith.mulf %69, %70 : vector<1x16xf32>
    %72 = arith.mulf %67, %67 : vector<610x16xf32>
    %cst_44 = arith.constant dense<0.000000e+00> : vector<16xf32>
    %73 = vector.multi_reduction <add>, %72, %cst_44 [0] : vector<610x16xf32> to vector<16xf32>
    %74 = vector.shape_cast %73 : vector<16xf32> to vector<1x16xf32>
    %cst_45 = arith.constant 0.001953125 : f32
    %75 = vector.broadcast %cst_45 : f32 to vector<1x16xf32>
    %76 = arith.mulf %74, %75 : vector<1x16xf32>
    %77 = arith.mulf %71, %71 : vector<1x16xf32>
    %78 = arith.subf %76, %77 : vector<1x16xf32>
    %cst_46 = arith.constant 9.99999974E-6 : f32
    %79 = vector.broadcast %cst_46 : f32 to vector<1x16xf32>
    %80 = arith.addf %78, %79 : vector<1x16xf32>
    %81 = math.rsqrt %80 : vector<1x16xf32>
    %82 = arith.mulf %5, %81 : vector<1x16xf32>
    %83 = vector.broadcast %82 : vector<1x16xf32> to vector<610x16xf32>
    %84 = arith.mulf %67, %83 : vector<610x16xf32>
    %85 = arith.mulf %71, %82 : vector<1x16xf32>
    %86 = arith.subf %6, %85 : vector<1x16xf32>
    %87 = vector.broadcast %86 : vector<1x16xf32> to vector<610x16xf32>
    %88 = arith.addf %84, %87 : vector<610x16xf32>
    %c24 = arith.constant 24 : index
    %c0_47 = arith.constant 0 : index
    %89 = vector.load %arg4[%c24, %c0_47] : memref<1064x16xf32, #tpu.memory_space<vmem>>, vector<610x16xf32>
    tpu.vector_store %arg4[%c24, %c0_47], %88 {strides = array<i32>} : memref<1064x16xf32, #tpu.memory_space<vmem>>, vector<610x16xf32>,
    %c24_48 = arith.constant 24 : index
    %c0_49 = arith.constant 0 : index
    %90 = tpu.strided_load %arg4[%c24_48, %c0_49] {strides = array<i32: 2, 1>} : memref<1064x16xf32, #tpu.memory_space<vmem>>, vector<8x16xf32>
    %c25 = arith.constant 25 : index
    %c0_50 = arith.constant 0 : index
    %91 = tpu.strided_load %arg4[%c25, %c0_50] {strides = array<i32: 2, 1>} : memref<1064x16xf32, #tpu.memory_space<vmem>>, vector<8x16xf32>
    %92 = arith.maximumf %90, %91 : vector<8x16xf32>
    %c42 = arith.constant 42 : index
    %c0_51 = arith.constant 0 : index
    %93 = tpu.strided_load %arg4[%c42, %c0_51] {strides = array<i32: 2, 1>} : memref<1064x16xf32, #tpu.memory_space<vmem>>, vector<8x16xf32>
    %c43 = arith.constant 43 : index
    %c0_52 = arith.constant 0 : index
    %94 = tpu.strided_load %arg4[%c43, %c0_52] {strides = array<i32: 2, 1>} : memref<1064x16xf32, #tpu.memory_space<vmem>>, vector<8x16xf32>
    %95 = arith.maximumf %93, %94 : vector<8x16xf32>
    %96 = arith.maximumf %92, %95 : vector<8x16xf32>
    %c667 = arith.constant 667 : index
    %c0_53 = arith.constant 0 : index
    %97 = vector.load %arg4[%c667, %c0_53] : memref<1064x16xf32, #tpu.memory_space<vmem>>, vector<8x16xf32>
    tpu.vector_store %arg4[%c667, %c0_53], %96 {strides = array<i32>} : memref<1064x16xf32, #tpu.memory_space<vmem>>, vector<8x16xf32>,
    %c60 = arith.constant 60 : index
    %c0_54 = arith.constant 0 : index
    %98 = tpu.strided_load %arg4[%c60, %c0_54] {strides = array<i32: 2, 1>} : memref<1064x16xf32, #tpu.memory_space<vmem>>, vector<8x16xf32>
    %c61 = arith.constant 61 : index
    %c0_55 = arith.constant 0 : index
    %99 = tpu.strided_load %arg4[%c61, %c0_55] {strides = array<i32: 2, 1>} : memref<1064x16xf32, #tpu.memory_space<vmem>>, vector<8x16xf32>
    %100 = arith.maximumf %98, %99 : vector<8x16xf32>
    %c78 = arith.constant 78 : index
    %c0_56 = arith.constant 0 : index
    %101 = tpu.strided_load %arg4[%c78, %c0_56] {strides = array<i32: 2, 1>} : memref<1064x16xf32, #tpu.memory_space<vmem>>, vector<8x16xf32>
    %c79 = arith.constant 79 : index
    %c0_57 = arith.constant 0 : index
    %102 = tpu.strided_load %arg4[%c79, %c0_57] {strides = array<i32: 2, 1>} : memref<1064x16xf32, #tpu.memory_space<vmem>>, vector<8x16xf32>
    %103 = arith.maximumf %101, %102 : vector<8x16xf32>
    %104 = arith.maximumf %100, %103 : vector<8x16xf32>
    %c677 = arith.constant 677 : index
    %c0_58 = arith.constant 0 : index
    %105 = vector.load %arg4[%c677, %c0_58] : memref<1064x16xf32, #tpu.memory_space<vmem>>, vector<8x16xf32>
    tpu.vector_store %arg4[%c677, %c0_58], %104 {strides = array<i32>} : memref<1064x16xf32, #tpu.memory_space<vmem>>, vector<8x16xf32>,
    %c96 = arith.constant 96 : index
    %c0_59 = arith.constant 0 : index
    %106 = tpu.strided_load %arg4[%c96, %c0_59] {strides = array<i32: 2, 1>} : memref<1064x16xf32, #tpu.memory_space<vmem>>, vector<8x16xf32>
    %c97 = arith.constant 97 : index
    %c0_60 = arith.constant 0 : index
    %107 = tpu.strided_load %arg4[%c97, %c0_60] {strides = array<i32: 2, 1>} : memref<1064x16xf32, #tpu.memory_space<vmem>>, vector<8x16xf32>
    %108 = arith.maximumf %106, %107 : vector<8x16xf32>
    %c114 = arith.constant 114 : index
    %c0_61 = arith.constant 0 : index
    %109 = tpu.strided_load %arg4[%c114, %c0_61] {strides = array<i32: 2, 1>} : memref<1064x16xf32, #tpu.memory_space<vmem>>, vector<8x16xf32>
    %c115 = arith.constant 115 : index
    %c0_62 = arith.constant 0 : index
    %110 = tpu.strided_load %arg4[%c115, %c0_62] {strides = array<i32: 2, 1>} : memref<1064x16xf32, #tpu.memory_space<vmem>>, vector<8x16xf32>
    %111 = arith.maximumf %109, %110 : vector<8x16xf32>
    %112 = arith.maximumf %108, %111 : vector<8x16xf32>
    %c687 = arith.constant 687 : index
    %c0_63 = arith.constant 0 : index
    %113 = vector.load %arg4[%c687, %c0_63] : memref<1064x16xf32, #tpu.memory_space<vmem>>, vector<8x16xf32>
    tpu.vector_store %arg4[%c687, %c0_63], %112 {strides = array<i32>} : memref<1064x16xf32, #tpu.memory_space<vmem>>, vector<8x16xf32>,
    %c132 = arith.constant 132 : index
    %c0_64 = arith.constant 0 : index
    %114 = tpu.strided_load %arg4[%c132, %c0_64] {strides = array<i32: 2, 1>} : memref<1064x16xf32, #tpu.memory_space<vmem>>, vector<8x16xf32>
    %c133 = arith.constant 133 : index
    %c0_65 = arith.constant 0 : index
    %115 = tpu.strided_load %arg4[%c133, %c0_65] {strides = array<i32: 2, 1>} : memref<1064x16xf32, #tpu.memory_space<vmem>>, vector<8x16xf32>
    %116 = arith.maximumf %114, %115 : vector<8x16xf32>
    %c150 = arith.constant 150 : index
    %c0_66 = arith.constant 0 : index
    %117 = tpu.strided_load %arg4[%c150, %c0_66] {strides = array<i32: 2, 1>} : memref<1064x16xf32, #tpu.memory_space<vmem>>, vector<8x16xf32>
    %c151 = arith.constant 151 : index
    %c0_67 = arith.constant 0 : index
    %118 = tpu.strided_load %arg4[%c151, %c0_67] {strides = array<i32: 2, 1>} : memref<1064x16xf32, #tpu.memory_space<vmem>>, vector<8x16xf32>
    %119 = arith.maximumf %117, %118 : vector<8x16xf32>
    %120 = arith.maximumf %116, %119 : vector<8x16xf32>
    %c697 = arith.constant 697 : index
    %c0_68 = arith.constant 0 : index
    %121 = vector.load %arg4[%c697, %c0_68] : memref<1064x16xf32, #tpu.memory_space<vmem>>, vector<8x16xf32>
    tpu.vector_store %arg4[%c697, %c0_68], %120 {strides = array<i32>} : memref<1064x16xf32, #tpu.memory_space<vmem>>, vector<8x16xf32>,
    %c168 = arith.constant 168 : index
    %c0_69 = arith.constant 0 : index
    %122 = tpu.strided_load %arg4[%c168, %c0_69] {strides = array<i32: 2, 1>} : memref<1064x16xf32, #tpu.memory_space<vmem>>, vector<8x16xf32>
    %c169 = arith.constant 169 : index
    %c0_70 = arith.constant 0 : index
    %123 = tpu.strided_load %arg4[%c169, %c0_70] {strides = array<i32: 2, 1>} : memref<1064x16xf32, #tpu.memory_space<vmem>>, vector<8x16xf32>
    %124 = arith.maximumf %122, %123 : vector<8x16xf32>
    %c186 = arith.constant 186 : index
    %c0_71 = arith.constant 0 : index
    %125 = tpu.strided_load %arg4[%c186, %c0_71] {strides = array<i32: 2, 1>} : memref<1064x16xf32, #tpu.memory_space<vmem>>, vector<8x16xf32>
    %c187 = arith.constant 187 : index
    %c0_72 = arith.constant 0 : index
    %126 = tpu.strided_load %arg4[%c187, %c0_72] {strides = array<i32: 2, 1>} : memref<1064x16xf32, #tpu.memory_space<vmem>>, vector<8x16xf32>
    %127 = arith.maximumf %125, %126 : vector<8x16xf32>
    %128 = arith.maximumf %124, %127 : vector<8x16xf32>
    %c707 = arith.constant 707 : index
    %c0_73 = arith.constant 0 : index
    %129 = vector.load %arg4[%c707, %c0_73] : memref<1064x16xf32, #tpu.memory_space<vmem>>, vector<8x16xf32>
    tpu.vector_store %arg4[%c707, %c0_73], %128 {strides = array<i32>} : memref<1064x16xf32, #tpu.memory_space<vmem>>, vector<8x16xf32>,
    %c204 = arith.constant 204 : index
    %c0_74 = arith.constant 0 : index
    %130 = tpu.strided_load %arg4[%c204, %c0_74] {strides = array<i32: 2, 1>} : memref<1064x16xf32, #tpu.memory_space<vmem>>, vector<8x16xf32>
    %c205 = arith.constant 205 : index
    %c0_75 = arith.constant 0 : index
    %131 = tpu.strided_load %arg4[%c205, %c0_75] {strides = array<i32: 2, 1>} : memref<1064x16xf32, #tpu.memory_space<vmem>>, vector<8x16xf32>
    %132 = arith.maximumf %130, %131 : vector<8x16xf32>
    %c222 = arith.constant 222 : index
    %c0_76 = arith.constant 0 : index
    %133 = tpu.strided_load %arg4[%c222, %c0_76] {strides = array<i32: 2, 1>} : memref<1064x16xf32, #tpu.memory_space<vmem>>, vector<8x16xf32>
    %c223 = arith.constant 223 : index
    %c0_77 = arith.constant 0 : index
    %134 = tpu.strided_load %arg4[%c223, %c0_77] {strides = array<i32: 2, 1>} : memref<1064x16xf32, #tpu.memory_space<vmem>>, vector<8x16xf32>
    %135 = arith.maximumf %133, %134 : vector<8x16xf32>
    %136 = arith.maximumf %132, %135 : vector<8x16xf32>
    %c717 = arith.constant 717 : index
    %c0_78 = arith.constant 0 : index
    %137 = vector.load %arg4[%c717, %c0_78] : memref<1064x16xf32, #tpu.memory_space<vmem>>, vector<8x16xf32>
    tpu.vector_store %arg4[%c717, %c0_78], %136 {strides = array<i32>} : memref<1064x16xf32, #tpu.memory_space<vmem>>, vector<8x16xf32>,
    %c240 = arith.constant 240 : index
    %c0_79 = arith.constant 0 : index
    %138 = tpu.strided_load %arg4[%c240, %c0_79] {strides = array<i32: 2, 1>} : memref<1064x16xf32, #tpu.memory_space<vmem>>, vector<8x16xf32>
    %c241 = arith.constant 241 : index
    %c0_80 = arith.constant 0 : index
    %139 = tpu.strided_load %arg4[%c241, %c0_80] {strides = array<i32: 2, 1>} : memref<1064x16xf32, #tpu.memory_space<vmem>>, vector<8x16xf32>
    %140 = arith.maximumf %138, %139 : vector<8x16xf32>
    %c258 = arith.constant 258 : index
    %c0_81 = arith.constant 0 : index
    %141 = tpu.strided_load %arg4[%c258, %c0_81] {strides = array<i32: 2, 1>} : memref<1064x16xf32, #tpu.memory_space<vmem>>, vector<8x16xf32>
    %c259 = arith.constant 259 : index
    %c0_82 = arith.constant 0 : index
    %142 = tpu.strided_load %arg4[%c259, %c0_82] {strides = array<i32: 2, 1>} : memref<1064x16xf32, #tpu.memory_space<vmem>>, vector<8x16xf32>
    %143 = arith.maximumf %141, %142 : vector<8x16xf32>
    %144 = arith.maximumf %140, %143 : vector<8x16xf32>
    %c727 = arith.constant 727 : index
    %c0_83 = arith.constant 0 : index
    %145 = vector.load %arg4[%c727, %c0_83] : memref<1064x16xf32, #tpu.memory_space<vmem>>, vector<8x16xf32>
    tpu.vector_store %arg4[%c727, %c0_83], %144 {strides = array<i32>} : memref<1064x16xf32, #tpu.memory_space<vmem>>, vector<8x16xf32>,
    %c276 = arith.constant 276 : index
    %c0_84 = arith.constant 0 : index
    %146 = tpu.strided_load %arg4[%c276, %c0_84] {strides = array<i32: 2, 1>} : memref<1064x16xf32, #tpu.memory_space<vmem>>, vector<8x16xf32>
    %c277 = arith.constant 277 : index
    %c0_85 = arith.constant 0 : index
    %147 = tpu.strided_load %arg4[%c277, %c0_85] {strides = array<i32: 2, 1>} : memref<1064x16xf32, #tpu.memory_space<vmem>>, vector<8x16xf32>
    %148 = arith.maximumf %146, %147 : vector<8x16xf32>
    %c294 = arith.constant 294 : index
    %c0_86 = arith.constant 0 : index
    %149 = tpu.strided_load %arg4[%c294, %c0_86] {strides = array<i32: 2, 1>} : memref<1064x16xf32, #tpu.memory_space<vmem>>, vector<8x16xf32>
    %c295 = arith.constant 295 : index
    %c0_87 = arith.constant 0 : index
    %150 = tpu.strided_load %arg4[%c295, %c0_87] {strides = array<i32: 2, 1>} : memref<1064x16xf32, #tpu.memory_space<vmem>>, vector<8x16xf32>
    %151 = arith.maximumf %149, %150 : vector<8x16xf32>
    %152 = arith.maximumf %148, %151 : vector<8x16xf32>
    %c737 = arith.constant 737 : index
    %c0_88 = arith.constant 0 : index
    %153 = vector.load %arg4[%c737, %c0_88] : memref<1064x16xf32, #tpu.memory_space<vmem>>, vector<8x16xf32>
    tpu.vector_store %arg4[%c737, %c0_88], %152 {strides = array<i32>} : memref<1064x16xf32, #tpu.memory_space<vmem>>, vector<8x16xf32>,
    %c348 = arith.constant 348 : index
    %c0_89 = arith.constant 0 : index
    %154 = tpu.strided_load %arg4[%c348, %c0_89] {strides = array<i32: 2, 1>} : memref<1064x16xf32, #tpu.memory_space<vmem>>, vector<8x16xf32>
    %c349 = arith.constant 349 : index
    %c0_90 = arith.constant 0 : index
    %155 = tpu.strided_load %arg4[%c349, %c0_90] {strides = array<i32: 2, 1>} : memref<1064x16xf32, #tpu.memory_space<vmem>>, vector<8x16xf32>
    %156 = arith.maximumf %154, %155 : vector<8x16xf32>
    %c366 = arith.constant 366 : index
    %c0_91 = arith.constant 0 : index
    %157 = tpu.strided_load %arg4[%c366, %c0_91] {strides = array<i32: 2, 1>} : memref<1064x16xf32, #tpu.memory_space<vmem>>, vector<8x16xf32>
    %c367 = arith.constant 367 : index
    %c0_92 = arith.constant 0 : index
    %158 = tpu.strided_load %arg4[%c367, %c0_92] {strides = array<i32: 2, 1>} : memref<1064x16xf32, #tpu.memory_space<vmem>>, vector<8x16xf32>
    %159 = arith.maximumf %157, %158 : vector<8x16xf32>
    %160 = arith.maximumf %156, %159 : vector<8x16xf32>
    %c767 = arith.constant 767 : index
    %c0_93 = arith.constant 0 : index
    %161 = vector.load %arg4[%c767, %c0_93] : memref<1064x16xf32, #tpu.memory_space<vmem>>, vector<8x16xf32>
    tpu.vector_store %arg4[%c767, %c0_93], %160 {strides = array<i32>} : memref<1064x16xf32, #tpu.memory_space<vmem>>, vector<8x16xf32>,
    %c384 = arith.constant 384 : index
    %c0_94 = arith.constant 0 : index
    %162 = tpu.strided_load %arg4[%c384, %c0_94] {strides = array<i32: 2, 1>} : memref<1064x16xf32, #tpu.memory_space<vmem>>, vector<8x16xf32>
    %c385 = arith.constant 385 : index
    %c0_95 = arith.constant 0 : index
    %163 = tpu.strided_load %arg4[%c385, %c0_95] {strides = array<i32: 2, 1>} : memref<1064x16xf32, #tpu.memory_space<vmem>>, vector<8x16xf32>
    %164 = arith.maximumf %162, %163 : vector<8x16xf32>
    %c402 = arith.constant 402 : index
    %c0_96 = arith.constant 0 : index
    %165 = tpu.strided_load %arg4[%c402, %c0_96] {strides = array<i32: 2, 1>} : memref<1064x16xf32, #tpu.memory_space<vmem>>, vector<8x16xf32>
    %c403 = arith.constant 403 : index
    %c0_97 = arith.constant 0 : index
    %166 = tpu.strided_load %arg4[%c403, %c0_97] {strides = array<i32: 2, 1>} : memref<1064x16xf32, #tpu.memory_space<vmem>>, vector<8x16xf32>
    %167 = arith.maximumf %165, %166 : vector<8x16xf32>
    %168 = arith.maximumf %164, %167 : vector<8x16xf32>
    %c777 = arith.constant 777 : index
    %c0_98 = arith.constant 0 : index
    %169 = vector.load %arg4[%c777, %c0_98] : memref<1064x16xf32, #tpu.memory_space<vmem>>, vector<8x16xf32>
    tpu.vector_store %arg4[%c777, %c0_98], %168 {strides = array<i32>} : memref<1064x16xf32, #tpu.memory_space<vmem>>, vector<8x16xf32>,
    %c420 = arith.constant 420 : index
    %c0_99 = arith.constant 0 : index
    %170 = tpu.strided_load %arg4[%c420, %c0_99] {strides = array<i32: 2, 1>} : memref<1064x16xf32, #tpu.memory_space<vmem>>, vector<8x16xf32>
    %c421 = arith.constant 421 : index
    %c0_100 = arith.constant 0 : index
    %171 = tpu.strided_load %arg4[%c421, %c0_100] {strides = array<i32: 2, 1>} : memref<1064x16xf32, #tpu.memory_space<vmem>>, vector<8x16xf32>
    %172 = arith.maximumf %170, %171 : vector<8x16xf32>
    %c438 = arith.constant 438 : index
    %c0_101 = arith.constant 0 : index
    %173 = tpu.strided_load %arg4[%c438, %c0_101] {strides = array<i32: 2, 1>} : memref<1064x16xf32, #tpu.memory_space<vmem>>, vector<8x16xf32>
    %c439 = arith.constant 439 : index
    %c0_102 = arith.constant 0 : index
    %174 = tpu.strided_load %arg4[%c439, %c0_102] {strides = array<i32: 2, 1>} : memref<1064x16xf32, #tpu.memory_space<vmem>>, vector<8x16xf32>
    %175 = arith.maximumf %173, %174 : vector<8x16xf32>
    %176 = arith.maximumf %172, %175 : vector<8x16xf32>
    %c787 = arith.constant 787 : index
    %c0_103 = arith.constant 0 : index
    %177 = vector.load %arg4[%c787, %c0_103] : memref<1064x16xf32, #tpu.memory_space<vmem>>, vector<8x16xf32>
    tpu.vector_store %arg4[%c787, %c0_103], %176 {strides = array<i32>} : memref<1064x16xf32, #tpu.memory_space<vmem>>, vector<8x16xf32>,
    %c456 = arith.constant 456 : index
    %c0_104 = arith.constant 0 : index
    %178 = tpu.strided_load %arg4[%c456, %c0_104] {strides = array<i32: 2, 1>} : memref<1064x16xf32, #tpu.memory_space<vmem>>, vector<8x16xf32>
    %c457 = arith.constant 457 : index
    %c0_105 = arith.constant 0 : index
    %179 = tpu.strided_load %arg4[%c457, %c0_105] {strides = array<i32: 2, 1>} : memref<1064x16xf32, #tpu.memory_space<vmem>>, vector<8x16xf32>
    %180 = arith.maximumf %178, %179 : vector<8x16xf32>
    %c474 = arith.constant 474 : index
    %c0_106 = arith.constant 0 : index
    %181 = tpu.strided_load %arg4[%c474, %c0_106] {strides = array<i32: 2, 1>} : memref<1064x16xf32, #tpu.memory_space<vmem>>, vector<8x16xf32>
    %c475 = arith.constant 475 : index
    %c0_107 = arith.constant 0 : index
    %182 = tpu.strided_load %arg4[%c475, %c0_107] {strides = array<i32: 2, 1>} : memref<1064x16xf32, #tpu.memory_space<vmem>>, vector<8x16xf32>
    %183 = arith.maximumf %181, %182 : vector<8x16xf32>
    %184 = arith.maximumf %180, %183 : vector<8x16xf32>
    %c797 = arith.constant 797 : index
    %c0_108 = arith.constant 0 : index
    %185 = vector.load %arg4[%c797, %c0_108] : memref<1064x16xf32, #tpu.memory_space<vmem>>, vector<8x16xf32>
    tpu.vector_store %arg4[%c797, %c0_108], %184 {strides = array<i32>} : memref<1064x16xf32, #tpu.memory_space<vmem>>, vector<8x16xf32>,
    %c492 = arith.constant 492 : index
    %c0_109 = arith.constant 0 : index
    %186 = tpu.strided_load %arg4[%c492, %c0_109] {strides = array<i32: 2, 1>} : memref<1064x16xf32, #tpu.memory_space<vmem>>, vector<8x16xf32>
    %c493 = arith.constant 493 : index
    %c0_110 = arith.constant 0 : index
    %187 = tpu.strided_load %arg4[%c493, %c0_110] {strides = array<i32: 2, 1>} : memref<1064x16xf32, #tpu.memory_space<vmem>>, vector<8x16xf32>
    %188 = arith.maximumf %186, %187 : vector<8x16xf32>
    %c510 = arith.constant 510 : index
    %c0_111 = arith.constant 0 : index
    %189 = tpu.strided_load %arg4[%c510, %c0_111] {strides = array<i32: 2, 1>} : memref<1064x16xf32, #tpu.memory_space<vmem>>, vector<8x16xf32>
    %c511 = arith.constant 511 : index
    %c0_112 = arith.constant 0 : index
    %190 = tpu.strided_load %arg4[%c511, %c0_112] {strides = array<i32: 2, 1>} : memref<1064x16xf32, #tpu.memory_space<vmem>>, vector<8x16xf32>
    %191 = arith.maximumf %189, %190 : vector<8x16xf32>
    %192 = arith.maximumf %188, %191 : vector<8x16xf32>
    %c807 = arith.constant 807 : index
    %c0_113 = arith.constant 0 : index
    %193 = vector.load %arg4[%c807, %c0_113] : memref<1064x16xf32, #tpu.memory_space<vmem>>, vector<8x16xf32>
    tpu.vector_store %arg4[%c807, %c0_113], %192 {strides = array<i32>} : memref<1064x16xf32, #tpu.memory_space<vmem>>, vector<8x16xf32>,
    %c528 = arith.constant 528 : index
    %c0_114 = arith.constant 0 : index
    %194 = tpu.strided_load %arg4[%c528, %c0_114] {strides = array<i32: 2, 1>} : memref<1064x16xf32, #tpu.memory_space<vmem>>, vector<8x16xf32>
    %c529 = arith.constant 529 : index
    %c0_115 = arith.constant 0 : index
    %195 = tpu.strided_load %arg4[%c529, %c0_115] {strides = array<i32: 2, 1>} : memref<1064x16xf32, #tpu.memory_space<vmem>>, vector<8x16xf32>
    %196 = arith.maximumf %194, %195 : vector<8x16xf32>
    %c546 = arith.constant 546 : index
    %c0_116 = arith.constant 0 : index
    %197 = tpu.strided_load %arg4[%c546, %c0_116] {strides = array<i32: 2, 1>} : memref<1064x16xf32, #tpu.memory_space<vmem>>, vector<8x16xf32>
    %c547 = arith.constant 547 : index
    %c0_117 = arith.constant 0 : index
    %198 = tpu.strided_load %arg4[%c547, %c0_117] {strides = array<i32: 2, 1>} : memref<1064x16xf32, #tpu.memory_space<vmem>>, vector<8x16xf32>
    %199 = arith.maximumf %197, %198 : vector<8x16xf32>
    %200 = arith.maximumf %196, %199 : vector<8x16xf32>
    %c817 = arith.constant 817 : index
    %c0_118 = arith.constant 0 : index
    %201 = vector.load %arg4[%c817, %c0_118] : memref<1064x16xf32, #tpu.memory_space<vmem>>, vector<8x16xf32>
    tpu.vector_store %arg4[%c817, %c0_118], %200 {strides = array<i32>} : memref<1064x16xf32, #tpu.memory_space<vmem>>, vector<8x16xf32>,
    %c564 = arith.constant 564 : index
    %c0_119 = arith.constant 0 : index
    %202 = tpu.strided_load %arg4[%c564, %c0_119] {strides = array<i32: 2, 1>} : memref<1064x16xf32, #tpu.memory_space<vmem>>, vector<8x16xf32>
    %c565 = arith.constant 565 : index
    %c0_120 = arith.constant 0 : index
    %203 = tpu.strided_load %arg4[%c565, %c0_120] {strides = array<i32: 2, 1>} : memref<1064x16xf32, #tpu.memory_space<vmem>>, vector<8x16xf32>
    %204 = arith.maximumf %202, %203 : vector<8x16xf32>
    %c582 = arith.constant 582 : index
    %c0_121 = arith.constant 0 : index
    %205 = tpu.strided_load %arg4[%c582, %c0_121] {strides = array<i32: 2, 1>} : memref<1064x16xf32, #tpu.memory_space<vmem>>, vector<8x16xf32>
    %c583 = arith.constant 583 : index
    %c0_122 = arith.constant 0 : index
    %206 = tpu.strided_load %arg4[%c583, %c0_122] {strides = array<i32: 2, 1>} : memref<1064x16xf32, #tpu.memory_space<vmem>>, vector<8x16xf32>
    %207 = arith.maximumf %205, %206 : vector<8x16xf32>
    %208 = arith.maximumf %204, %207 : vector<8x16xf32>
    %c827 = arith.constant 827 : index
    %c0_123 = arith.constant 0 : index
    %209 = vector.load %arg4[%c827, %c0_123] : memref<1064x16xf32, #tpu.memory_space<vmem>>, vector<8x16xf32>
    tpu.vector_store %arg4[%c827, %c0_123], %208 {strides = array<i32>} : memref<1064x16xf32, #tpu.memory_space<vmem>>, vector<8x16xf32>,
    %c600 = arith.constant 600 : index
    %c0_124 = arith.constant 0 : index
    %210 = tpu.strided_load %arg4[%c600, %c0_124] {strides = array<i32: 2, 1>} : memref<1064x16xf32, #tpu.memory_space<vmem>>, vector<8x16xf32>
    %c601 = arith.constant 601 : index
    %c0_125 = arith.constant 0 : index
    %211 = tpu.strided_load %arg4[%c601, %c0_125] {strides = array<i32: 2, 1>} : memref<1064x16xf32, #tpu.memory_space<vmem>>, vector<8x16xf32>
    %212 = arith.maximumf %210, %211 : vector<8x16xf32>
    %c618 = arith.constant 618 : index
    %c0_126 = arith.constant 0 : index
    %213 = tpu.strided_load %arg4[%c618, %c0_126] {strides = array<i32: 2, 1>} : memref<1064x16xf32, #tpu.memory_space<vmem>>, vector<8x16xf32>
    %c619 = arith.constant 619 : index
    %c0_127 = arith.constant 0 : index
    %214 = tpu.strided_load %arg4[%c619, %c0_127] {strides = array<i32: 2, 1>} : memref<1064x16xf32, #tpu.memory_space<vmem>>, vector<8x16xf32>
    %215 = arith.maximumf %213, %214 : vector<8x16xf32>
    %216 = arith.maximumf %212, %215 : vector<8x16xf32>
    %c837 = arith.constant 837 : index
    %c0_128 = arith.constant 0 : index
    %217 = vector.load %arg4[%c837, %c0_128] : memref<1064x16xf32, #tpu.memory_space<vmem>>, vector<8x16xf32>
    tpu.vector_store %arg4[%c837, %c0_128], %216 {strides = array<i32>} : memref<1064x16xf32, #tpu.memory_space<vmem>>, vector<8x16xf32>,
    %218 = tpu.iota {dimensions = array<i32: 0>} : vector<178x1xi32>
    %219 = arith.sitofp %218 : vector<178x1xi32> to vector<178x1xf32>
    %cst_129 = arith.constant 1.100000e+01 : f32
    %220 = vector.broadcast %cst_129 : f32 to vector<178x1xf32>
    %221 = arith.addf %219, %220 : vector<178x1xf32>
    %cst_130 = arith.constant 5.000000e-01 : f32
    %222 = vector.broadcast %cst_130 : f32 to vector<178x1xf32>
    %223 = arith.addf %221, %222 : vector<178x1xf32>
    %cst_131 = arith.constant 1.000000e+02 : f32
    %224 = vector.broadcast %cst_131 : f32 to vector<178x1xf32>
    %225 = arith.divf %223, %224 : vector<178x1xf32>
    %226 = math.floor %225 : vector<178x1xf32>
    %cst_132 = arith.constant 1.000000e+02 : f32
    %227 = vector.broadcast %cst_132 : f32 to vector<178x1xf32>
    %228 = arith.mulf %226, %227 : vector<178x1xf32>
    %229 = arith.subf %221, %228 : vector<178x1xf32>
    %cst_133 = arith.constant 5.000000e-01 : f32
    %230 = vector.broadcast %cst_133 : f32 to vector<178x1xf32>
    %231 = arith.addf %229, %230 : vector<178x1xf32>
    %cst_134 = arith.constant 1.000000e+01 : f32
    %232 = vector.broadcast %cst_134 : f32 to vector<178x1xf32>
    %233 = arith.divf %231, %232 : vector<178x1xf32>
    %234 = math.floor %233 : vector<178x1xf32>
    %cst_135 = arith.constant 1.000000e+01 : f32
    %235 = vector.broadcast %cst_135 : f32 to vector<178x1xf32>
    %236 = arith.mulf %234, %235 : vector<178x1xf32>
    %237 = arith.subf %229, %236 : vector<178x1xf32>
    %cst_136 = arith.constant 1.000000e+01 : f32
    %238 = vector.broadcast %cst_136 : f32 to vector<178x1xf32>
    %239 = arith.cmpf oge, %229, %238 : vector<178x1xf32>
    %cst_137 = arith.constant 9.000000e+01 : f32
    %240 = vector.broadcast %cst_137 : f32 to vector<178x1xf32>
    %241 = arith.cmpf olt, %229, %240 : vector<178x1xf32>
    %242 = arith.andi %239, %241 : vector<178x1xi1>
    %cst_138 = arith.constant 1.000000e+00 : f32
    %243 = vector.broadcast %cst_138 : f32 to vector<178x1xf32>
    %244 = arith.cmpf oge, %237, %243 : vector<178x1xf32>
    %245 = arith.andi %242, %244 : vector<178x1xi1>
    %cst_139 = arith.constant 8.000000e+00 : f32
    %246 = vector.broadcast %cst_139 : f32 to vector<178x1xf32>
    %247 = arith.cmpf ole, %237, %246 : vector<178x1xf32>
    %248 = arith.andi %245, %247 : vector<178x1xi1>
    %249 = arith.extui %248 : vector<178x1xi1> to vector<178x1xi32>
    %250 = arith.sitofp %249 : vector<178x1xi32> to vector<178x1xf32>
    %c656_140 = arith.constant 656 : index
    %c0_141 = arith.constant 0 : index
    %251 = vector.load %arg4[%c656_140, %c0_141] : memref<1064x16xf32, #tpu.memory_space<vmem>>, vector<178x16xf32>
    %c657 = arith.constant 657 : index
    %c0_142 = arith.constant 0 : index
    %252 = vector.load %arg4[%c657, %c0_142] : memref<1064x16xf32, #tpu.memory_space<vmem>>, vector<178x16xf32>
    %c658 = arith.constant 658 : index
    %c0_143 = arith.constant 0 : index
    %253 = vector.load %arg4[%c658, %c0_143] : memref<1064x16xf32, #tpu.memory_space<vmem>>, vector<178x16xf32>
    %c666 = arith.constant 666 : index
    %c0_144 = arith.constant 0 : index
    %254 = vector.load %arg4[%c666, %c0_144] : memref<1064x16xf32, #tpu.memory_space<vmem>>, vector<178x16xf32>
    %c667_145 = arith.constant 667 : index
    %c0_146 = arith.constant 0 : index
    %255 = vector.load %arg4[%c667_145, %c0_146] : memref<1064x16xf32, #tpu.memory_space<vmem>>, vector<178x16xf32>
    %c668 = arith.constant 668 : index
    %c0_147 = arith.constant 0 : index
    %256 = vector.load %arg4[%c668, %c0_147] : memref<1064x16xf32, #tpu.memory_space<vmem>>, vector<178x16xf32>
    %c676 = arith.constant 676 : index
    %c0_148 = arith.constant 0 : index
    %257 = vector.load %arg4[%c676, %c0_148] : memref<1064x16xf32, #tpu.memory_space<vmem>>, vector<178x16xf32>
    %c677_149 = arith.constant 677 : index
    %c0_150 = arith.constant 0 : index
    %258 = vector.load %arg4[%c677_149, %c0_150] : memref<1064x16xf32, #tpu.memory_space<vmem>>, vector<178x16xf32>
    %c678 = arith.constant 678 : index
    %c0_151 = arith.constant 0 : index
    %259 = vector.load %arg4[%c678, %c0_151] : memref<1064x16xf32, #tpu.memory_space<vmem>>, vector<178x16xf32>
    %260 = tpu.concatenate %251, %252, %253, %254, %255, %256, %257, %258, %259 in 1 : vector<178x16xf32>, vector<178x16xf32>, vector<178x16xf32>, vector<178x16xf32>, vector<178x16xf32>, vector<178x16xf32>, vector<178x16xf32>, vector<178x16xf32>, vector<178x16xf32> -> vector<178x144xf32>
    %cst_152 = arith.constant dense<0.000000e+00> : vector<178x4xf32>
    %261 = tpu.matmul %260, %1, %cst_152 {dimension_numbers = #tpu.dot_dimension_numbers<[1], [0], [0], [1], [0, 0, 1, 1], [], []>} : vector<178x144xf32>, vector<144x4xf32>, vector<178x4xf32> -> vector<178x4xf32>
    %262 = vector.broadcast %7 : vector<1x4xf32> to vector<178x4xf32>
    %263 = arith.addf %261, %262 : vector<178x4xf32>
    %cst_153 = arith.constant 0.000000e+00 : f32
    %cst_154 = arith.constant 6.000000e+00 : f32
    %264 = vector.broadcast %cst_153 : f32 to vector<178x4xf32>
    %265 = arith.maximumf %264, %263 : vector<178x4xf32>
    %266 = vector.broadcast %cst_154 : f32 to vector<178x4xf32>
    %267 = arith.minimumf %266, %265 : vector<178x4xf32>
    %268 = vector.broadcast %250 : vector<178x1xf32> to vector<178x4xf32>
    %269 = arith.mulf %267, %268 : vector<178x4xf32>
    %cst_155 = arith.constant dense<0.000000e+00> : vector<4xf32>
    %270 = vector.multi_reduction <add>, %269, %cst_155 [0] : vector<178x4xf32> to vector<4xf32>
    %271 = vector.shape_cast %270 : vector<4xf32> to vector<1x4xf32>
    %cst_156 = arith.constant 7.812500e-03 : f32
    %272 = vector.broadcast %cst_156 : f32 to vector<1x4xf32>
    %273 = arith.mulf %271, %272 : vector<1x4xf32>
    %274 = arith.mulf %269, %269 : vector<178x4xf32>
    %cst_157 = arith.constant dense<0.000000e+00> : vector<4xf32>
    %275 = vector.multi_reduction <add>, %274, %cst_157 [0] : vector<178x4xf32> to vector<4xf32>
    %276 = vector.shape_cast %275 : vector<4xf32> to vector<1x4xf32>
    %cst_158 = arith.constant 7.812500e-03 : f32
    %277 = vector.broadcast %cst_158 : f32 to vector<1x4xf32>
    %278 = arith.mulf %276, %277 : vector<1x4xf32>
    %279 = arith.mulf %273, %273 : vector<1x4xf32>
    %280 = arith.subf %278, %279 : vector<1x4xf32>
    %cst_159 = arith.constant 9.99999974E-6 : f32
    %281 = vector.broadcast %cst_159 : f32 to vector<1x4xf32>
    %282 = arith.addf %280, %281 : vector<1x4xf32>
    %283 = math.rsqrt %282 : vector<1x4xf32>
    %284 = arith.mulf %8, %283 : vector<1x4xf32>
    %285 = vector.broadcast %284 : vector<1x4xf32> to vector<178x4xf32>
    %286 = arith.mulf %269, %285 : vector<178x4xf32>
    %287 = arith.mulf %273, %284 : vector<1x4xf32>
    %288 = arith.subf %9, %287 : vector<1x4xf32>
    %289 = vector.broadcast %288 : vector<1x4xf32> to vector<178x4xf32>
    %290 = arith.addf %286, %289 : vector<178x4xf32>
    %c872 = arith.constant 872 : index
    %c0_160 = arith.constant 0 : index
    %291 = vector.load %arg4[%c872, %c0_160] : memref<1064x16xf32, #tpu.memory_space<vmem>>, vector<178x4xf32>
    tpu.vector_store %arg4[%c872, %c0_160], %290 {strides = array<i32>} : memref<1064x16xf32, #tpu.memory_space<vmem>>, vector<178x4xf32>,
    %c872_161 = arith.constant 872 : index
    %c0_162 = arith.constant 0 : index
    %292 = tpu.strided_load %arg4[%c872_161, %c0_162] {strides = array<i32: 2, 1>} : memref<1064x16xf32, #tpu.memory_space<vmem>>, vector<4x4xf32>
    %c873 = arith.constant 873 : index
    %c0_163 = arith.constant 0 : index
    %293 = tpu.strided_load %arg4[%c873, %c0_163] {strides = array<i32: 2, 1>} : memref<1064x16xf32, #tpu.memory_space<vmem>>, vector<4x4xf32>
    %294 = arith.maximumf %292, %293 : vector<4x4xf32>
    %c882 = arith.constant 882 : index
    %c0_164 = arith.constant 0 : index
    %295 = tpu.strided_load %arg4[%c882, %c0_164] {strides = array<i32: 2, 1>} : memref<1064x16xf32, #tpu.memory_space<vmem>>, vector<4x4xf32>
    %c883 = arith.constant 883 : index
    %c0_165 = arith.constant 0 : index
    %296 = tpu.strided_load %arg4[%c883, %c0_165] {strides = array<i32: 2, 1>} : memref<1064x16xf32, #tpu.memory_space<vmem>>, vector<4x4xf32>
    %297 = arith.maximumf %295, %296 : vector<4x4xf32>
    %298 = arith.maximumf %294, %297 : vector<4x4xf32>
    %c892 = arith.constant 892 : index
    %c0_166 = arith.constant 0 : index
    %299 = tpu.strided_load %arg4[%c892, %c0_166] {strides = array<i32: 2, 1>} : memref<1064x16xf32, #tpu.memory_space<vmem>>, vector<4x4xf32>
    %c893 = arith.constant 893 : index
    %c0_167 = arith.constant 0 : index
    %300 = tpu.strided_load %arg4[%c893, %c0_167] {strides = array<i32: 2, 1>} : memref<1064x16xf32, #tpu.memory_space<vmem>>, vector<4x4xf32>
    %301 = arith.maximumf %299, %300 : vector<4x4xf32>
    %c902 = arith.constant 902 : index
    %c0_168 = arith.constant 0 : index
    %302 = tpu.strided_load %arg4[%c902, %c0_168] {strides = array<i32: 2, 1>} : memref<1064x16xf32, #tpu.memory_space<vmem>>, vector<4x4xf32>
    %c903 = arith.constant 903 : index
    %c0_169 = arith.constant 0 : index
    %303 = tpu.strided_load %arg4[%c903, %c0_169] {strides = array<i32: 2, 1>} : memref<1064x16xf32, #tpu.memory_space<vmem>>, vector<4x4xf32>
    %304 = arith.maximumf %302, %303 : vector<4x4xf32>
    %305 = arith.maximumf %301, %304 : vector<4x4xf32>
    %c912 = arith.constant 912 : index
    %c0_170 = arith.constant 0 : index
    %306 = tpu.strided_load %arg4[%c912, %c0_170] {strides = array<i32: 2, 1>} : memref<1064x16xf32, #tpu.memory_space<vmem>>, vector<4x4xf32>
    %c913 = arith.constant 913 : index
    %c0_171 = arith.constant 0 : index
    %307 = tpu.strided_load %arg4[%c913, %c0_171] {strides = array<i32: 2, 1>} : memref<1064x16xf32, #tpu.memory_space<vmem>>, vector<4x4xf32>
    %308 = arith.maximumf %306, %307 : vector<4x4xf32>
    %c922 = arith.constant 922 : index
    %c0_172 = arith.constant 0 : index
    %309 = tpu.strided_load %arg4[%c922, %c0_172] {strides = array<i32: 2, 1>} : memref<1064x16xf32, #tpu.memory_space<vmem>>, vector<4x4xf32>
    %c923 = arith.constant 923 : index
    %c0_173 = arith.constant 0 : index
    %310 = tpu.strided_load %arg4[%c923, %c0_173] {strides = array<i32: 2, 1>} : memref<1064x16xf32, #tpu.memory_space<vmem>>, vector<4x4xf32>
    %311 = arith.maximumf %309, %310 : vector<4x4xf32>
    %312 = arith.maximumf %308, %311 : vector<4x4xf32>
    %c932 = arith.constant 932 : index
    %c0_174 = arith.constant 0 : index
    %313 = tpu.strided_load %arg4[%c932, %c0_174] {strides = array<i32: 2, 1>} : memref<1064x16xf32, #tpu.memory_space<vmem>>, vector<4x4xf32>
    %c933 = arith.constant 933 : index
    %c0_175 = arith.constant 0 : index
    %314 = tpu.strided_load %arg4[%c933, %c0_175] {strides = array<i32: 2, 1>} : memref<1064x16xf32, #tpu.memory_space<vmem>>, vector<4x4xf32>
    %315 = arith.maximumf %313, %314 : vector<4x4xf32>
    %c942 = arith.constant 942 : index
    %c0_176 = arith.constant 0 : index
    %316 = tpu.strided_load %arg4[%c942, %c0_176] {strides = array<i32: 2, 1>} : memref<1064x16xf32, #tpu.memory_space<vmem>>, vector<4x4xf32>
    %c943 = arith.constant 943 : index
    %c0_177 = arith.constant 0 : index
    %317 = tpu.strided_load %arg4[%c943, %c0_177] {strides = array<i32: 2, 1>} : memref<1064x16xf32, #tpu.memory_space<vmem>>, vector<4x4xf32>
    %318 = arith.maximumf %316, %317 : vector<4x4xf32>
    %319 = arith.maximumf %315, %318 : vector<4x4xf32>
    %c972 = arith.constant 972 : index
    %c0_178 = arith.constant 0 : index
    %320 = tpu.strided_load %arg4[%c972, %c0_178] {strides = array<i32: 2, 1>} : memref<1064x16xf32, #tpu.memory_space<vmem>>, vector<4x4xf32>
    %c973 = arith.constant 973 : index
    %c0_179 = arith.constant 0 : index
    %321 = tpu.strided_load %arg4[%c973, %c0_179] {strides = array<i32: 2, 1>} : memref<1064x16xf32, #tpu.memory_space<vmem>>, vector<4x4xf32>
    %322 = arith.maximumf %320, %321 : vector<4x4xf32>
    %c982 = arith.constant 982 : index
    %c0_180 = arith.constant 0 : index
    %323 = tpu.strided_load %arg4[%c982, %c0_180] {strides = array<i32: 2, 1>} : memref<1064x16xf32, #tpu.memory_space<vmem>>, vector<4x4xf32>
    %c983 = arith.constant 983 : index
    %c0_181 = arith.constant 0 : index
    %324 = tpu.strided_load %arg4[%c983, %c0_181] {strides = array<i32: 2, 1>} : memref<1064x16xf32, #tpu.memory_space<vmem>>, vector<4x4xf32>
    %325 = arith.maximumf %323, %324 : vector<4x4xf32>
    %326 = arith.maximumf %322, %325 : vector<4x4xf32>
    %c992 = arith.constant 992 : index
    %c0_182 = arith.constant 0 : index
    %327 = tpu.strided_load %arg4[%c992, %c0_182] {strides = array<i32: 2, 1>} : memref<1064x16xf32, #tpu.memory_space<vmem>>, vector<4x4xf32>
    %c993 = arith.constant 993 : index
    %c0_183 = arith.constant 0 : index
    %328 = tpu.strided_load %arg4[%c993, %c0_183] {strides = array<i32: 2, 1>} : memref<1064x16xf32, #tpu.memory_space<vmem>>, vector<4x4xf32>
    %329 = arith.maximumf %327, %328 : vector<4x4xf32>
    %c1002 = arith.constant 1002 : index
    %c0_184 = arith.constant 0 : index
    %330 = tpu.strided_load %arg4[%c1002, %c0_184] {strides = array<i32: 2, 1>} : memref<1064x16xf32, #tpu.memory_space<vmem>>, vector<4x4xf32>
    %c1003 = arith.constant 1003 : index
    %c0_185 = arith.constant 0 : index
    %331 = tpu.strided_load %arg4[%c1003, %c0_185] {strides = array<i32: 2, 1>} : memref<1064x16xf32, #tpu.memory_space<vmem>>, vector<4x4xf32>
    %332 = arith.maximumf %330, %331 : vector<4x4xf32>
    %333 = arith.maximumf %329, %332 : vector<4x4xf32>
    %c1012 = arith.constant 1012 : index
    %c0_186 = arith.constant 0 : index
    %334 = tpu.strided_load %arg4[%c1012, %c0_186] {strides = array<i32: 2, 1>} : memref<1064x16xf32, #tpu.memory_space<vmem>>, vector<4x4xf32>
    %c1013 = arith.constant 1013 : index
    %c0_187 = arith.constant 0 : index
    %335 = tpu.strided_load %arg4[%c1013, %c0_187] {strides = array<i32: 2, 1>} : memref<1064x16xf32, #tpu.memory_space<vmem>>, vector<4x4xf32>
    %336 = arith.maximumf %334, %335 : vector<4x4xf32>
    %c1022 = arith.constant 1022 : index
    %c0_188 = arith.constant 0 : index
    %337 = tpu.strided_load %arg4[%c1022, %c0_188] {strides = array<i32: 2, 1>} : memref<1064x16xf32, #tpu.memory_space<vmem>>, vector<4x4xf32>
    %c1023 = arith.constant 1023 : index
    %c0_189 = arith.constant 0 : index
    %338 = tpu.strided_load %arg4[%c1023, %c0_189] {strides = array<i32: 2, 1>} : memref<1064x16xf32, #tpu.memory_space<vmem>>, vector<4x4xf32>
    %339 = arith.maximumf %337, %338 : vector<4x4xf32>
    %340 = arith.maximumf %336, %339 : vector<4x4xf32>
    %c1032 = arith.constant 1032 : index
    %c0_190 = arith.constant 0 : index
    %341 = tpu.strided_load %arg4[%c1032, %c0_190] {strides = array<i32: 2, 1>} : memref<1064x16xf32, #tpu.memory_space<vmem>>, vector<4x4xf32>
    %c1033 = arith.constant 1033 : index
    %c0_191 = arith.constant 0 : index
    %342 = tpu.strided_load %arg4[%c1033, %c0_191] {strides = array<i32: 2, 1>} : memref<1064x16xf32, #tpu.memory_space<vmem>>, vector<4x4xf32>
    %343 = arith.maximumf %341, %342 : vector<4x4xf32>
    %c1042 = arith.constant 1042 : index
    %c0_192 = arith.constant 0 : index
    %344 = tpu.strided_load %arg4[%c1042, %c0_192] {strides = array<i32: 2, 1>} : memref<1064x16xf32, #tpu.memory_space<vmem>>, vector<4x4xf32>
    %c1043 = arith.constant 1043 : index
    %c0_193 = arith.constant 0 : index
    %345 = tpu.strided_load %arg4[%c1043, %c0_193] {strides = array<i32: 2, 1>} : memref<1064x16xf32, #tpu.memory_space<vmem>>, vector<4x4xf32>
    %346 = arith.maximumf %344, %345 : vector<4x4xf32>
    %347 = arith.maximumf %343, %346 : vector<4x4xf32>
    %348 = tpu.concatenate %298, %305, %312, %319, %326, %333, %340, %347 in 0 : vector<4x4xf32>, vector<4x4xf32>, vector<4x4xf32>, vector<4x4xf32>, vector<4x4xf32>, vector<4x4xf32>, vector<4x4xf32>, vector<4x4xf32> -> vector<32x4xf32>
    %cst_194 = arith.constant dense<0.000000e+00> : vector<32x64xf32>
    %349 = tpu.matmul %348, %2, %cst_194 {dimension_numbers = #tpu.dot_dimension_numbers<[1], [0], [0], [1], [0, 0, 1, 1], [], []>} : vector<32x4xf32>, vector<4x64xf32>, vector<32x64xf32> -> vector<32x64xf32>
    %350 = vector.broadcast %10 : vector<1x64xf32> to vector<32x64xf32>
    %351 = arith.addf %349, %350 : vector<32x64xf32>
    %cst_195 = arith.constant 0.000000e+00 : f32
    %cst_196 = arith.constant 6.000000e+00 : f32
    %352 = vector.broadcast %cst_195 : f32 to vector<32x64xf32>
    %353 = arith.maximumf %352, %351 : vector<32x64xf32>
    %354 = vector.broadcast %cst_196 : f32 to vector<32x64xf32>
    %355 = arith.minimumf %354, %353 : vector<32x64xf32>
    %cst_197 = arith.constant dense<0.000000e+00> : vector<64xf32>
    %356 = vector.multi_reduction <add>, %355, %cst_197 [0] : vector<32x64xf32> to vector<64xf32>
    %357 = vector.shape_cast %356 : vector<64xf32> to vector<1x64xf32>
    %358 = arith.mulf %355, %355 : vector<32x64xf32>
    %cst_198 = arith.constant dense<0.000000e+00> : vector<64xf32>
    %359 = vector.multi_reduction <add>, %358, %cst_198 [0] : vector<32x64xf32> to vector<64xf32>
    %360 = vector.shape_cast %359 : vector<64xf32> to vector<1x64xf32>
    %361 = vector.extract_strided_slice %357 {offsets = [0, 0], sizes = [1, 16], strides = [1, 1]} : vector<1x64xf32> to vector<1x16xf32>
    %362 = vector.extract_strided_slice %357 {offsets = [0, 16], sizes = [1, 16], strides = [1, 1]} : vector<1x64xf32> to vector<1x16xf32>
    %363 = arith.addf %361, %362 : vector<1x16xf32>
    %364 = vector.extract_strided_slice %357 {offsets = [0, 32], sizes = [1, 16], strides = [1, 1]} : vector<1x64xf32> to vector<1x16xf32>
    %365 = arith.addf %363, %364 : vector<1x16xf32>
    %366 = vector.extract_strided_slice %357 {offsets = [0, 48], sizes = [1, 16], strides = [1, 1]} : vector<1x64xf32> to vector<1x16xf32>
    %367 = arith.addf %365, %366 : vector<1x16xf32>
    %368 = vector.extract_strided_slice %360 {offsets = [0, 0], sizes = [1, 16], strides = [1, 1]} : vector<1x64xf32> to vector<1x16xf32>
    %369 = vector.extract_strided_slice %360 {offsets = [0, 16], sizes = [1, 16], strides = [1, 1]} : vector<1x64xf32> to vector<1x16xf32>
    %370 = arith.addf %368, %369 : vector<1x16xf32>
    %371 = vector.extract_strided_slice %360 {offsets = [0, 32], sizes = [1, 16], strides = [1, 1]} : vector<1x64xf32> to vector<1x16xf32>
    %372 = arith.addf %370, %371 : vector<1x16xf32>
    %373 = vector.extract_strided_slice %360 {offsets = [0, 48], sizes = [1, 16], strides = [1, 1]} : vector<1x64xf32> to vector<1x16xf32>
    %374 = arith.addf %372, %373 : vector<1x16xf32>
    %cst_199 = arith.constant 7.812500e-03 : f32
    %375 = vector.broadcast %cst_199 : f32 to vector<1x16xf32>
    %376 = arith.mulf %367, %375 : vector<1x16xf32>
    %cst_200 = arith.constant 7.812500e-03 : f32
    %377 = vector.broadcast %cst_200 : f32 to vector<1x16xf32>
    %378 = arith.mulf %374, %377 : vector<1x16xf32>
    %379 = arith.mulf %376, %376 : vector<1x16xf32>
    %380 = arith.subf %378, %379 : vector<1x16xf32>
    %cst_201 = arith.constant 9.99999974E-6 : f32
    %381 = vector.broadcast %cst_201 : f32 to vector<1x16xf32>
    %382 = arith.addf %380, %381 : vector<1x16xf32>
    %383 = math.rsqrt %382 : vector<1x16xf32>
    %384 = arith.mulf %11, %383 : vector<1x16xf32>
    %385 = arith.mulf %376, %384 : vector<1x16xf32>
    %386 = arith.subf %12, %385 : vector<1x16xf32>
    %387 = tpu.concatenate %384, %384, %384, %384 in 1 : vector<1x16xf32>, vector<1x16xf32>, vector<1x16xf32>, vector<1x16xf32> -> vector<1x64xf32>
    %388 = vector.broadcast %387 : vector<1x64xf32> to vector<32x64xf32>
    %389 = arith.mulf %355, %388 : vector<32x64xf32>
    %390 = tpu.concatenate %386, %386, %386, %386 in 1 : vector<1x16xf32>, vector<1x16xf32>, vector<1x16xf32>, vector<1x16xf32> -> vector<1x64xf32>
    %391 = vector.broadcast %390 : vector<1x64xf32> to vector<32x64xf32>
    %392 = arith.addf %389, %391 : vector<32x64xf32>
    %cst_202 = arith.constant dense<0.000000e+00> : vector<32x48xf32>
    %393 = tpu.matmul %392, %3, %cst_202 {dimension_numbers = #tpu.dot_dimension_numbers<[1], [0], [0], [1], [0, 0, 1, 1], [], []>} : vector<32x64xf32>, vector<64x48xf32>, vector<32x48xf32> -> vector<32x48xf32>
    %394 = vector.broadcast %13 : vector<1x48xf32> to vector<32x48xf32>
    %395 = arith.addf %393, %394 : vector<32x48xf32>
    %cst_203 = arith.constant 0.000000e+00 : f32
    %396 = vector.broadcast %cst_203 : f32 to vector<32x48xf32>
    %397 = arith.subf %396, %395 : vector<32x48xf32>
    %398 = math.exp %397 : vector<32x48xf32>
    %cst_204 = arith.constant 1.000000e+00 : f32
    %399 = vector.broadcast %cst_204 : f32 to vector<32x48xf32>
    %400 = arith.addf %399, %398 : vector<32x48xf32>
    %401 = tpu.reciprocal %400 {approx = true} : vector<32x48xf32> -> vector<32x48xf32>
    %402 = arith.mulf %400, %401 : vector<32x48xf32>
    %cst_205 = arith.constant 2.000000e+00 : f32
    %403 = vector.broadcast %cst_205 : f32 to vector<32x48xf32>
    %404 = arith.subf %403, %402 : vector<32x48xf32>
    %405 = arith.mulf %401, %404 : vector<32x48xf32>
    %c0_206 = arith.constant 0 : index
    %c0_207 = arith.constant 0 : index
    %406 = vector.load %arg3[%c0_206, %c0_207] : memref<32x48xf32, #tpu.memory_space<vmem>>, vector<32x48xf32>
    tpu.vector_store %arg3[%c0_206, %c0_207], %405 {strides = array<i32>} : memref<32x48xf32, #tpu.memory_space<vmem>>, vector<32x48xf32>,
    return
  }
}

</mosaic_0001>

<llo_original>
// kernel: mynet_forward.1
$region0: #{mynet_forward.1}
  #allocation0 [shape = 'u32[]', space=smem, size = 0x4, offset = 0x4, fixed_abs, tag = 'smem constant byte address 0x4 - core index']
  #allocation1 [shape = 'u32[144,128]{1,0:T(1,128)}', space=vmem, size = 0x12000, scoped, tag = 'internal scratch']
  #allocation2 [shape = 'f32[1064,16]{1,0:T(8,128)}', space=vmem, size = 0x85000, scoped, tag = 'scratch operand']
  %s0 = inlined_call_operand.vmem [shape: f32[648,3], index: 0, kind: input, shape index: {}]
  %s1 = inlined_call_operand.vmem [shape: f32[256,128], index: 1, kind: input, shape index: {}]
  %s2 = inlined_call_operand.vmem [shape: f32[16,128], index: 2, kind: input, shape index: {}]
  %s3 = inlined_call_operand.vmem [shape: f32[32,48], index: 3, kind: output, shape index: {}]
  %s4 = sld [smem:[#allocation0]]
  $region22: #{mynet_forward.1} parent=0
    _
  %s6 = ssub.s32 1, %s4
  %s7 = scalar_select 0, %s6, %s4
  // Predicated region
  $region2: #{mynet_forward.1} parent=0 // pred_check
    _
  $region3: #{mynet_forward.1} parent=0 // pred_check_branch
    %9 = sbr.rel (0) target = $region5
  $region4: #{mynet_forward.1} parent=0 // pred_region
    _
  $region5: #{mynet_forward.1} parent=0 // pred_fallthru
    _
  // Predicated region
  $region6: #{mynet_forward.1} parent=0 // pred_check
    _
  $region7: #{mynet_forward.1} parent=0 // pred_check_branch
    %11 = sbr.rel (0) target = $region9
  $region8: #{mynet_forward.1} parent=0 // pred_region
    _
  $region9: #{mynet_forward.1} parent=0 // pred_fallthru
    _
  // Predicated region
  $region10: #{mynet_forward.1} parent=0 // pred_check
    _
  $region11: #{mynet_forward.1} parent=0 // pred_check_branch
    %13 = sbr.rel (0) target = $region13
  $region12: #{mynet_forward.1} parent=0 // pred_region
    _
  $region13: #{mynet_forward.1} parent=0 // pred_fallthru
    _
  %v14 = vld [vmem:[%s1] sm:$0xff]
  %v15 = vld [vmem:[%s1 + $0x8] sm:$0xff]
  %v16 = vld [vmem:[%s1 + $0x10] sm:$0xff]
  %v17 = vld [vmem:[%s1 + $0x18] sm:$0x7]
  %v18 = vld [vmem:[%s1 + $0x20] sm:$0xff]
  %v19 = vld [vmem:[%s1 + $0x28] sm:$0xff]
  %v20 = vld [vmem:[%s1 + $0x30] sm:$0xff]
  %v21 = vld [vmem:[%s1 + $0x38] sm:$0xff]
  %v22 = vld [vmem:[%s1 + $0x40] sm:$0xff]
  %v23 = vld [vmem:[%s1 + $0x48] sm:$0xff]
  %v24 = vld [vmem:[%s1 + $0x50] sm:$0xff]
  %v25 = vld [vmem:[%s1 + $0x58] sm:$0xff]
  %v26 = vld [vmem:[%s1 + $0x60] sm:$0xff]
  %v27 = vld [vmem:[%s1 + $0x68] sm:$0xff]
  %v28 = vld [vmem:[%s1 + $0x70] sm:$0xff]
  %v29 = vld [vmem:[%s1 + $0x78] sm:$0xff]
  %v30 = vld [vmem:[%s1 + $0x80] sm:$0xff]
  %v31 = vld [vmem:[%s1 + $0x88] sm:$0xff]
  %v32 = vld [vmem:[%s1 + $0x90] sm:$0xff]
  %v33 = vld [vmem:[%s1 + $0x98] sm:$0xff]
  %v34 = vld [vmem:[%s1 + $0xa0] sm:$0xff]
  %v35 = vld [vmem:[%s1 + $0xa8] sm:$0xff]
  %v36 = vld [vmem:[%s1 + $0xb0] sm:$0xf]
  %v37 = vld [vmem:[%s1 + $0xb8] sm:$0xff]
  %v38 = vld [vmem:[%s1 + $0xc0] sm:$0xff]
  %v39 = vld [vmem:[%s1 + $0xc8] sm:$0xff]
  %v40 = vld [vmem:[%s1 + $0xd0] sm:$0xff]
  %v41 = vld [vmem:[%s1 + $0xd8] sm:$0xff]
  %v42 = vld [vmem:[%s1 + $0xe0] sm:$0xff]
  %v43 = vld [vmem:[%s1 + $0xe8] sm:$0xff]
  %v44 = vld [vmem:[%s1 + $0xf0] sm:$0xff]
  %v45 = vld [vmem:[%s2] sm:$0x1]
  %v46 = vld [vmem:[%s2 + $0x1] sm:$0x1]
  %v47 = vld [vmem:[%s2 + $0x2] sm:$0x1]
  %v48 = vld [vmem:[%s2 + $0x3] sm:$0x1]
  %v49 = vld [vmem:[%s2 + $0x4] sm:$0x1]
  %v50 = vld [vmem:[%s2 + $0x5] sm:$0x1]
  %v51 = vld [vmem:[%s2 + $0x6] sm:$0x1]
  %v52 = vld [vmem:[%s2 + $0x7] sm:$0x1]
  %v53 = vld [vmem:[%s2 + $0x8] sm:$0x1]
  %v54 = vld [vmem:[%s2 + $0x9] sm:$0x1]
  %vm55 = vcmask 130048
  %56 = vst.msk [vmem:[#allocation2 + $0x290] sm:$0xff] %vm55, 0.0
  %57 = vst.msk [vmem:[#allocation2 + $0x298] sm:$0xff] %vm55, 0.0
  %58 = vst.msk [vmem:[#allocation2 + $0x2a0] sm:$0xff] %vm55, 0.0
  %59 = vst.msk [vmem:[#allocation2 + $0x2a8] sm:$0xff] %vm55, 0.0
  %60 = vst.msk [vmem:[#allocation2 + $0x2b0] sm:$0xff] %vm55, 0.0
  %61 = vst.msk [vmem:[#allocation2 + $0x2b8] sm:$0xff] %vm55, 0.0
  %62 = vst.msk [vmem:[#allocation2 + $0x2c0] sm:$0xff] %vm55, 0.0
  %63 = vst.msk [vmem:[#allocation2 + $0x2c8] sm:$0xff] %vm55, 0.0
  %64 = vst.msk [vmem:[#allocation2 + $0x2d0] sm:$0xff] %vm55, 0.0
  %65 = vst.msk [vmem:[#allocation2 + $0x2d8] sm:$0xff] %vm55, 0.0
  %66 = vst.msk [vmem:[#allocation2 + $0x2e0] sm:$0xff] %vm55, 0.0
  %67 = vst.msk [vmem:[#allocation2 + $0x2e8] sm:$0xff] %vm55, 0.0
  %68 = vst.msk [vmem:[#allocation2 + $0x2f0] sm:$0xff] %vm55, 0.0
  %69 = vst.msk [vmem:[#allocation2 + $0x2f8] sm:$0xff] %vm55, 0.0
  %70 = vst.msk [vmem:[#allocation2 + $0x300] sm:$0xff] %vm55, 0.0
  %71 = vst.msk [vmem:[#allocation2 + $0x308] sm:$0xff] %vm55, 0.0
  %72 = vst.msk [vmem:[#allocation2 + $0x310] sm:$0xff] %vm55, 0.0
  %73 = vst.msk [vmem:[#allocation2 + $0x318] sm:$0xff] %vm55, 0.0
  %74 = vst.msk [vmem:[#allocation2 + $0x320] sm:$0xff] %vm55, 0.0
  %75 = vst.msk [vmem:[#allocation2 + $0x328] sm:$0xff] %vm55, 0.0
  %76 = vst.msk [vmem:[#allocation2 + $0x330] sm:$0xff] %vm55, 0.0
  %77 = vst.msk [vmem:[#allocation2 + $0x338] sm:$0xff] %vm55, 0.0
  %78 = vst.msk [vmem:[#allocation2 + $0x340] sm:$0xff] %vm55, 0.0
  %79 = vst.msk [vmem:[#allocation2 + $0x348] sm:$0xff] %vm55, 0.0
  %80 = vst.msk [vmem:[#allocation2 + $0x350] sm:$0xff] %vm55, 0.0
  %v81 = vlaneseq
  %v82 = vshrl.u32 %v81, 7
  %v83 = vadd.s32 %v82, 8
  %v84 = vadd.s32 %v82, 16
  %v85 = vadd.s32 %v82, 24
  %v86 = vadd.s32 %v82, 32
  %v87 = vadd.s32 %v82, 40
  %v88 = vadd.s32 %v82, 48
  %v89 = vadd.s32 %v82, 56
  %v90 = vadd.s32 %v82, 64
  %v91 = vadd.s32 %v82, 72
  %v92 = vadd.s32 %v82, 80
  %v93 = vadd.s32 %v82, 88
  %v94 = vadd.s32 %v82, 96
  %v95 = vadd.s32 %v82, 104
  %v96 = vadd.s32 %v82, 112
  %v97 = vadd.s32 %v82, 120
  %v98 = vadd.s32 %v82, 128
  %v99 = vadd.s32 %v82, 136
  %v100 = vadd.s32 %v82, 144
  %v101 = vadd.s32 %v82, 152
  %v102 = vadd.s32 %v82, 160
  %v103 = vadd.s32 %v82, 168
  %v104 = vadd.s32 %v82, 176
  %v105 = vadd.s32 %v82, 184
  %v106 = vadd.s32 %v82, 192
  %v107 = vadd.s32 %v82, 200
  %v108 = vadd.s32 %v82, 208
  %v109 = vadd.s32 %v82, 216
  %v110 = vadd.s32 %v82, 224
  %v111 = vadd.s32 %v82, 232
  %v112 = vadd.s32 %v82, 240
  %v113 = vadd.s32 %v82, 248
  %v114 = vadd.s32 %v82, 256
  %v115 = vadd.s32 %v82, 264
  %v116 = vadd.s32 %v82, 272
  %v117 = vadd.s32 %v82, 280
  %v118 = vadd.s32 %v82, 288
  %v119 = vadd.s32 %v82, 296
  %v120 = vadd.s32 %v82, 304
  %v121 = vadd.s32 %v82, 312
  %v122 = vadd.s32 %v82, 320
  %v123 = vadd.s32 %v82, 328
  %v124 = vadd.s32 %v82, 336
  %v125 = vadd.s32 %v82, 344
  %v126 = vadd.s32 %v82, 352
  %v127 = vadd.s32 %v82, 360
  %v128 = vadd.s32 %v82, 368
  %v129 = vadd.s32 %v82, 376
  %v130 = vadd.s32 %v82, 384
  %v131 = vadd.s32 %v82, 392
  %v132 = vadd.s32 %v82, 400
  %v133 = vadd.s32 %v82, 408
  %v134 = vadd.s32 %v82, 416
  %v135 = vadd.s32 %v82, 424
  %v136 = vadd.s32 %v82, 432
  %v137 = vadd.s32 %v82, 440
  %v138 = vadd.s32 %v82, 448
  %v139 = vadd.s32 %v82, 456
  %v140 = vadd.s32 %v82, 464
  %v141 = vadd.s32 %v82, 472
  %v142 = vadd.s32 %v82, 480
  %v143 = vadd.s32 %v82, 488
  %v144 = vadd.s32 %v82, 496
  %v145 = vadd.s32 %v82, 504
  %v146 = vadd.s32 %v82, 512
  %v147 = vadd.s32 %v82, 520
  %v148 = vadd.s32 %v82, 528
  %v149 = vadd.s32 %v82, 536
  %v150 = vadd.s32 %v82, 544
  %v151 = vadd.s32 %v82, 552
  %v152 = vadd.s32 %v82, 560
  %v153 = vadd.s32 %v82, 568
  %v154 = vadd.s32 %v82, 576
  %v155 = vadd.s32 %v82, 584
  %v156 = vadd.s32 %v82, 592
  %v157 = vadd.s32 %v82, 600
  %v158 = vadd.s32 %v82, 608
  %v159 = vcvt.s32.f32 %v82
  %v160 = vcvt.s32.f32 %v83
  %v161 = vcvt.s32.f32 %v84
  %v162 = vcvt.s32.f32 %v85
  %v163 = vcvt.s32.f32 %v86
  %v164 = vcvt.s32.f32 %v87
  %v165 = vcvt.s32.f32 %v88
  %v166 = vcvt.s32.f32 %v89
  %v167 = vcvt.s32.f32 %v90
  %v168 = vcvt.s32.f32 %v91
  %v169 = vcvt.s32.f32 %v92
  %v170 = vcvt.s32.f32 %v93
  %v171 = vcvt.s32.f32 %v94
  %v172 = vcvt.s32.f32 %v95
  %v173 = vcvt.s32.f32 %v96
  %v174 = vcvt.s32.f32 %v97
  %v175 = vcvt.s32.f32 %v98
  %v176 = vcvt.s32.f32 %v99
  %v177 = vcvt.s32.f32 %v100
  %v178 = vcvt.s32.f32 %v101
  %v179 = vcvt.s32.f32 %v102
  %v180 = vcvt.s32.f32 %v103
  %v181 = vcvt.s32.f32 %v104
  %v182 = vcvt.s32.f32 %v105
  %v183 = vcvt.s32.f32 %v106
  %v184 = vcvt.s32.f32 %v107
  %v185 = vcvt.s32.f32 %v108
  %v186 = vcvt.s32.f32 %v109
  %v187 = vcvt.s32.f32 %v110
  %v188 = vcvt.s32.f32 %v111
  %v189 = vcvt.s32.f32 %v112
  %v190 = vcvt.s32.f32 %v113
  %v191 = vcvt.s32.f32 %v114
  %v192 = vcvt.s32.f32 %v115
  %v193 = vcvt.s32.f32 %v116
  %v194 = vcvt.s32.f32 %v117
  %v195 = vcvt.s32.f32 %v118
  %v196 = vcvt.s32.f32 %v119
  %v197 = vcvt.s32.f32 %v120
  %v198 = vcvt.s32.f32 %v121
  %v199 = vcvt.s32.f32 %v122
  %v200 = vcvt.s32.f32 %v123
  %v201 = vcvt.s32.f32 %v124
  %v202 = vcvt.s32.f32 %v125
  %v203 = vcvt.s32.f32 %v126
  %v204 = vcvt.s32.f32 %v127
  %v205 = vcvt.s32.f32 %v128
  %v206 = vcvt.s32.f32 %v129
  %v207 = vcvt.s32.f32 %v130
  %v208 = vcvt.s32.f32 %v131
  %v209 = vcvt.s32.f32 %v132
  %v210 = vcvt.s32.f32 %v133
  %v211 = vcvt.s32.f32 %v134
  %v212 = vcvt.s32.f32 %v135
  %v213 = vcvt.s32.f32 %v136
  %v214 = vcvt.s32.f32 %v137
  %v215 = vcvt.s32.f32 %v138
  %v216 = vcvt.s32.f32 %v139
  %v217 = vcvt.s32.f32 %v140
  %v218 = vcvt.s32.f32 %v141
  %v219 = vcvt.s32.f32 %v142
  %v220 = vcvt.s32.f32 %v143
  %v221 = vcvt.s32.f32 %v144
  %v222 = vcvt.s32.f32 %v145
  %v223 = vcvt.s32.f32 %v146
  %v224 = vcvt.s32.f32 %v147
  %v225 = vcvt.s32.f32 %v148
  %v226 = vcvt.s32.f32 %v149
  %v227 = vcvt.s32.f32 %v150
  %v228 = vcvt.s32.f32 %v151
  %v229 = vcvt.s32.f32 %v152
  %v230 = vcvt.s32.f32 %v153
  %v231 = vcvt.s32.f32 %v154
  %v232 = vcvt.s32.f32 %v155
  %v233 = vcvt.s32.f32 %v156
  %v234 = vcvt.s32.f32 %v157
  %v235 = vcvt.s32.f32 %v158
  %v236 = vadd.f32 %v159, 19.0
  %v237 = vadd.f32 %v160, 19.0
  %v238 = vadd.f32 %v161, 19.0
  %v239 = vadd.f32 %v162, 19.0
  %v240 = vadd.f32 %v163, 19.0
  %v241 = vadd.f32 %v164, 19.0
  %v242 = vadd.f32 %v165, 19.0
  %v243 = vadd.f32 %v166, 19.0
  %v244 = vadd.f32 %v167, 19.0
  %v245 = vadd.f32 %v168, 19.0
  %v246 = vadd.f32 %v169, 19.0
  %v247 = vadd.f32 %v170, 19.0
  %v248 = vadd.f32 %v171, 19.0
  %v249 = vadd.f32 %v172, 19.0
  %v250 = vadd.f32 %v173, 19.0
  %v251 = vadd.f32 %v174, 19.0
  %v252 = vadd.f32 %v175, 19.0
  %v253 = vadd.f32 %v176, 19.0
  %v254 = vadd.f32 %v177, 19.0
  %v255 = vadd.f32 %v178, 19.0
  %v256 = vadd.f32 %v179, 19.0
  %v257 = vadd.f32 %v180, 19.0
  %v258 = vadd.f32 %v181, 19.0
  %v259 = vadd.f32 %v182, 19.0
  %v260 = vadd.f32 %v183, 19.0
  %v261 = vadd.f32 %v184, 19.0
  %v262 = vadd.f32 %v185, 19.0
  %v263 = vadd.f32 %v186, 19.0
  %v264 = vadd.f32 %v187, 19.0
  %v265 = vadd.f32 %v188, 19.0
  %v266 = vadd.f32 %v189, 19.0
  %v267 = vadd.f32 %v190, 19.0
  %v268 = vadd.f32 %v191, 19.0
  %v269 = vadd.f32 %v192, 19.0
  %v270 = vadd.f32 %v193, 19.0
  %v271 = vadd.f32 %v194, 19.0
  %v272 = vadd.f32 %v195, 19.0
  %v273 = vadd.f32 %v196, 19.0
  %v274 = vadd.f32 %v197, 19.0
  %v275 = vadd.f32 %v198, 19.0
  %v276 = vadd.f32 %v199, 19.0
  %v277 = vadd.f32 %v200, 19.0
  %v278 = vadd.f32 %v201, 19.0
  %v279 = vadd.f32 %v202, 19.0
  %v280 = vadd.f32 %v203, 19.0
  %v281 = vadd.f32 %v204, 19.0
  %v282 = vadd.f32 %v205, 19.0
  %v283 = vadd.f32 %v206, 19.0
  %v284 = vadd.f32 %v207, 19.0
  %v285 = vadd.f32 %v208, 19.0
  %v286 = vadd.f32 %v209, 19.0
  %v287 = vadd.f32 %v210, 19.0
  %v288 = vadd.f32 %v211, 19.0
  %v289 = vadd.f32 %v212, 19.0
  %v290 = vadd.f32 %v213, 19.0
  %v291 = vadd.f32 %v214, 19.0
  %v292 = vadd.f32 %v215, 19.0
  %v293 = vadd.f32 %v216, 19.0
  %v294 = vadd.f32 %v217, 19.0
  %v295 = vadd.f32 %v218, 19.0
  %v296 = vadd.f32 %v219, 19.0
  %v297 = vadd.f32 %v220, 19.0
  %v298 = vadd.f32 %v221, 19.0
  %v299 = vadd.f32 %v222, 19.0
  %v300 = vadd.f32 %v223, 19.0
  %v301 = vadd.f32 %v224, 19.0
  %v302 = vadd.f32 %v225, 19.0
  %v303 = vadd.f32 %v226, 19.0
  %v304 = vadd.f32 %v227, 19.0
  %v305 = vadd.f32 %v228, 19.0
  %v306 = vadd.f32 %v229, 19.0
  %v307 = vadd.f32 %v230, 19.0
  %v308 = vadd.f32 %v231, 19.0
  %v309 = vadd.f32 %v232, 19.0
  %v310 = vadd.f32 %v233, 19.0
  %v311 = vadd.f32 %v234, 19.0
  %v312 = vadd.f32 %v235, 19.0
  %v313 = vadd.f32 %v236, 0.5
  %v314 = vadd.f32 %v237, 0.5
  %v315 = vadd.f32 %v238, 0.5
  %v316 = vadd.f32 %v239, 0.5
  %v317 = vadd.f32 %v240, 0.5
  %v318 = vadd.f32 %v241, 0.5
  %v319 = vadd.f32 %v242, 0.5
  %v320 = vadd.f32 %v243, 0.5
  %v321 = vadd.f32 %v244, 0.5
  %v322 = vadd.f32 %v245, 0.5
  %v323 = vadd.f32 %v246, 0.5
  %v324 = vadd.f32 %v247, 0.5
  %v325 = vadd.f32 %v248, 0.5
  %v326 = vadd.f32 %v249, 0.5
  %v327 = vadd.f32 %v250, 0.5
  %v328 = vadd.f32 %v251, 0.5
  %v329 = vadd.f32 %v252, 0.5
  %v330 = vadd.f32 %v253, 0.5
  %v331 = vadd.f32 %v254, 0.5
  %v332 = vadd.f32 %v255, 0.5
  %v333 = vadd.f32 %v256, 0.5
  %v334 = vadd.f32 %v257, 0.5
  %v335 = vadd.f32 %v258, 0.5
  %v336 = vadd.f32 %v259, 0.5
  %v337 = vadd.f32 %v260, 0.5
  %v338 = vadd.f32 %v261, 0.5
  %v339 = vadd.f32 %v262, 0.5
  %v340 = vadd.f32 %v263, 0.5
  %v341 = vadd.f32 %v264, 0.5
  %v342 = vadd.f32 %v265, 0.5
  %v343 = vadd.f32 %v266, 0.5
  %v344 = vadd.f32 %v267, 0.5
  %v345 = vadd.f32 %v268, 0.5
  %v346 = vadd.f32 %v269, 0.5
  %v347 = vadd.f32 %v270, 0.5
  %v348 = vadd.f32 %v271, 0.5
  %v349 = vadd.f32 %v272, 0.5
  %v350 = vadd.f32 %v273, 0.5
  %v351 = vadd.f32 %v274, 0.5
  %v352 = vadd.f32 %v275, 0.5
  %v353 = vadd.f32 %v276, 0.5
  %v354 = vadd.f32 %v277, 0.5
  %v355 = vadd.f32 %v278, 0.5
  %v356 = vadd.f32 %v279, 0.5
  %v357 = vadd.f32 %v280, 0.5
  %v358 = vadd.f32 %v281, 0.5
  %v359 = vadd.f32 %v282, 0.5
  %v360 = vadd.f32 %v283, 0.5
  %v361 = vadd.f32 %v284, 0.5
  %v362 = vadd.f32 %v285, 0.5
  %v363 = vadd.f32 %v286, 0.5
  %v364 = vadd.f32 %v287, 0.5
  %v365 = vadd.f32 %v288, 0.5
  %v366 = vadd.f32 %v289, 0.5
  %v367 = vadd.f32 %v290, 0.5
  %v368 = vadd.f32 %v291, 0.5
  %v369 = vadd.f32 %v292, 0.5
  %v370 = vadd.f32 %v293, 0.5
  %v371 = vadd.f32 %v294, 0.5
  %v372 = vadd.f32 %v295, 0.5
  %v373 = vadd.f32 %v296, 0.5
  %v374 = vadd.f32 %v297, 0.5
  %v375 = vadd.f32 %v298, 0.5
  %v376 = vadd.f32 %v299, 0.5
  %v377 = vadd.f32 %v300, 0.5
  %v378 = vadd.f32 %v301, 0.5
  %v379 = vadd.f32 %v302, 0.5
  %v380 = vadd.f32 %v303, 0.5
  %v381 = vadd.f32 %v304, 0.5
  %v382 = vadd.f32 %v305, 0.5
  %v383 = vadd.f32 %v306, 0.5
  %v384 = vadd.f32 %v307, 0.5
  %v385 = vadd.f32 %v308, 0.5
  %v386 = vadd.f32 %v309, 0.5
  %v387 = vadd.f32 %v310, 0.5
  %v388 = vadd.f32 %v311, 0.5
  %v389 = vadd.f32 %v312, 0.5
  %v390 = vrcp.pop 324.0
  %v391 = vmul.f32 %v313, %v390
  %v392 = vmul.f32 %v314, %v390
  %v393 = vmul.f32 %v315, %v390
  %v394 = vmul.f32 %v316, %v390
  %v395 = vmul.f32 %v317, %v390
  %v396 = vmul.f32 %v318, %v390
  %v397 = vmul.f32 %v319, %v390
  %v398 = vmul.f32 %v320, %v390
  %v399 = vmul.f32 %v321, %v390
  %v400 = vmul.f32 %v322, %v390
  %v401 = vmul.f32 %v323, %v390
  %v402 = vmul.f32 %v324, %v390
  %v403 = vmul.f32 %v325, %v390
  %v404 = vmul.f32 %v326, %v390
  %v405 = vmul.f32 %v327, %v390
  %v406 = vmul.f32 %v328, %v390
  %v407 = vmul.f32 %v329, %v390
  %v408 = vmul.f32 %v330, %v390
  %v409 = vmul.f32 %v331, %v390
  %v410 = vmul.f32 %v332, %v390
  %v411 = vmul.f32 %v333, %v390
  %v412 = vmul.f32 %v334, %v390
  %v413 = vmul.f32 %v335, %v390
  %v414 = vmul.f32 %v336, %v390
  %v415 = vmul.f32 %v337, %v390
  %v416 = vmul.f32 %v338, %v390
  %v417 = vmul.f32 %v339, %v390
  %v418 = vmul.f32 %v340, %v390
  %v419 = vmul.f32 %v341, %v390
  %v420 = vmul.f32 %v342, %v390
  %v421 = vmul.f32 %v343, %v390
  %v422 = vmul.f32 %v344, %v390
  %v423 = vmul.f32 %v345, %v390
  %v424 = vmul.f32 %v346, %v390
  %v425 = vmul.f32 %v347, %v390
  %v426 = vmul.f32 %v348, %v390
  %v427 = vmul.f32 %v349, %v390
  %v428 = vmul.f32 %v350, %v390
  %v429 = vmul.f32 %v351, %v390
  %v430 = vmul.f32 %v352, %v390
  %v431 = vmul.f32 %v353, %v390
  %v432 = vmul.f32 %v354, %v390
  %v433 = vmul.f32 %v355, %v390
  %v434 = vmul.f32 %v356, %v390
  %v435 = vmul.f32 %v357, %v390
  %v436 = vmul.f32 %v358, %v390
  %v437 = vmul.f32 %v359, %v390
  %v438 = vmul.f32 %v360, %v390
  %v439 = vmul.f32 %v361, %v390
  %v440 = vmul.f32 %v362, %v390
  %v441 = vmul.f32 %v363, %v390
  %v442 = vmul.f32 %v364, %v390
  %v443 = vmul.f32 %v365, %v390
  %v444 = vmul.f32 %v366, %v390
  %v445 = vmul.f32 %v367, %v390
  %v446 = vmul.f32 %v368, %v390
  %v447 = vmul.f32 %v369, %v390
  %v448 = vmul.f32 %v370, %v390
  %v449 = vmul.f32 %v371, %v390
  %v450 = vmul.f32 %v372, %v390
  %v451 = vmul.f32 %v373, %v390
  %v452 = vmul.f32 %v374, %v390
  %v453 = vmul.f32 %v375, %v390
  %v454 = vmul.f32 %v376, %v390
  %v455 = vmul.f32 %v377, %v390
  %v456 = vmul.f32 %v378, %v390
  %v457 = vmul.f32 %v379, %v390
  %v458 = vmul.f32 %v380, %v390
  %v459 = vmul.f32 %v381, %v390
  %v460 = vmul.f32 %v382, %v390
  %v461 = vmul.f32 %v383, %v390
  %v462 = vmul.f32 %v384, %v390
  %v463 = vmul.f32 %v385, %v390
  %v464 = vmul.f32 %v386, %v390
  %v465 = vmul.f32 %v387, %v390
  %v466 = vmul.f32 %v388, %v390
  %v467 = vmul.f32 %v389, %v390
  %v468 = vfloor.f32 %v391
  %v469 = vfloor.f32 %v392
  %v470 = vfloor.f32 %v393
  %v471 = vfloor.f32 %v394
  %v472 = vfloor.f32 %v395
  %v473 = vfloor.f32 %v396
  %v474 = vfloor.f32 %v397
  %v475 = vfloor.f32 %v398
  %v476 = vfloor.f32 %v399
  %v477 = vfloor.f32 %v400
  %v478 = vfloor.f32 %v401
  %v479 = vfloor.f32 %v402
  %v480 = vfloor.f32 %v403
  %v481 = vfloor.f32 %v404
  %v482 = vfloor.f32 %v405
  %v483 = vfloor.f32 %v406
  %v484 = vfloor.f32 %v407
  %v485 = vfloor.f32 %v408
  %v486 = vfloor.f32 %v409
  %v487 = vfloor.f32 %v410
  %v488 = vfloor.f32 %v411
  %v489 = vfloor.f32 %v412
  %v490 = vfloor.f32 %v413
  %v491 = vfloor.f32 %v414
  %v492 = vfloor.f32 %v415
  %v493 = vfloor.f32 %v416
  %v494 = vfloor.f32 %v417
  %v495 = vfloor.f32 %v418
  %v496 = vfloor.f32 %v419
  %v497 = vfloor.f32 %v420
  %v498 = vfloor.f32 %v421
  %v499 = vfloor.f32 %v422
  %v500 = vfloor.f32 %v423
  %v501 = vfloor.f32 %v424
  %v502 = vfloor.f32 %v425
  %v503 = vfloor.f32 %v426
  %v504 = vfloor.f32 %v427
  %v505 = vfloor.f32 %v428
  %v506 = vfloor.f32 %v429
  %v507 = vfloor.f32 %v430
  %v508 = vfloor.f32 %v431
  %v509 = vfloor.f32 %v432
  %v510 = vfloor.f32 %v433
  %v511 = vfloor.f32 %v434
  %v512 = vfloor.f32 %v435
  %v513 = vfloor.f32 %v436
  %v514 = vfloor.f32 %v437
  %v515 = vfloor.f32 %v438
  %v516 = vfloor.f32 %v439
  %v517 = vfloor.f32 %v440
  %v518 = vfloor.f32 %v441
  %v519 = vfloor.f32 %v442
  %v520 = vfloor.f32 %v443
  %v521 = vfloor.f32 %v444
  %v522 = vfloor.f32 %v445
  %v523 = vfloor.f32 %v446
  %v524 = vfloor.f32 %v447
  %v525 = vfloor.f32 %v448
  %v526 = vfloor.f32 %v449
  %v527 = vfloor.f32 %v450
  %v528 = vfloor.f32 %v451
  %v529 = vfloor.f32 %v452
  %v530 = vfloor.f32 %v453
  %v531 = vfloor.f32 %v454
  %v532 = vfloor.f32 %v455
  %v533 = vfloor.f32 %v456
  %v534 = vfloor.f32 %v457
  %v535 = vfloor.f32 %v458
  %v536 = vfloor.f32 %v459
  %v537 = vfloor.f32 %v460
  %v538 = vfloor.f32 %v461
  %v539 = vfloor.f32 %v462
  %v540 = vfloor.f32 %v463
  %v541 = vfloor.f32 %v464
  %v542 = vfloor.f32 %v465
  %v543 = vfloor.f32 %v466
  %v544 = vfloor.f32 %v467
  %v545 = vmul.f32 %v468, 324.0
  %v546 = vmul.f32 %v469, 324.0
  %v547 = vmul.f32 %v470, 324.0
  %v548 = vmul.f32 %v471, 324.0
  %v549 = vmul.f32 %v472, 324.0
  %v550 = vmul.f32 %v473, 324.0
  %v551 = vmul.f32 %v474, 324.0
  %v552 = vmul.f32 %v475, 324.0
  %v553 = vmul.f32 %v476, 324.0
  %v554 = vmul.f32 %v477, 324.0
  %v555 = vmul.f32 %v478, 324.0
  %v556 = vmul.f32 %v479, 324.0
  %v557 = vmul.f32 %v480, 324.0
  %v558 = vmul.f32 %v481, 324.0
  %v559 = vmul.f32 %v482, 324.0
  %v560 = vmul.f32 %v483, 324.0
  %v561 = vmul.f32 %v484, 324.0
  %v562 = vmul.f32 %v485, 324.0
  %v563 = vmul.f32 %v486, 324.0
  %v564 = vmul.f32 %v487, 324.0
  %v565 = vmul.f32 %v488, 324.0
  %v566 = vmul.f32 %v489, 324.0
  %v567 = vmul.f32 %v490, 324.0
  %v568 = vmul.f32 %v491, 324.0
  %v569 = vmul.f32 %v492, 324.0
  %v570 = vmul.f32 %v493, 324.0
  %v571 = vmul.f32 %v494, 324.0
  %v572 = vmul.f32 %v495, 324.0
  %v573 = vmul.f32 %v496, 324.0
  %v574 = vmul.f32 %v497, 324.0
  %v575 = vmul.f32 %v498, 324.0
  %v576 = vmul.f32 %v499, 324.0
  %v577 = vmul.f32 %v500, 324.0
  %v578 = vmul.f32 %v501, 324.0
  %v579 = vmul.f32 %v502, 324.0
  %v580 = vmul.f32 %v503, 324.0
  %v581 = vmul.f32 %v504, 324.0
  %v582 = vmul.f32 %v505, 324.0
  %v583 = vmul.f32 %v506, 324.0
  %v584 = vmul.f32 %v507, 324.0
  %v585 = vmul.f32 %v508, 324.0
  %v586 = vmul.f32 %v509, 324.0
  %v587 = vmul.f32 %v510, 324.0
  %v588 = vmul.f32 %v511, 324.0
  %v589 = vmul.f32 %v512, 324.0
  %v590 = vmul.f32 %v513, 324.0
  %v591 = vmul.f32 %v514, 324.0
  %v592 = vmul.f32 %v515, 324.0
  %v593 = vmul.f32 %v516, 324.0
  %v594 = vmul.f32 %v517, 324.0
  %v595 = vmul.f32 %v518, 324.0
  %v596 = vmul.f32 %v519, 324.0
  %v597 = vmul.f32 %v520, 324.0
  %v598 = vmul.f32 %v521, 324.0
  %v599 = vmul.f32 %v522, 324.0
  %v600 = vmul.f32 %v523, 324.0
  %v601 = vmul.f32 %v524, 324.0
  %v602 = vmul.f32 %v525, 324.0
  %v603 = vmul.f32 %v526, 324.0
  %v604 = vmul.f32 %v527, 324.0
  %v605 = vmul.f32 %v528, 324.0
  %v606 = vmul.f32 %v529, 324.0
  %v607 = vmul.f32 %v530, 324.0
  %v608 = vmul.f32 %v531, 324.0
  %v609 = vmul.f32 %v532, 324.0
  %v610 = vmul.f32 %v533, 324.0
  %v611 = vmul.f32 %v534, 324.0
  %v612 = vmul.f32 %v535, 324.0
  %v613 = vmul.f32 %v536, 324.0
  %v614 = vmul.f32 %v537, 324.0
  %v615 = vmul.f32 %v538, 324.0
  %v616 = vmul.f32 %v539, 324.0
  %v617 = vmul.f32 %v540, 324.0
  %v618 = vmul.f32 %v541, 324.0
  %v619 = vmul.f32 %v542, 324.0
  %v620 = vmul.f32 %v543, 324.0
  %v621 = vmul.f32 %v544, 324.0
  %v622 = vsub.f32 %v236, %v545
  %v623 = vsub.f32 %v237, %v546
  %v624 = vsub.f32 %v238, %v547
  %v625 = vsub.f32 %v239, %v548
  %v626 = vsub.f32 %v240, %v549
  %v627 = vsub.f32 %v241, %v550
  %v628 = vsub.f32 %v242, %v551
  %v629 = vsub.f32 %v243, %v552
  %v630 = vsub.f32 %v244, %v553
  %v631 = vsub.f32 %v245, %v554
  %v632 = vsub.f32 %v246, %v555
  %v633 = vsub.f32 %v247, %v556
  %v634 = vsub.f32 %v248, %v557
  %v635 = vsub.f32 %v249, %v558
  %v636 = vsub.f32 %v250, %v559
  %v637 = vsub.f32 %v251, %v560
  %v638 = vsub.f32 %v252, %v561
  %v639 = vsub.f32 %v253, %v562
  %v640 = vsub.f32 %v254, %v563
  %v641 = vsub.f32 %v255, %v564
  %v642 = vsub.f32 %v256, %v565
  %v643 = vsub.f32 %v257, %v566
  %v644 = vsub.f32 %v258, %v567
  %v645 = vsub.f32 %v259, %v568
  %v646 = vsub.f32 %v260, %v569
  %v647 = vsub.f32 %v261, %v570
  %v648 = vsub.f32 %v262, %v571
  %v649 = vsub.f32 %v263, %v572
  %v650 = vsub.f32 %v264, %v573
  %v651 = vsub.f32 %v265, %v574
  %v652 = vsub.f32 %v266, %v575
  %v653 = vsub.f32 %v267, %v576
  %v654 = vsub.f32 %v268, %v577
  %v655 = vsub.f32 %v269, %v578
  %v656 = vsub.f32 %v270, %v579
  %v657 = vsub.f32 %v271, %v580
  %v658 = vsub.f32 %v272, %v581
  %v659 = vsub.f32 %v273, %v582
  %v660 = vsub.f32 %v274, %v583
  %v661 = vsub.f32 %v275, %v584
  %v662 = vsub.f32 %v276, %v585
  %v663 = vsub.f32 %v277, %v586
  %v664 = vsub.f32 %v278, %v587
  %v665 = vsub.f32 %v279, %v588
  %v666 = vsub.f32 %v280, %v589
  %v667 = vsub.f32 %v281, %v590
  %v668 = vsub.f32 %v282, %v591
  %v669 = vsub.f32 %v283, %v592
  %v670 = vsub.f32 %v284, %v593
  %v671 = vsub.f32 %v285, %v594
  %v672 = vsub.f32 %v286, %v595
  %v673 = vsub.f32 %v287, %v596
  %v674 = vsub.f32 %v288, %v597
  %v675 = vsub.f32 %v289, %v598
  %v676 = vsub.f32 %v290, %v599
  %v677 = vsub.f32 %v291, %v600
  %v678 = vsub.f32 %v292, %v601
  %v679 = vsub.f32 %v293, %v602
  %v680 = vsub.f32 %v294, %v603
  %v681 = vsub.f32 %v295, %v604
  %v682 = vsub.f32 %v296, %v605
  %v683 = vsub.f32 %v297, %v606
  %v684 = vsub.f32 %v298, %v607
  %v685 = vsub.f32 %v299, %v608
  %v686 = vsub.f32 %v300, %v609
  %v687 = vsub.f32 %v301, %v610
  %v688 = vsub.f32 %v302, %v611
  %v689 = vsub.f32 %v303, %v612
  %v690 = vsub.f32 %v304, %v613
  %v691 = vsub.f32 %v305, %v614
  %v692 = vsub.f32 %v306, %v615
  %v693 = vsub.f32 %v307, %v616
  %v694 = vsub.f32 %v308, %v617
  %v695 = vsub.f32 %v309, %v618
  %v696 = vsub.f32 %v310, %v619
  %v697 = vsub.f32 %v311, %v620
  %v698 = vsub.f32 %v312, %v621
  %v699 = vadd.f32 %v622, 0.5
  %v700 = vadd.f32 %v623, 0.5
  %v701 = vadd.f32 %v624, 0.5
  %v702 = vadd.f32 %v625, 0.5
  %v703 = vadd.f32 %v626, 0.5
  %v704 = vadd.f32 %v627, 0.5
  %v705 = vadd.f32 %v628, 0.5
  %v706 = vadd.f32 %v629, 0.5
  %v707 = vadd.f32 %v630, 0.5
  %v708 = vadd.f32 %v631, 0.5
  %v709 = vadd.f32 %v632, 0.5
  %v710 = vadd.f32 %v633, 0.5
  %v711 = vadd.f32 %v634, 0.5
  %v712 = vadd.f32 %v635, 0.5
  %v713 = vadd.f32 %v636, 0.5
  %v714 = vadd.f32 %v637, 0.5
  %v715 = vadd.f32 %v638, 0.5
  %v716 = vadd.f32 %v639, 0.5
  %v717 = vadd.f32 %v640, 0.5
  %v718 = vadd.f32 %v641, 0.5
  %v719 = vadd.f32 %v642, 0.5
  %v720 = vadd.f32 %v643, 0.5
  %v721 = vadd.f32 %v644, 0.5
  %v722 = vadd.f32 %v645, 0.5
  %v723 = vadd.f32 %v646, 0.5
  %v724 = vadd.f32 %v647, 0.5
  %v725 = vadd.f32 %v648, 0.5
  %v726 = vadd.f32 %v649, 0.5
  %v727 = vadd.f32 %v650, 0.5
  %v728 = vadd.f32 %v651, 0.5
  %v729 = vadd.f32 %v652, 0.5
  %v730 = vadd.f32 %v653, 0.5
  %v731 = vadd.f32 %v654, 0.5
  %v732 = vadd.f32 %v655, 0.5
  %v733 = vadd.f32 %v656, 0.5
  %v734 = vadd.f32 %v657, 0.5
  %v735 = vadd.f32 %v658, 0.5
  %v736 = vadd.f32 %v659, 0.5
  %v737 = vadd.f32 %v660, 0.5
  %v738 = vadd.f32 %v661, 0.5
  %v739 = vadd.f32 %v662, 0.5
  %v740 = vadd.f32 %v663, 0.5
  %v741 = vadd.f32 %v664, 0.5
  %v742 = vadd.f32 %v665, 0.5
  %v743 = vadd.f32 %v666, 0.5
  %v744 = vadd.f32 %v667, 0.5
  %v745 = vadd.f32 %v668, 0.5
  %v746 = vadd.f32 %v669, 0.5
  %v747 = vadd.f32 %v670, 0.5
  %v748 = vadd.f32 %v671, 0.5
  %v749 = vadd.f32 %v672, 0.5
  %v750 = vadd.f32 %v673, 0.5
  %v751 = vadd.f32 %v674, 0.5
  %v752 = vadd.f32 %v675, 0.5
  %v753 = vadd.f32 %v676, 0.5
  %v754 = vadd.f32 %v677, 0.5
  %v755 = vadd.f32 %v678, 0.5
  %v756 = vadd.f32 %v679, 0.5
  %v757 = vadd.f32 %v680, 0.5
  %v758 = vadd.f32 %v681, 0.5
  %v759 = vadd.f32 %v682, 0.5
  %v760 = vadd.f32 %v683, 0.5
  %v761 = vadd.f32 %v684, 0.5
  %v762 = vadd.f32 %v685, 0.5
  %v763 = vadd.f32 %v686, 0.5
  %v764 = vadd.f32 %v687, 0.5
  %v765 = vadd.f32 %v688, 0.5
  %v766 = vadd.f32 %v689, 0.5
  %v767 = vadd.f32 %v690, 0.5
  %v768 = vadd.f32 %v691, 0.5
  %v769 = vadd.f32 %v692, 0.5
  %v770 = vadd.f32 %v693, 0.5
  %v771 = vadd.f32 %v694, 0.5
  %v772 = vadd.f32 %v695, 0.5
  %v773 = vadd.f32 %v696, 0.5
  %v774 = vadd.f32 %v697, 0.5
  %v775 = vadd.f32 %v698, 0.5
  %v776 = vrcp.pop 18.0
  %v777 = vmul.f32 %v699, %v776
  %v778 = vmul.f32 %v700, %v776
  %v779 = vmul.f32 %v701, %v776
  %v780 = vmul.f32 %v702, %v776
  %v781 = vmul.f32 %v703, %v776
  %v782 = vmul.f32 %v704, %v776
  %v783 = vmul.f32 %v705, %v776
  %v784 = vmul.f32 %v706, %v776
  %v785 = vmul.f32 %v707, %v776
  %v786 = vmul.f32 %v708, %v776
  %v787 = vmul.f32 %v709, %v776
  %v788 = vmul.f32 %v710, %v776
  %v789 = vmul.f32 %v711, %v776
  %v790 = vmul.f32 %v712, %v776
  %v791 = vmul.f32 %v713, %v776
  %v792 = vmul.f32 %v714, %v776
  %v793 = vmul.f32 %v715, %v776
  %v794 = vmul.f32 %v716, %v776
  %v795 = vmul.f32 %v717, %v776
  %v796 = vmul.f32 %v718, %v776
  %v797 = vmul.f32 %v719, %v776
  %v798 = vmul.f32 %v720, %v776
  %v799 = vmul.f32 %v721, %v776
  %v800 = vmul.f32 %v722, %v776
  %v801 = vmul.f32 %v723, %v776
  %v802 = vmul.f32 %v724, %v776
  %v803 = vmul.f32 %v725, %v776
  %v804 = vmul.f32 %v726, %v776
  %v805 = vmul.f32 %v727, %v776
  %v806 = vmul.f32 %v728, %v776
  %v807 = vmul.f32 %v729, %v776
  %v808 = vmul.f32 %v730, %v776
  %v809 = vmul.f32 %v731, %v776
  %v810 = vmul.f32 %v732, %v776
  %v811 = vmul.f32 %v733, %v776
  %v812 = vmul.f32 %v734, %v776
  %v813 = vmul.f32 %v735, %v776
  %v814 = vmul.f32 %v736, %v776
  %v815 = vmul.f32 %v737, %v776
  %v816 = vmul.f32 %v738, %v776
  %v817 = vmul.f32 %v739, %v776
  %v818 = vmul.f32 %v740, %v776
  %v819 = vmul.f32 %v741, %v776
  %v820 = vmul.f32 %v742, %v776
  %v821 = vmul.f32 %v743, %v776
  %v822 = vmul.f32 %v744, %v776
  %v823 = vmul.f32 %v745, %v776
  %v824 = vmul.f32 %v746, %v776
  %v825 = vmul.f32 %v747, %v776
  %v826 = vmul.f32 %v748, %v776
  %v827 = vmul.f32 %v749, %v776
  %v828 = vmul.f32 %v750, %v776
  %v829 = vmul.f32 %v751, %v776
  %v830 = vmul.f32 %v752, %v776
  %v831 = vmul.f32 %v753, %v776
  %v832 = vmul.f32 %v754, %v776
  %v833 = vmul.f32 %v755, %v776
  %v834 = vmul.f32 %v756, %v776
  %v835 = vmul.f32 %v757, %v776
  %v836 = vmul.f32 %v758, %v776
  %v837 = vmul.f32 %v759, %v776
  %v838 = vmul.f32 %v760, %v776
  %v839 = vmul.f32 %v761, %v776
  %v840 = vmul.f32 %v762, %v776
  %v841 = vmul.f32 %v763, %v776
  %v842 = vmul.f32 %v764, %v776
  %v843 = vmul.f32 %v765, %v776
  %v844 = vmul.f32 %v766, %v776
  %v845 = vmul.f32 %v767, %v776
  %v846 = vmul.f32 %v768, %v776
  %v847 = vmul.f32 %v769, %v776
  %v848 = vmul.f32 %v770, %v776
  %v849 = vmul.f32 %v771, %v776
  %v850 = vmul.f32 %v772, %v776
  %v851 = vmul.f32 %v773, %v776
  %v852 = vmul.f32 %v774, %v776
  %v853 = vmul.f32 %v775, %v776
  %v854 = vfloor.f32 %v777
  %v855 = vfloor.f32 %v778
  %v856 = vfloor.f32 %v779
  %v857 = vfloor.f32 %v780
  %v858 = vfloor.f32 %v781
  %v859 = vfloor.f32 %v782
  %v860 = vfloor.f32 %v783
  %v861 = vfloor.f32 %v784
  %v862 = vfloor.f32 %v785
  %v863 = vfloor.f32 %v786
  %v864 = vfloor.f32 %v787
  %v865 = vfloor.f32 %v788
  %v866 = vfloor.f32 %v789
  %v867 = vfloor.f32 %v790
  %v868 = vfloor.f32 %v791
  %v869 = vfloor.f32 %v792
  %v870 = vfloor.f32 %v793
  %v871 = vfloor.f32 %v794
  %v872 = vfloor.f32 %v795
  %v873 = vfloor.f32 %v796
  %v874 = vfloor.f32 %v797
  %v875 = vfloor.f32 %v798
  %v876 = vfloor.f32 %v799
  %v877 = vfloor.f32 %v800
  %v878 = vfloor.f32 %v801
  %v879 = vfloor.f32 %v802
  %v880 = vfloor.f32 %v803
  %v881 = vfloor.f32 %v804
  %v882 = vfloor.f32 %v805
  %v883 = vfloor.f32 %v806
  %v884 = vfloor.f32 %v807
  %v885 = vfloor.f32 %v808
  %v886 = vfloor.f32 %v809
  %v887 = vfloor.f32 %v810
  %v888 = vfloor.f32 %v811
  %v889 = vfloor.f32 %v812
  %v890 = vfloor.f32 %v813
  %v891 = vfloor.f32 %v814
  %v892 = vfloor.f32 %v815
  %v893 = vfloor.f32 %v816
  %v894 = vfloor.f32 %v817
  %v895 = vfloor.f32 %v818
  %v896 = vfloor.f32 %v819
  %v897 = vfloor.f32 %v820
  %v898 = vfloor.f32 %v821
  %v899 = vfloor.f32 %v822
  %v900 = vfloor.f32 %v823
  %v901 = vfloor.f32 %v824
  %v902 = vfloor.f32 %v825
  %v903 = vfloor.f32 %v826
  %v904 = vfloor.f32 %v827
  %v905 = vfloor.f32 %v828
  %v906 = vfloor.f32 %v829
  %v907 = vfloor.f32 %v830
  %v908 = vfloor.f32 %v831
  %v909 = vfloor.f32 %v832
  %v910 = vfloor.f32 %v833
  %v911 = vfloor.f32 %v834
  %v912 = vfloor.f32 %v835
  %v913 = vfloor.f32 %v836
  %v914 = vfloor.f32 %v837
  %v915 = vfloor.f32 %v838
  %v916 = vfloor.f32 %v839
  %v917 = vfloor.f32 %v840
  %v918 = vfloor.f32 %v841
  %v919 = vfloor.f32 %v842
  %v920 = vfloor.f32 %v843
  %v921 = vfloor.f32 %v844
  %v922 = vfloor.f32 %v845
  %v923 = vfloor.f32 %v846
  %v924 = vfloor.f32 %v847
  %v925 = vfloor.f32 %v848
  %v926 = vfloor.f32 %v849
  %v927 = vfloor.f32 %v850
  %v928 = vfloor.f32 %v851
  %v929 = vfloor.f32 %v852
  %v930 = vfloor.f32 %v853
  %v931 = vmul.f32 %v854, 18.0
  %v932 = vmul.f32 %v855, 18.0
  %v933 = vmul.f32 %v856, 18.0
  %v934 = vmul.f32 %v857, 18.0
  %v935 = vmul.f32 %v858, 18.0
  %v936 = vmul.f32 %v859, 18.0
  %v937 = vmul.f32 %v860, 18.0
  %v938 = vmul.f32 %v861, 18.0
  %v939 = vmul.f32 %v862, 18.0
  %v940 = vmul.f32 %v863, 18.0
  %v941 = vmul.f32 %v864, 18.0
  %v942 = vmul.f32 %v865, 18.0
  %v943 = vmul.f32 %v866, 18.0
  %v944 = vmul.f32 %v867, 18.0
  %v945 = vmul.f32 %v868, 18.0
  %v946 = vmul.f32 %v869, 18.0
  %v947 = vmul.f32 %v870, 18.0
  %v948 = vmul.f32 %v871, 18.0
  %v949 = vmul.f32 %v872, 18.0
  %v950 = vmul.f32 %v873, 18.0
  %v951 = vmul.f32 %v874, 18.0
  %v952 = vmul.f32 %v875, 18.0
  %v953 = vmul.f32 %v876, 18.0
  %v954 = vmul.f32 %v877, 18.0
  %v955 = vmul.f32 %v878, 18.0
  %v956 = vmul.f32 %v879, 18.0
  %v957 = vmul.f32 %v880, 18.0
  %v958 = vmul.f32 %v881, 18.0
  %v959 = vmul.f32 %v882, 18.0
  %v960 = vmul.f32 %v883, 18.0
  %v961 = vmul.f32 %v884, 18.0
  %v962 = vmul.f32 %v885, 18.0
  %v963 = vmul.f32 %v886, 18.0
  %v964 = vmul.f32 %v887, 18.0
  %v965 = vmul.f32 %v888, 18.0
  %v966 = vmul.f32 %v889, 18.0
  %v967 = vmul.f32 %v890, 18.0
  %v968 = vmul.f32 %v891, 18.0
  %v969 = vmul.f32 %v892, 18.0
  %v970 = vmul.f32 %v893, 18.0
  %v971 = vmul.f32 %v894, 18.0
  %v972 = vmul.f32 %v895, 18.0
  %v973 = vmul.f32 %v896, 18.0
  %v974 = vmul.f32 %v897, 18.0
  %v975 = vmul.f32 %v898, 18.0
  %v976 = vmul.f32 %v899, 18.0
  %v977 = vmul.f32 %v900, 18.0
  %v978 = vmul.f32 %v901, 18.0
  %v979 = vmul.f32 %v902, 18.0
  %v980 = vmul.f32 %v903, 18.0
  %v981 = vmul.f32 %v904, 18.0
  %v982 = vmul.f32 %v905, 18.0
  %v983 = vmul.f32 %v906, 18.0
  %v984 = vmul.f32 %v907, 18.0
  %v985 = vmul.f32 %v908, 18.0
  %v986 = vmul.f32 %v909, 18.0
  %v987 = vmul.f32 %v910, 18.0
  %v988 = vmul.f32 %v911, 18.0
  %v989 = vmul.f32 %v912, 18.0
  %v990 = vmul.f32 %v913, 18.0
  %v991 = vmul.f32 %v914, 18.0
  %v992 = vmul.f32 %v915, 18.0
  %v993 = vmul.f32 %v916, 18.0
  %v994 = vmul.f32 %v917, 18.0
  %v995 = vmul.f32 %v918, 18.0
  %v996 = vmul.f32 %v919, 18.0
  %v997 = vmul.f32 %v920, 18.0
  %v998 = vmul.f32 %v921, 18.0
  %v999 = vmul.f32 %v922, 18.0
  %v1000 = vmul.f32 %v923, 18.0
  %v1001 = vmul.f32 %v924, 18.0
  %v1002 = vmul.f32 %v925, 18.0
  %v1003 = vmul.f32 %v926, 18.0
  %v1004 = vmul.f32 %v927, 18.0
  %v1005 = vmul.f32 %v928, 18.0
  %v1006 = vmul.f32 %v929, 18.0
  %v1007 = vmul.f32 %v930, 18.0
  %v1008 = vsub.f32 %v622, %v931
  %v1009 = vsub.f32 %v623, %v932
  %v1010 = vsub.f32 %v624, %v933
  %v1011 = vsub.f32 %v625, %v934
  %v1012 = vsub.f32 %v626, %v935
  %v1013 = vsub.f32 %v627, %v936
  %v1014 = vsub.f32 %v628, %v937
  %v1015 = vsub.f32 %v629, %v938
  %v1016 = vsub.f32 %v630, %v939
  %v1017 = vsub.f32 %v631, %v940
  %v1018 = vsub.f32 %v632, %v941
  %v1019 = vsub.f32 %v633, %v942
  %v1020 = vsub.f32 %v634, %v943
  %v1021 = vsub.f32 %v635, %v944
  %v1022 = vsub.f32 %v636, %v945
  %v1023 = vsub.f32 %v637, %v946
  %v1024 = vsub.f32 %v638, %v947
  %v1025 = vsub.f32 %v639, %v948
  %v1026 = vsub.f32 %v640, %v949
  %v1027 = vsub.f32 %v641, %v950
  %v1028 = vsub.f32 %v642, %v951
  %v1029 = vsub.f32 %v643, %v952
  %v1030 = vsub.f32 %v644, %v953
  %v1031 = vsub.f32 %v645, %v954
  %v1032 = vsub.f32 %v646, %v955
  %v1033 = vsub.f32 %v647, %v956
  %v1034 = vsub.f32 %v648, %v957
  %v1035 = vsub.f32 %v649, %v958
  %v1036 = vsub.f32 %v650, %v959
  %v1037 = vsub.f32 %v651, %v960
  %v1038 = vsub.f32 %v652, %v961
  %v1039 = vsub.f32 %v653, %v962
  %v1040 = vsub.f32 %v654, %v963
  %v1041 = vsub.f32 %v655, %v964
  %v1042 = vsub.f32 %v656, %v965
  %v1043 = vsub.f32 %v657, %v966
  %v1044 = vsub.f32 %v658, %v967
  %v1045 = vsub.f32 %v659, %v968
  %v1046 = vsub.f32 %v660, %v969
  %v1047 = vsub.f32 %v661, %v970
  %v1048 = vsub.f32 %v662, %v971
  %v1049 = vsub.f32 %v663, %v972
  %v1050 = vsub.f32 %v664, %v973
  %v1051 = vsub.f32 %v665, %v974
  %v1052 = vsub.f32 %v666, %v975
  %v1053 = vsub.f32 %v667, %v976
  %v1054 = vsub.f32 %v668, %v977
  %v1055 = vsub.f32 %v669, %v978
  %v1056 = vsub.f32 %v670, %v979
  %v1057 = vsub.f32 %v671, %v980
  %v1058 = vsub.f32 %v672, %v981
  %v1059 = vsub.f32 %v673, %v982
  %v1060 = vsub.f32 %v674, %v983
  %v1061 = vsub.f32 %v675, %v984
  %v1062 = vsub.f32 %v676, %v985
  %v1063 = vsub.f32 %v677, %v986
  %v1064 = vsub.f32 %v678, %v987
  %v1065 = vsub.f32 %v679, %v988
  %v1066 = vsub.f32 %v680, %v989
  %v1067 = vsub.f32 %v681, %v990
  %v1068 = vsub.f32 %v682, %v991
  %v1069 = vsub.f32 %v683, %v992
  %v1070 = vsub.f32 %v684, %v993
  %v1071 = vsub.f32 %v685, %v994
  %v1072 = vsub.f32 %v686, %v995
  %v1073 = vsub.f32 %v687, %v996
  %v1074 = vsub.f32 %v688, %v997
  %v1075 = vsub.f32 %v689, %v998
  %v1076 = vsub.f32 %v690, %v999
  %v1077 = vsub.f32 %v691, %v1000
  %v1078 = vsub.f32 %v692, %v1001
  %v1079 = vsub.f32 %v693, %v1002
  %v1080 = vsub.f32 %v694, %v1003
  %v1081 = vsub.f32 %v695, %v1004
  %v1082 = vsub.f32 %v696, %v1005
  %v1083 = vsub.f32 %v697, %v1006
  %v1084 = vsub.f32 %v698, %v1007
  %vm1085 = vcmp.ge.f32.partialorder %v622, 18.0
  %vm1086 = vcmp.ge.f32.partialorder %v623, 18.0
  %vm1087 = vcmp.ge.f32.partialorder %v624, 18.0
  %vm1088 = vcmp.ge.f32.partialorder %v625, 18.0
  %vm1089 = vcmp.ge.f32.partialorder %v626, 18.0
  %vm1090 = vcmp.ge.f32.partialorder %v627, 18.0
  %vm1091 = vcmp.ge.f32.partialorder %v628, 18.0
  %vm1092 = vcmp.ge.f32.partialorder %v629, 18.0
  %vm1093 = vcmp.ge.f32.partialorder %v630, 18.0
  %vm1094 = vcmp.ge.f32.partialorder %v631, 18.0
  %vm1095 = vcmp.ge.f32.partialorder %v632, 18.0
  %vm1096 = vcmp.ge.f32.partialorder %v633, 18.0
  %vm1097 = vcmp.ge.f32.partialorder %v634, 18.0
  %vm1098 = vcmp.ge.f32.partialorder %v635, 18.0
  %vm1099 = vcmp.ge.f32.partialorder %v636, 18.0
  %vm1100 = vcmp.ge.f32.partialorder %v637, 18.0
  %vm1101 = vcmp.ge.f32.partialorder %v638, 18.0
  %vm1102 = vcmp.ge.f32.partialorder %v639, 18.0
  %vm1103 = vcmp.ge.f32.partialorder %v640, 18.0
  %vm1104 = vcmp.ge.f32.partialorder %v641, 18.0
  %vm1105 = vcmp.ge.f32.partialorder %v642, 18.0
  %vm1106 = vcmp.ge.f32.partialorder %v643, 18.0
  %vm1107 = vcmp.ge.f32.partialorder %v644, 18.0
  %vm1108 = vcmp.ge.f32.partialorder %v645, 18.0
  %vm1109 = vcmp.ge.f32.partialorder %v646, 18.0
  %vm1110 = vcmp.ge.f32.partialorder %v647, 18.0
  %vm1111 = vcmp.ge.f32.partialorder %v648, 18.0
  %vm1112 = vcmp.ge.f32.partialorder %v649, 18.0
  %vm1113 = vcmp.ge.f32.partialorder %v650, 18.0
  %vm1114 = vcmp.ge.f32.partialorder %v651, 18.0
  %vm1115 = vcmp.ge.f32.partialorder %v652, 18.0
  %vm1116 = vcmp.ge.f32.partialorder %v653, 18.0
  %vm1117 = vcmp.ge.f32.partialorder %v654, 18.0
  %vm1118 = vcmp.ge.f32.partialorder %v655, 18.0
  %vm1119 = vcmp.ge.f32.partialorder %v656, 18.0
  %vm1120 = vcmp.ge.f32.partialorder %v657, 18.0
  %vm1121 = vcmp.ge.f32.partialorder %v658, 18.0
  %vm1122 = vcmp.ge.f32.partialorder %v659, 18.0
  %vm1123 = vcmp.ge.f32.partialorder %v660, 18.0
  %vm1124 = vcmp.ge.f32.partialorder %v661, 18.0
  %vm1125 = vcmp.ge.f32.partialorder %v662, 18.0
  %vm1126 = vcmp.ge.f32.partialorder %v663, 18.0
  %vm1127 = vcmp.ge.f32.partialorder %v664, 18.0
  %vm1128 = vcmp.ge.f32.partialorder %v665, 18.0
  %vm1129 = vcmp.ge.f32.partialorder %v666, 18.0
  %vm1130 = vcmp.ge.f32.partialorder %v667, 18.0
  %vm1131 = vcmp.ge.f32.partialorder %v668, 18.0
  %vm1132 = vcmp.ge.f32.partialorder %v669, 18.0
  %vm1133 = vcmp.ge.f32.partialorder %v670, 18.0
  %vm1134 = vcmp.ge.f32.partialorder %v671, 18.0
  %vm1135 = vcmp.ge.f32.partialorder %v672, 18.0
  %vm1136 = vcmp.ge.f32.partialorder %v673, 18.0
  %vm1137 = vcmp.ge.f32.partialorder %v674, 18.0
  %vm1138 = vcmp.ge.f32.partialorder %v675, 18.0
  %vm1139 = vcmp.ge.f32.partialorder %v676, 18.0
  %vm1140 = vcmp.ge.f32.partialorder %v677, 18.0
  %vm1141 = vcmp.ge.f32.partialorder %v678, 18.0
  %vm1142 = vcmp.ge.f32.partialorder %v679, 18.0
  %vm1143 = vcmp.ge.f32.partialorder %v680, 18.0
  %vm1144 = vcmp.ge.f32.partialorder %v681, 18.0
  %vm1145 = vcmp.ge.f32.partialorder %v682, 18.0
  %vm1146 = vcmp.ge.f32.partialorder %v683, 18.0
  %vm1147 = vcmp.ge.f32.partialorder %v684, 18.0
  %vm1148 = vcmp.ge.f32.partialorder %v685, 18.0
  %vm1149 = vcmp.ge.f32.partialorder %v686, 18.0
  %vm1150 = vcmp.ge.f32.partialorder %v687, 18.0
  %vm1151 = vcmp.ge.f32.partialorder %v688, 18.0
  %vm1152 = vcmp.ge.f32.partialorder %v689, 18.0
  %vm1153 = vcmp.ge.f32.partialorder %v690, 18.0
  %vm1154 = vcmp.ge.f32.partialorder %v691, 18.0
  %vm1155 = vcmp.ge.f32.partialorder %v692, 18.0
  %vm1156 = vcmp.ge.f32.partialorder %v693, 18.0
  %vm1157 = vcmp.ge.f32.partialorder %v694, 18.0
  %vm1158 = vcmp.ge.f32.partialorder %v695, 18.0
  %vm1159 = vcmp.ge.f32.partialorder %v696, 18.0
  %vm1160 = vcmp.ge.f32.partialorder %v697, 18.0
  %vm1161 = vcmp.ge.f32.partialorder %v698, 18.0
  %vm1162 = vcmp.lt.f32.partialorder %v622, 306.0
  %vm1163 = vcmp.lt.f32.partialorder %v623, 306.0
  %vm1164 = vcmp.lt.f32.partialorder %v624, 306.0
  %vm1165 = vcmp.lt.f32.partialorder %v625, 306.0
  %vm1166 = vcmp.lt.f32.partialorder %v626, 306.0
  %vm1167 = vcmp.lt.f32.partialorder %v627, 306.0
  %vm1168 = vcmp.lt.f32.partialorder %v628, 306.0
  %vm1169 = vcmp.lt.f32.partialorder %v629, 306.0
  %vm1170 = vcmp.lt.f32.partialorder %v630, 306.0
  %vm1171 = vcmp.lt.f32.partialorder %v631, 306.0
  %vm1172 = vcmp.lt.f32.partialorder %v632, 306.0
  %vm1173 = vcmp.lt.f32.partialorder %v633, 306.0
  %vm1174 = vcmp.lt.f32.partialorder %v634, 306.0
  %vm1175 = vcmp.lt.f32.partialorder %v635, 306.0
  %vm1176 = vcmp.lt.f32.partialorder %v636, 306.0
  %vm1177 = vcmp.lt.f32.partialorder %v637, 306.0
  %vm1178 = vcmp.lt.f32.partialorder %v638, 306.0
  %vm1179 = vcmp.lt.f32.partialorder %v639, 306.0
  %vm1180 = vcmp.lt.f32.partialorder %v640, 306.0
  %vm1181 = vcmp.lt.f32.partialorder %v641, 306.0
  %vm1182 = vcmp.lt.f32.partialorder %v642, 306.0
  %vm1183 = vcmp.lt.f32.partialorder %v643, 306.0
  %vm1184 = vcmp.lt.f32.partialorder %v644, 306.0
  %vm1185 = vcmp.lt.f32.partialorder %v645, 306.0
  %vm1186 = vcmp.lt.f32.partialorder %v646, 306.0
  %vm1187 = vcmp.lt.f32.partialorder %v647, 306.0
  %vm1188 = vcmp.lt.f32.partialorder %v648, 306.0
  %vm1189 = vcmp.lt.f32.partialorder %v649, 306.0
  %vm1190 = vcmp.lt.f32.partialorder %v650, 306.0
  %vm1191 = vcmp.lt.f32.partialorder %v651, 306.0
  %vm1192 = vcmp.lt.f32.partialorder %v652, 306.0
  %vm1193 = vcmp.lt.f32.partialorder %v653, 306.0
  %vm1194 = vcmp.lt.f32.partialorder %v654, 306.0
  %vm1195 = vcmp.lt.f32.partialorder %v655, 306.0
  %vm1196 = vcmp.lt.f32.partialorder %v656, 306.0
  %vm1197 = vcmp.lt.f32.partialorder %v657, 306.0
  %vm1198 = vcmp.lt.f32.partialorder %v658, 306.0
  %vm1199 = vcmp.lt.f32.partialorder %v659, 306.0
  %vm1200 = vcmp.lt.f32.partialorder %v660, 306.0
  %vm1201 = vcmp.lt.f32.partialorder %v661, 306.0
  %vm1202 = vcmp.lt.f32.partialorder %v662, 306.0
  %vm1203 = vcmp.lt.f32.partialorder %v663, 306.0
  %vm1204 = vcmp.lt.f32.partialorder %v664, 306.0
  %vm1205 = vcmp.lt.f32.partialorder %v665, 306.0
  %vm1206 = vcmp.lt.f32.partialorder %v666, 306.0
  %vm1207 = vcmp.lt.f32.partialorder %v667, 306.0
  %vm1208 = vcmp.lt.f32.partialorder %v668, 306.0
  %vm1209 = vcmp.lt.f32.partialorder %v669, 306.0
  %vm1210 = vcmp.lt.f32.partialorder %v670, 306.0
  %vm1211 = vcmp.lt.f32.partialorder %v671, 306.0
  %vm1212 = vcmp.lt.f32.partialorder %v672, 306.0
  %vm1213 = vcmp.lt.f32.partialorder %v673, 306.0
  %vm1214 = vcmp.lt.f32.partialorder %v674, 306.0
  %vm1215 = vcmp.lt.f32.partialorder %v675, 306.0
  %vm1216 = vcmp.lt.f32.partialorder %v676, 306.0
  %vm1217 = vcmp.lt.f32.partialorder %v677, 306.0
  %vm1218 = vcmp.lt.f32.partialorder %v678, 306.0
  %vm1219 = vcmp.lt.f32.partialorder %v679, 306.0
  %vm1220 = vcmp.lt.f32.partialorder %v680, 306.0
  %vm1221 = vcmp.lt.f32.partialorder %v681, 306.0
  %vm1222 = vcmp.lt.f32.partialorder %v682, 306.0
  %vm1223 = vcmp.lt.f32.partialorder %v683, 306.0
  %vm1224 = vcmp.lt.f32.partialorder %v684, 306.0
  %vm1225 = vcmp.lt.f32.partialorder %v685, 306.0
  %vm1226 = vcmp.lt.f32.partialorder %v686, 306.0
  %vm1227 = vcmp.lt.f32.partialorder %v687, 306.0
  %vm1228 = vcmp.lt.f32.partialorder %v688, 306.0
  %vm1229 = vcmp.lt.f32.partialorder %v689, 306.0
  %vm1230 = vcmp.lt.f32.partialorder %v690, 306.0
  %vm1231 = vcmp.lt.f32.partialorder %v691, 306.0
  %vm1232 = vcmp.lt.f32.partialorder %v692, 306.0
  %vm1233 = vcmp.lt.f32.partialorder %v693, 306.0
  %vm1234 = vcmp.lt.f32.partialorder %v694, 306.0
  %vm1235 = vcmp.lt.f32.partialorder %v695, 306.0
  %vm1236 = vcmp.lt.f32.partialorder %v696, 306.0
  %vm1237 = vcmp.lt.f32.partialorder %v697, 306.0
  %vm1238 = vcmp.lt.f32.partialorder %v698, 306.0
  %vm1239 = vmand %vm1085, %vm1162
  %vm1240 = vmand %vm1086, %vm1163
  %vm1241 = vmand %vm1087, %vm1164
  %vm1242 = vmand %vm1088, %vm1165
  %vm1243 = vmand %vm1089, %vm1166
  %vm1244 = vmand %vm1090, %vm1167
  %vm1245 = vmand %vm1091, %vm1168
  %vm1246 = vmand %vm1092, %vm1169
  %vm1247 = vmand %vm1093, %vm1170
  %vm1248 = vmand %vm1094, %vm1171
  %vm1249 = vmand %vm1095, %vm1172
  %vm1250 = vmand %vm1096, %vm1173
  %vm1251 = vmand %vm1097, %vm1174
  %vm1252 = vmand %vm1098, %vm1175
  %vm1253 = vmand %vm1099, %vm1176
  %vm1254 = vmand %vm1100, %vm1177
  %vm1255 = vmand %vm1101, %vm1178
  %vm1256 = vmand %vm1102, %vm1179
  %vm1257 = vmand %vm1103, %vm1180
  %vm1258 = vmand %vm1104, %vm1181
  %vm1259 = vmand %vm1105, %vm1182
  %vm1260 = vmand %vm1106, %vm1183
  %vm1261 = vmand %vm1107, %vm1184
  %vm1262 = vmand %vm1108, %vm1185
  %vm1263 = vmand %vm1109, %vm1186
  %vm1264 = vmand %vm1110, %vm1187
  %vm1265 = vmand %vm1111, %vm1188
  %vm1266 = vmand %vm1112, %vm1189
  %vm1267 = vmand %vm1113, %vm1190
  %vm1268 = vmand %vm1114, %vm1191
  %vm1269 = vmand %vm1115, %vm1192
  %vm1270 = vmand %vm1116, %vm1193
  %vm1271 = vmand %vm1117, %vm1194
  %vm1272 = vmand %vm1118, %vm1195
  %vm1273 = vmand %vm1119, %vm1196
  %vm1274 = vmand %vm1120, %vm1197
  %vm1275 = vmand %vm1121, %vm1198
  %vm1276 = vmand %vm1122, %vm1199
  %vm1277 = vmand %vm1123, %vm1200
  %vm1278 = vmand %vm1124, %vm1201
  %vm1279 = vmand %vm1125, %vm1202
  %vm1280 = vmand %vm1126, %vm1203
  %vm1281 = vmand %vm1127, %vm1204
  %vm1282 = vmand %vm1128, %vm1205
  %vm1283 = vmand %vm1129, %vm1206
  %vm1284 = vmand %vm1130, %vm1207
  %vm1285 = vmand %vm1131, %vm1208
  %vm1286 = vmand %vm1132, %vm1209
  %vm1287 = vmand %vm1133, %vm1210
  %vm1288 = vmand %vm1134, %vm1211
  %vm1289 = vmand %vm1135, %vm1212
  %vm1290 = vmand %vm1136, %vm1213
  %vm1291 = vmand %vm1137, %vm1214
  %vm1292 = vmand %vm1138, %vm1215
  %vm1293 = vmand %vm1139, %vm1216
  %vm1294 = vmand %vm1140, %vm1217
  %vm1295 = vmand %vm1141, %vm1218
  %vm1296 = vmand %vm1142, %vm1219
  %vm1297 = vmand %vm1143, %vm1220
  %vm1298 = vmand %vm1144, %vm1221
  %vm1299 = vmand %vm1145, %vm1222
  %vm1300 = vmand %vm1146, %vm1223
  %vm1301 = vmand %vm1147, %vm1224
  %vm1302 = vmand %vm1148, %vm1225
  %vm1303 = vmand %vm1149, %vm1226
  %vm1304 = vmand %vm1150, %vm1227
  %vm1305 = vmand %vm1151, %vm1228
  %vm1306 = vmand %vm1152, %vm1229
  %vm1307 = vmand %vm1153, %vm1230
  %vm1308 = vmand %vm1154, %vm1231
  %vm1309 = vmand %vm1155, %vm1232
  %vm1310 = vmand %vm1156, %vm1233
  %vm1311 = vmand %vm1157, %vm1234
  %vm1312 = vmand %vm1158, %vm1235
  %vm1313 = vmand %vm1159, %vm1236
  %vm1314 = vmand %vm1160, %vm1237
  %vm1315 = vmand %vm1161, %vm1238
  %vm1316 = vcmp.ge.f32.partialorder %v1008, 1.0
  %vm1317 = vcmp.ge.f32.partialorder %v1009, 1.0
  %vm1318 = vcmp.ge.f32.partialorder %v1010, 1.0
  %vm1319 = vcmp.ge.f32.partialorder %v1011, 1.0
  %vm1320 = vcmp.ge.f32.partialorder %v1012, 1.0
  %vm1321 = vcmp.ge.f32.partialorder %v1013, 1.0
  %vm1322 = vcmp.ge.f32.partialorder %v1014, 1.0
  %vm1323 = vcmp.ge.f32.partialorder %v1015, 1.0
  %vm1324 = vcmp.ge.f32.partialorder %v1016, 1.0
  %vm1325 = vcmp.ge.f32.partialorder %v1017, 1.0
  %vm1326 = vcmp.ge.f32.partialorder %v1018, 1.0
  %vm1327 = vcmp.ge.f32.partialorder %v1019, 1.0
  %vm1328 = vcmp.ge.f32.partialorder %v1020, 1.0
  %vm1329 = vcmp.ge.f32.partialorder %v1021, 1.0
  %vm1330 = vcmp.ge.f32.partialorder %v1022, 1.0
  %vm1331 = vcmp.ge.f32.partialorder %v1023, 1.0
  %vm1332 = vcmp.ge.f32.partialorder %v1024, 1.0
  %vm1333 = vcmp.ge.f32.partialorder %v1025, 1.0
  %vm1334 = vcmp.ge.f32.partialorder %v1026, 1.0
  %vm1335 = vcmp.ge.f32.partialorder %v1027, 1.0
  %vm1336 = vcmp.ge.f32.partialorder %v1028, 1.0
  %vm1337 = vcmp.ge.f32.partialorder %v1029, 1.0
  %vm1338 = vcmp.ge.f32.partialorder %v1030, 1.0
  %vm1339 = vcmp.ge.f32.partialorder %v1031, 1.0
  %vm1340 = vcmp.ge.f32.partialorder %v1032, 1.0
  %vm1341 = vcmp.ge.f32.partialorder %v1033, 1.0
  %vm1342 = vcmp.ge.f32.partialorder %v1034, 1.0
  %vm1343 = vcmp.ge.f32.partialorder %v1035, 1.0
  %vm1344 = vcmp.ge.f32.partialorder %v1036, 1.0
  %vm1345 = vcmp.ge.f32.partialorder %v1037, 1.0
  %vm1346 = vcmp.ge.f32.partialorder %v1038, 1.0
  %vm1347 = vcmp.ge.f32.partialorder %v1039, 1.0
  %vm1348 = vcmp.ge.f32.partialorder %v1040, 1.0
  %vm1349 = vcmp.ge.f32.partialorder %v1041, 1.0
  %vm1350 = vcmp.ge.f32.partialorder %v1042, 1.0
  %vm1351 = vcmp.ge.f32.partialorder %v1043, 1.0
  %vm1352 = vcmp.ge.f32.partialorder %v1044, 1.0
  %vm1353 = vcmp.ge.f32.partialorder %v1045, 1.0
  %vm1354 = vcmp.ge.f32.partialorder %v1046, 1.0
  %vm1355 = vcmp.ge.f32.partialorder %v1047, 1.0
  %vm1356 = vcmp.ge.f32.partialorder %v1048, 1.0
  %vm1357 = vcmp.ge.f32.partialorder %v1049, 1.0
  %vm1358 = vcmp.ge.f32.partialorder %v1050, 1.0
  %vm1359 = vcmp.ge.f32.partialorder %v1051, 1.0
  %vm1360 = vcmp.ge.f32.partialorder %v1052, 1.0
  %vm1361 = vcmp.ge.f32.partialorder %v1053, 1.0
  %vm1362 = vcmp.ge.f32.partialorder %v1054, 1.0
  %vm1363 = vcmp.ge.f32.partialorder %v1055, 1.0
  %vm1364 = vcmp.ge.f32.partialorder %v1056, 1.0
  %vm1365 = vcmp.ge.f32.partialorder %v1057, 1.0
  %vm1366 = vcmp.ge.f32.partialorder %v1058, 1.0
  %vm1367 = vcmp.ge.f32.partialorder %v1059, 1.0
  %vm1368 = vcmp.ge.f32.partialorder %v1060, 1.0
  %vm1369 = vcmp.ge.f32.partialorder %v1061, 1.0
  %vm1370 = vcmp.ge.f32.partialorder %v1062, 1.0
  %vm1371 = vcmp.ge.f32.partialorder %v1063, 1.0
  %vm1372 = vcmp.ge.f32.partialorder %v1064, 1.0
  %vm1373 = vcmp.ge.f32.partialorder %v1065, 1.0
  %vm1374 = vcmp.ge.f32.partialorder %v1066, 1.0
  %vm1375 = vcmp.ge.f32.partialorder %v1067, 1.0
  %vm1376 = vcmp.ge.f32.partialorder %v1068, 1.0
  %vm1377 = vcmp.ge.f32.partialorder %v1069, 1.0
  %vm1378 = vcmp.ge.f32.partialorder %v1070, 1.0
  %vm1379 = vcmp.ge.f32.partialorder %v1071, 1.0
  %vm1380 = vcmp.ge.f32.partialorder %v1072, 1.0
  %vm1381 = vcmp.ge.f32.partialorder %v1073, 1.0
  %vm1382 = vcmp.ge.f32.partialorder %v1074, 1.0
  %vm1383 = vcmp.ge.f32.partialorder %v1075, 1.0
  %vm1384 = vcmp.ge.f32.partialorder %v1076, 1.0
  %vm1385 = vcmp.ge.f32.partialorder %v1077, 1.0
  %vm1386 = vcmp.ge.f32.partialorder %v1078, 1.0
  %vm1387 = vcmp.ge.f32.partialorder %v1079, 1.0
  %vm1388 = vcmp.ge.f32.partialorder %v1080, 1.0
  %vm1389 = vcmp.ge.f32.partialorder %v1081, 1.0
  %vm1390 = vcmp.ge.f32.partialorder %v1082, 1.0
  %vm1391 = vcmp.ge.f32.partialorder %v1083, 1.0
  %vm1392 = vcmp.ge.f32.partialorder %v1084, 1.0
  %vm1393 = vmand %vm1239, %vm1316
  %vm1394 = vmand %vm1240, %vm1317
  %vm1395 = vmand %vm1241, %vm1318
  %vm1396 = vmand %vm1242, %vm1319
  %vm1397 = vmand %vm1243, %vm1320
  %vm1398 = vmand %vm1244, %vm1321
  %vm1399 = vmand %vm1245, %vm1322
  %vm1400 = vmand %vm1246, %vm1323
  %vm1401 = vmand %vm1247, %vm1324
  %vm1402 = vmand %vm1248, %vm1325
  %vm1403 = vmand %vm1249, %vm1326
  %vm1404 = vmand %vm1250, %vm1327
  %vm1405 = vmand %vm1251, %vm1328
  %vm1406 = vmand %vm1252, %vm1329
  %vm1407 = vmand %vm1253, %vm1330
  %vm1408 = vmand %vm1254, %vm1331
  %vm1409 = vmand %vm1255, %vm1332
  %vm1410 = vmand %vm1256, %vm1333
  %vm1411 = vmand %vm1257, %vm1334
  %vm1412 = vmand %vm1258, %vm1335
  %vm1413 = vmand %vm1259, %vm1336
  %vm1414 = vmand %vm1260, %vm1337
  %vm1415 = vmand %vm1261, %vm1338
  %vm1416 = vmand %vm1262, %vm1339
  %vm1417 = vmand %vm1263, %vm1340
  %vm1418 = vmand %vm1264, %vm1341
  %vm1419 = vmand %vm1265, %vm1342
  %vm1420 = vmand %vm1266, %vm1343
  %vm1421 = vmand %vm1267, %vm1344
  %vm1422 = vmand %vm1268, %vm1345
  %vm1423 = vmand %vm1269, %vm1346
  %vm1424 = vmand %vm1270, %vm1347
  %vm1425 = vmand %vm1271, %vm1348
  %vm1426 = vmand %vm1272, %vm1349
  %vm1427 = vmand %vm1273, %vm1350
  %vm1428 = vmand %vm1274, %vm1351
  %vm1429 = vmand %vm1275, %vm1352
  %vm1430 = vmand %vm1276, %vm1353
  %vm1431 = vmand %vm1277, %vm1354
  %vm1432 = vmand %vm1278, %vm1355
  %vm1433 = vmand %vm1279, %vm1356
  %vm1434 = vmand %vm1280, %vm1357
  %vm1435 = vmand %vm1281, %vm1358
  %vm1436 = vmand %vm1282, %vm1359
  %vm1437 = vmand %vm1283, %vm1360
  %vm1438 = vmand %vm1284, %vm1361
  %vm1439 = vmand %vm1285, %vm1362
  %vm1440 = vmand %vm1286, %vm1363
  %vm1441 = vmand %vm1287, %vm1364
  %vm1442 = vmand %vm1288, %vm1365
  %vm1443 = vmand %vm1289, %vm1366
  %vm1444 = vmand %vm1290, %vm1367
  %vm1445 = vmand %vm1291, %vm1368
  %vm1446 = vmand %vm1292, %vm1369
  %vm1447 = vmand %vm1293, %vm1370
  %vm1448 = vmand %vm1294, %vm1371
  %vm1449 = vmand %vm1295, %vm1372
  %vm1450 = vmand %vm1296, %vm1373
  %vm1451 = vmand %vm1297, %vm1374
  %vm1452 = vmand %vm1298, %vm1375
  %vm1453 = vmand %vm1299, %vm1376
  %vm1454 = vmand %vm1300, %vm1377
  %vm1455 = vmand %vm1301, %vm1378
  %vm1456 = vmand %vm1302, %vm1379
  %vm1457 = vmand %vm1303, %vm1380
  %vm1458 = vmand %vm1304, %vm1381
  %vm1459 = vmand %vm1305, %vm1382
  %vm1460 = vmand %vm1306, %vm1383
  %vm1461 = vmand %vm1307, %vm1384
  %vm1462 = vmand %vm1308, %vm1385
  %vm1463 = vmand %vm1309, %vm1386
  %vm1464 = vmand %vm1310, %vm1387
  %vm1465 = vmand %vm1311, %vm1388
  %vm1466 = vmand %vm1312, %vm1389
  %vm1467 = vmand %vm1313, %vm1390
  %vm1468 = vmand %vm1314, %vm1391
  %vm1469 = vmand %vm1315, %vm1392
  %vm1470 = vcmp.le.f32.partialorder %v1008, 16.0
  %vm1471 = vcmp.le.f32.partialorder %v1009, 16.0
  %vm1472 = vcmp.le.f32.partialorder %v1010, 16.0
  %vm1473 = vcmp.le.f32.partialorder %v1011, 16.0
  %vm1474 = vcmp.le.f32.partialorder %v1012, 16.0
  %vm1475 = vcmp.le.f32.partialorder %v1013, 16.0
  %vm1476 = vcmp.le.f32.partialorder %v1014, 16.0
  %vm1477 = vcmp.le.f32.partialorder %v1015, 16.0
  %vm1478 = vcmp.le.f32.partialorder %v1016, 16.0
  %vm1479 = vcmp.le.f32.partialorder %v1017, 16.0
  %vm1480 = vcmp.le.f32.partialorder %v1018, 16.0
  %vm1481 = vcmp.le.f32.partialorder %v1019, 16.0
  %vm1482 = vcmp.le.f32.partialorder %v1020, 16.0
  %vm1483 = vcmp.le.f32.partialorder %v1021, 16.0
  %vm1484 = vcmp.le.f32.partialorder %v1022, 16.0
  %vm1485 = vcmp.le.f32.partialorder %v1023, 16.0
  %vm1486 = vcmp.le.f32.partialorder %v1024, 16.0
  %vm1487 = vcmp.le.f32.partialorder %v1025, 16.0
  %vm1488 = vcmp.le.f32.partialorder %v1026, 16.0
  %vm1489 = vcmp.le.f32.partialorder %v1027, 16.0
  %vm1490 = vcmp.le.f32.partialorder %v1028, 16.0
  %vm1491 = vcmp.le.f32.partialorder %v1029, 16.0
  %vm1492 = vcmp.le.f32.partialorder %v1030, 16.0
  %vm1493 = vcmp.le.f32.partialorder %v1031, 16.0
  %vm1494 = vcmp.le.f32.partialorder %v1032, 16.0
  %vm1495 = vcmp.le.f32.partialorder %v1033, 16.0
  %vm1496 = vcmp.le.f32.partialorder %v1034, 16.0
  %vm1497 = vcmp.le.f32.partialorder %v1035, 16.0
  %vm1498 = vcmp.le.f32.partialorder %v1036, 16.0
  %vm1499 = vcmp.le.f32.partialorder %v1037, 16.0
  %vm1500 = vcmp.le.f32.partialorder %v1038, 16.0
  %vm1501 = vcmp.le.f32.partialorder %v1039, 16.0
  %vm1502 = vcmp.le.f32.partialorder %v1040, 16.0
  %vm1503 = vcmp.le.f32.partialorder %v1041, 16.0
  %vm1504 = vcmp.le.f32.partialorder %v1042, 16.0
  %vm1505 = vcmp.le.f32.partialorder %v1043, 16.0
  %vm1506 = vcmp.le.f32.partialorder %v1044, 16.0
  %vm1507 = vcmp.le.f32.partialorder %v1045, 16.0
  %vm1508 = vcmp.le.f32.partialorder %v1046, 16.0
  %vm1509 = vcmp.le.f32.partialorder %v1047, 16.0
  %vm1510 = vcmp.le.f32.partialorder %v1048, 16.0
  %vm1511 = vcmp.le.f32.partialorder %v1049, 16.0
  %vm1512 = vcmp.le.f32.partialorder %v1050, 16.0
  %vm1513 = vcmp.le.f32.partialorder %v1051, 16.0
  %vm1514 = vcmp.le.f32.partialorder %v1052, 16.0
  %vm1515 = vcmp.le.f32.partialorder %v1053, 16.0
  %vm1516 = vcmp.le.f32.partialorder %v1054, 16.0
  %vm1517 = vcmp.le.f32.partialorder %v1055, 16.0
  %vm1518 = vcmp.le.f32.partialorder %v1056, 16.0
  %vm1519 = vcmp.le.f32.partialorder %v1057, 16.0
  %vm1520 = vcmp.le.f32.partialorder %v1058, 16.0
  %vm1521 = vcmp.le.f32.partialorder %v1059, 16.0
  %vm1522 = vcmp.le.f32.partialorder %v1060, 16.0
  %vm1523 = vcmp.le.f32.partialorder %v1061, 16.0
  %vm1524 = vcmp.le.f32.partialorder %v1062, 16.0
  %vm1525 = vcmp.le.f32.partialorder %v1063, 16.0
  %vm1526 = vcmp.le.f32.partialorder %v1064, 16.0
  %vm1527 = vcmp.le.f32.partialorder %v1065, 16.0
  %vm1528 = vcmp.le.f32.partialorder %v1066, 16.0
  %vm1529 = vcmp.le.f32.partialorder %v1067, 16.0
  %vm1530 = vcmp.le.f32.partialorder %v1068, 16.0
  %vm1531 = vcmp.le.f32.partialorder %v1069, 16.0
  %vm1532 = vcmp.le.f32.partialorder %v1070, 16.0
  %vm1533 = vcmp.le.f32.partialorder %v1071, 16.0
  %vm1534 = vcmp.le.f32.partialorder %v1072, 16.0
  %vm1535 = vcmp.le.f32.partialorder %v1073, 16.0
  %vm1536 = vcmp.le.f32.partialorder %v1074, 16.0
  %vm1537 = vcmp.le.f32.partialorder %v1075, 16.0
  %vm1538 = vcmp.le.f32.partialorder %v1076, 16.0
  %vm1539 = vcmp.le.f32.partialorder %v1077, 16.0
  %vm1540 = vcmp.le.f32.partialorder %v1078, 16.0
  %vm1541 = vcmp.le.f32.partialorder %v1079, 16.0
  %vm1542 = vcmp.le.f32.partialorder %v1080, 16.0
  %vm1543 = vcmp.le.f32.partialorder %v1081, 16.0
  %vm1544 = vcmp.le.f32.partialorder %v1082, 16.0
  %vm1545 = vcmp.le.f32.partialorder %v1083, 16.0
  %vm1546 = vcmp.le.f32.partialorder %v1084, 16.0
  %vm1547 = vmand %vm1393, %vm1470
  %vm1548 = vmand %vm1394, %vm1471
  %vm1549 = vmand %vm1395, %vm1472
  %vm1550 = vmand %vm1396, %vm1473
  %vm1551 = vmand %vm1397, %vm1474
  %vm1552 = vmand %vm1398, %vm1475
  %vm1553 = vmand %vm1399, %vm1476
  %vm1554 = vmand %vm1400, %vm1477
  %vm1555 = vmand %vm1401, %vm1478
  %vm1556 = vmand %vm1402, %vm1479
  %vm1557 = vmand %vm1403, %vm1480
  %vm1558 = vmand %vm1404, %vm1481
  %vm1559 = vmand %vm1405, %vm1482
  %vm1560 = vmand %vm1406, %vm1483
  %vm1561 = vmand %vm1407, %vm1484
  %vm1562 = vmand %vm1408, %vm1485
  %vm1563 = vmand %vm1409, %vm1486
  %vm1564 = vmand %vm1410, %vm1487
  %vm1565 = vmand %vm1411, %vm1488
  %vm1566 = vmand %vm1412, %vm1489
  %vm1567 = vmand %vm1413, %vm1490
  %vm1568 = vmand %vm1414, %vm1491
  %vm1569 = vmand %vm1415, %vm1492
  %vm1570 = vmand %vm1416, %vm1493
  %vm1571 = vmand %vm1417, %vm1494
  %vm1572 = vmand %vm1418, %vm1495
  %vm1573 = vmand %vm1419, %vm1496
  %vm1574 = vmand %vm1420, %vm1497
  %vm1575 = vmand %vm1421, %vm1498
  %vm1576 = vmand %vm1422, %vm1499
  %vm1577 = vmand %vm1423, %vm1500
  %vm1578 = vmand %vm1424, %vm1501
  %vm1579 = vmand %vm1425, %vm1502
  %vm1580 = vmand %vm1426, %vm1503
  %vm1581 = vmand %vm1427, %vm1504
  %vm1582 = vmand %vm1428, %vm1505
  %vm1583 = vmand %vm1429, %vm1506
  %vm1584 = vmand %vm1430, %vm1507
  %vm1585 = vmand %vm1431, %vm1508
  %vm1586 = vmand %vm1432, %vm1509
  %vm1587 = vmand %vm1433, %vm1510
  %vm1588 = vmand %vm1434, %vm1511
  %vm1589 = vmand %vm1435, %vm1512
  %vm1590 = vmand %vm1436, %vm1513
  %vm1591 = vmand %vm1437, %vm1514
  %vm1592 = vmand %vm1438, %vm1515
  %vm1593 = vmand %vm1439, %vm1516
  %vm1594 = vmand %vm1440, %vm1517
  %vm1595 = vmand %vm1441, %vm1518
  %vm1596 = vmand %vm1442, %vm1519
  %vm1597 = vmand %vm1443, %vm1520
  %vm1598 = vmand %vm1444, %vm1521
  %vm1599 = vmand %vm1445, %vm1522
  %vm1600 = vmand %vm1446, %vm1523
  %vm1601 = vmand %vm1447, %vm1524
  %vm1602 = vmand %vm1448, %vm1525
  %vm1603 = vmand %vm1449, %vm1526
  %vm1604 = vmand %vm1450, %vm1527
  %vm1605 = vmand %vm1451, %vm1528
  %vm1606 = vmand %vm1452, %vm1529
  %vm1607 = vmand %vm1453, %vm1530
  %vm1608 = vmand %vm1454, %vm1531
  %vm1609 = vmand %vm1455, %vm1532
  %vm1610 = vmand %vm1456, %vm1533
  %vm1611 = vmand %vm1457, %vm1534
  %vm1612 = vmand %vm1458, %vm1535
  %vm1613 = vmand %vm1459, %vm1536
  %vm1614 = vmand %vm1460, %vm1537
  %vm1615 = vmand %vm1461, %vm1538
  %vm1616 = vmand %vm1462, %vm1539
  %vm1617 = vmand %vm1463, %vm1540
  %vm1618 = vmand %vm1464, %vm1541
  %vm1619 = vmand %vm1465, %vm1542
  %vm1620 = vmand %vm1466, %vm1543
  %vm1621 = vmand %vm1467, %vm1544
  %vm1622 = vmand %vm1468, %vm1545
  %vm1623 = vmand %vm1469, %vm1546
  %v1624 = vsel %vm1547, 1, 0
  %v1625 = vsel %vm1548, 1, 0
  %v1626 = vsel %vm1549, 1, 0
  %v1627 = vsel %vm1550, 1, 0
  %v1628 = vsel %vm1551, 1, 0
  %v1629 = vsel %vm1552, 1, 0
  %v1630 = vsel %vm1553, 1, 0
  %v1631 = vsel %vm1554, 1, 0
  %v1632 = vsel %vm1555, 1, 0
  %v1633 = vsel %vm1556, 1, 0
  %v1634 = vsel %vm1557, 1, 0
  %v1635 = vsel %vm1558, 1, 0
  %v1636 = vsel %vm1559, 1, 0
  %v1637 = vsel %vm1560, 1, 0
  %v1638 = vsel %vm1561, 1, 0
  %v1639 = vsel %vm1562, 1, 0
  %v1640 = vsel %vm1563, 1, 0
  %v1641 = vsel %vm1564, 1, 0
  %v1642 = vsel %vm1565, 1, 0
  %v1643 = vsel %vm1566, 1, 0
  %v1644 = vsel %vm1567, 1, 0
  %v1645 = vsel %vm1568, 1, 0
  %v1646 = vsel %vm1569, 1, 0
  %v1647 = vsel %vm1570, 1, 0
  %v1648 = vsel %vm1571, 1, 0
  %v1649 = vsel %vm1572, 1, 0
  %v1650 = vsel %vm1573, 1, 0
  %v1651 = vsel %vm1574, 1, 0
  %v1652 = vsel %vm1575, 1, 0
  %v1653 = vsel %vm1576, 1, 0
  %v1654 = vsel %vm1577, 1, 0
  %v1655 = vsel %vm1578, 1, 0
  %v1656 = vsel %vm1579, 1, 0
  %v1657 = vsel %vm1580, 1, 0
  %v1658 = vsel %vm1581, 1, 0
  %v1659 = vsel %vm1582, 1, 0
  %v1660 = vsel %vm1583, 1, 0
  %v1661 = vsel %vm1584, 1, 0
  %v1662 = vsel %vm1585, 1, 0
  %v1663 = vsel %vm1586, 1, 0
  %v1664 = vsel %vm1587, 1, 0
  %v1665 = vsel %vm1588, 1, 0
  %v1666 = vsel %vm1589, 1, 0
  %v1667 = vsel %vm1590, 1, 0
  %v1668 = vsel %vm1591, 1, 0
  %v1669 = vsel %vm1592, 1, 0
  %v1670 = vsel %vm1593, 1, 0
  %v1671 = vsel %vm1594, 1, 0
  %v1672 = vsel %vm1595, 1, 0
  %v1673 = vsel %vm1596, 1, 0
  %v1674 = vsel %vm1597, 1, 0
  %v1675 = vsel %vm1598, 1, 0
  %v1676 = vsel %vm1599, 1, 0
  %v1677 = vsel %vm1600, 1, 0
  %v1678 = vsel %vm1601, 1, 0
  %v1679 = vsel %vm1602, 1, 0
  %v1680 = vsel %vm1603, 1, 0
  %v1681 = vsel %vm1604, 1, 0
  %v1682 = vsel %vm1605, 1, 0
  %v1683 = vsel %vm1606, 1, 0
  %v1684 = vsel %vm1607, 1, 0
  %v1685 = vsel %vm1608, 1, 0
  %v1686 = vsel %vm1609, 1, 0
  %v1687 = vsel %vm1610, 1, 0
  %v1688 = vsel %vm1611, 1, 0
  %v1689 = vsel %vm1612, 1, 0
  %v1690 = vsel %vm1613, 1, 0
  %v1691 = vsel %vm1614, 1, 0
  %v1692 = vsel %vm1615, 1, 0
  %v1693 = vsel %vm1616, 1, 0
  %v1694 = vsel %vm1617, 1, 0
  %v1695 = vsel %vm1618, 1, 0
  %v1696 = vsel %vm1619, 1, 0
  %v1697 = vsel %vm1620, 1, 0
  %v1698 = vsel %vm1621, 1, 0
  %v1699 = vsel %vm1622, 1, 0
  %v1700 = vsel %vm1623, 1, 0
  %v1701 = vcvt.s32.f32 %v1624
  %v1702 = vcvt.s32.f32 %v1625
  %v1703 = vcvt.s32.f32 %v1626
  %v1704 = vcvt.s32.f32 %v1627
  %v1705 = vcvt.s32.f32 %v1628
  %v1706 = vcvt.s32.f32 %v1629
  %v1707 = vcvt.s32.f32 %v1630
  %v1708 = vcvt.s32.f32 %v1631
  %v1709 = vcvt.s32.f32 %v1632
  %v1710 = vcvt.s32.f32 %v1633
  %v1711 = vcvt.s32.f32 %v1634
  %v1712 = vcvt.s32.f32 %v1635
  %v1713 = vcvt.s32.f32 %v1636
  %v1714 = vcvt.s32.f32 %v1637
  %v1715 = vcvt.s32.f32 %v1638
  %v1716 = vcvt.s32.f32 %v1639
  %v1717 = vcvt.s32.f32 %v1640
  %v1718 = vcvt.s32.f32 %v1641
  %v1719 = vcvt.s32.f32 %v1642
  %v1720 = vcvt.s32.f32 %v1643
  %v1721 = vcvt.s32.f32 %v1644
  %v1722 = vcvt.s32.f32 %v1645
  %v1723 = vcvt.s32.f32 %v1646
  %v1724 = vcvt.s32.f32 %v1647
  %v1725 = vcvt.s32.f32 %v1648
  %v1726 = vcvt.s32.f32 %v1649
  %v1727 = vcvt.s32.f32 %v1650
  %v1728 = vcvt.s32.f32 %v1651
  %v1729 = vcvt.s32.f32 %v1652
  %v1730 = vcvt.s32.f32 %v1653
  %v1731 = vcvt.s32.f32 %v1654
  %v1732 = vcvt.s32.f32 %v1655
  %v1733 = vcvt.s32.f32 %v1656
  %v1734 = vcvt.s32.f32 %v1657
  %v1735 = vcvt.s32.f32 %v1658
  %v1736 = vcvt.s32.f32 %v1659
  %v1737 = vcvt.s32.f32 %v1660
  %v1738 = vcvt.s32.f32 %v1661
  %v1739 = vcvt.s32.f32 %v1662
  %v1740 = vcvt.s32.f32 %v1663
  %v1741 = vcvt.s32.f32 %v1664
  %v1742 = vcvt.s32.f32 %v1665
  %v1743 = vcvt.s32.f32 %v1666
  %v1744 = vcvt.s32.f32 %v1667
  %v1745 = vcvt.s32.f32 %v1668
  %v1746 = vcvt.s32.f32 %v1669
  %v1747 = vcvt.s32.f32 %v1670
  %v1748 = vcvt.s32.f32 %v1671
  %v1749 = vcvt.s32.f32 %v1672
  %v1750 = vcvt.s32.f32 %v1673
  %v1751 = vcvt.s32.f32 %v1674
  %v1752 = vcvt.s32.f32 %v1675
  %v1753 = vcvt.s32.f32 %v1676
  %v1754 = vcvt.s32.f32 %v1677
  %v1755 = vcvt.s32.f32 %v1678
  %v1756 = vcvt.s32.f32 %v1679
  %v1757 = vcvt.s32.f32 %v1680
  %v1758 = vcvt.s32.f32 %v1681
  %v1759 = vcvt.s32.f32 %v1682
  %v1760 = vcvt.s32.f32 %v1683
  %v1761 = vcvt.s32.f32 %v1684
  %v1762 = vcvt.s32.f32 %v1685
  %v1763 = vcvt.s32.f32 %v1686
  %v1764 = vcvt.s32.f32 %v1687
  %v1765 = vcvt.s32.f32 %v1688
  %v1766 = vcvt.s32.f32 %v1689
  %v1767 = vcvt.s32.f32 %v1690
  %v1768 = vcvt.s32.f32 %v1691
  %v1769 = vcvt.s32.f32 %v1692
  %v1770 = vcvt.s32.f32 %v1693
  %v1771 = vcvt.s32.f32 %v1694
  %v1772 = vcvt.s32.f32 %v1695
  %v1773 = vcvt.s32.f32 %v1696
  %v1774 = vcvt.s32.f32 %v1697
  %v1775 = vcvt.s32.f32 %v1698
  %v1776 = vcvt.s32.f32 %v1699
  %v1777 = vcvt.s32.f32 %v1700
  %v1778 = vld [vmem:[%s0] sm:$0xff]
  %v1779 = vld [vmem:[%s0 + $0x8] sm:$0xff]
  %v1780 = vld [vmem:[%s0 + $0x10] sm:$0xff]
  %v1781 = vld [vmem:[%s0 + $0x18] sm:$0xff]
  %v1782 = vld [vmem:[%s0 + $0x20] sm:$0xff]
  %v1783 = vld [vmem:[%s0 + $0x28] sm:$0xff]
  %v1784 = vld [vmem:[%s0 + $0x30] sm:$0xff]
  %v1785 = vld [vmem:[%s0 + $0x38] sm:$0xff]
  %v1786 = vld [vmem:[%s0 + $0x40] sm:$0xff]
  %v1787 = vld [vmem:[%s0 + $0x48] sm:$0xff]
  %v1788 = vld [vmem:[%s0 + $0x50] sm:$0xff]
  %v1789 = vld [vmem:[%s0 + $0x58] sm:$0xff]
  %v1790 = vld [vmem:[%s0 + $0x60] sm:$0xff]
  %v1791 = vld [vmem:[%s0 + $0x68] sm:$0xff]
  %v1792 = vld [vmem:[%s0 + $0x70] sm:$0xff]
  %v1793 = vld [vmem:[%s0 + $0x78] sm:$0xff]
  %v1794 = vld [vmem:[%s0 + $0x80] sm:$0xff]
  %v1795 = vld [vmem:[%s0 + $0x88] sm:$0xff]
  %v1796 = vld [vmem:[%s0 + $0x90] sm:$0xff]
  %v1797 = vld [vmem:[%s0 + $0x98] sm:$0xff]
  %v1798 = vld [vmem:[%s0 + $0xa0] sm:$0xff]
  %v1799 = vld [vmem:[%s0 + $0xa8] sm:$0xff]
  %v1800 = vld [vmem:[%s0 + $0xb0] sm:$0xff]
  %v1801 = vld [vmem:[%s0 + $0xb8] sm:$0xff]
  %v1802 = vld [vmem:[%s0 + $0xc0] sm:$0xff]
  %v1803 = vld [vmem:[%s0 + $0xc8] sm:$0xff]
  %v1804 = vld [vmem:[%s0 + $0xd0] sm:$0xff]
  %v1805 = vld [vmem:[%s0 + $0xd8] sm:$0xff]
  %v1806 = vld [vmem:[%s0 + $0xe0] sm:$0xff]
  %v1807 = vld [vmem:[%s0 + $0xe8] sm:$0xff]
  %v1808 = vld [vmem:[%s0 + $0xf0] sm:$0xff]
  %v1809 = vld [vmem:[%s0 + $0xf8] sm:$0xff]
  %v1810 = vld [vmem:[%s0 + $0x100] sm:$0xff]
  %v1811 = vld [vmem:[%s0 + $0x108] sm:$0xff]
  %v1812 = vld [vmem:[%s0 + $0x110] sm:$0xff]
  %v1813 = vld [vmem:[%s0 + $0x118] sm:$0xff]
  %v1814 = vld [vmem:[%s0 + $0x120] sm:$0xff]
  %v1815 = vld [vmem:[%s0 + $0x128] sm:$0xff]
  %v1816 = vld [vmem:[%s0 + $0x130] sm:$0xff]
  %v1817 = vld [vmem:[%s0 + $0x138] sm:$0xff]
  %v1818 = vld [vmem:[%s0 + $0x140] sm:$0xff]
  %v1819 = vld [vmem:[%s0 + $0x148] sm:$0xff]
  %v1820 = vld [vmem:[%s0 + $0x150] sm:$0xff]
  %v1821 = vld [vmem:[%s0 + $0x158] sm:$0xff]
  %v1822 = vld [vmem:[%s0 + $0x160] sm:$0xff]
  %v1823 = vld [vmem:[%s0 + $0x168] sm:$0xff]
  %v1824 = vld [vmem:[%s0 + $0x170] sm:$0xff]
  %v1825 = vld [vmem:[%s0 + $0x178] sm:$0xff]
  %v1826 = vld [vmem:[%s0 + $0x180] sm:$0xff]
  %v1827 = vld [vmem:[%s0 + $0x188] sm:$0xff]
  %v1828 = vld [vmem:[%s0 + $0x190] sm:$0xff]
  %v1829 = vld [vmem:[%s0 + $0x198] sm:$0xff]
  %v1830 = vld [vmem:[%s0 + $0x1a0] sm:$0xff]
  %v1831 = vld [vmem:[%s0 + $0x1a8] sm:$0xff]
  %v1832 = vld [vmem:[%s0 + $0x1b0] sm:$0xff]
  %v1833 = vld [vmem:[%s0 + $0x1b8] sm:$0xff]
  %v1834 = vld [vmem:[%s0 + $0x1c0] sm:$0xff]
  %v1835 = vld [vmem:[%s0 + $0x1c8] sm:$0xff]
  %v1836 = vld [vmem:[%s0 + $0x1d0] sm:$0xff]
  %v1837 = vld [vmem:[%s0 + $0x1d8] sm:$0xff]
  %v1838 = vld [vmem:[%s0 + $0x1e0] sm:$0xff]
  %v1839 = vld [vmem:[%s0 + $0x1e8] sm:$0xff]
  %v1840 = vld [vmem:[%s0 + $0x1f0] sm:$0xff]
  %v1841 = vld [vmem:[%s0 + $0x1f8] sm:$0xff]
  %v1842 = vld [vmem:[%s0 + $0x200] sm:$0xff]
  %v1843 = vld [vmem:[%s0 + $0x208] sm:$0xff]
  %v1844 = vld [vmem:[%s0 + $0x210] sm:$0xff]
  %v1845 = vld [vmem:[%s0 + $0x218] sm:$0xff]
  %v1846 = vld [vmem:[%s0 + $0x220] sm:$0xff]
  %v1847 = vld [vmem:[%s0 + $0x228] sm:$0xff]
  %v1848 = vld [vmem:[%s0 + $0x230] sm:$0xff]
  %v1849 = vld [vmem:[%s0 + $0x238] sm:$0xff]
  %v1850 = vld [vmem:[%s0 + $0x240] sm:$0xff]
  %v1851 = vld [vmem:[%s0 + $0x248] sm:$0xff]
  %v1852 = vld [vmem:[%s0 + $0x250] sm:$0xff]
  %v1853 = vld [vmem:[%s0 + $0x258] sm:$0xff]
  %v1854 = vld [vmem:[%s0 + $0x260] sm:$0x3]
  %v1855 = vld [vmem:[%s0 + $0x1] sm:$0xff]
  %v1856 = vld [vmem:[%s0 + $0x9] sm:$0xff]
  %v1857 = vld [vmem:[%s0 + $0x11] sm:$0xff]
  %v1858 = vld [vmem:[%s0 + $0x19] sm:$0xff]
  %v1859 = vld [vmem:[%s0 + $0x21] sm:$0xff]
  %v1860 = vld [vmem:[%s0 + $0x29] sm:$0xff]
  %v1861 = vld [vmem:[%s0 + $0x31] sm:$0xff]
  %v1862 = vld [vmem:[%s0 + $0x39] sm:$0xff]
  %v1863 = vld [vmem:[%s0 + $0x41] sm:$0xff]
  %v1864 = vld [vmem:[%s0 + $0x49] sm:$0xff]
  %v1865 = vld [vmem:[%s0 + $0x51] sm:$0xff]
  %v1866 = vld [vmem:[%s0 + $0x59] sm:$0xff]
  %v1867 = vld [vmem:[%s0 + $0x61] sm:$0xff]
  %v1868 = vld [vmem:[%s0 + $0x69] sm:$0xff]
  %v1869 = vld [vmem:[%s0 + $0x71] sm:$0xff]
  %v1870 = vld [vmem:[%s0 + $0x79] sm:$0xff]
  %v1871 = vld [vmem:[%s0 + $0x81] sm:$0xff]
  %v1872 = vld [vmem:[%s0 + $0x89] sm:$0xff]
  %v1873 = vld [vmem:[%s0 + $0x91] sm:$0xff]
  %v1874 = vld [vmem:[%s0 + $0x99] sm:$0xff]
  %v1875 = vld [vmem:[%s0 + $0xa1] sm:$0xff]
  %v1876 = vld [vmem:[%s0 + $0xa9] sm:$0xff]
  %v1877 = vld [vmem:[%s0 + $0xb1] sm:$0xff]
  %v1878 = vld [vmem:[%s0 + $0xb9] sm:$0xff]
  %v1879 = vld [vmem:[%s0 + $0xc1] sm:$0xff]
  %v1880 = vld [vmem:[%s0 + $0xc9] sm:$0xff]
  %v1881 = vld [vmem:[%s0 + $0xd1] sm:$0xff]
  %v1882 = vld [vmem:[%s0 + $0xd9] sm:$0xff]
  %v1883 = vld [vmem:[%s0 + $0xe1] sm:$0xff]
  %v1884 = vld [vmem:[%s0 + $0xe9] sm:$0xff]
  %v1885 = vld [vmem:[%s0 + $0xf1] sm:$0xff]
  %v1886 = vld [vmem:[%s0 + $0xf9] sm:$0xff]
  %v1887 = vld [vmem:[%s0 + $0x101] sm:$0xff]
  %v1888 = vld [vmem:[%s0 + $0x109] sm:$0xff]
  %v1889 = vld [vmem:[%s0 + $0x111] sm:$0xff]
  %v1890 = vld [vmem:[%s0 + $0x119] sm:$0xff]
  %v1891 = vld [vmem:[%s0 + $0x121] sm:$0xff]
  %v1892 = vld [vmem:[%s0 + $0x129] sm:$0xff]
  %v1893 = vld [vmem:[%s0 + $0x131] sm:$0xff]
  %v1894 = vld [vmem:[%s0 + $0x139] sm:$0xff]
  %v1895 = vld [vmem:[%s0 + $0x141] sm:$0xff]
  %v1896 = vld [vmem:[%s0 + $0x149] sm:$0xff]
  %v1897 = vld [vmem:[%s0 + $0x151] sm:$0xff]
  %v1898 = vld [vmem:[%s0 + $0x159] sm:$0xff]
  %v1899 = vld [vmem:[%s0 + $0x161] sm:$0xff]
  %v1900 = vld [vmem:[%s0 + $0x169] sm:$0xff]
  %v1901 = vld [vmem:[%s0 + $0x171] sm:$0xff]
  %v1902 = vld [vmem:[%s0 + $0x179] sm:$0xff]
  %v1903 = vld [vmem:[%s0 + $0x181] sm:$0xff]
  %v1904 = vld [vmem:[%s0 + $0x189] sm:$0xff]
  %v1905 = vld [vmem:[%s0 + $0x191] sm:$0xff]
  %v1906 = vld [vmem:[%s0 + $0x199] sm:$0xff]
  %v1907 = vld [vmem:[%s0 + $0x1a1] sm:$0xff]
  %v1908 = vld [vmem:[%s0 + $0x1a9] sm:$0xff]
  %v1909 = vld [vmem:[%s0 + $0x1b1] sm:$0xff]
  %v1910 = vld [vmem:[%s0 + $0x1b9] sm:$0xff]
  %v1911 = vld [vmem:[%s0 + $0x1c1] sm:$0xff]
  %v1912 = vld [vmem:[%s0 + $0x1c9] sm:$0xff]
  %v1913 = vld [vmem:[%s0 + $0x1d1] sm:$0xff]
  %v1914 = vld [vmem:[%s0 + $0x1d9] sm:$0xff]
  %v1915 = vld [vmem:[%s0 + $0x1e1] sm:$0xff]
  %v1916 = vld [vmem:[%s0 + $0x1e9] sm:$0xff]
  %v1917 = vld [vmem:[%s0 + $0x1f1] sm:$0xff]
  %v1918 = vld [vmem:[%s0 + $0x1f9] sm:$0xff]
  %v1919 = vld [vmem:[%s0 + $0x201] sm:$0xff]
  %v1920 = vld [vmem:[%s0 + $0x209] sm:$0xff]
  %v1921 = vld [vmem:[%s0 + $0x211] sm:$0xff]
  %v1922 = vld [vmem:[%s0 + $0x219] sm:$0xff]
  %v1923 = vld [vmem:[%s0 + $0x221] sm:$0xff]
  %v1924 = vld [vmem:[%s0 + $0x229] sm:$0xff]
  %v1925 = vld [vmem:[%s0 + $0x231] sm:$0xff]
  %v1926 = vld [vmem:[%s0 + $0x239] sm:$0xff]
  %v1927 = vld [vmem:[%s0 + $0x241] sm:$0xff]
  %v1928 = vld [vmem:[%s0 + $0x249] sm:$0xff]
  %v1929 = vld [vmem:[%s0 + $0x251] sm:$0xff]
  %v1930 = vld [vmem:[%s0 + $0x259] sm:$0xff]
  %v1931 = vld [vmem:[%s0 + $0x261] sm:$0x3]
  %v1932 = vld [vmem:[%s0 + $0x2] sm:$0xff]
  %v1933 = vld [vmem:[%s0 + $0xa] sm:$0xff]
  %v1934 = vld [vmem:[%s0 + $0x12] sm:$0xff]
  %v1935 = vld [vmem:[%s0 + $0x1a] sm:$0xff]
  %v1936 = vld [vmem:[%s0 + $0x22] sm:$0xff]
  %v1937 = vld [vmem:[%s0 + $0x2a] sm:$0xff]
  %v1938 = vld [vmem:[%s0 + $0x32] sm:$0xff]
  %v1939 = vld [vmem:[%s0 + $0x3a] sm:$0xff]
  %v1940 = vld [vmem:[%s0 + $0x42] sm:$0xff]
  %v1941 = vld [vmem:[%s0 + $0x4a] sm:$0xff]
  %v1942 = vld [vmem:[%s0 + $0x52] sm:$0xff]
  %v1943 = vld [vmem:[%s0 + $0x5a] sm:$0xff]
  %v1944 = vld [vmem:[%s0 + $0x62] sm:$0xff]
  %v1945 = vld [vmem:[%s0 + $0x6a] sm:$0xff]
  %v1946 = vld [vmem:[%s0 + $0x72] sm:$0xff]
  %v1947 = vld [vmem:[%s0 + $0x7a] sm:$0xff]
  %v1948 = vld [vmem:[%s0 + $0x82] sm:$0xff]
  %v1949 = vld [vmem:[%s0 + $0x8a] sm:$0xff]
  %v1950 = vld [vmem:[%s0 + $0x92] sm:$0xff]
  %v1951 = vld [vmem:[%s0 + $0x9a] sm:$0xff]
  %v1952 = vld [vmem:[%s0 + $0xa2] sm:$0xff]
  %v1953 = vld [vmem:[%s0 + $0xaa] sm:$0xff]
  %v1954 = vld [vmem:[%s0 + $0xb2] sm:$0xff]
  %v1955 = vld [vmem:[%s0 + $0xba] sm:$0xff]
  %v1956 = vld [vmem:[%s0 + $0xc2] sm:$0xff]
  %v1957 = vld [vmem:[%s0 + $0xca] sm:$0xff]
  %v1958 = vld [vmem:[%s0 + $0xd2] sm:$0xff]
  %v1959 = vld [vmem:[%s0 + $0xda] sm:$0xff]
  %v1960 = vld [vmem:[%s0 + $0xe2] sm:$0xff]
  %v1961 = vld [vmem:[%s0 + $0xea] sm:$0xff]
  %v1962 = vld [vmem:[%s0 + $0xf2] sm:$0xff]
  %v1963 = vld [vmem:[%s0 + $0xfa] sm:$0xff]
  %v1964 = vld [vmem:[%s0 + $0x102] sm:$0xff]
  %v1965 = vld [vmem:[%s0 + $0x10a] sm:$0xff]
  %v1966 = vld [vmem:[%s0 + $0x112] sm:$0xff]
  %v1967 = vld [vmem:[%s0 + $0x11a] sm:$0xff]
  %v1968 = vld [vmem:[%s0 + $0x122] sm:$0xff]
  %v1969 = vld [vmem:[%s0 + $0x12a] sm:$0xff]
  %v1970 = vld [vmem:[%s0 + $0x132] sm:$0xff]
  %v1971 = vld [vmem:[%s0 + $0x13a] sm:$0xff]
  %v1972 = vld [vmem:[%s0 + $0x142] sm:$0xff]
  %v1973 = vld [vmem:[%s0 + $0x14a] sm:$0xff]
  %v1974 = vld [vmem:[%s0 + $0x152] sm:$0xff]
  %v1975 = vld [vmem:[%s0 + $0x15a] sm:$0xff]
  %v1976 = vld [vmem:[%s0 + $0x162] sm:$0xff]
  %v1977 = vld [vmem:[%s0 + $0x16a] sm:$0xff]
  %v1978 = vld [vmem:[%s0 + $0x172] sm:$0xff]
  %v1979 = vld [vmem:[%s0 + $0x17a] sm:$0xff]
  %v1980 = vld [vmem:[%s0 + $0x182] sm:$0xff]
  %v1981 = vld [vmem:[%s0 + $0x18a] sm:$0xff]
  %v1982 = vld [vmem:[%s0 + $0x192] sm:$0xff]
  %v1983 = vld [vmem:[%s0 + $0x19a] sm:$0xff]
  %v1984 = vld [vmem:[%s0 + $0x1a2] sm:$0xff]
  %v1985 = vld [vmem:[%s0 + $0x1aa] sm:$0xff]
  %v1986 = vld [vmem:[%s0 + $0x1b2] sm:$0xff]
  %v1987 = vld [vmem:[%s0 + $0x1ba] sm:$0xff]
  %v1988 = vld [vmem:[%s0 + $0x1c2] sm:$0xff]
  %v1989 = vld [vmem:[%s0 + $0x1ca] sm:$0xff]
  %v1990 = vld [vmem:[%s0 + $0x1d2] sm:$0xff]
  %v1991 = vld [vmem:[%s0 + $0x1da] sm:$0xff]
  %v1992 = vld [vmem:[%s0 + $0x1e2] sm:$0xff]
  %v1993 = vld [vmem:[%s0 + $0x1ea] sm:$0xff]
  %v1994 = vld [vmem:[%s0 + $0x1f2] sm:$0xff]
  %v1995 = vld [vmem:[%s0 + $0x1fa] sm:$0xff]
  %v1996 = vld [vmem:[%s0 + $0x202] sm:$0xff]
  %v1997 = vld [vmem:[%s0 + $0x20a] sm:$0xff]
  %v1998 = vld [vmem:[%s0 + $0x212] sm:$0xff]
  %v1999 = vld [vmem:[%s0 + $0x21a] sm:$0xff]
  %v2000 = vld [vmem:[%s0 + $0x222] sm:$0xff]
  %v2001 = vld [vmem:[%s0 + $0x22a] sm:$0xff]
  %v2002 = vld [vmem:[%s0 + $0x232] sm:$0xff]
  %v2003 = vld [vmem:[%s0 + $0x23a] sm:$0xff]
  %v2004 = vld [vmem:[%s0 + $0x242] sm:$0xff]
  %v2005 = vld [vmem:[%s0 + $0x24a] sm:$0xff]
  %v2006 = vld [vmem:[%s0 + $0x252] sm:$0xff]
  %v2007 = vld [vmem:[%s0 + $0x25a] sm:$0xff]
  %v2008 = vld [vmem:[%s0 + $0x262] sm:$0x3]
  %v2009 = vld [vmem:[%s0 + $0x262] sm:$0xff]
  %v2010 = vld [vmem:[%s0 + $0x26a] sm:$0xff]
  %v2011 = vld [vmem:[%s0 + $0x272] sm:$0x3]
  %v2012 = vld [vmem:[%s0 + $0x13] sm:$0xff]
  %v2013 = vld [vmem:[%s0 + $0x1b] sm:$0xff]
  %v2014 = vld [vmem:[%s0 + $0x23] sm:$0xff]
  %v2015 = vld [vmem:[%s0 + $0x2b] sm:$0xff]
  %v2016 = vld [vmem:[%s0 + $0x33] sm:$0xff]
  %v2017 = vld [vmem:[%s0 + $0x3b] sm:$0xff]
  %v2018 = vld [vmem:[%s0 + $0x43] sm:$0xff]
  %v2019 = vld [vmem:[%s0 + $0x4b] sm:$0xff]
  %v2020 = vld [vmem:[%s0 + $0x53] sm:$0xff]
  %v2021 = vld [vmem:[%s0 + $0x5b] sm:$0xff]
  %v2022 = vld [vmem:[%s0 + $0x63] sm:$0xff]
  %v2023 = vld [vmem:[%s0 + $0x6b] sm:$0xff]
  %v2024 = vld [vmem:[%s0 + $0x73] sm:$0xff]
  %v2025 = vld [vmem:[%s0 + $0x7b] sm:$0xff]
  %v2026 = vld [vmem:[%s0 + $0x83] sm:$0xff]
  %v2027 = vld [vmem:[%s0 + $0x8b] sm:$0xff]
  %v2028 = vld [vmem:[%s0 + $0x93] sm:$0xff]
  %v2029 = vld [vmem:[%s0 + $0x9b] sm:$0xff]
  %v2030 = vld [vmem:[%s0 + $0xa3] sm:$0xff]
  %v2031 = vld [vmem:[%s0 + $0xab] sm:$0xff]
  %v2032 = vld [vmem:[%s0 + $0xb3] sm:$0xff]
  %v2033 = vld [vmem:[%s0 + $0xbb] sm:$0xff]
  %v2034 = vld [vmem:[%s0 + $0xc3] sm:$0xff]
  %v2035 = vld [vmem:[%s0 + $0xcb] sm:$0xff]
  %v2036 = vld [vmem:[%s0 + $0xd3] sm:$0xff]
  %v2037 = vld [vmem:[%s0 + $0xdb] sm:$0xff]
  %v2038 = vld [vmem:[%s0 + $0xe3] sm:$0xff]
  %v2039 = vld [vmem:[%s0 + $0xeb] sm:$0xff]
  %v2040 = vld [vmem:[%s0 + $0xf3] sm:$0xff]
  %v2041 = vld [vmem:[%s0 + $0xfb] sm:$0xff]
  %v2042 = vld [vmem:[%s0 + $0x103] sm:$0xff]
  %v2043 = vld [vmem:[%s0 + $0x10b] sm:$0xff]
  %v2044 = vld [vmem:[%s0 + $0x113] sm:$0xff]
  %v2045 = vld [vmem:[%s0 + $0x11b] sm:$0xff]
  %v2046 = vld [vmem:[%s0 + $0x123] sm:$0xff]
  %v2047 = vld [vmem:[%s0 + $0x12b] sm:$0xff]
  %v2048 = vld [vmem:[%s0 + $0x133] sm:$0xff]
  %v2049 = vld [vmem:[%s0 + $0x13b] sm:$0xff]
  %v2050 = vld [vmem:[%s0 + $0x143] sm:$0xff]
  %v2051 = vld [vmem:[%s0 + $0x14b] sm:$0xff]
  %v2052 = vld [vmem:[%s0 + $0x153] sm:$0xff]
  %v2053 = vld [vmem:[%s0 + $0x15b] sm:$0xff]
  %v2054 = vld [vmem:[%s0 + $0x163] sm:$0xff]
  %v2055 = vld [vmem:[%s0 + $0x16b] sm:$0xff]
  %v2056 = vld [vmem:[%s0 + $0x173] sm:$0xff]
  %v2057 = vld [vmem:[%s0 + $0x17b] sm:$0xff]
  %v2058 = vld [vmem:[%s0 + $0x183] sm:$0xff]
  %v2059 = vld [vmem:[%s0 + $0x18b] sm:$0xff]
  %v2060 = vld [vmem:[%s0 + $0x193] sm:$0xff]
  %v2061 = vld [vmem:[%s0 + $0x19b] sm:$0xff]
  %v2062 = vld [vmem:[%s0 + $0x1a3] sm:$0xff]
  %v2063 = vld [vmem:[%s0 + $0x1ab] sm:$0xff]
  %v2064 = vld [vmem:[%s0 + $0x1b3] sm:$0xff]
  %v2065 = vld [vmem:[%s0 + $0x1bb] sm:$0xff]
  %v2066 = vld [vmem:[%s0 + $0x1c3] sm:$0xff]
  %v2067 = vld [vmem:[%s0 + $0x1cb] sm:$0xff]
  %v2068 = vld [vmem:[%s0 + $0x1d3] sm:$0xff]
  %v2069 = vld [vmem:[%s0 + $0x1db] sm:$0xff]
  %v2070 = vld [vmem:[%s0 + $0x1e3] sm:$0xff]
  %v2071 = vld [vmem:[%s0 + $0x1eb] sm:$0xff]
  %v2072 = vld [vmem:[%s0 + $0x1f3] sm:$0xff]
  %v2073 = vld [vmem:[%s0 + $0x1fb] sm:$0xff]
  %v2074 = vld [vmem:[%s0 + $0x203] sm:$0xff]
  %v2075 = vld [vmem:[%s0 + $0x20b] sm:$0xff]
  %v2076 = vld [vmem:[%s0 + $0x213] sm:$0xff]
  %v2077 = vld [vmem:[%s0 + $0x21b] sm:$0xff]
  %v2078 = vld [vmem:[%s0 + $0x223] sm:$0xff]
  %v2079 = vld [vmem:[%s0 + $0x22b] sm:$0xff]
  %v2080 = vld [vmem:[%s0 + $0x233] sm:$0xff]
  %v2081 = vld [vmem:[%s0 + $0x23b] sm:$0xff]
  %v2082 = vld [vmem:[%s0 + $0x243] sm:$0xff]
  %v2083 = vld [vmem:[%s0 + $0x24b] sm:$0xff]
  %v2084 = vld [vmem:[%s0 + $0x253] sm:$0xff]
  %v2085 = vld [vmem:[%s0 + $0x25b] sm:$0xff]
  %v2086 = vld [vmem:[%s0 + $0x263] sm:$0xff]
  %v2087 = vld [vmem:[%s0 + $0x26b] sm:$0xff]
  %v2088 = vld [vmem:[%s0 + $0x273] sm:$0x3]
  %v2089 = vld [vmem:[%s0 + $0x14] sm:$0xff]
  %v2090 = vld [vmem:[%s0 + $0x1c] sm:$0xff]
  %v2091 = vld [vmem:[%s0 + $0x24] sm:$0xff]
  %v2092 = vld [vmem:[%s0 + $0x2c] sm:$0xff]
  %v2093 = vld [vmem:[%s0 + $0x34] sm:$0xff]
  %v2094 = vld [vmem:[%s0 + $0x3c] sm:$0xff]
  %v2095 = vld [vmem:[%s0 + $0x44] sm:$0xff]
  %v2096 = vld [vmem:[%s0 + $0x4c] sm:$0xff]
  %v2097 = vld [vmem:[%s0 + $0x54] sm:$0xff]
  %v2098 = vld [vmem:[%s0 + $0x5c] sm:$0xff]
  %v2099 = vld [vmem:[%s0 + $0x64] sm:$0xff]
  %v2100 = vld [vmem:[%s0 + $0x6c] sm:$0xff]
  %v2101 = vld [vmem:[%s0 + $0x74] sm:$0xff]
  %v2102 = vld [vmem:[%s0 + $0x7c] sm:$0xff]
  %v2103 = vld [vmem:[%s0 + $0x84] sm:$0xff]
  %v2104 = vld [vmem:[%s0 + $0x8c] sm:$0xff]
  %v2105 = vld [vmem:[%s0 + $0x94] sm:$0xff]
  %v2106 = vld [vmem:[%s0 + $0x9c] sm:$0xff]
  %v2107 = vld [vmem:[%s0 + $0xa4] sm:$0xff]
  %v2108 = vld [vmem:[%s0 + $0xac] sm:$0xff]
  %v2109 = vld [vmem:[%s0 + $0xb4] sm:$0xff]
  %v2110 = vld [vmem:[%s0 + $0xbc] sm:$0xff]
  %v2111 = vld [vmem:[%s0 + $0xc4] sm:$0xff]
  %v2112 = vld [vmem:[%s0 + $0xcc] sm:$0xff]
  %v2113 = vld [vmem:[%s0 + $0xd4] sm:$0xff]
  %v2114 = vld [vmem:[%s0 + $0xdc] sm:$0xff]
  %v2115 = vld [vmem:[%s0 + $0xe4] sm:$0xff]
  %v2116 = vld [vmem:[%s0 + $0xec] sm:$0xff]
  %v2117 = vld [vmem:[%s0 + $0xf4] sm:$0xff]
  %v2118 = vld [vmem:[%s0 + $0xfc] sm:$0xff]
  %v2119 = vld [vmem:[%s0 + $0x104] sm:$0xff]
  %v2120 = vld [vmem:[%s0 + $0x10c] sm:$0xff]
  %v2121 = vld [vmem:[%s0 + $0x114] sm:$0xff]
  %v2122 = vld [vmem:[%s0 + $0x11c] sm:$0xff]
  %v2123 = vld [vmem:[%s0 + $0x124] sm:$0xff]
  %v2124 = vld [vmem:[%s0 + $0x12c] sm:$0xff]
  %v2125 = vld [vmem:[%s0 + $0x134] sm:$0xff]
  %v2126 = vld [vmem:[%s0 + $0x13c] sm:$0xff]
  %v2127 = vld [vmem:[%s0 + $0x144] sm:$0xff]
  %v2128 = vld [vmem:[%s0 + $0x14c] sm:$0xff]
  %v2129 = vld [vmem:[%s0 + $0x154] sm:$0xff]
  %v2130 = vld [vmem:[%s0 + $0x15c] sm:$0xff]
  %v2131 = vld [vmem:[%s0 + $0x164] sm:$0xff]
  %v2132 = vld [vmem:[%s0 + $0x16c] sm:$0xff]
  %v2133 = vld [vmem:[%s0 + $0x174] sm:$0xff]
  %v2134 = vld [vmem:[%s0 + $0x17c] sm:$0xff]
  %v2135 = vld [vmem:[%s0 + $0x184] sm:$0xff]
  %v2136 = vld [vmem:[%s0 + $0x18c] sm:$0xff]
  %v2137 = vld [vmem:[%s0 + $0x194] sm:$0xff]
  %v2138 = vld [vmem:[%s0 + $0x19c] sm:$0xff]
  %v2139 = vld [vmem:[%s0 + $0x1a4] sm:$0xff]
  %v2140 = vld [vmem:[%s0 + $0x1ac] sm:$0xff]
  %v2141 = vld [vmem:[%s0 + $0x1b4] sm:$0xff]
  %v2142 = vld [vmem:[%s0 + $0x1bc] sm:$0xff]
  %v2143 = vld [vmem:[%s0 + $0x1c4] sm:$0xff]
  %v2144 = vld [vmem:[%s0 + $0x1cc] sm:$0xff]
  %v2145 = vld [vmem:[%s0 + $0x1d4] sm:$0xff]
  %v2146 = vld [vmem:[%s0 + $0x1dc] sm:$0xff]
  %v2147 = vld [vmem:[%s0 + $0x1e4] sm:$0xff]
  %v2148 = vld [vmem:[%s0 + $0x1ec] sm:$0xff]
  %v2149 = vld [vmem:[%s0 + $0x1f4] sm:$0xff]
  %v2150 = vld [vmem:[%s0 + $0x1fc] sm:$0xff]
  %v2151 = vld [vmem:[%s0 + $0x204] sm:$0xff]
  %v2152 = vld [vmem:[%s0 + $0x20c] sm:$0xff]
  %v2153 = vld [vmem:[%s0 + $0x214] sm:$0xff]
  %v2154 = vld [vmem:[%s0 + $0x21c] sm:$0xff]
  %v2155 = vld [vmem:[%s0 + $0x224] sm:$0xff]
  %v2156 = vld [vmem:[%s0 + $0x22c] sm:$0xff]
  %v2157 = vld [vmem:[%s0 + $0x234] sm:$0xff]
  %v2158 = vld [vmem:[%s0 + $0x23c] sm:$0xff]
  %v2159 = vld [vmem:[%s0 + $0x244] sm:$0xff]
  %v2160 = vld [vmem:[%s0 + $0x24c] sm:$0xff]
  %v2161 = vld [vmem:[%s0 + $0x254] sm:$0xff]
  %v2162 = vld [vmem:[%s0 + $0x25c] sm:$0xff]
  %v2163 = vld [vmem:[%s0 + $0x264] sm:$0xff]
  %v2164 = vld [vmem:[%s0 + $0x26c] sm:$0xff]
  %v2165 = vld [vmem:[%s0 + $0x274] sm:$0x3]
  %v2166 = vld [vmem:[%s0 + $0x274] sm:$0xff]
  %v2167 = vld [vmem:[%s0 + $0x27c] sm:$0xff]
  %v2168 = vld [vmem:[%s0 + $0x284] sm:$0x3]
  %v2169 = vld [vmem:[%s0 + $0x25] sm:$0xff]
  %v2170 = vld [vmem:[%s0 + $0x2d] sm:$0xff]
  %v2171 = vld [vmem:[%s0 + $0x35] sm:$0xff]
  %v2172 = vld [vmem:[%s0 + $0x3d] sm:$0xff]
  %v2173 = vld [vmem:[%s0 + $0x45] sm:$0xff]
  %v2174 = vld [vmem:[%s0 + $0x4d] sm:$0xff]
  %v2175 = vld [vmem:[%s0 + $0x55] sm:$0xff]
  %v2176 = vld [vmem:[%s0 + $0x5d] sm:$0xff]
  %v2177 = vld [vmem:[%s0 + $0x65] sm:$0xff]
  %v2178 = vld [vmem:[%s0 + $0x6d] sm:$0xff]
  %v2179 = vld [vmem:[%s0 + $0x75] sm:$0xff]
  %v2180 = vld [vmem:[%s0 + $0x7d] sm:$0xff]
  %v2181 = vld [vmem:[%s0 + $0x85] sm:$0xff]
  %v2182 = vld [vmem:[%s0 + $0x8d] sm:$0xff]
  %v2183 = vld [vmem:[%s0 + $0x95] sm:$0xff]
  %v2184 = vld [vmem:[%s0 + $0x9d] sm:$0xff]
  %v2185 = vld [vmem:[%s0 + $0xa5] sm:$0xff]
  %v2186 = vld [vmem:[%s0 + $0xad] sm:$0xff]
  %v2187 = vld [vmem:[%s0 + $0xb5] sm:$0xff]
  %v2188 = vld [vmem:[%s0 + $0xbd] sm:$0xff]
  %v2189 = vld [vmem:[%s0 + $0xc5] sm:$0xff]
  %v2190 = vld [vmem:[%s0 + $0xcd] sm:$0xff]
  %v2191 = vld [vmem:[%s0 + $0xd5] sm:$0xff]
  %v2192 = vld [vmem:[%s0 + $0xdd] sm:$0xff]
  %v2193 = vld [vmem:[%s0 + $0xe5] sm:$0xff]
  %v2194 = vld [vmem:[%s0 + $0xed] sm:$0xff]
  %v2195 = vld [vmem:[%s0 + $0xf5] sm:$0xff]
  %v2196 = vld [vmem:[%s0 + $0xfd] sm:$0xff]
  %v2197 = vld [vmem:[%s0 + $0x105] sm:$0xff]
  %v2198 = vld [vmem:[%s0 + $0x10d] sm:$0xff]
  %v2199 = vld [vmem:[%s0 + $0x115] sm:$0xff]
  %v2200 = vld [vmem:[%s0 + $0x11d] sm:$0xff]
  %v2201 = vld [vmem:[%s0 + $0x125] sm:$0xff]
  %v2202 = vld [vmem:[%s0 + $0x12d] sm:$0xff]
  %v2203 = vld [vmem:[%s0 + $0x135] sm:$0xff]
  %v2204 = vld [vmem:[%s0 + $0x13d] sm:$0xff]
  %v2205 = vld [vmem:[%s0 + $0x145] sm:$0xff]
  %v2206 = vld [vmem:[%s0 + $0x14d] sm:$0xff]
  %v2207 = vld [vmem:[%s0 + $0x155] sm:$0xff]
  %v2208 = vld [vmem:[%s0 + $0x15d] sm:$0xff]
  %v2209 = vld [vmem:[%s0 + $0x165] sm:$0xff]
  %v2210 = vld [vmem:[%s0 + $0x16d] sm:$0xff]
  %v2211 = vld [vmem:[%s0 + $0x175] sm:$0xff]
  %v2212 = vld [vmem:[%s0 + $0x17d] sm:$0xff]
  %v2213 = vld [vmem:[%s0 + $0x185] sm:$0xff]
  %v2214 = vld [vmem:[%s0 + $0x18d] sm:$0xff]
  %v2215 = vld [vmem:[%s0 + $0x195] sm:$0xff]
  %v2216 = vld [vmem:[%s0 + $0x19d] sm:$0xff]
  %v2217 = vld [vmem:[%s0 + $0x1a5] sm:$0xff]
  %v2218 = vld [vmem:[%s0 + $0x1ad] sm:$0xff]
  %v2219 = vld [vmem:[%s0 + $0x1b5] sm:$0xff]
  %v2220 = vld [vmem:[%s0 + $0x1bd] sm:$0xff]
  %v2221 = vld [vmem:[%s0 + $0x1c5] sm:$0xff]
  %v2222 = vld [vmem:[%s0 + $0x1cd] sm:$0xff]
  %v2223 = vld [vmem:[%s0 + $0x1d5] sm:$0xff]
  %v2224 = vld [vmem:[%s0 + $0x1dd] sm:$0xff]
  %v2225 = vld [vmem:[%s0 + $0x1e5] sm:$0xff]
  %v2226 = vld [vmem:[%s0 + $0x1ed] sm:$0xff]
  %v2227 = vld [vmem:[%s0 + $0x1f5] sm:$0xff]
  %v2228 = vld [vmem:[%s0 + $0x1fd] sm:$0xff]
  %v2229 = vld [vmem:[%s0 + $0x205] sm:$0xff]
  %v2230 = vld [vmem:[%s0 + $0x20d] sm:$0xff]
  %v2231 = vld [vmem:[%s0 + $0x215] sm:$0xff]
  %v2232 = vld [vmem:[%s0 + $0x21d] sm:$0xff]
  %v2233 = vld [vmem:[%s0 + $0x225] sm:$0xff]
  %v2234 = vld [vmem:[%s0 + $0x22d] sm:$0xff]
  %v2235 = vld [vmem:[%s0 + $0x235] sm:$0xff]
  %v2236 = vld [vmem:[%s0 + $0x23d] sm:$0xff]
  %v2237 = vld [vmem:[%s0 + $0x245] sm:$0xff]
  %v2238 = vld [vmem:[%s0 + $0x24d] sm:$0xff]
  %v2239 = vld [vmem:[%s0 + $0x255] sm:$0xff]
  %v2240 = vld [vmem:[%s0 + $0x25d] sm:$0xff]
  %v2241 = vld [vmem:[%s0 + $0x265] sm:$0xff]
  %v2242 = vld [vmem:[%s0 + $0x26d] sm:$0xff]
  %v2243 = vld [vmem:[%s0 + $0x275] sm:$0xff]
  %v2244 = vld [vmem:[%s0 + $0x27d] sm:$0xff]
  %v2245 = vld [vmem:[%s0 + $0x285] sm:$0x3]
  %v2246 = vld [vmem:[%s0 + $0x26] sm:$0xff]
  %v2247 = vld [vmem:[%s0 + $0x2e] sm:$0xff]
  %v2248 = vld [vmem:[%s0 + $0x36] sm:$0xff]
  %v2249 = vld [vmem:[%s0 + $0x3e] sm:$0xff]
  %v2250 = vld [vmem:[%s0 + $0x46] sm:$0xff]
  %v2251 = vld [vmem:[%s0 + $0x4e] sm:$0xff]
  %v2252 = vld [vmem:[%s0 + $0x56] sm:$0xff]
  %v2253 = vld [vmem:[%s0 + $0x5e] sm:$0xff]
  %v2254 = vld [vmem:[%s0 + $0x66] sm:$0xff]
  %v2255 = vld [vmem:[%s0 + $0x6e] sm:$0xff]
  %v2256 = vld [vmem:[%s0 + $0x76] sm:$0xff]
  %v2257 = vld [vmem:[%s0 + $0x7e] sm:$0xff]
  %v2258 = vld [vmem:[%s0 + $0x86] sm:$0xff]
  %v2259 = vld [vmem:[%s0 + $0x8e] sm:$0xff]
  %v2260 = vld [vmem:[%s0 + $0x96] sm:$0xff]
  %v2261 = vld [vmem:[%s0 + $0x9e] sm:$0xff]
  %v2262 = vld [vmem:[%s0 + $0xa6] sm:$0xff]
  %v2263 = vld [vmem:[%s0 + $0xae] sm:$0xff]
  %v2264 = vld [vmem:[%s0 + $0xb6] sm:$0xff]
  %v2265 = vld [vmem:[%s0 + $0xbe] sm:$0xff]
  %v2266 = vld [vmem:[%s0 + $0xc6] sm:$0xff]
  %v2267 = vld [vmem:[%s0 + $0xce] sm:$0xff]
  %v2268 = vld [vmem:[%s0 + $0xd6] sm:$0xff]
  %v2269 = vld [vmem:[%s0 + $0xde] sm:$0xff]
  %v2270 = vld [vmem:[%s0 + $0xe6] sm:$0xff]
  %v2271 = vld [vmem:[%s0 + $0xee] sm:$0xff]
  %v2272 = vld [vmem:[%s0 + $0xf6] sm:$0xff]
  %v2273 = vld [vmem:[%s0 + $0xfe] sm:$0xff]
  %v2274 = vld [vmem:[%s0 + $0x106] sm:$0xff]
  %v2275 = vld [vmem:[%s0 + $0x10e] sm:$0xff]
  %v2276 = vld [vmem:[%s0 + $0x116] sm:$0xff]
  %v2277 = vld [vmem:[%s0 + $0x11e] sm:$0xff]
  %v2278 = vld [vmem:[%s0 + $0x126] sm:$0xff]
  %v2279 = vld [vmem:[%s0 + $0x12e] sm:$0xff]
  %v2280 = vld [vmem:[%s0 + $0x136] sm:$0xff]
  %v2281 = vld [vmem:[%s0 + $0x13e] sm:$0xff]
  %v2282 = vld [vmem:[%s0 + $0x146] sm:$0xff]
  %v2283 = vld [vmem:[%s0 + $0x14e] sm:$0xff]
  %v2284 = vld [vmem:[%s0 + $0x156] sm:$0xff]
  %v2285 = vld [vmem:[%s0 + $0x15e] sm:$0xff]
  %v2286 = vld [vmem:[%s0 + $0x166] sm:$0xff]
  %v2287 = vld [vmem:[%s0 + $0x16e] sm:$0xff]
  %v2288 = vld [vmem:[%s0 + $0x176] sm:$0xff]
  %v2289 = vld [vmem:[%s0 + $0x17e] sm:$0xff]
  %v2290 = vld [vmem:[%s0 + $0x186] sm:$0xff]
  %v2291 = vld [vmem:[%s0 + $0x18e] sm:$0xff]
  %v2292 = vld [vmem:[%s0 + $0x196] sm:$0xff]
  %v2293 = vld [vmem:[%s0 + $0x19e] sm:$0xff]
  %v2294 = vld [vmem:[%s0 + $0x1a6] sm:$0xff]
  %v2295 = vld [vmem:[%s0 + $0x1ae] sm:$0xff]
  %v2296 = vld [vmem:[%s0 + $0x1b6] sm:$0xff]
  %v2297 = vld [vmem:[%s0 + $0x1be] sm:$0xff]
  %v2298 = vld [vmem:[%s0 + $0x1c6] sm:$0xff]
  %v2299 = vld [vmem:[%s0 + $0x1ce] sm:$0xff]
  %v2300 = vld [vmem:[%s0 + $0x1d6] sm:$0xff]
  %v2301 = vld [vmem:[%s0 + $0x1de] sm:$0xff]
  %v2302 = vld [vmem:[%s0 + $0x1e6] sm:$0xff]
  %v2303 = vld [vmem:[%s0 + $0x1ee] sm:$0xff]
  %v2304 = vld [vmem:[%s0 + $0x1f6] sm:$0xff]
  %v2305 = vld [vmem:[%s0 + $0x1fe] sm:$0xff]
  %v2306 = vld [vmem:[%s0 + $0x206] sm:$0xff]
  %v2307 = vld [vmem:[%s0 + $0x20e] sm:$0xff]
  %v2308 = vld [vmem:[%s0 + $0x216] sm:$0xff]
  %v2309 = vld [vmem:[%s0 + $0x21e] sm:$0xff]
  %v2310 = vld [vmem:[%s0 + $0x226] sm:$0xff]
  %v2311 = vld [vmem:[%s0 + $0x22e] sm:$0xff]
  %v2312 = vld [vmem:[%s0 + $0x236] sm:$0xff]
  %v2313 = vld [vmem:[%s0 + $0x23e] sm:$0xff]
  %v2314 = vld [vmem:[%s0 + $0x246] sm:$0xff]
  %v2315 = vld [vmem:[%s0 + $0x24e] sm:$0xff]
  %v2316 = vld [vmem:[%s0 + $0x256] sm:$0xff]
  %v2317 = vld [vmem:[%s0 + $0x25e] sm:$0xff]
  %v2318 = vld [vmem:[%s0 + $0x266] sm:$0xff]
  %v2319 = vld [vmem:[%s0 + $0x26e] sm:$0xff]
  %v2320 = vld [vmem:[%s0 + $0x276] sm:$0xff]
  %v2321 = vld [vmem:[%s0 + $0x27e] sm:$0xff]
  %v2322 = vld [vmem:[%s0 + $0x286] sm:$0x3]
  %2400 = vrot.lane.b32.xlu0 %v1855, 3
  %v2401 = vpop.permute.xlu0 %2400
  %2402 = vrot.lane.b32.xlu0 %v1856, 3
  %v2403 = vpop.permute.xlu0 %2402
  %2404 = vrot.lane.b32.xlu0 %v1857, 3
  %v2405 = vpop.permute.xlu0 %2404
  %2406 = vrot.lane.b32.xlu0 %v1858, 3
  %v2407 = vpop.permute.xlu0 %2406
  %2408 = vrot.lane.b32.xlu0 %v1859, 3
  %v2409 = vpop.permute.xlu0 %2408
  %2410 = vrot.lane.b32.xlu0 %v1860, 3
  %v2411 = vpop.permute.xlu0 %2410
  %2412 = vrot.lane.b32.xlu0 %v1861, 3
  %v2413 = vpop.permute.xlu0 %2412
  %2414 = vrot.lane.b32.xlu0 %v1862, 3
  %v2415 = vpop.permute.xlu0 %2414
  %2416 = vrot.lane.b32.xlu0 %v1863, 3
  %v2417 = vpop.permute.xlu0 %2416
  %2418 = vrot.lane.b32.xlu0 %v1864, 3
  %v2419 = vpop.permute.xlu0 %2418
  %2420 = vrot.lane.b32.xlu0 %v1865, 3
  %v2421 = vpop.permute.xlu0 %2420
  %2422 = vrot.lane.b32.xlu0 %v1866, 3
  %v2423 = vpop.permute.xlu0 %2422
  %2424 = vrot.lane.b32.xlu0 %v1867, 3
  %v2425 = vpop.permute.xlu0 %2424
  %2426 = vrot.lane.b32.xlu0 %v1868, 3
  %v2427 = vpop.permute.xlu0 %2426
  %2428 = vrot.lane.b32.xlu0 %v1869, 3
  %v2429 = vpop.permute.xlu0 %2428
  %2430 = vrot.lane.b32.xlu0 %v1870, 3
  %v2431 = vpop.permute.xlu0 %2430
  %2432 = vrot.lane.b32.xlu0 %v1871, 3
  %v2433 = vpop.permute.xlu0 %2432
  %2434 = vrot.lane.b32.xlu0 %v1872, 3
  %v2435 = vpop.permute.xlu0 %2434
  %2436 = vrot.lane.b32.xlu0 %v1873, 3
  %v2437 = vpop.permute.xlu0 %2436
  %2438 = vrot.lane.b32.xlu0 %v1874, 3
  %v2439 = vpop.permute.xlu0 %2438
  %2440 = vrot.lane.b32.xlu0 %v1875, 3
  %v2441 = vpop.permute.xlu0 %2440
  %2442 = vrot.lane.b32.xlu0 %v1876, 3
  %v2443 = vpop.permute.xlu0 %2442
  %2444 = vrot.lane.b32.xlu0 %v1877, 3
  %v2445 = vpop.permute.xlu0 %2444
  %2446 = vrot.lane.b32.xlu0 %v1878, 3
  %v2447 = vpop.permute.xlu0 %2446
  %2448 = vrot.lane.b32.xlu0 %v1879, 3
  %v2449 = vpop.permute.xlu0 %2448
  %2450 = vrot.lane.b32.xlu0 %v1880, 3
  %v2451 = vpop.permute.xlu0 %2450
  %2452 = vrot.lane.b32.xlu0 %v1881, 3
  %v2453 = vpop.permute.xlu0 %2452
  %2454 = vrot.lane.b32.xlu0 %v1882, 3
  %v2455 = vpop.permute.xlu0 %2454
  %2456 = vrot.lane.b32.xlu0 %v1883, 3
  %v2457 = vpop.permute.xlu0 %2456
  %2458 = vrot.lane.b32.xlu0 %v1884, 3
  %v2459 = vpop.permute.xlu0 %2458
  %2460 = vrot.lane.b32.xlu0 %v1885, 3
  %v2461 = vpop.permute.xlu0 %2460
  %2462 = vrot.lane.b32.xlu0 %v1886, 3
  %v2463 = vpop.permute.xlu0 %2462
  %2464 = vrot.lane.b32.xlu0 %v1887, 3
  %v2465 = vpop.permute.xlu0 %2464
  %2466 = vrot.lane.b32.xlu0 %v1888, 3
  %v2467 = vpop.permute.xlu0 %2466
  %2468 = vrot.lane.b32.xlu0 %v1889, 3
  %v2469 = vpop.permute.xlu0 %2468
  %2470 = vrot.lane.b32.xlu0 %v1890, 3
  %v2471 = vpop.permute.xlu0 %2470
  %2472 = vrot.lane.b32.xlu0 %v1891, 3
  %v2473 = vpop.permute.xlu0 %2472
  %2474 = vrot.lane.b32.xlu0 %v1892, 3
  %v2475 = vpop.permute.xlu0 %2474
  %2476 = vrot.lane.b32.xlu0 %v1893, 3
  %v2477 = vpop.permute.xlu0 %2476
  %2478 = vrot.lane.b32.xlu0 %v1894, 3
  %v2479 = vpop.permute.xlu0 %2478
  %2480 = vrot.lane.b32.xlu0 %v1895, 3
  %v2481 = vpop.permute.xlu0 %2480
  %2482 = vrot.lane.b32.xlu0 %v1896, 3
  %v2483 = vpop.permute.xlu0 %2482
  %2484 = vrot.lane.b32.xlu0 %v1897, 3
  %v2485 = vpop.permute.xlu0 %2484
  %2486 = vrot.lane.b32.xlu0 %v1898, 3
  %v2487 = vpop.permute.xlu0 %2486
  %2488 = vrot.lane.b32.xlu0 %v1899, 3
  %v2489 = vpop.permute.xlu0 %2488
  %2490 = vrot.lane.b32.xlu0 %v1900, 3
  %v2491 = vpop.permute.xlu0 %2490
  %2492 = vrot.lane.b32.xlu0 %v1901, 3
  %v2493 = vpop.permute.xlu0 %2492
  %2494 = vrot.lane.b32.xlu0 %v1902, 3
  %v2495 = vpop.permute.xlu0 %2494
  %2496 = vrot.lane.b32.xlu0 %v1903, 3
  %v2497 = vpop.permute.xlu0 %2496
  %2498 = vrot.lane.b32.xlu0 %v1904, 3
  %v2499 = vpop.permute.xlu0 %2498
  %2500 = vrot.lane.b32.xlu0 %v1905, 3
  %v2501 = vpop.permute.xlu0 %2500
  %2502 = vrot.lane.b32.xlu0 %v1906, 3
  %v2503 = vpop.permute.xlu0 %2502
  %2504 = vrot.lane.b32.xlu0 %v1907, 3
  %v2505 = vpop.permute.xlu0 %2504
  %2506 = vrot.lane.b32.xlu0 %v1908, 3
  %v2507 = vpop.permute.xlu0 %2506
  %2508 = vrot.lane.b32.xlu0 %v1909, 3
  %v2509 = vpop.permute.xlu0 %2508
  %2510 = vrot.lane.b32.xlu0 %v1910, 3
  %v2511 = vpop.permute.xlu0 %2510
  %2512 = vrot.lane.b32.xlu0 %v1911, 3
  %v2513 = vpop.permute.xlu0 %2512
  %2514 = vrot.lane.b32.xlu0 %v1912, 3
  %v2515 = vpop.permute.xlu0 %2514
  %2516 = vrot.lane.b32.xlu0 %v1913, 3
  %v2517 = vpop.permute.xlu0 %2516
  %2518 = vrot.lane.b32.xlu0 %v1914, 3
  %v2519 = vpop.permute.xlu0 %2518
  %2520 = vrot.lane.b32.xlu0 %v1915, 3
  %v2521 = vpop.permute.xlu0 %2520
  %2522 = vrot.lane.b32.xlu0 %v1916, 3
  %v2523 = vpop.permute.xlu0 %2522
  %2524 = vrot.lane.b32.xlu0 %v1917, 3
  %v2525 = vpop.permute.xlu0 %2524
  %2526 = vrot.lane.b32.xlu0 %v1918, 3
  %v2527 = vpop.permute.xlu0 %2526
  %2528 = vrot.lane.b32.xlu0 %v1919, 3
  %v2529 = vpop.permute.xlu0 %2528
  %2530 = vrot.lane.b32.xlu0 %v1920, 3
  %v2531 = vpop.permute.xlu0 %2530
  %2532 = vrot.lane.b32.xlu0 %v1921, 3
  %v2533 = vpop.permute.xlu0 %2532
  %2534 = vrot.lane.b32.xlu0 %v1922, 3
  %v2535 = vpop.permute.xlu0 %2534
  %2536 = vrot.lane.b32.xlu0 %v1923, 3
  %v2537 = vpop.permute.xlu0 %2536
  %2538 = vrot.lane.b32.xlu0 %v1924, 3
  %v2539 = vpop.permute.xlu0 %2538
  %2540 = vrot.lane.b32.xlu0 %v1925, 3
  %v2541 = vpop.permute.xlu0 %2540
  %2542 = vrot.lane.b32.xlu0 %v1926, 3
  %v2543 = vpop.permute.xlu0 %2542
  %2544 = vrot.lane.b32.xlu0 %v1927, 3
  %v2545 = vpop.permute.xlu0 %2544
  %2546 = vrot.lane.b32.xlu0 %v1928, 3
  %v2547 = vpop.permute.xlu0 %2546
  %2548 = vrot.lane.b32.xlu0 %v1929, 3
  %v2549 = vpop.permute.xlu0 %2548
  %2550 = vrot.lane.b32.xlu0 %v1930, 3
  %v2551 = vpop.permute.xlu0 %2550
  %2552 = vrot.lane.b32.xlu0 %v1931, 3
  %v2553 = vpop.permute.xlu0 %2552
  %2708 = vrot.lane.b32.xlu0 %v1932, 6
  %v2709 = vpop.permute.xlu0 %2708
  %2710 = vrot.lane.b32.xlu0 %v1933, 6
  %v2711 = vpop.permute.xlu0 %2710
  %2712 = vrot.lane.b32.xlu0 %v1934, 6
  %v2713 = vpop.permute.xlu0 %2712
  %2714 = vrot.lane.b32.xlu0 %v1935, 6
  %v2715 = vpop.permute.xlu0 %2714
  %2716 = vrot.lane.b32.xlu0 %v1936, 6
  %v2717 = vpop.permute.xlu0 %2716
  %2718 = vrot.lane.b32.xlu0 %v1937, 6
  %v2719 = vpop.permute.xlu0 %2718
  %2720 = vrot.lane.b32.xlu0 %v1938, 6
  %v2721 = vpop.permute.xlu0 %2720
  %2722 = vrot.lane.b32.xlu0 %v1939, 6
  %v2723 = vpop.permute.xlu0 %2722
  %2724 = vrot.lane.b32.xlu0 %v1940, 6
  %v2725 = vpop.permute.xlu0 %2724
  %2726 = vrot.lane.b32.xlu0 %v1941, 6
  %v2727 = vpop.permute.xlu0 %2726
  %2728 = vrot.lane.b32.xlu0 %v1942, 6
  %v2729 = vpop.permute.xlu0 %2728
  %2730 = vrot.lane.b32.xlu0 %v1943, 6
  %v2731 = vpop.permute.xlu0 %2730
  %2732 = vrot.lane.b32.xlu0 %v1944, 6
  %v2733 = vpop.permute.xlu0 %2732
  %2734 = vrot.lane.b32.xlu0 %v1945, 6
  %v2735 = vpop.permute.xlu0 %2734
  %2736 = vrot.lane.b32.xlu0 %v1946, 6
  %v2737 = vpop.permute.xlu0 %2736
  %2738 = vrot.lane.b32.xlu0 %v1947, 6
  %v2739 = vpop.permute.xlu0 %2738
  %2740 = vrot.lane.b32.xlu0 %v1948, 6
  %v2741 = vpop.permute.xlu0 %2740
  %2742 = vrot.lane.b32.xlu0 %v1949, 6
  %v2743 = vpop.permute.xlu0 %2742
  %2744 = vrot.lane.b32.xlu0 %v1950, 6
  %v2745 = vpop.permute.xlu0 %2744
  %2746 = vrot.lane.b32.xlu0 %v1951, 6
  %v2747 = vpop.permute.xlu0 %2746
  %2748 = vrot.lane.b32.xlu0 %v1952, 6
  %v2749 = vpop.permute.xlu0 %2748
  %2750 = vrot.lane.b32.xlu0 %v1953, 6
  %v2751 = vpop.permute.xlu0 %2750
  %2752 = vrot.lane.b32.xlu0 %v1954, 6
  %v2753 = vpop.permute.xlu0 %2752
  %2754 = vrot.lane.b32.xlu0 %v1955, 6
  %v2755 = vpop.permute.xlu0 %2754
  %2756 = vrot.lane.b32.xlu0 %v1956, 6
  %v2757 = vpop.permute.xlu0 %2756
  %2758 = vrot.lane.b32.xlu0 %v1957, 6
  %v2759 = vpop.permute.xlu0 %2758
  %2760 = vrot.lane.b32.xlu0 %v1958, 6
  %v2761 = vpop.permute.xlu0 %2760
  %2762 = vrot.lane.b32.xlu0 %v1959, 6
  %v2763 = vpop.permute.xlu0 %2762
  %2764 = vrot.lane.b32.xlu0 %v1960, 6
  %v2765 = vpop.permute.xlu0 %2764
  %2766 = vrot.lane.b32.xlu0 %v1961, 6
  %v2767 = vpop.permute.xlu0 %2766
  %2768 = vrot.lane.b32.xlu0 %v1962, 6
  %v2769 = vpop.permute.xlu0 %2768
  %2770 = vrot.lane.b32.xlu0 %v1963, 6
  %v2771 = vpop.permute.xlu0 %2770
  %2772 = vrot.lane.b32.xlu0 %v1964, 6
  %v2773 = vpop.permute.xlu0 %2772
  %2774 = vrot.lane.b32.xlu0 %v1965, 6
  %v2775 = vpop.permute.xlu0 %2774
  %2776 = vrot.lane.b32.xlu0 %v1966, 6
  %v2777 = vpop.permute.xlu0 %2776
  %2778 = vrot.lane.b32.xlu0 %v1967, 6
  %v2779 = vpop.permute.xlu0 %2778
  %2780 = vrot.lane.b32.xlu0 %v1968, 6
  %v2781 = vpop.permute.xlu0 %2780
  %2782 = vrot.lane.b32.xlu0 %v1969, 6
  %v2783 = vpop.permute.xlu0 %2782
  %2784 = vrot.lane.b32.xlu0 %v1970, 6
  %v2785 = vpop.permute.xlu0 %2784
  %2786 = vrot.lane.b32.xlu0 %v1971, 6
  %v2787 = vpop.permute.xlu0 %2786
  %2788 = vrot.lane.b32.xlu0 %v1972, 6
  %v2789 = vpop.permute.xlu0 %2788
  %2790 = vrot.lane.b32.xlu0 %v1973, 6
  %v2791 = vpop.permute.xlu0 %2790
  %2792 = vrot.lane.b32.xlu0 %v1974, 6
  %v2793 = vpop.permute.xlu0 %2792
  %2794 = vrot.lane.b32.xlu0 %v1975, 6
  %v2795 = vpop.permute.xlu0 %2794
  %2796 = vrot.lane.b32.xlu0 %v1976, 6
  %v2797 = vpop.permute.xlu0 %2796
  %2798 = vrot.lane.b32.xlu0 %v1977, 6
  %v2799 = vpop.permute.xlu0 %2798
  %2800 = vrot.lane.b32.xlu0 %v1978, 6
  %v2801 = vpop.permute.xlu0 %2800
  %2802 = vrot.lane.b32.xlu0 %v1979, 6
  %v2803 = vpop.permute.xlu0 %2802
  %2804 = vrot.lane.b32.xlu0 %v1980, 6
  %v2805 = vpop.permute.xlu0 %2804
  %2806 = vrot.lane.b32.xlu0 %v1981, 6
  %v2807 = vpop.permute.xlu0 %2806
  %2808 = vrot.lane.b32.xlu0 %v1982, 6
  %v2809 = vpop.permute.xlu0 %2808
  %2810 = vrot.lane.b32.xlu0 %v1983, 6
  %v2811 = vpop.permute.xlu0 %2810
  %2812 = vrot.lane.b32.xlu0 %v1984, 6
  %v2813 = vpop.permute.xlu0 %2812
  %2814 = vrot.lane.b32.xlu0 %v1985, 6
  %v2815 = vpop.permute.xlu0 %2814
  %2816 = vrot.lane.b32.xlu0 %v1986, 6
  %v2817 = vpop.permute.xlu0 %2816
  %2818 = vrot.lane.b32.xlu0 %v1987, 6
  %v2819 = vpop.permute.xlu0 %2818
  %2820 = vrot.lane.b32.xlu0 %v1988, 6
  %v2821 = vpop.permute.xlu0 %2820
  %2822 = vrot.lane.b32.xlu0 %v1989, 6
  %v2823 = vpop.permute.xlu0 %2822
  %2824 = vrot.lane.b32.xlu0 %v1990, 6
  %v2825 = vpop.permute.xlu0 %2824
  %2826 = vrot.lane.b32.xlu0 %v1991, 6
  %v2827 = vpop.permute.xlu0 %2826
  %2828 = vrot.lane.b32.xlu0 %v1992, 6
  %v2829 = vpop.permute.xlu0 %2828
  %2830 = vrot.lane.b32.xlu0 %v1993, 6
  %v2831 = vpop.permute.xlu0 %2830
  %2832 = vrot.lane.b32.xlu0 %v1994, 6
  %v2833 = vpop.permute.xlu0 %2832
  %2834 = vrot.lane.b32.xlu0 %v1995, 6
  %v2835 = vpop.permute.xlu0 %2834
  %2836 = vrot.lane.b32.xlu0 %v1996, 6
  %v2837 = vpop.permute.xlu0 %2836
  %2838 = vrot.lane.b32.xlu0 %v1997, 6
  %v2839 = vpop.permute.xlu0 %2838
  %2840 = vrot.lane.b32.xlu0 %v1998, 6
  %v2841 = vpop.permute.xlu0 %2840
  %2842 = vrot.lane.b32.xlu0 %v1999, 6
  %v2843 = vpop.permute.xlu0 %2842
  %2844 = vrot.lane.b32.xlu0 %v2000, 6
  %v2845 = vpop.permute.xlu0 %2844
  %2846 = vrot.lane.b32.xlu0 %v2001, 6
  %v2847 = vpop.permute.xlu0 %2846
  %2848 = vrot.lane.b32.xlu0 %v2002, 6
  %v2849 = vpop.permute.xlu0 %2848
  %2850 = vrot.lane.b32.xlu0 %v2003, 6
  %v2851 = vpop.permute.xlu0 %2850
  %2852 = vrot.lane.b32.xlu0 %v2004, 6
  %v2853 = vpop.permute.xlu0 %2852
  %2854 = vrot.lane.b32.xlu0 %v2005, 6
  %v2855 = vpop.permute.xlu0 %2854
  %2856 = vrot.lane.b32.xlu0 %v2006, 6
  %v2857 = vpop.permute.xlu0 %2856
  %2858 = vrot.lane.b32.xlu0 %v2007, 6
  %v2859 = vpop.permute.xlu0 %2858
  %2860 = vrot.lane.b32.xlu0 %v2008, 6
  %v2861 = vpop.permute.xlu0 %2860
  %2942 = vrot.lane.b32.xlu0 %v1934, 9
  %v2943 = vpop.permute.xlu0 %2942
  %2944 = vrot.lane.b32.xlu0 %v1935, 9
  %v2945 = vpop.permute.xlu0 %2944
  %2946 = vrot.lane.b32.xlu0 %v1936, 9
  %v2947 = vpop.permute.xlu0 %2946
  %2948 = vrot.lane.b32.xlu0 %v1937, 9
  %v2949 = vpop.permute.xlu0 %2948
  %2950 = vrot.lane.b32.xlu0 %v1938, 9
  %v2951 = vpop.permute.xlu0 %2950
  %2952 = vrot.lane.b32.xlu0 %v1939, 9
  %v2953 = vpop.permute.xlu0 %2952
  %2954 = vrot.lane.b32.xlu0 %v1940, 9
  %v2955 = vpop.permute.xlu0 %2954
  %2956 = vrot.lane.b32.xlu0 %v1941, 9
  %v2957 = vpop.permute.xlu0 %2956
  %2958 = vrot.lane.b32.xlu0 %v1942, 9
  %v2959 = vpop.permute.xlu0 %2958
  %2960 = vrot.lane.b32.xlu0 %v1943, 9
  %v2961 = vpop.permute.xlu0 %2960
  %2962 = vrot.lane.b32.xlu0 %v1944, 9
  %v2963 = vpop.permute.xlu0 %2962
  %2964 = vrot.lane.b32.xlu0 %v1945, 9
  %v2965 = vpop.permute.xlu0 %2964
  %2966 = vrot.lane.b32.xlu0 %v1946, 9
  %v2967 = vpop.permute.xlu0 %2966
  %2968 = vrot.lane.b32.xlu0 %v1947, 9
  %v2969 = vpop.permute.xlu0 %2968
  %2970 = vrot.lane.b32.xlu0 %v1948, 9
  %v2971 = vpop.permute.xlu0 %2970
  %2972 = vrot.lane.b32.xlu0 %v1949, 9
  %v2973 = vpop.permute.xlu0 %2972
  %2974 = vrot.lane.b32.xlu0 %v1950, 9
  %v2975 = vpop.permute.xlu0 %2974
  %2976 = vrot.lane.b32.xlu0 %v1951, 9
  %v2977 = vpop.permute.xlu0 %2976
  %2978 = vrot.lane.b32.xlu0 %v1952, 9
  %v2979 = vpop.permute.xlu0 %2978
  %2980 = vrot.lane.b32.xlu0 %v1953, 9
  %v2981 = vpop.permute.xlu0 %2980
  %2982 = vrot.lane.b32.xlu0 %v1954, 9
  %v2983 = vpop.permute.xlu0 %2982
  %2984 = vrot.lane.b32.xlu0 %v1955, 9
  %v2985 = vpop.permute.xlu0 %2984
  %2986 = vrot.lane.b32.xlu0 %v1956, 9
  %v2987 = vpop.permute.xlu0 %2986
  %2988 = vrot.lane.b32.xlu0 %v1957, 9
  %v2989 = vpop.permute.xlu0 %2988
  %2990 = vrot.lane.b32.xlu0 %v1958, 9
  %v2991 = vpop.permute.xlu0 %2990
  %2992 = vrot.lane.b32.xlu0 %v1959, 9
  %v2993 = vpop.permute.xlu0 %2992
  %2994 = vrot.lane.b32.xlu0 %v1960, 9
  %v2995 = vpop.permute.xlu0 %2994
  %2996 = vrot.lane.b32.xlu0 %v1961, 9
  %v2997 = vpop.permute.xlu0 %2996
  %2998 = vrot.lane.b32.xlu0 %v1962, 9
  %v2999 = vpop.permute.xlu0 %2998
  %3000 = vrot.lane.b32.xlu0 %v1963, 9
  %v3001 = vpop.permute.xlu0 %3000
  %3002 = vrot.lane.b32.xlu0 %v1964, 9
  %v3003 = vpop.permute.xlu0 %3002
  %3004 = vrot.lane.b32.xlu0 %v1965, 9
  %v3005 = vpop.permute.xlu0 %3004
  %3006 = vrot.lane.b32.xlu0 %v1966, 9
  %v3007 = vpop.permute.xlu0 %3006
  %3008 = vrot.lane.b32.xlu0 %v1967, 9
  %v3009 = vpop.permute.xlu0 %3008
  %3010 = vrot.lane.b32.xlu0 %v1968, 9
  %v3011 = vpop.permute.xlu0 %3010
  %3012 = vrot.lane.b32.xlu0 %v1969, 9
  %v3013 = vpop.permute.xlu0 %3012
  %3014 = vrot.lane.b32.xlu0 %v1970, 9
  %v3015 = vpop.permute.xlu0 %3014
  %3016 = vrot.lane.b32.xlu0 %v1971, 9
  %v3017 = vpop.permute.xlu0 %3016
  %3018 = vrot.lane.b32.xlu0 %v1972, 9
  %v3019 = vpop.permute.xlu0 %3018
  %3020 = vrot.lane.b32.xlu0 %v1973, 9
  %v3021 = vpop.permute.xlu0 %3020
  %3022 = vrot.lane.b32.xlu0 %v1974, 9
  %v3023 = vpop.permute.xlu0 %3022
  %3024 = vrot.lane.b32.xlu0 %v1975, 9
  %v3025 = vpop.permute.xlu0 %3024
  %3026 = vrot.lane.b32.xlu0 %v1976, 9
  %v3027 = vpop.permute.xlu0 %3026
  %3028 = vrot.lane.b32.xlu0 %v1977, 9
  %v3029 = vpop.permute.xlu0 %3028
  %3030 = vrot.lane.b32.xlu0 %v1978, 9
  %v3031 = vpop.permute.xlu0 %3030
  %3032 = vrot.lane.b32.xlu0 %v1979, 9
  %v3033 = vpop.permute.xlu0 %3032
  %3034 = vrot.lane.b32.xlu0 %v1980, 9
  %v3035 = vpop.permute.xlu0 %3034
  %3036 = vrot.lane.b32.xlu0 %v1981, 9
  %v3037 = vpop.permute.xlu0 %3036
  %3038 = vrot.lane.b32.xlu0 %v1982, 9
  %v3039 = vpop.permute.xlu0 %3038
  %3040 = vrot.lane.b32.xlu0 %v1983, 9
  %v3041 = vpop.permute.xlu0 %3040
  %3042 = vrot.lane.b32.xlu0 %v1984, 9
  %v3043 = vpop.permute.xlu0 %3042
  %3044 = vrot.lane.b32.xlu0 %v1985, 9
  %v3045 = vpop.permute.xlu0 %3044
  %3046 = vrot.lane.b32.xlu0 %v1986, 9
  %v3047 = vpop.permute.xlu0 %3046
  %3048 = vrot.lane.b32.xlu0 %v1987, 9
  %v3049 = vpop.permute.xlu0 %3048
  %3050 = vrot.lane.b32.xlu0 %v1988, 9
  %v3051 = vpop.permute.xlu0 %3050
  %3052 = vrot.lane.b32.xlu0 %v1989, 9
  %v3053 = vpop.permute.xlu0 %3052
  %3054 = vrot.lane.b32.xlu0 %v1990, 9
  %v3055 = vpop.permute.xlu0 %3054
  %3056 = vrot.lane.b32.xlu0 %v1991, 9
  %v3057 = vpop.permute.xlu0 %3056
  %3058 = vrot.lane.b32.xlu0 %v1992, 9
  %v3059 = vpop.permute.xlu0 %3058
  %3060 = vrot.lane.b32.xlu0 %v1993, 9
  %v3061 = vpop.permute.xlu0 %3060
  %3062 = vrot.lane.b32.xlu0 %v1994, 9
  %v3063 = vpop.permute.xlu0 %3062
  %3064 = vrot.lane.b32.xlu0 %v1995, 9
  %v3065 = vpop.permute.xlu0 %3064
  %3066 = vrot.lane.b32.xlu0 %v1996, 9
  %v3067 = vpop.permute.xlu0 %3066
  %3068 = vrot.lane.b32.xlu0 %v1997, 9
  %v3069 = vpop.permute.xlu0 %3068
  %3070 = vrot.lane.b32.xlu0 %v1998, 9
  %v3071 = vpop.permute.xlu0 %3070
  %3072 = vrot.lane.b32.xlu0 %v1999, 9
  %v3073 = vpop.permute.xlu0 %3072
  %3074 = vrot.lane.b32.xlu0 %v2000, 9
  %v3075 = vpop.permute.xlu0 %3074
  %3076 = vrot.lane.b32.xlu0 %v2001, 9
  %v3077 = vpop.permute.xlu0 %3076
  %3078 = vrot.lane.b32.xlu0 %v2002, 9
  %v3079 = vpop.permute.xlu0 %3078
  %3080 = vrot.lane.b32.xlu0 %v2003, 9
  %v3081 = vpop.permute.xlu0 %3080
  %3082 = vrot.lane.b32.xlu0 %v2004, 9
  %v3083 = vpop.permute.xlu0 %3082
  %3084 = vrot.lane.b32.xlu0 %v2005, 9
  %v3085 = vpop.permute.xlu0 %3084
  %3086 = vrot.lane.b32.xlu0 %v2006, 9
  %v3087 = vpop.permute.xlu0 %3086
  %3088 = vrot.lane.b32.xlu0 %v2007, 9
  %v3089 = vpop.permute.xlu0 %3088
  %3090 = vrot.lane.b32.xlu0 %v2009, 9
  %v3091 = vpop.permute.xlu0 %3090
  %3092 = vrot.lane.b32.xlu0 %v2010, 9
  %v3093 = vpop.permute.xlu0 %3092
  %3094 = vrot.lane.b32.xlu0 %v2011, 9
  %v3095 = vpop.permute.xlu0 %3094
  %3250 = vrot.lane.b32.xlu0 %v2012, 12
  %v3251 = vpop.permute.xlu0 %3250
  %3252 = vrot.lane.b32.xlu0 %v2013, 12
  %v3253 = vpop.permute.xlu0 %3252
  %3254 = vrot.lane.b32.xlu0 %v2014, 12
  %v3255 = vpop.permute.xlu0 %3254
  %3256 = vrot.lane.b32.xlu0 %v2015, 12
  %v3257 = vpop.permute.xlu0 %3256
  %3258 = vrot.lane.b32.xlu0 %v2016, 12
  %v3259 = vpop.permute.xlu0 %3258
  %3260 = vrot.lane.b32.xlu0 %v2017, 12
  %v3261 = vpop.permute.xlu0 %3260
  %3262 = vrot.lane.b32.xlu0 %v2018, 12
  %v3263 = vpop.permute.xlu0 %3262
  %3264 = vrot.lane.b32.xlu0 %v2019, 12
  %v3265 = vpop.permute.xlu0 %3264
  %3266 = vrot.lane.b32.xlu0 %v2020, 12
  %v3267 = vpop.permute.xlu0 %3266
  %3268 = vrot.lane.b32.xlu0 %v2021, 12
  %v3269 = vpop.permute.xlu0 %3268
  %3270 = vrot.lane.b32.xlu0 %v2022, 12
  %v3271 = vpop.permute.xlu0 %3270
  %3272 = vrot.lane.b32.xlu0 %v2023, 12
  %v3273 = vpop.permute.xlu0 %3272
  %3274 = vrot.lane.b32.xlu0 %v2024, 12
  %v3275 = vpop.permute.xlu0 %3274
  %3276 = vrot.lane.b32.xlu0 %v2025, 12
  %v3277 = vpop.permute.xlu0 %3276
  %3278 = vrot.lane.b32.xlu0 %v2026, 12
  %v3279 = vpop.permute.xlu0 %3278
  %3280 = vrot.lane.b32.xlu0 %v2027, 12
  %v3281 = vpop.permute.xlu0 %3280
  %3282 = vrot.lane.b32.xlu0 %v2028, 12
  %v3283 = vpop.permute.xlu0 %3282
  %3284 = vrot.lane.b32.xlu0 %v2029, 12
  %v3285 = vpop.permute.xlu0 %3284
  %3286 = vrot.lane.b32.xlu0 %v2030, 12
  %v3287 = vpop.permute.xlu0 %3286
  %3288 = vrot.lane.b32.xlu0 %v2031, 12
  %v3289 = vpop.permute.xlu0 %3288
  %3290 = vrot.lane.b32.xlu0 %v2032, 12
  %v3291 = vpop.permute.xlu0 %3290
  %3292 = vrot.lane.b32.xlu0 %v2033, 12
  %v3293 = vpop.permute.xlu0 %3292
  %3294 = vrot.lane.b32.xlu0 %v2034, 12
  %v3295 = vpop.permute.xlu0 %3294
  %3296 = vrot.lane.b32.xlu0 %v2035, 12
  %v3297 = vpop.permute.xlu0 %3296
  %3298 = vrot.lane.b32.xlu0 %v2036, 12
  %v3299 = vpop.permute.xlu0 %3298
  %3300 = vrot.lane.b32.xlu0 %v2037, 12
  %v3301 = vpop.permute.xlu0 %3300
  %3302 = vrot.lane.b32.xlu0 %v2038, 12
  %v3303 = vpop.permute.xlu0 %3302
  %3304 = vrot.lane.b32.xlu0 %v2039, 12
  %v3305 = vpop.permute.xlu0 %3304
  %3306 = vrot.lane.b32.xlu0 %v2040, 12
  %v3307 = vpop.permute.xlu0 %3306
  %3308 = vrot.lane.b32.xlu0 %v2041, 12
  %v3309 = vpop.permute.xlu0 %3308
  %3310 = vrot.lane.b32.xlu0 %v2042, 12
  %v3311 = vpop.permute.xlu0 %3310
  %3312 = vrot.lane.b32.xlu0 %v2043, 12
  %v3313 = vpop.permute.xlu0 %3312
  %3314 = vrot.lane.b32.xlu0 %v2044, 12
  %v3315 = vpop.permute.xlu0 %3314
  %3316 = vrot.lane.b32.xlu0 %v2045, 12
  %v3317 = vpop.permute.xlu0 %3316
  %3318 = vrot.lane.b32.xlu0 %v2046, 12
  %v3319 = vpop.permute.xlu0 %3318
  %3320 = vrot.lane.b32.xlu0 %v2047, 12
  %v3321 = vpop.permute.xlu0 %3320
  %3322 = vrot.lane.b32.xlu0 %v2048, 12
  %v3323 = vpop.permute.xlu0 %3322
  %3324 = vrot.lane.b32.xlu0 %v2049, 12
  %v3325 = vpop.permute.xlu0 %3324
  %3326 = vrot.lane.b32.xlu0 %v2050, 12
  %v3327 = vpop.permute.xlu0 %3326
  %3328 = vrot.lane.b32.xlu0 %v2051, 12
  %v3329 = vpop.permute.xlu0 %3328
  %3330 = vrot.lane.b32.xlu0 %v2052, 12
  %v3331 = vpop.permute.xlu0 %3330
  %3332 = vrot.lane.b32.xlu0 %v2053, 12
  %v3333 = vpop.permute.xlu0 %3332
  %3334 = vrot.lane.b32.xlu0 %v2054, 12
  %v3335 = vpop.permute.xlu0 %3334
  %3336 = vrot.lane.b32.xlu0 %v2055, 12
  %v3337 = vpop.permute.xlu0 %3336
  %3338 = vrot.lane.b32.xlu0 %v2056, 12
  %v3339 = vpop.permute.xlu0 %3338
  %3340 = vrot.lane.b32.xlu0 %v2057, 12
  %v3341 = vpop.permute.xlu0 %3340
  %3342 = vrot.lane.b32.xlu0 %v2058, 12
  %v3343 = vpop.permute.xlu0 %3342
  %3344 = vrot.lane.b32.xlu0 %v2059, 12
  %v3345 = vpop.permute.xlu0 %3344
  %3346 = vrot.lane.b32.xlu0 %v2060, 12
  %v3347 = vpop.permute.xlu0 %3346
  %3348 = vrot.lane.b32.xlu0 %v2061, 12
  %v3349 = vpop.permute.xlu0 %3348
  %3350 = vrot.lane.b32.xlu0 %v2062, 12
  %v3351 = vpop.permute.xlu0 %3350
  %3352 = vrot.lane.b32.xlu0 %v2063, 12
  %v3353 = vpop.permute.xlu0 %3352
  %3354 = vrot.lane.b32.xlu0 %v2064, 12
  %v3355 = vpop.permute.xlu0 %3354
  %3356 = vrot.lane.b32.xlu0 %v2065, 12
  %v3357 = vpop.permute.xlu0 %3356
  %3358 = vrot.lane.b32.xlu0 %v2066, 12
  %v3359 = vpop.permute.xlu0 %3358
  %3360 = vrot.lane.b32.xlu0 %v2067, 12
  %v3361 = vpop.permute.xlu0 %3360
  %3362 = vrot.lane.b32.xlu0 %v2068, 12
  %v3363 = vpop.permute.xlu0 %3362
  %3364 = vrot.lane.b32.xlu0 %v2069, 12
  %v3365 = vpop.permute.xlu0 %3364
  %3366 = vrot.lane.b32.xlu0 %v2070, 12
  %v3367 = vpop.permute.xlu0 %3366
  %3368 = vrot.lane.b32.xlu0 %v2071, 12
  %v3369 = vpop.permute.xlu0 %3368
  %3370 = vrot.lane.b32.xlu0 %v2072, 12
  %v3371 = vpop.permute.xlu0 %3370
  %3372 = vrot.lane.b32.xlu0 %v2073, 12
  %v3373 = vpop.permute.xlu0 %3372
  %3374 = vrot.lane.b32.xlu0 %v2074, 12
  %v3375 = vpop.permute.xlu0 %3374
  %3376 = vrot.lane.b32.xlu0 %v2075, 12
  %v3377 = vpop.permute.xlu0 %3376
  %3378 = vrot.lane.b32.xlu0 %v2076, 12
  %v3379 = vpop.permute.xlu0 %3378
  %3380 = vrot.lane.b32.xlu0 %v2077, 12
  %v3381 = vpop.permute.xlu0 %3380
  %3382 = vrot.lane.b32.xlu0 %v2078, 12
  %v3383 = vpop.permute.xlu0 %3382
  %3384 = vrot.lane.b32.xlu0 %v2079, 12
  %v3385 = vpop.permute.xlu0 %3384
  %3386 = vrot.lane.b32.xlu0 %v2080, 12
  %v3387 = vpop.permute.xlu0 %3386
  %3388 = vrot.lane.b32.xlu0 %v2081, 12
  %v3389 = vpop.permute.xlu0 %3388
  %3390 = vrot.lane.b32.xlu0 %v2082, 12
  %v3391 = vpop.permute.xlu0 %3390
  %3392 = vrot.lane.b32.xlu0 %v2083, 12
  %v3393 = vpop.permute.xlu0 %3392
  %3394 = vrot.lane.b32.xlu0 %v2084, 12
  %v3395 = vpop.permute.xlu0 %3394
  %3396 = vrot.lane.b32.xlu0 %v2085, 12
  %v3397 = vpop.permute.xlu0 %3396
  %3398 = vrot.lane.b32.xlu0 %v2086, 12
  %v3399 = vpop.permute.xlu0 %3398
  %3400 = vrot.lane.b32.xlu0 %v2087, 12
  %v3401 = vpop.permute.xlu0 %3400
  %3402 = vrot.lane.b32.xlu0 %v2088, 12
  %v3403 = vpop.permute.xlu0 %3402
  %3558 = vrot.lane.b32.xlu0 %v2089, 15
  %v3559 = vpop.permute.xlu0 %3558
  %3560 = vrot.lane.b32.xlu0 %v2090, 15
  %v3561 = vpop.permute.xlu0 %3560
  %3562 = vrot.lane.b32.xlu0 %v2091, 15
  %v3563 = vpop.permute.xlu0 %3562
  %3564 = vrot.lane.b32.xlu0 %v2092, 15
  %v3565 = vpop.permute.xlu0 %3564
  %3566 = vrot.lane.b32.xlu0 %v2093, 15
  %v3567 = vpop.permute.xlu0 %3566
  %3568 = vrot.lane.b32.xlu0 %v2094, 15
  %v3569 = vpop.permute.xlu0 %3568
  %3570 = vrot.lane.b32.xlu0 %v2095, 15
  %v3571 = vpop.permute.xlu0 %3570
  %3572 = vrot.lane.b32.xlu0 %v2096, 15
  %v3573 = vpop.permute.xlu0 %3572
  %3574 = vrot.lane.b32.xlu0 %v2097, 15
  %v3575 = vpop.permute.xlu0 %3574
  %3576 = vrot.lane.b32.xlu0 %v2098, 15
  %v3577 = vpop.permute.xlu0 %3576
  %3578 = vrot.lane.b32.xlu0 %v2099, 15
  %v3579 = vpop.permute.xlu0 %3578
  %3580 = vrot.lane.b32.xlu0 %v2100, 15
  %v3581 = vpop.permute.xlu0 %3580
  %3582 = vrot.lane.b32.xlu0 %v2101, 15
  %v3583 = vpop.permute.xlu0 %3582
  %3584 = vrot.lane.b32.xlu0 %v2102, 15
  %v3585 = vpop.permute.xlu0 %3584
  %3586 = vrot.lane.b32.xlu0 %v2103, 15
  %v3587 = vpop.permute.xlu0 %3586
  %3588 = vrot.lane.b32.xlu0 %v2104, 15
  %v3589 = vpop.permute.xlu0 %3588
  %3590 = vrot.lane.b32.xlu0 %v2105, 15
  %v3591 = vpop.permute.xlu0 %3590
  %3592 = vrot.lane.b32.xlu0 %v2106, 15
  %v3593 = vpop.permute.xlu0 %3592
  %3594 = vrot.lane.b32.xlu0 %v2107, 15
  %v3595 = vpop.permute.xlu0 %3594
  %3596 = vrot.lane.b32.xlu0 %v2108, 15
  %v3597 = vpop.permute.xlu0 %3596
  %3598 = vrot.lane.b32.xlu0 %v2109, 15
  %v3599 = vpop.permute.xlu0 %3598
  %3600 = vrot.lane.b32.xlu0 %v2110, 15
  %v3601 = vpop.permute.xlu0 %3600
  %3602 = vrot.lane.b32.xlu0 %v2111, 15
  %v3603 = vpop.permute.xlu0 %3602
  %3604 = vrot.lane.b32.xlu0 %v2112, 15
  %v3605 = vpop.permute.xlu0 %3604
  %3606 = vrot.lane.b32.xlu0 %v2113, 15
  %v3607 = vpop.permute.xlu0 %3606
  %3608 = vrot.lane.b32.xlu0 %v2114, 15
  %v3609 = vpop.permute.xlu0 %3608
  %3610 = vrot.lane.b32.xlu0 %v2115, 15
  %v3611 = vpop.permute.xlu0 %3610
  %3612 = vrot.lane.b32.xlu0 %v2116, 15
  %v3613 = vpop.permute.xlu0 %3612
  %3614 = vrot.lane.b32.xlu0 %v2117, 15
  %v3615 = vpop.permute.xlu0 %3614
  %3616 = vrot.lane.b32.xlu0 %v2118, 15
  %v3617 = vpop.permute.xlu0 %3616
  %3618 = vrot.lane.b32.xlu0 %v2119, 15
  %v3619 = vpop.permute.xlu0 %3618
  %3620 = vrot.lane.b32.xlu0 %v2120, 15
  %v3621 = vpop.permute.xlu0 %3620
  %3622 = vrot.lane.b32.xlu0 %v2121, 15
  %v3623 = vpop.permute.xlu0 %3622
  %3624 = vrot.lane.b32.xlu0 %v2122, 15
  %v3625 = vpop.permute.xlu0 %3624
  %3626 = vrot.lane.b32.xlu0 %v2123, 15
  %v3627 = vpop.permute.xlu0 %3626
  %3628 = vrot.lane.b32.xlu0 %v2124, 15
  %v3629 = vpop.permute.xlu0 %3628
  %3630 = vrot.lane.b32.xlu0 %v2125, 15
  %v3631 = vpop.permute.xlu0 %3630
  %3632 = vrot.lane.b32.xlu0 %v2126, 15
  %v3633 = vpop.permute.xlu0 %3632
  %3634 = vrot.lane.b32.xlu0 %v2127, 15
  %v3635 = vpop.permute.xlu0 %3634
  %3636 = vrot.lane.b32.xlu0 %v2128, 15
  %v3637 = vpop.permute.xlu0 %3636
  %3638 = vrot.lane.b32.xlu0 %v2129, 15
  %v3639 = vpop.permute.xlu0 %3638
  %3640 = vrot.lane.b32.xlu0 %v2130, 15
  %v3641 = vpop.permute.xlu0 %3640
  %3642 = vrot.lane.b32.xlu0 %v2131, 15
  %v3643 = vpop.permute.xlu0 %3642
  %3644 = vrot.lane.b32.xlu0 %v2132, 15
  %v3645 = vpop.permute.xlu0 %3644
  %3646 = vrot.lane.b32.xlu0 %v2133, 15
  %v3647 = vpop.permute.xlu0 %3646
  %3648 = vrot.lane.b32.xlu0 %v2134, 15
  %v3649 = vpop.permute.xlu0 %3648
  %3650 = vrot.lane.b32.xlu0 %v2135, 15
  %v3651 = vpop.permute.xlu0 %3650
  %3652 = vrot.lane.b32.xlu0 %v2136, 15
  %v3653 = vpop.permute.xlu0 %3652
  %3654 = vrot.lane.b32.xlu0 %v2137, 15
  %v3655 = vpop.permute.xlu0 %3654
  %3656 = vrot.lane.b32.xlu0 %v2138, 15
  %v3657 = vpop.permute.xlu0 %3656
  %3658 = vrot.lane.b32.xlu0 %v2139, 15
  %v3659 = vpop.permute.xlu0 %3658
  %3660 = vrot.lane.b32.xlu0 %v2140, 15
  %v3661 = vpop.permute.xlu0 %3660
  %3662 = vrot.lane.b32.xlu0 %v2141, 15
  %v3663 = vpop.permute.xlu0 %3662
  %3664 = vrot.lane.b32.xlu0 %v2142, 15
  %v3665 = vpop.permute.xlu0 %3664
  %3666 = vrot.lane.b32.xlu0 %v2143, 15
  %v3667 = vpop.permute.xlu0 %3666
  %3668 = vrot.lane.b32.xlu0 %v2144, 15
  %v3669 = vpop.permute.xlu0 %3668
  %3670 = vrot.lane.b32.xlu0 %v2145, 15
  %v3671 = vpop.permute.xlu0 %3670
  %3672 = vrot.lane.b32.xlu0 %v2146, 15
  %v3673 = vpop.permute.xlu0 %3672
  %3674 = vrot.lane.b32.xlu0 %v2147, 15
  %v3675 = vpop.permute.xlu0 %3674
  %3676 = vrot.lane.b32.xlu0 %v2148, 15
  %v3677 = vpop.permute.xlu0 %3676
  %3678 = vrot.lane.b32.xlu0 %v2149, 15
  %v3679 = vpop.permute.xlu0 %3678
  %3680 = vrot.lane.b32.xlu0 %v2150, 15
  %v3681 = vpop.permute.xlu0 %3680
  %3682 = vrot.lane.b32.xlu0 %v2151, 15
  %v3683 = vpop.permute.xlu0 %3682
  %3684 = vrot.lane.b32.xlu0 %v2152, 15
  %v3685 = vpop.permute.xlu0 %3684
  %3686 = vrot.lane.b32.xlu0 %v2153, 15
  %v3687 = vpop.permute.xlu0 %3686
  %3688 = vrot.lane.b32.xlu0 %v2154, 15
  %v3689 = vpop.permute.xlu0 %3688
  %3690 = vrot.lane.b32.xlu0 %v2155, 15
  %v3691 = vpop.permute.xlu0 %3690
  %3692 = vrot.lane.b32.xlu0 %v2156, 15
  %v3693 = vpop.permute.xlu0 %3692
  %3694 = vrot.lane.b32.xlu0 %v2157, 15
  %v3695 = vpop.permute.xlu0 %3694
  %3696 = vrot.lane.b32.xlu0 %v2158, 15
  %v3697 = vpop.permute.xlu0 %3696
  %3698 = vrot.lane.b32.xlu0 %v2159, 15
  %v3699 = vpop.permute.xlu0 %3698
  %3700 = vrot.lane.b32.xlu0 %v2160, 15
  %v3701 = vpop.permute.xlu0 %3700
  %3702 = vrot.lane.b32.xlu0 %v2161, 15
  %v3703 = vpop.permute.xlu0 %3702
  %3704 = vrot.lane.b32.xlu0 %v2162, 15
  %v3705 = vpop.permute.xlu0 %3704
  %3706 = vrot.lane.b32.xlu0 %v2163, 15
  %v3707 = vpop.permute.xlu0 %3706
  %3708 = vrot.lane.b32.xlu0 %v2164, 15
  %v3709 = vpop.permute.xlu0 %3708
  %3710 = vrot.lane.b32.xlu0 %v2165, 15
  %v3711 = vpop.permute.xlu0 %3710
  %3792 = vrot.lane.b32.xlu0 %v2091, 18
  %v3793 = vpop.permute.xlu0 %3792
  %3794 = vrot.lane.b32.xlu0 %v2092, 18
  %v3795 = vpop.permute.xlu0 %3794
  %3796 = vrot.lane.b32.xlu0 %v2093, 18
  %v3797 = vpop.permute.xlu0 %3796
  %3798 = vrot.lane.b32.xlu0 %v2094, 18
  %v3799 = vpop.permute.xlu0 %3798
  %3800 = vrot.lane.b32.xlu0 %v2095, 18
  %v3801 = vpop.permute.xlu0 %3800
  %3802 = vrot.lane.b32.xlu0 %v2096, 18
  %v3803 = vpop.permute.xlu0 %3802
  %3804 = vrot.lane.b32.xlu0 %v2097, 18
  %v3805 = vpop.permute.xlu0 %3804
  %3806 = vrot.lane.b32.xlu0 %v2098, 18
  %v3807 = vpop.permute.xlu0 %3806
  %3808 = vrot.lane.b32.xlu0 %v2099, 18
  %v3809 = vpop.permute.xlu0 %3808
  %3810 = vrot.lane.b32.xlu0 %v2100, 18
  %v3811 = vpop.permute.xlu0 %3810
  %3812 = vrot.lane.b32.xlu0 %v2101, 18
  %v3813 = vpop.permute.xlu0 %3812
  %3814 = vrot.lane.b32.xlu0 %v2102, 18
  %v3815 = vpop.permute.xlu0 %3814
  %3816 = vrot.lane.b32.xlu0 %v2103, 18
  %v3817 = vpop.permute.xlu0 %3816
  %3818 = vrot.lane.b32.xlu0 %v2104, 18
  %v3819 = vpop.permute.xlu0 %3818
  %3820 = vrot.lane.b32.xlu0 %v2105, 18
  %v3821 = vpop.permute.xlu0 %3820
  %3822 = vrot.lane.b32.xlu0 %v2106, 18
  %v3823 = vpop.permute.xlu0 %3822
  %3824 = vrot.lane.b32.xlu0 %v2107, 18
  %v3825 = vpop.permute.xlu0 %3824
  %3826 = vrot.lane.b32.xlu0 %v2108, 18
  %v3827 = vpop.permute.xlu0 %3826
  %3828 = vrot.lane.b32.xlu0 %v2109, 18
  %v3829 = vpop.permute.xlu0 %3828
  %3830 = vrot.lane.b32.xlu0 %v2110, 18
  %v3831 = vpop.permute.xlu0 %3830
  %3832 = vrot.lane.b32.xlu0 %v2111, 18
  %v3833 = vpop.permute.xlu0 %3832
  %3834 = vrot.lane.b32.xlu0 %v2112, 18
  %v3835 = vpop.permute.xlu0 %3834
  %3836 = vrot.lane.b32.xlu0 %v2113, 18
  %v3837 = vpop.permute.xlu0 %3836
  %3838 = vrot.lane.b32.xlu0 %v2114, 18
  %v3839 = vpop.permute.xlu0 %3838
  %3840 = vrot.lane.b32.xlu0 %v2115, 18
  %v3841 = vpop.permute.xlu0 %3840
  %3842 = vrot.lane.b32.xlu0 %v2116, 18
  %v3843 = vpop.permute.xlu0 %3842
  %3844 = vrot.lane.b32.xlu0 %v2117, 18
  %v3845 = vpop.permute.xlu0 %3844
  %3846 = vrot.lane.b32.xlu0 %v2118, 18
  %v3847 = vpop.permute.xlu0 %3846
  %3848 = vrot.lane.b32.xlu0 %v2119, 18
  %v3849 = vpop.permute.xlu0 %3848
  %3850 = vrot.lane.b32.xlu0 %v2120, 18
  %v3851 = vpop.permute.xlu0 %3850
  %3852 = vrot.lane.b32.xlu0 %v2121, 18
  %v3853 = vpop.permute.xlu0 %3852
  %3854 = vrot.lane.b32.xlu0 %v2122, 18
  %v3855 = vpop.permute.xlu0 %3854
  %3856 = vrot.lane.b32.xlu0 %v2123, 18
  %v3857 = vpop.permute.xlu0 %3856
  %3858 = vrot.lane.b32.xlu0 %v2124, 18
  %v3859 = vpop.permute.xlu0 %3858
  %3860 = vrot.lane.b32.xlu0 %v2125, 18
  %v3861 = vpop.permute.xlu0 %3860
  %3862 = vrot.lane.b32.xlu0 %v2126, 18
  %v3863 = vpop.permute.xlu0 %3862
  %3864 = vrot.lane.b32.xlu0 %v2127, 18
  %v3865 = vpop.permute.xlu0 %3864
  %3866 = vrot.lane.b32.xlu0 %v2128, 18
  %v3867 = vpop.permute.xlu0 %3866
  %3868 = vrot.lane.b32.xlu0 %v2129, 18
  %v3869 = vpop.permute.xlu0 %3868
  %3870 = vrot.lane.b32.xlu0 %v2130, 18
  %v3871 = vpop.permute.xlu0 %3870
  %3872 = vrot.lane.b32.xlu0 %v2131, 18
  %v3873 = vpop.permute.xlu0 %3872
  %3874 = vrot.lane.b32.xlu0 %v2132, 18
  %v3875 = vpop.permute.xlu0 %3874
  %3876 = vrot.lane.b32.xlu0 %v2133, 18
  %v3877 = vpop.permute.xlu0 %3876
  %3878 = vrot.lane.b32.xlu0 %v2134, 18
  %v3879 = vpop.permute.xlu0 %3878
  %3880 = vrot.lane.b32.xlu0 %v2135, 18
  %v3881 = vpop.permute.xlu0 %3880
  %3882 = vrot.lane.b32.xlu0 %v2136, 18
  %v3883 = vpop.permute.xlu0 %3882
  %3884 = vrot.lane.b32.xlu0 %v2137, 18
  %v3885 = vpop.permute.xlu0 %3884
  %3886 = vrot.lane.b32.xlu0 %v2138, 18
  %v3887 = vpop.permute.xlu0 %3886
  %3888 = vrot.lane.b32.xlu0 %v2139, 18
  %v3889 = vpop.permute.xlu0 %3888
  %3890 = vrot.lane.b32.xlu0 %v2140, 18
  %v3891 = vpop.permute.xlu0 %3890
  %3892 = vrot.lane.b32.xlu0 %v2141, 18
  %v3893 = vpop.permute.xlu0 %3892
  %3894 = vrot.lane.b32.xlu0 %v2142, 18
  %v3895 = vpop.permute.xlu0 %3894
  %3896 = vrot.lane.b32.xlu0 %v2143, 18
  %v3897 = vpop.permute.xlu0 %3896
  %3898 = vrot.lane.b32.xlu0 %v2144, 18
  %v3899 = vpop.permute.xlu0 %3898
  %3900 = vrot.lane.b32.xlu0 %v2145, 18
  %v3901 = vpop.permute.xlu0 %3900
  %3902 = vrot.lane.b32.xlu0 %v2146, 18
  %v3903 = vpop.permute.xlu0 %3902
  %3904 = vrot.lane.b32.xlu0 %v2147, 18
  %v3905 = vpop.permute.xlu0 %3904
  %3906 = vrot.lane.b32.xlu0 %v2148, 18
  %v3907 = vpop.permute.xlu0 %3906
  %3908 = vrot.lane.b32.xlu0 %v2149, 18
  %v3909 = vpop.permute.xlu0 %3908
  %3910 = vrot.lane.b32.xlu0 %v2150, 18
  %v3911 = vpop.permute.xlu0 %3910
  %3912 = vrot.lane.b32.xlu0 %v2151, 18
  %v3913 = vpop.permute.xlu0 %3912
  %3914 = vrot.lane.b32.xlu0 %v2152, 18
  %v3915 = vpop.permute.xlu0 %3914
  %3916 = vrot.lane.b32.xlu0 %v2153, 18
  %v3917 = vpop.permute.xlu0 %3916
  %3918 = vrot.lane.b32.xlu0 %v2154, 18
  %v3919 = vpop.permute.xlu0 %3918
  %3920 = vrot.lane.b32.xlu0 %v2155, 18
  %v3921 = vpop.permute.xlu0 %3920
  %3922 = vrot.lane.b32.xlu0 %v2156, 18
  %v3923 = vpop.permute.xlu0 %3922
  %3924 = vrot.lane.b32.xlu0 %v2157, 18
  %v3925 = vpop.permute.xlu0 %3924
  %3926 = vrot.lane.b32.xlu0 %v2158, 18
  %v3927 = vpop.permute.xlu0 %3926
  %3928 = vrot.lane.b32.xlu0 %v2159, 18
  %v3929 = vpop.permute.xlu0 %3928
  %3930 = vrot.lane.b32.xlu0 %v2160, 18
  %v3931 = vpop.permute.xlu0 %3930
  %3932 = vrot.lane.b32.xlu0 %v2161, 18
  %v3933 = vpop.permute.xlu0 %3932
  %3934 = vrot.lane.b32.xlu0 %v2162, 18
  %v3935 = vpop.permute.xlu0 %3934
  %3936 = vrot.lane.b32.xlu0 %v2163, 18
  %v3937 = vpop.permute.xlu0 %3936
  %3938 = vrot.lane.b32.xlu0 %v2164, 18
  %v3939 = vpop.permute.xlu0 %3938
  %3940 = vrot.lane.b32.xlu0 %v2166, 18
  %v3941 = vpop.permute.xlu0 %3940
  %3942 = vrot.lane.b32.xlu0 %v2167, 18
  %v3943 = vpop.permute.xlu0 %3942
  %3944 = vrot.lane.b32.xlu0 %v2168, 18
  %v3945 = vpop.permute.xlu0 %3944
  %4100 = vrot.lane.b32.xlu0 %v2169, 21
  %v4101 = vpop.permute.xlu0 %4100
  %4102 = vrot.lane.b32.xlu0 %v2170, 21
  %v4103 = vpop.permute.xlu0 %4102
  %4104 = vrot.lane.b32.xlu0 %v2171, 21
  %v4105 = vpop.permute.xlu0 %4104
  %4106 = vrot.lane.b32.xlu0 %v2172, 21
  %v4107 = vpop.permute.xlu0 %4106
  %4108 = vrot.lane.b32.xlu0 %v2173, 21
  %v4109 = vpop.permute.xlu0 %4108
  %4110 = vrot.lane.b32.xlu0 %v2174, 21
  %v4111 = vpop.permute.xlu0 %4110
  %4112 = vrot.lane.b32.xlu0 %v2175, 21
  %v4113 = vpop.permute.xlu0 %4112
  %4114 = vrot.lane.b32.xlu0 %v2176, 21
  %v4115 = vpop.permute.xlu0 %4114
  %4116 = vrot.lane.b32.xlu0 %v2177, 21
  %v4117 = vpop.permute.xlu0 %4116
  %4118 = vrot.lane.b32.xlu0 %v2178, 21
  %v4119 = vpop.permute.xlu0 %4118
  %4120 = vrot.lane.b32.xlu0 %v2179, 21
  %v4121 = vpop.permute.xlu0 %4120
  %4122 = vrot.lane.b32.xlu0 %v2180, 21
  %v4123 = vpop.permute.xlu0 %4122
  %4124 = vrot.lane.b32.xlu0 %v2181, 21
  %v4125 = vpop.permute.xlu0 %4124
  %4126 = vrot.lane.b32.xlu0 %v2182, 21
  %v4127 = vpop.permute.xlu0 %4126
  %4128 = vrot.lane.b32.xlu0 %v2183, 21
  %v4129 = vpop.permute.xlu0 %4128
  %4130 = vrot.lane.b32.xlu0 %v2184, 21
  %v4131 = vpop.permute.xlu0 %4130
  %4132 = vrot.lane.b32.xlu0 %v2185, 21
  %v4133 = vpop.permute.xlu0 %4132
  %4134 = vrot.lane.b32.xlu0 %v2186, 21
  %v4135 = vpop.permute.xlu0 %4134
  %4136 = vrot.lane.b32.xlu0 %v2187, 21
  %v4137 = vpop.permute.xlu0 %4136
  %4138 = vrot.lane.b32.xlu0 %v2188, 21
  %v4139 = vpop.permute.xlu0 %4138
  %4140 = vrot.lane.b32.xlu0 %v2189, 21
  %v4141 = vpop.permute.xlu0 %4140
  %4142 = vrot.lane.b32.xlu0 %v2190, 21
  %v4143 = vpop.permute.xlu0 %4142
  %4144 = vrot.lane.b32.xlu0 %v2191, 21
  %v4145 = vpop.permute.xlu0 %4144
  %4146 = vrot.lane.b32.xlu0 %v2192, 21
  %v4147 = vpop.permute.xlu0 %4146
  %4148 = vrot.lane.b32.xlu0 %v2193, 21
  %v4149 = vpop.permute.xlu0 %4148
  %4150 = vrot.lane.b32.xlu0 %v2194, 21
  %v4151 = vpop.permute.xlu0 %4150
  %4152 = vrot.lane.b32.xlu0 %v2195, 21
  %v4153 = vpop.permute.xlu0 %4152
  %4154 = vrot.lane.b32.xlu0 %v2196, 21
  %v4155 = vpop.permute.xlu0 %4154
  %4156 = vrot.lane.b32.xlu0 %v2197, 21
  %v4157 = vpop.permute.xlu0 %4156
  %4158 = vrot.lane.b32.xlu0 %v2198, 21
  %v4159 = vpop.permute.xlu0 %4158
  %4160 = vrot.lane.b32.xlu0 %v2199, 21
  %v4161 = vpop.permute.xlu0 %4160
  %4162 = vrot.lane.b32.xlu0 %v2200, 21
  %v4163 = vpop.permute.xlu0 %4162
  %4164 = vrot.lane.b32.xlu0 %v2201, 21
  %v4165 = vpop.permute.xlu0 %4164
  %4166 = vrot.lane.b32.xlu0 %v2202, 21
  %v4167 = vpop.permute.xlu0 %4166
  %4168 = vrot.lane.b32.xlu0 %v2203, 21
  %v4169 = vpop.permute.xlu0 %4168
  %4170 = vrot.lane.b32.xlu0 %v2204, 21
  %v4171 = vpop.permute.xlu0 %4170
  %4172 = vrot.lane.b32.xlu0 %v2205, 21
  %v4173 = vpop.permute.xlu0 %4172
  %4174 = vrot.lane.b32.xlu0 %v2206, 21
  %v4175 = vpop.permute.xlu0 %4174
  %4176 = vrot.lane.b32.xlu0 %v2207, 21
  %v4177 = vpop.permute.xlu0 %4176
  %4178 = vrot.lane.b32.xlu0 %v2208, 21
  %v4179 = vpop.permute.xlu0 %4178
  %4180 = vrot.lane.b32.xlu0 %v2209, 21
  %v4181 = vpop.permute.xlu0 %4180
  %4182 = vrot.lane.b32.xlu0 %v2210, 21
  %v4183 = vpop.permute.xlu0 %4182
  %4184 = vrot.lane.b32.xlu0 %v2211, 21
  %v4185 = vpop.permute.xlu0 %4184
  %4186 = vrot.lane.b32.xlu0 %v2212, 21
  %v4187 = vpop.permute.xlu0 %4186
  %4188 = vrot.lane.b32.xlu0 %v2213, 21
  %v4189 = vpop.permute.xlu0 %4188
  %4190 = vrot.lane.b32.xlu0 %v2214, 21
  %v4191 = vpop.permute.xlu0 %4190
  %4192 = vrot.lane.b32.xlu0 %v2215, 21
  %v4193 = vpop.permute.xlu0 %4192
  %4194 = vrot.lane.b32.xlu0 %v2216, 21
  %v4195 = vpop.permute.xlu0 %4194
  %4196 = vrot.lane.b32.xlu0 %v2217, 21
  %v4197 = vpop.permute.xlu0 %4196
  %4198 = vrot.lane.b32.xlu0 %v2218, 21
  %v4199 = vpop.permute.xlu0 %4198
  %4200 = vrot.lane.b32.xlu0 %v2219, 21
  %v4201 = vpop.permute.xlu0 %4200
  %4202 = vrot.lane.b32.xlu0 %v2220, 21
  %v4203 = vpop.permute.xlu0 %4202
  %4204 = vrot.lane.b32.xlu0 %v2221, 21
  %v4205 = vpop.permute.xlu0 %4204
  %4206 = vrot.lane.b32.xlu0 %v2222, 21
  %v4207 = vpop.permute.xlu0 %4206
  %4208 = vrot.lane.b32.xlu0 %v2223, 21
  %v4209 = vpop.permute.xlu0 %4208
  %4210 = vrot.lane.b32.xlu0 %v2224, 21
  %v4211 = vpop.permute.xlu0 %4210
  %4212 = vrot.lane.b32.xlu0 %v2225, 21
  %v4213 = vpop.permute.xlu0 %4212
  %4214 = vrot.lane.b32.xlu0 %v2226, 21
  %v4215 = vpop.permute.xlu0 %4214
  %4216 = vrot.lane.b32.xlu0 %v2227, 21
  %v4217 = vpop.permute.xlu0 %4216
  %4218 = vrot.lane.b32.xlu0 %v2228, 21
  %v4219 = vpop.permute.xlu0 %4218
  %4220 = vrot.lane.b32.xlu0 %v2229, 21
  %v4221 = vpop.permute.xlu0 %4220
  %4222 = vrot.lane.b32.xlu0 %v2230, 21
  %v4223 = vpop.permute.xlu0 %4222
  %4224 = vrot.lane.b32.xlu0 %v2231, 21
  %v4225 = vpop.permute.xlu0 %4224
  %4226 = vrot.lane.b32.xlu0 %v2232, 21
  %v4227 = vpop.permute.xlu0 %4226
  %4228 = vrot.lane.b32.xlu0 %v2233, 21
  %v4229 = vpop.permute.xlu0 %4228
  %4230 = vrot.lane.b32.xlu0 %v2234, 21
  %v4231 = vpop.permute.xlu0 %4230
  %4232 = vrot.lane.b32.xlu0 %v2235, 21
  %v4233 = vpop.permute.xlu0 %4232
  %4234 = vrot.lane.b32.xlu0 %v2236, 21
  %v4235 = vpop.permute.xlu0 %4234
  %4236 = vrot.lane.b32.xlu0 %v2237, 21
  %v4237 = vpop.permute.xlu0 %4236
  %4238 = vrot.lane.b32.xlu0 %v2238, 21
  %v4239 = vpop.permute.xlu0 %4238
  %4240 = vrot.lane.b32.xlu0 %v2239, 21
  %v4241 = vpop.permute.xlu0 %4240
  %4242 = vrot.lane.b32.xlu0 %v2240, 21
  %v4243 = vpop.permute.xlu0 %4242
  %4244 = vrot.lane.b32.xlu0 %v2241, 21
  %v4245 = vpop.permute.xlu0 %4244
  %4246 = vrot.lane.b32.xlu0 %v2242, 21
  %v4247 = vpop.permute.xlu0 %4246
  %4248 = vrot.lane.b32.xlu0 %v2243, 21
  %v4249 = vpop.permute.xlu0 %4248
  %4250 = vrot.lane.b32.xlu0 %v2244, 21
  %v4251 = vpop.permute.xlu0 %4250
  %4252 = vrot.lane.b32.xlu0 %v2245, 21
  %v4253 = vpop.permute.xlu0 %4252
  %4408 = vrot.lane.b32.xlu0 %v2246, 24
  %v4409 = vpop.permute.xlu0 %4408
  %4410 = vrot.lane.b32.xlu0 %v2247, 24
  %v4411 = vpop.permute.xlu0 %4410
  %4412 = vrot.lane.b32.xlu0 %v2248, 24
  %v4413 = vpop.permute.xlu0 %4412
  %4414 = vrot.lane.b32.xlu0 %v2249, 24
  %v4415 = vpop.permute.xlu0 %4414
  %4416 = vrot.lane.b32.xlu0 %v2250, 24
  %v4417 = vpop.permute.xlu0 %4416
  %4418 = vrot.lane.b32.xlu0 %v2251, 24
  %v4419 = vpop.permute.xlu0 %4418
  %4420 = vrot.lane.b32.xlu0 %v2252, 24
  %v4421 = vpop.permute.xlu0 %4420
  %4422 = vrot.lane.b32.xlu0 %v2253, 24
  %v4423 = vpop.permute.xlu0 %4422
  %4424 = vrot.lane.b32.xlu0 %v2254, 24
  %v4425 = vpop.permute.xlu0 %4424
  %4426 = vrot.lane.b32.xlu0 %v2255, 24
  %v4427 = vpop.permute.xlu0 %4426
  %4428 = vrot.lane.b32.xlu0 %v2256, 24
  %v4429 = vpop.permute.xlu0 %4428
  %4430 = vrot.lane.b32.xlu0 %v2257, 24
  %v4431 = vpop.permute.xlu0 %4430
  %4432 = vrot.lane.b32.xlu0 %v2258, 24
  %v4433 = vpop.permute.xlu0 %4432
  %4434 = vrot.lane.b32.xlu0 %v2259, 24
  %v4435 = vpop.permute.xlu0 %4434
  %4436 = vrot.lane.b32.xlu0 %v2260, 24
  %v4437 = vpop.permute.xlu0 %4436
  %4438 = vrot.lane.b32.xlu0 %v2261, 24
  %v4439 = vpop.permute.xlu0 %4438
  %4440 = vrot.lane.b32.xlu0 %v2262, 24
  %v4441 = vpop.permute.xlu0 %4440
  %4442 = vrot.lane.b32.xlu0 %v2263, 24
  %v4443 = vpop.permute.xlu0 %4442
  %4444 = vrot.lane.b32.xlu0 %v2264, 24
  %v4445 = vpop.permute.xlu0 %4444
  %4446 = vrot.lane.b32.xlu0 %v2265, 24
  %v4447 = vpop.permute.xlu0 %4446
  %4448 = vrot.lane.b32.xlu0 %v2266, 24
  %v4449 = vpop.permute.xlu0 %4448
  %4450 = vrot.lane.b32.xlu0 %v2267, 24
  %v4451 = vpop.permute.xlu0 %4450
  %4452 = vrot.lane.b32.xlu0 %v2268, 24
  %v4453 = vpop.permute.xlu0 %4452
  %4454 = vrot.lane.b32.xlu0 %v2269, 24
  %v4455 = vpop.permute.xlu0 %4454
  %4456 = vrot.lane.b32.xlu0 %v2270, 24
  %v4457 = vpop.permute.xlu0 %4456
  %4458 = vrot.lane.b32.xlu0 %v2271, 24
  %v4459 = vpop.permute.xlu0 %4458
  %4460 = vrot.lane.b32.xlu0 %v2272, 24
  %v4461 = vpop.permute.xlu0 %4460
  %4462 = vrot.lane.b32.xlu0 %v2273, 24
  %v4463 = vpop.permute.xlu0 %4462
  %4464 = vrot.lane.b32.xlu0 %v2274, 24
  %v4465 = vpop.permute.xlu0 %4464
  %4466 = vrot.lane.b32.xlu0 %v2275, 24
  %v4467 = vpop.permute.xlu0 %4466
  %4468 = vrot.lane.b32.xlu0 %v2276, 24
  %v4469 = vpop.permute.xlu0 %4468
  %4470 = vrot.lane.b32.xlu0 %v2277, 24
  %v4471 = vpop.permute.xlu0 %4470
  %4472 = vrot.lane.b32.xlu0 %v2278, 24
  %v4473 = vpop.permute.xlu0 %4472
  %4474 = vrot.lane.b32.xlu0 %v2279, 24
  %v4475 = vpop.permute.xlu0 %4474
  %4476 = vrot.lane.b32.xlu0 %v2280, 24
  %v4477 = vpop.permute.xlu0 %4476
  %4478 = vrot.lane.b32.xlu0 %v2281, 24
  %v4479 = vpop.permute.xlu0 %4478
  %4480 = vrot.lane.b32.xlu0 %v2282, 24
  %v4481 = vpop.permute.xlu0 %4480
  %4482 = vrot.lane.b32.xlu0 %v2283, 24
  %v4483 = vpop.permute.xlu0 %4482
  %4484 = vrot.lane.b32.xlu0 %v2284, 24
  %v4485 = vpop.permute.xlu0 %4484
  %4486 = vrot.lane.b32.xlu0 %v2285, 24
  %v4487 = vpop.permute.xlu0 %4486
  %4488 = vrot.lane.b32.xlu0 %v2286, 24
  %v4489 = vpop.permute.xlu0 %4488
  %4490 = vrot.lane.b32.xlu0 %v2287, 24
  %v4491 = vpop.permute.xlu0 %4490
  %4492 = vrot.lane.b32.xlu0 %v2288, 24
  %v4493 = vpop.permute.xlu0 %4492
  %4494 = vrot.lane.b32.xlu0 %v2289, 24
  %v4495 = vpop.permute.xlu0 %4494
  %4496 = vrot.lane.b32.xlu0 %v2290, 24
  %v4497 = vpop.permute.xlu0 %4496
  %4498 = vrot.lane.b32.xlu0 %v2291, 24
  %v4499 = vpop.permute.xlu0 %4498
  %4500 = vrot.lane.b32.xlu0 %v2292, 24
  %v4501 = vpop.permute.xlu0 %4500
  %4502 = vrot.lane.b32.xlu0 %v2293, 24
  %v4503 = vpop.permute.xlu0 %4502
  %4504 = vrot.lane.b32.xlu0 %v2294, 24
  %v4505 = vpop.permute.xlu0 %4504
  %4506 = vrot.lane.b32.xlu0 %v2295, 24
  %v4507 = vpop.permute.xlu0 %4506
  %4508 = vrot.lane.b32.xlu0 %v2296, 24
  %v4509 = vpop.permute.xlu0 %4508
  %4510 = vrot.lane.b32.xlu0 %v2297, 24
  %v4511 = vpop.permute.xlu0 %4510
  %4512 = vrot.lane.b32.xlu0 %v2298, 24
  %v4513 = vpop.permute.xlu0 %4512
  %4514 = vrot.lane.b32.xlu0 %v2299, 24
  %v4515 = vpop.permute.xlu0 %4514
  %4516 = vrot.lane.b32.xlu0 %v2300, 24
  %v4517 = vpop.permute.xlu0 %4516
  %4518 = vrot.lane.b32.xlu0 %v2301, 24
  %v4519 = vpop.permute.xlu0 %4518
  %4520 = vrot.lane.b32.xlu0 %v2302, 24
  %v4521 = vpop.permute.xlu0 %4520
  %4522 = vrot.lane.b32.xlu0 %v2303, 24
  %v4523 = vpop.permute.xlu0 %4522
  %4524 = vrot.lane.b32.xlu0 %v2304, 24
  %v4525 = vpop.permute.xlu0 %4524
  %4526 = vrot.lane.b32.xlu0 %v2305, 24
  %v4527 = vpop.permute.xlu0 %4526
  %4528 = vrot.lane.b32.xlu0 %v2306, 24
  %v4529 = vpop.permute.xlu0 %4528
  %4530 = vrot.lane.b32.xlu0 %v2307, 24
  %v4531 = vpop.permute.xlu0 %4530
  %4532 = vrot.lane.b32.xlu0 %v2308, 24
  %v4533 = vpop.permute.xlu0 %4532
  %4534 = vrot.lane.b32.xlu0 %v2309, 24
  %v4535 = vpop.permute.xlu0 %4534
  %4536 = vrot.lane.b32.xlu0 %v2310, 24
  %v4537 = vpop.permute.xlu0 %4536
  %4538 = vrot.lane.b32.xlu0 %v2311, 24
  %v4539 = vpop.permute.xlu0 %4538
  %4540 = vrot.lane.b32.xlu0 %v2312, 24
  %v4541 = vpop.permute.xlu0 %4540
  %4542 = vrot.lane.b32.xlu0 %v2313, 24
  %v4543 = vpop.permute.xlu0 %4542
  %4544 = vrot.lane.b32.xlu0 %v2314, 24
  %v4545 = vpop.permute.xlu0 %4544
  %4546 = vrot.lane.b32.xlu0 %v2315, 24
  %v4547 = vpop.permute.xlu0 %4546
  %4548 = vrot.lane.b32.xlu0 %v2316, 24
  %v4549 = vpop.permute.xlu0 %4548
  %4550 = vrot.lane.b32.xlu0 %v2317, 24
  %v4551 = vpop.permute.xlu0 %4550
  %4552 = vrot.lane.b32.xlu0 %v2318, 24
  %v4553 = vpop.permute.xlu0 %4552
  %4554 = vrot.lane.b32.xlu0 %v2319, 24
  %v4555 = vpop.permute.xlu0 %4554
  %4556 = vrot.lane.b32.xlu0 %v2320, 24
  %v4557 = vpop.permute.xlu0 %4556
  %4558 = vrot.lane.b32.xlu0 %v2321, 24
  %v4559 = vpop.permute.xlu0 %4558
  %4560 = vrot.lane.b32.xlu0 %v2322, 24
  %v4561 = vpop.permute.xlu0 %4560
  %vm4639 = vcmask 23552
  %v4640 = vsel %vm4639, %v1778, %v2401
  %v4641 = vsel %vm4639, %v1779, %v2403
  %v4642 = vsel %vm4639, %v1780, %v2405
  %v4643 = vsel %vm4639, %v1781, %v2407
  %v4644 = vsel %vm4639, %v1782, %v2409
  %v4645 = vsel %vm4639, %v1783, %v2411
  %v4646 = vsel %vm4639, %v1784, %v2413
  %v4647 = vsel %vm4639, %v1785, %v2415
  %v4648 = vsel %vm4639, %v1786, %v2417
  %v4649 = vsel %vm4639, %v1787, %v2419
  %v4650 = vsel %vm4639, %v1788, %v2421
  %v4651 = vsel %vm4639, %v1789, %v2423
  %v4652 = vsel %vm4639, %v1790, %v2425
  %v4653 = vsel %vm4639, %v1791, %v2427
  %v4654 = vsel %vm4639, %v1792, %v2429
  %v4655 = vsel %vm4639, %v1793, %v2431
  %v4656 = vsel %vm4639, %v1794, %v2433
  %v4657 = vsel %vm4639, %v1795, %v2435
  %v4658 = vsel %vm4639, %v1796, %v2437
  %v4659 = vsel %vm4639, %v1797, %v2439
  %v4660 = vsel %vm4639, %v1798, %v2441
  %v4661 = vsel %vm4639, %v1799, %v2443
  %v4662 = vsel %vm4639, %v1800, %v2445
  %v4663 = vsel %vm4639, %v1801, %v2447
  %v4664 = vsel %vm4639, %v1802, %v2449
  %v4665 = vsel %vm4639, %v1803, %v2451
  %v4666 = vsel %vm4639, %v1804, %v2453
  %v4667 = vsel %vm4639, %v1805, %v2455
  %v4668 = vsel %vm4639, %v1806, %v2457
  %v4669 = vsel %vm4639, %v1807, %v2459
  %v4670 = vsel %vm4639, %v1808, %v2461
  %v4671 = vsel %vm4639, %v1809, %v2463
  %v4672 = vsel %vm4639, %v1810, %v2465
  %v4673 = vsel %vm4639, %v1811, %v2467
  %v4674 = vsel %vm4639, %v1812, %v2469
  %v4675 = vsel %vm4639, %v1813, %v2471
  %v4676 = vsel %vm4639, %v1814, %v2473
  %v4677 = vsel %vm4639, %v1815, %v2475
  %v4678 = vsel %vm4639, %v1816, %v2477
  %v4679 = vsel %vm4639, %v1817, %v2479
  %v4680 = vsel %vm4639, %v1818, %v2481
  %v4681 = vsel %vm4639, %v1819, %v2483
  %v4682 = vsel %vm4639, %v1820, %v2485
  %v4683 = vsel %vm4639, %v1821, %v2487
  %v4684 = vsel %vm4639, %v1822, %v2489
  %v4685 = vsel %vm4639, %v1823, %v2491
  %v4686 = vsel %vm4639, %v1824, %v2493
  %v4687 = vsel %vm4639, %v1825, %v2495
  %v4688 = vsel %vm4639, %v1826, %v2497
  %v4689 = vsel %vm4639, %v1827, %v2499
  %v4690 = vsel %vm4639, %v1828, %v2501
  %v4691 = vsel %vm4639, %v1829, %v2503
  %v4692 = vsel %vm4639, %v1830, %v2505
  %v4693 = vsel %vm4639, %v1831, %v2507
  %v4694 = vsel %vm4639, %v1832, %v2509
  %v4695 = vsel %vm4639, %v1833, %v2511
  %v4696 = vsel %vm4639, %v1834, %v2513
  %v4697 = vsel %vm4639, %v1835, %v2515
  %v4698 = vsel %vm4639, %v1836, %v2517
  %v4699 = vsel %vm4639, %v1837, %v2519
  %v4700 = vsel %vm4639, %v1838, %v2521
  %v4701 = vsel %vm4639, %v1839, %v2523
  %v4702 = vsel %vm4639, %v1840, %v2525
  %v4703 = vsel %vm4639, %v1841, %v2527
  %v4704 = vsel %vm4639, %v1842, %v2529
  %v4705 = vsel %vm4639, %v1843, %v2531
  %v4706 = vsel %vm4639, %v1844, %v2533
  %v4707 = vsel %vm4639, %v1845, %v2535
  %v4708 = vsel %vm4639, %v1846, %v2537
  %v4709 = vsel %vm4639, %v1847, %v2539
  %v4710 = vsel %vm4639, %v1848, %v2541
  %v4711 = vsel %vm4639, %v1849, %v2543
  %v4712 = vsel %vm4639, %v1850, %v2545
  %v4713 = vsel %vm4639, %v1851, %v2547
  %v4714 = vsel %vm4639, %v1852, %v2549
  %v4715 = vsel %vm4639, %v1853, %v2551
  %v4716 = vsel %vm4639, %v1854, %v2553
  %vm4717 = vcmask 48128
  %v4718 = vsel %vm4717, %v4640, %v2709
  %v4719 = vsel %vm4717, %v4641, %v2711
  %v4720 = vsel %vm4717, %v4642, %v2713
  %v4721 = vsel %vm4717, %v4643, %v2715
  %v4722 = vsel %vm4717, %v4644, %v2717
  %v4723 = vsel %vm4717, %v4645, %v2719
  %v4724 = vsel %vm4717, %v4646, %v2721
  %v4725 = vsel %vm4717, %v4647, %v2723
  %v4726 = vsel %vm4717, %v4648, %v2725
  %v4727 = vsel %vm4717, %v4649, %v2727
  %v4728 = vsel %vm4717, %v4650, %v2729
  %v4729 = vsel %vm4717, %v4651, %v2731
  %v4730 = vsel %vm4717, %v4652, %v2733
  %v4731 = vsel %vm4717, %v4653, %v2735
  %v4732 = vsel %vm4717, %v4654, %v2737
  %v4733 = vsel %vm4717, %v4655, %v2739
  %v4734 = vsel %vm4717, %v4656, %v2741
  %v4735 = vsel %vm4717, %v4657, %v2743
  %v4736 = vsel %vm4717, %v4658, %v2745
  %v4737 = vsel %vm4717, %v4659, %v2747
  %v4738 = vsel %vm4717, %v4660, %v2749
  %v4739 = vsel %vm4717, %v4661, %v2751
  %v4740 = vsel %vm4717, %v4662, %v2753
  %v4741 = vsel %vm4717, %v4663, %v2755
  %v4742 = vsel %vm4717, %v4664, %v2757
  %v4743 = vsel %vm4717, %v4665, %v2759
  %v4744 = vsel %vm4717, %v4666, %v2761
  %v4745 = vsel %vm4717, %v4667, %v2763
  %v4746 = vsel %vm4717, %v4668, %v2765
  %v4747 = vsel %vm4717, %v4669, %v2767
  %v4748 = vsel %vm4717, %v4670, %v2769
  %v4749 = vsel %vm4717, %v4671, %v2771
  %v4750 = vsel %vm4717, %v4672, %v2773
  %v4751 = vsel %vm4717, %v4673, %v2775
  %v4752 = vsel %vm4717, %v4674, %v2777
  %v4753 = vsel %vm4717, %v4675, %v2779
  %v4754 = vsel %vm4717, %v4676, %v2781
  %v4755 = vsel %vm4717, %v4677, %v2783
  %v4756 = vsel %vm4717, %v4678, %v2785
  %v4757 = vsel %vm4717, %v4679, %v2787
  %v4758 = vsel %vm4717, %v4680, %v2789
  %v4759 = vsel %vm4717, %v4681, %v2791
  %v4760 = vsel %vm4717, %v4682, %v2793
  %v4761 = vsel %vm4717, %v4683, %v2795
  %v4762 = vsel %vm4717, %v4684, %v2797
  %v4763 = vsel %vm4717, %v4685, %v2799
  %v4764 = vsel %vm4717, %v4686, %v2801
  %v4765 = vsel %vm4717, %v4687, %v2803
  %v4766 = vsel %vm4717, %v4688, %v2805
  %v4767 = vsel %vm4717, %v4689, %v2807
  %v4768 = vsel %vm4717, %v4690, %v2809
  %v4769 = vsel %vm4717, %v4691, %v2811
  %v4770 = vsel %vm4717, %v4692, %v2813
  %v4771 = vsel %vm4717, %v4693, %v2815
  %v4772 = vsel %vm4717, %v4694, %v2817
  %v4773 = vsel %vm4717, %v4695, %v2819
  %v4774 = vsel %vm4717, %v4696, %v2821
  %v4775 = vsel %vm4717, %v4697, %v2823
  %v4776 = vsel %vm4717, %v4698, %v2825
  %v4777 = vsel %vm4717, %v4699, %v2827
  %v4778 = vsel %vm4717, %v4700, %v2829
  %v4779 = vsel %vm4717, %v4701, %v2831
  %v4780 = vsel %vm4717, %v4702, %v2833
  %v4781 = vsel %vm4717, %v4703, %v2835
  %v4782 = vsel %vm4717, %v4704, %v2837
  %v4783 = vsel %vm4717, %v4705, %v2839
  %v4784 = vsel %vm4717, %v4706, %v2841
  %v4785 = vsel %vm4717, %v4707, %v2843
  %v4786 = vsel %vm4717, %v4708, %v2845
  %v4787 = vsel %vm4717, %v4709, %v2847
  %v4788 = vsel %vm4717, %v4710, %v2849
  %v4789 = vsel %vm4717, %v4711, %v2851
  %v4790 = vsel %vm4717, %v4712, %v2853
  %v4791 = vsel %vm4717, %v4713, %v2855
  %v4792 = vsel %vm4717, %v4714, %v2857
  %v4793 = vsel %vm4717, %v4715, %v2859
  %v4794 = vsel %vm4717, %v4716, %v2861
  %vm4795 = vcmask 72704
  %v4796 = vsel %vm4795, %v4718, %v2943
  %v4797 = vsel %vm4795, %v4719, %v2945
  %v4798 = vsel %vm4795, %v4720, %v2947
  %v4799 = vsel %vm4795, %v4721, %v2949
  %v4800 = vsel %vm4795, %v4722, %v2951
  %v4801 = vsel %vm4795, %v4723, %v2953
  %v4802 = vsel %vm4795, %v4724, %v2955
  %v4803 = vsel %vm4795, %v4725, %v2957
  %v4804 = vsel %vm4795, %v4726, %v2959
  %v4805 = vsel %vm4795, %v4727, %v2961
  %v4806 = vsel %vm4795, %v4728, %v2963
  %v4807 = vsel %vm4795, %v4729, %v2965
  %v4808 = vsel %vm4795, %v4730, %v2967
  %v4809 = vsel %vm4795, %v4731, %v2969
  %v4810 = vsel %vm4795, %v4732, %v2971
  %v4811 = vsel %vm4795, %v4733, %v2973
  %v4812 = vsel %vm4795, %v4734, %v2975
  %v4813 = vsel %vm4795, %v4735, %v2977
  %v4814 = vsel %vm4795, %v4736, %v2979
  %v4815 = vsel %vm4795, %v4737, %v2981
  %v4816 = vsel %vm4795, %v4738, %v2983
  %v4817 = vsel %vm4795, %v4739, %v2985
  %v4818 = vsel %vm4795, %v4740, %v2987
  %v4819 = vsel %vm4795, %v4741, %v2989
  %v4820 = vsel %vm4795, %v4742, %v2991
  %v4821 = vsel %vm4795, %v4743, %v2993
  %v4822 = vsel %vm4795, %v4744, %v2995
  %v4823 = vsel %vm4795, %v4745, %v2997
  %v4824 = vsel %vm4795, %v4746, %v2999
  %v4825 = vsel %vm4795, %v4747, %v3001
  %v4826 = vsel %vm4795, %v4748, %v3003
  %v4827 = vsel %vm4795, %v4749, %v3005
  %v4828 = vsel %vm4795, %v4750, %v3007
  %v4829 = vsel %vm4795, %v4751, %v3009
  %v4830 = vsel %vm4795, %v4752, %v3011
  %v4831 = vsel %vm4795, %v4753, %v3013
  %v4832 = vsel %vm4795, %v4754, %v3015
  %v4833 = vsel %vm4795, %v4755, %v3017
  %v4834 = vsel %vm4795, %v4756, %v3019
  %v4835 = vsel %vm4795, %v4757, %v3021
  %v4836 = vsel %vm4795, %v4758, %v3023
  %v4837 = vsel %vm4795, %v4759, %v3025
  %v4838 = vsel %vm4795, %v4760, %v3027
  %v4839 = vsel %vm4795, %v4761, %v3029
  %v4840 = vsel %vm4795, %v4762, %v3031
  %v4841 = vsel %vm4795, %v4763, %v3033
  %v4842 = vsel %vm4795, %v4764, %v3035
  %v4843 = vsel %vm4795, %v4765, %v3037
  %v4844 = vsel %vm4795, %v4766, %v3039
  %v4845 = vsel %vm4795, %v4767, %v3041
  %v4846 = vsel %vm4795, %v4768, %v3043
  %v4847 = vsel %vm4795, %v4769, %v3045
  %v4848 = vsel %vm4795, %v4770, %v3047
  %v4849 = vsel %vm4795, %v4771, %v3049
  %v4850 = vsel %vm4795, %v4772, %v3051
  %v4851 = vsel %vm4795, %v4773, %v3053
  %v4852 = vsel %vm4795, %v4774, %v3055
  %v4853 = vsel %vm4795, %v4775, %v3057
  %v4854 = vsel %vm4795, %v4776, %v3059
  %v4855 = vsel %vm4795, %v4777, %v3061
  %v4856 = vsel %vm4795, %v4778, %v3063
  %v4857 = vsel %vm4795, %v4779, %v3065
  %v4858 = vsel %vm4795, %v4780, %v3067
  %v4859 = vsel %vm4795, %v4781, %v3069
  %v4860 = vsel %vm4795, %v4782, %v3071
  %v4861 = vsel %vm4795, %v4783, %v3073
  %v4862 = vsel %vm4795, %v4784, %v3075
  %v4863 = vsel %vm4795, %v4785, %v3077
  %v4864 = vsel %vm4795, %v4786, %v3079
  %v4865 = vsel %vm4795, %v4787, %v3081
  %v4866 = vsel %vm4795, %v4788, %v3083
  %v4867 = vsel %vm4795, %v4789, %v3085
  %v4868 = vsel %vm4795, %v4790, %v3087
  %v4869 = vsel %vm4795, %v4791, %v3089
  %v4870 = vsel %vm4795, %v4792, %v3091
  %v4871 = vsel %vm4795, %v4793, %v3093
  %v4872 = vsel %vm4795, %v4794, %v3095
  %vm4873 = vcmask 97280
  %v4874 = vsel %vm4873, %v4796, %v3251
  %v4875 = vsel %vm4873, %v4797, %v3253
  %v4876 = vsel %vm4873, %v4798, %v3255
  %v4877 = vsel %vm4873, %v4799, %v3257
  %v4878 = vsel %vm4873, %v4800, %v3259
  %v4879 = vsel %vm4873, %v4801, %v3261
  %v4880 = vsel %vm4873, %v4802, %v3263
  %v4881 = vsel %vm4873, %v4803, %v3265
  %v4882 = vsel %vm4873, %v4804, %v3267
  %v4883 = vsel %vm4873, %v4805, %v3269
  %v4884 = vsel %vm4873, %v4806, %v3271
  %v4885 = vsel %vm4873, %v4807, %v3273
  %v4886 = vsel %vm4873, %v4808, %v3275
  %v4887 = vsel %vm4873, %v4809, %v3277
  %v4888 = vsel %vm4873, %v4810, %v3279
  %v4889 = vsel %vm4873, %v4811, %v3281
  %v4890 = vsel %vm4873, %v4812, %v3283
  %v4891 = vsel %vm4873, %v4813, %v3285
  %v4892 = vsel %vm4873, %v4814, %v3287
  %v4893 = vsel %vm4873, %v4815, %v3289
  %v4894 = vsel %vm4873, %v4816, %v3291
  %v4895 = vsel %vm4873, %v4817, %v3293
  %v4896 = vsel %vm4873, %v4818, %v3295
  %v4897 = vsel %vm4873, %v4819, %v3297
  %v4898 = vsel %vm4873, %v4820, %v3299
  %v4899 = vsel %vm4873, %v4821, %v3301
  %v4900 = vsel %vm4873, %v4822, %v3303
  %v4901 = vsel %vm4873, %v4823, %v3305
  %v4902 = vsel %vm4873, %v4824, %v3307
  %v4903 = vsel %vm4873, %v4825, %v3309
  %v4904 = vsel %vm4873, %v4826, %v3311
  %v4905 = vsel %vm4873, %v4827, %v3313
  %v4906 = vsel %vm4873, %v4828, %v3315
  %v4907 = vsel %vm4873, %v4829, %v3317
  %v4908 = vsel %vm4873, %v4830, %v3319
  %v4909 = vsel %vm4873, %v4831, %v3321
  %v4910 = vsel %vm4873, %v4832, %v3323
  %v4911 = vsel %vm4873, %v4833, %v3325
  %v4912 = vsel %vm4873, %v4834, %v3327
  %v4913 = vsel %vm4873, %v4835, %v3329
  %v4914 = vsel %vm4873, %v4836, %v3331
  %v4915 = vsel %vm4873, %v4837, %v3333
  %v4916 = vsel %vm4873, %v4838, %v3335
  %v4917 = vsel %vm4873, %v4839, %v3337
  %v4918 = vsel %vm4873, %v4840, %v3339
  %v4919 = vsel %vm4873, %v4841, %v3341
  %v4920 = vsel %vm4873, %v4842, %v3343
  %v4921 = vsel %vm4873, %v4843, %v3345
  %v4922 = vsel %vm4873, %v4844, %v3347
  %v4923 = vsel %vm4873, %v4845, %v3349
  %v4924 = vsel %vm4873, %v4846, %v3351
  %v4925 = vsel %vm4873, %v4847, %v3353
  %v4926 = vsel %vm4873, %v4848, %v3355
  %v4927 = vsel %vm4873, %v4849, %v3357
  %v4928 = vsel %vm4873, %v4850, %v3359
  %v4929 = vsel %vm4873, %v4851, %v3361
  %v4930 = vsel %vm4873, %v4852, %v3363
  %v4931 = vsel %vm4873, %v4853, %v3365
  %v4932 = vsel %vm4873, %v4854, %v3367
  %v4933 = vsel %vm4873, %v4855, %v3369
  %v4934 = vsel %vm4873, %v4856, %v3371
  %v4935 = vsel %vm4873, %v4857, %v3373
  %v4936 = vsel %vm4873, %v4858, %v3375
  %v4937 = vsel %vm4873, %v4859, %v3377
  %v4938 = vsel %vm4873, %v4860, %v3379
  %v4939 = vsel %vm4873, %v4861, %v3381
  %v4940 = vsel %vm4873, %v4862, %v3383
  %v4941 = vsel %vm4873, %v4863, %v3385
  %v4942 = vsel %vm4873, %v4864, %v3387
  %v4943 = vsel %vm4873, %v4865, %v3389
  %v4944 = vsel %vm4873, %v4866, %v3391
  %v4945 = vsel %vm4873, %v4867, %v3393
  %v4946 = vsel %vm4873, %v4868, %v3395
  %v4947 = vsel %vm4873, %v4869, %v3397
  %v4948 = vsel %vm4873, %v4870, %v3399
  %v4949 = vsel %vm4873, %v4871, %v3401
  %v4950 = vsel %vm4873, %v4872, %v3403
  %vm4951 = vcmask 121856
  %v4952 = vsel %vm4951, %v4874, %v3559
  %v4953 = vsel %vm4951, %v4875, %v3561
  %v4954 = vsel %vm4951, %v4876, %v3563
  %v4955 = vsel %vm4951, %v4877, %v3565
  %v4956 = vsel %vm4951, %v4878, %v3567
  %v4957 = vsel %vm4951, %v4879, %v3569
  %v4958 = vsel %vm4951, %v4880, %v3571
  %v4959 = vsel %vm4951, %v4881, %v3573
  %v4960 = vsel %vm4951, %v4882, %v3575
  %v4961 = vsel %vm4951, %v4883, %v3577
  %v4962 = vsel %vm4951, %v4884, %v3579
  %v4963 = vsel %vm4951, %v4885, %v3581
  %v4964 = vsel %vm4951, %v4886, %v3583
  %v4965 = vsel %vm4951, %v4887, %v3585
  %v4966 = vsel %vm4951, %v4888, %v3587
  %v4967 = vsel %vm4951, %v4889, %v3589
  %v4968 = vsel %vm4951, %v4890, %v3591
  %v4969 = vsel %vm4951, %v4891, %v3593
  %v4970 = vsel %vm4951, %v4892, %v3595
  %v4971 = vsel %vm4951, %v4893, %v3597
  %v4972 = vsel %vm4951, %v4894, %v3599
  %v4973 = vsel %vm4951, %v4895, %v3601
  %v4974 = vsel %vm4951, %v4896, %v3603
  %v4975 = vsel %vm4951, %v4897, %v3605
  %v4976 = vsel %vm4951, %v4898, %v3607
  %v4977 = vsel %vm4951, %v4899, %v3609
  %v4978 = vsel %vm4951, %v4900, %v3611
  %v4979 = vsel %vm4951, %v4901, %v3613
  %v4980 = vsel %vm4951, %v4902, %v3615
  %v4981 = vsel %vm4951, %v4903, %v3617
  %v4982 = vsel %vm4951, %v4904, %v3619
  %v4983 = vsel %vm4951, %v4905, %v3621
  %v4984 = vsel %vm4951, %v4906, %v3623
  %v4985 = vsel %vm4951, %v4907, %v3625
  %v4986 = vsel %vm4951, %v4908, %v3627
  %v4987 = vsel %vm4951, %v4909, %v3629
  %v4988 = vsel %vm4951, %v4910, %v3631
  %v4989 = vsel %vm4951, %v4911, %v3633
  %v4990 = vsel %vm4951, %v4912, %v3635
  %v4991 = vsel %vm4951, %v4913, %v3637
  %v4992 = vsel %vm4951, %v4914, %v3639
  %v4993 = vsel %vm4951, %v4915, %v3641
  %v4994 = vsel %vm4951, %v4916, %v3643
  %v4995 = vsel %vm4951, %v4917, %v3645
  %v4996 = vsel %vm4951, %v4918, %v3647
  %v4997 = vsel %vm4951, %v4919, %v3649
  %v4998 = vsel %vm4951, %v4920, %v3651
  %v4999 = vsel %vm4951, %v4921, %v3653
  %v5000 = vsel %vm4951, %v4922, %v3655
  %v5001 = vsel %vm4951, %v4923, %v3657
  %v5002 = vsel %vm4951, %v4924, %v3659
  %v5003 = vsel %vm4951, %v4925, %v3661
  %v5004 = vsel %vm4951, %v4926, %v3663
  %v5005 = vsel %vm4951, %v4927, %v3665
  %v5006 = vsel %vm4951, %v4928, %v3667
  %v5007 = vsel %vm4951, %v4929, %v3669
  %v5008 = vsel %vm4951, %v4930, %v3671
  %v5009 = vsel %vm4951, %v4931, %v3673
  %v5010 = vsel %vm4951, %v4932, %v3675
  %v5011 = vsel %vm4951, %v4933, %v3677
  %v5012 = vsel %vm4951, %v4934, %v3679
  %v5013 = vsel %vm4951, %v4935, %v3681
  %v5014 = vsel %vm4951, %v4936, %v3683
  %v5015 = vsel %vm4951, %v4937, %v3685
  %v5016 = vsel %vm4951, %v4938, %v3687
  %v5017 = vsel %vm4951, %v4939, %v3689
  %v5018 = vsel %vm4951, %v4940, %v3691
  %v5019 = vsel %vm4951, %v4941, %v3693
  %v5020 = vsel %vm4951, %v4942, %v3695
  %v5021 = vsel %vm4951, %v4943, %v3697
  %v5022 = vsel %vm4951, %v4944, %v3699
  %v5023 = vsel %vm4951, %v4945, %v3701
  %v5024 = vsel %vm4951, %v4946, %v3703
  %v5025 = vsel %vm4951, %v4947, %v3705
  %v5026 = vsel %vm4951, %v4948, %v3707
  %v5027 = vsel %vm4951, %v4949, %v3709
  %v5028 = vsel %vm4951, %v4950, %v3711
  %vm5029 = vcmask 146432
  %v5030 = vsel %vm5029, %v4952, %v3793
  %v5031 = vsel %vm5029, %v4953, %v3795
  %v5032 = vsel %vm5029, %v4954, %v3797
  %v5033 = vsel %vm5029, %v4955, %v3799
  %v5034 = vsel %vm5029, %v4956, %v3801
  %v5035 = vsel %vm5029, %v4957, %v3803
  %v5036 = vsel %vm5029, %v4958, %v3805
  %v5037 = vsel %vm5029, %v4959, %v3807
  %v5038 = vsel %vm5029, %v4960, %v3809
  %v5039 = vsel %vm5029, %v4961, %v3811
  %v5040 = vsel %vm5029, %v4962, %v3813
  %v5041 = vsel %vm5029, %v4963, %v3815
  %v5042 = vsel %vm5029, %v4964, %v3817
  %v5043 = vsel %vm5029, %v4965, %v3819
  %v5044 = vsel %vm5029, %v4966, %v3821
  %v5045 = vsel %vm5029, %v4967, %v3823
  %v5046 = vsel %vm5029, %v4968, %v3825
  %v5047 = vsel %vm5029, %v4969, %v3827
  %v5048 = vsel %vm5029, %v4970, %v3829
  %v5049 = vsel %vm5029, %v4971, %v3831
  %v5050 = vsel %vm5029, %v4972, %v3833
  %v5051 = vsel %vm5029, %v4973, %v3835
  %v5052 = vsel %vm5029, %v4974, %v3837
  %v5053 = vsel %vm5029, %v4975, %v3839
  %v5054 = vsel %vm5029, %v4976, %v3841
  %v5055 = vsel %vm5029, %v4977, %v3843
  %v5056 = vsel %vm5029, %v4978, %v3845
  %v5057 = vsel %vm5029, %v4979, %v3847
  %v5058 = vsel %vm5029, %v4980, %v3849
  %v5059 = vsel %vm5029, %v4981, %v3851
  %v5060 = vsel %vm5029, %v4982, %v3853
  %v5061 = vsel %vm5029, %v4983, %v3855
  %v5062 = vsel %vm5029, %v4984, %v3857
  %v5063 = vsel %vm5029, %v4985, %v3859
  %v5064 = vsel %vm5029, %v4986, %v3861
  %v5065 = vsel %vm5029, %v4987, %v3863
  %v5066 = vsel %vm5029, %v4988, %v3865
  %v5067 = vsel %vm5029, %v4989, %v3867
  %v5068 = vsel %vm5029, %v4990, %v3869
  %v5069 = vsel %vm5029, %v4991, %v3871
  %v5070 = vsel %vm5029, %v4992, %v3873
  %v5071 = vsel %vm5029, %v4993, %v3875
  %v5072 = vsel %vm5029, %v4994, %v3877
  %v5073 = vsel %vm5029, %v4995, %v3879
  %v5074 = vsel %vm5029, %v4996, %v3881
  %v5075 = vsel %vm5029, %v4997, %v3883
  %v5076 = vsel %vm5029, %v4998, %v3885
  %v5077 = vsel %vm5029, %v4999, %v3887
  %v5078 = vsel %vm5029, %v5000, %v3889
  %v5079 = vsel %vm5029, %v5001, %v3891
  %v5080 = vsel %vm5029, %v5002, %v3893
  %v5081 = vsel %vm5029, %v5003, %v3895
  %v5082 = vsel %vm5029, %v5004, %v3897
  %v5083 = vsel %vm5029, %v5005, %v3899
  %v5084 = vsel %vm5029, %v5006, %v3901
  %v5085 = vsel %vm5029, %v5007, %v3903
  %v5086 = vsel %vm5029, %v5008, %v3905
  %v5087 = vsel %vm5029, %v5009, %v3907
  %v5088 = vsel %vm5029, %v5010, %v3909
  %v5089 = vsel %vm5029, %v5011, %v3911
  %v5090 = vsel %vm5029, %v5012, %v3913
  %v5091 = vsel %vm5029, %v5013, %v3915
  %v5092 = vsel %vm5029, %v5014, %v3917
  %v5093 = vsel %vm5029, %v5015, %v3919
  %v5094 = vsel %vm5029, %v5016, %v3921
  %v5095 = vsel %vm5029, %v5017, %v3923
  %v5096 = vsel %vm5029, %v5018, %v3925
  %v5097 = vsel %vm5029, %v5019, %v3927
  %v5098 = vsel %vm5029, %v5020, %v3929
  %v5099 = vsel %vm5029, %v5021, %v3931
  %v5100 = vsel %vm5029, %v5022, %v3933
  %v5101 = vsel %vm5029, %v5023, %v3935
  %v5102 = vsel %vm5029, %v5024, %v3937
  %v5103 = vsel %vm5029, %v5025, %v3939
  %v5104 = vsel %vm5029, %v5026, %v3941
  %v5105 = vsel %vm5029, %v5027, %v3943
  %v5106 = vsel %vm5029, %v5028, %v3945
  %vm5107 = vcmask 171008
  %v5108 = vsel %vm5107, %v5030, %v4101
  %v5109 = vsel %vm5107, %v5031, %v4103
  %v5110 = vsel %vm5107, %v5032, %v4105
  %v5111 = vsel %vm5107, %v5033, %v4107
  %v5112 = vsel %vm5107, %v5034, %v4109
  %v5113 = vsel %vm5107, %v5035, %v4111
  %v5114 = vsel %vm5107, %v5036, %v4113
  %v5115 = vsel %vm5107, %v5037, %v4115
  %v5116 = vsel %vm5107, %v5038, %v4117
  %v5117 = vsel %vm5107, %v5039, %v4119
  %v5118 = vsel %vm5107, %v5040, %v4121
  %v5119 = vsel %vm5107, %v5041, %v4123
  %v5120 = vsel %vm5107, %v5042, %v4125
  %v5121 = vsel %vm5107, %v5043, %v4127
  %v5122 = vsel %vm5107, %v5044, %v4129
  %v5123 = vsel %vm5107, %v5045, %v4131
  %v5124 = vsel %vm5107, %v5046, %v4133
  %v5125 = vsel %vm5107, %v5047, %v4135
  %v5126 = vsel %vm5107, %v5048, %v4137
  %v5127 = vsel %vm5107, %v5049, %v4139
  %v5128 = vsel %vm5107, %v5050, %v4141
  %v5129 = vsel %vm5107, %v5051, %v4143
  %v5130 = vsel %vm5107, %v5052, %v4145
  %v5131 = vsel %vm5107, %v5053, %v4147
  %v5132 = vsel %vm5107, %v5054, %v4149
  %v5133 = vsel %vm5107, %v5055, %v4151
  %v5134 = vsel %vm5107, %v5056, %v4153
  %v5135 = vsel %vm5107, %v5057, %v4155
  %v5136 = vsel %vm5107, %v5058, %v4157
  %v5137 = vsel %vm5107, %v5059, %v4159
  %v5138 = vsel %vm5107, %v5060, %v4161
  %v5139 = vsel %vm5107, %v5061, %v4163
  %v5140 = vsel %vm5107, %v5062, %v4165
  %v5141 = vsel %vm5107, %v5063, %v4167
  %v5142 = vsel %vm5107, %v5064, %v4169
  %v5143 = vsel %vm5107, %v5065, %v4171
  %v5144 = vsel %vm5107, %v5066, %v4173
  %v5145 = vsel %vm5107, %v5067, %v4175
  %v5146 = vsel %vm5107, %v5068, %v4177
  %v5147 = vsel %vm5107, %v5069, %v4179
  %v5148 = vsel %vm5107, %v5070, %v4181
  %v5149 = vsel %vm5107, %v5071, %v4183
  %v5150 = vsel %vm5107, %v5072, %v4185
  %v5151 = vsel %vm5107, %v5073, %v4187
  %v5152 = vsel %vm5107, %v5074, %v4189
  %v5153 = vsel %vm5107, %v5075, %v4191
  %v5154 = vsel %vm5107, %v5076, %v4193
  %v5155 = vsel %vm5107, %v5077, %v4195
  %v5156 = vsel %vm5107, %v5078, %v4197
  %v5157 = vsel %vm5107, %v5079, %v4199
  %v5158 = vsel %vm5107, %v5080, %v4201
  %v5159 = vsel %vm5107, %v5081, %v4203
  %v5160 = vsel %vm5107, %v5082, %v4205
  %v5161 = vsel %vm5107, %v5083, %v4207
  %v5162 = vsel %vm5107, %v5084, %v4209
  %v5163 = vsel %vm5107, %v5085, %v4211
  %v5164 = vsel %vm5107, %v5086, %v4213
  %v5165 = vsel %vm5107, %v5087, %v4215
  %v5166 = vsel %vm5107, %v5088, %v4217
  %v5167 = vsel %vm5107, %v5089, %v4219
  %v5168 = vsel %vm5107, %v5090, %v4221
  %v5169 = vsel %vm5107, %v5091, %v4223
  %v5170 = vsel %vm5107, %v5092, %v4225
  %v5171 = vsel %vm5107, %v5093, %v4227
  %v5172 = vsel %vm5107, %v5094, %v4229
  %v5173 = vsel %vm5107, %v5095, %v4231
  %v5174 = vsel %vm5107, %v5096, %v4233
  %v5175 = vsel %vm5107, %v5097, %v4235
  %v5176 = vsel %vm5107, %v5098, %v4237
  %v5177 = vsel %vm5107, %v5099, %v4239
  %v5178 = vsel %vm5107, %v5100, %v4241
  %v5179 = vsel %vm5107, %v5101, %v4243
  %v5180 = vsel %vm5107, %v5102, %v4245
  %v5181 = vsel %vm5107, %v5103, %v4247
  %v5182 = vsel %vm5107, %v5104, %v4249
  %v5183 = vsel %vm5107, %v5105, %v4251
  %v5184 = vsel %vm5107, %v5106, %v4253
  %vm5185 = vcmask 195584
  %v5186 = vsel %vm5185, %v5108, %v4409
  %v5187 = vsel %vm5185, %v5109, %v4411
  %v5188 = vsel %vm5185, %v5110, %v4413
  %v5189 = vsel %vm5185, %v5111, %v4415
  %v5190 = vsel %vm5185, %v5112, %v4417
  %v5191 = vsel %vm5185, %v5113, %v4419
  %v5192 = vsel %vm5185, %v5114, %v4421
  %v5193 = vsel %vm5185, %v5115, %v4423
  %v5194 = vsel %vm5185, %v5116, %v4425
  %v5195 = vsel %vm5185, %v5117, %v4427
  %v5196 = vsel %vm5185, %v5118, %v4429
  %v5197 = vsel %vm5185, %v5119, %v4431
  %v5198 = vsel %vm5185, %v5120, %v4433
  %v5199 = vsel %vm5185, %v5121, %v4435
  %v5200 = vsel %vm5185, %v5122, %v4437
  %v5201 = vsel %vm5185, %v5123, %v4439
  %v5202 = vsel %vm5185, %v5124, %v4441
  %v5203 = vsel %vm5185, %v5125, %v4443
  %v5204 = vsel %vm5185, %v5126, %v4445
  %v5205 = vsel %vm5185, %v5127, %v4447
  %v5206 = vsel %vm5185, %v5128, %v4449
  %v5207 = vsel %vm5185, %v5129, %v4451
  %v5208 = vsel %vm5185, %v5130, %v4453
  %v5209 = vsel %vm5185, %v5131, %v4455
  %v5210 = vsel %vm5185, %v5132, %v4457
  %v5211 = vsel %vm5185, %v5133, %v4459
  %v5212 = vsel %vm5185, %v5134, %v4461
  %v5213 = vsel %vm5185, %v5135, %v4463
  %v5214 = vsel %vm5185, %v5136, %v4465
  %v5215 = vsel %vm5185, %v5137, %v4467
  %v5216 = vsel %vm5185, %v5138, %v4469
  %v5217 = vsel %vm5185, %v5139, %v4471
  %v5218 = vsel %vm5185, %v5140, %v4473
  %v5219 = vsel %vm5185, %v5141, %v4475
  %v5220 = vsel %vm5185, %v5142, %v4477
  %v5221 = vsel %vm5185, %v5143, %v4479
  %v5222 = vsel %vm5185, %v5144, %v4481
  %v5223 = vsel %vm5185, %v5145, %v4483
  %v5224 = vsel %vm5185, %v5146, %v4485
  %v5225 = vsel %vm5185, %v5147, %v4487
  %v5226 = vsel %vm5185, %v5148, %v4489
  %v5227 = vsel %vm5185, %v5149, %v4491
  %v5228 = vsel %vm5185, %v5150, %v4493
  %v5229 = vsel %vm5185, %v5151, %v4495
  %v5230 = vsel %vm5185, %v5152, %v4497
  %v5231 = vsel %vm5185, %v5153, %v4499
  %v5232 = vsel %vm5185, %v5154, %v4501
  %v5233 = vsel %vm5185, %v5155, %v4503
  %v5234 = vsel %vm5185, %v5156, %v4505
  %v5235 = vsel %vm5185, %v5157, %v4507
  %v5236 = vsel %vm5185, %v5158, %v4509
  %v5237 = vsel %vm5185, %v5159, %v4511
  %v5238 = vsel %vm5185, %v5160, %v4513
  %v5239 = vsel %vm5185, %v5161, %v4515
  %v5240 = vsel %vm5185, %v5162, %v4517
  %v5241 = vsel %vm5185, %v5163, %v4519
  %v5242 = vsel %vm5185, %v5164, %v4521
  %v5243 = vsel %vm5185, %v5165, %v4523
  %v5244 = vsel %vm5185, %v5166, %v4525
  %v5245 = vsel %vm5185, %v5167, %v4527
  %v5246 = vsel %vm5185, %v5168, %v4529
  %v5247 = vsel %vm5185, %v5169, %v4531
  %v5248 = vsel %vm5185, %v5170, %v4533
  %v5249 = vsel %vm5185, %v5171, %v4535
  %v5250 = vsel %vm5185, %v5172, %v4537
  %v5251 = vsel %vm5185, %v5173, %v4539
  %v5252 = vsel %vm5185, %v5174, %v4541
  %v5253 = vsel %vm5185, %v5175, %v4543
  %v5254 = vsel %vm5185, %v5176, %v4545
  %v5255 = vsel %vm5185, %v5177, %v4547
  %v5256 = vsel %vm5185, %v5178, %v4549
  %v5257 = vsel %vm5185, %v5179, %v4551
  %v5258 = vsel %vm5185, %v5180, %v4553
  %v5259 = vsel %vm5185, %v5181, %v4555
  %v5260 = vsel %vm5185, %v5182, %v4557
  %v5261 = vsel %vm5185, %v5183, %v4559
  %v5262 = vsel %vm5185, %v5184, %v4561
  %v5263 = vlaneseq
  %v5264 = vshrl.u32 %v5263, 7
  %v5265 = vsub.s32 0, %v5264
  %v5266 = vrot.slane %v45, %v5265
  %vm5267 = vcmask 220160
  %v5269 = vsel %vm5267, %v5186, 0
  %v5272 = vsel %vm5267, %v5187, 0
  %v5275 = vsel %vm5267, %v5188, 0
  %v5278 = vsel %vm5267, %v5189, 0
  %v5281 = vsel %vm5267, %v5190, 0
  %v5284 = vsel %vm5267, %v5191, 0
  %v5287 = vsel %vm5267, %v5192, 0
  %v5290 = vsel %vm5267, %v5193, 0
  %v5293 = vsel %vm5267, %v5194, 0
  %v5296 = vsel %vm5267, %v5195, 0
  %v5299 = vsel %vm5267, %v5196, 0
  %v5302 = vsel %vm5267, %v5197, 0
  %v5305 = vsel %vm5267, %v5198, 0
  %v5308 = vsel %vm5267, %v5199, 0
  %v5311 = vsel %vm5267, %v5200, 0
  %v5314 = vsel %vm5267, %v5201, 0
  %v5317 = vsel %vm5267, %v5202, 0
  %v5320 = vsel %vm5267, %v5203, 0
  %v5323 = vsel %vm5267, %v5204, 0
  %v5326 = vsel %vm5267, %v5205, 0
  %v5329 = vsel %vm5267, %v5206, 0
  %v5332 = vsel %vm5267, %v5207, 0
  %v5335 = vsel %vm5267, %v5208, 0
  %v5338 = vsel %vm5267, %v5209, 0
  %v5341 = vsel %vm5267, %v5210, 0
  %v5344 = vsel %vm5267, %v5211, 0
  %v5347 = vsel %vm5267, %v5212, 0
  %v5350 = vsel %vm5267, %v5213, 0
  %v5353 = vsel %vm5267, %v5214, 0
  %v5356 = vsel %vm5267, %v5215, 0
  %v5359 = vsel %vm5267, %v5216, 0
  %v5362 = vsel %vm5267, %v5217, 0
  %v5365 = vsel %vm5267, %v5218, 0
  %v5368 = vsel %vm5267, %v5219, 0
  %v5371 = vsel %vm5267, %v5220, 0
  %v5374 = vsel %vm5267, %v5221, 0
  %v5377 = vsel %vm5267, %v5222, 0
  %v5380 = vsel %vm5267, %v5223, 0
  %v5383 = vsel %vm5267, %v5224, 0
  %v5386 = vsel %vm5267, %v5225, 0
  %v5389 = vsel %vm5267, %v5226, 0
  %v5392 = vsel %vm5267, %v5227, 0
  %v5395 = vsel %vm5267, %v5228, 0
  %v5398 = vsel %vm5267, %v5229, 0
  %v5401 = vsel %vm5267, %v5230, 0
  %v5404 = vsel %vm5267, %v5231, 0
  %v5407 = vsel %vm5267, %v5232, 0
  %v5410 = vsel %vm5267, %v5233, 0
  %v5413 = vsel %vm5267, %v5234, 0
  %v5416 = vsel %vm5267, %v5235, 0
  %v5419 = vsel %vm5267, %v5236, 0
  %v5422 = vsel %vm5267, %v5237, 0
  %v5425 = vsel %vm5267, %v5238, 0
  %v5428 = vsel %vm5267, %v5239, 0
  %v5431 = vsel %vm5267, %v5240, 0
  %v5434 = vsel %vm5267, %v5241, 0
  %v5437 = vsel %vm5267, %v5242, 0
  %v5440 = vsel %vm5267, %v5243, 0
  %v5443 = vsel %vm5267, %v5244, 0
  %v5446 = vsel %vm5267, %v5245, 0
  %v5449 = vsel %vm5267, %v5246, 0
  %v5452 = vsel %vm5267, %v5247, 0
  %v5455 = vsel %vm5267, %v5248, 0
  %v5458 = vsel %vm5267, %v5249, 0
  %v5461 = vsel %vm5267, %v5250, 0
  %v5464 = vsel %vm5267, %v5251, 0
  %v5467 = vsel %vm5267, %v5252, 0
  %v5470 = vsel %vm5267, %v5253, 0
  %v5473 = vsel %vm5267, %v5254, 0
  %v5476 = vsel %vm5267, %v5255, 0
  %v5479 = vsel %vm5267, %v5256, 0
  %v5482 = vsel %vm5267, %v5257, 0
  %v5485 = vsel %vm5267, %v5258, 0
  %v5488 = vsel %vm5267, %v5259, 0
  %v5491 = vsel %vm5267, %v5260, 0
  %v5494 = vsel %vm5267, %v5261, 0
  %v5497 = vsel %vm5267, %v5262, 0
  %vm5499 = vcmask 1042432
  %v5501 = vsel %vm5499, %v17, 0
  %5503 = vmatprep.subr.mxu0 0.0
  %5504 = vmatpush1.msra.mxu0 %v14
  %5505 = vmatprep.subr.mxu0 0.0
  %5506 = vmatpush1.msra.mxu0 %v15
  %5507 = vmatprep.subr.mxu0 0.0
  %5508 = vmatpush1.msra.mxu0 %v16
  %5509 = vmatprep.subr.mxu0 0.0
  %5510 = vmatpush1.msra.mxu0 %v5501
  %5511 = vmatprep.subr.mxu0 0.0
  %5512 = vmatpush1.msra.mxu0 0.0
  %5513 = vmatprep.subr.mxu0 0.0
  %5514 = vmatpush1.msra.mxu0 0.0
  %5515 = vmatprep.subr.mxu0 0.0
  %5516 = vmatpush1.msra.mxu0 0.0
  %5517 = vmatprep.subr.mxu0 0.0
  %5518 = vmatpush1.msra.mxu0 0.0
  %5519 = vmatprep.subr.mxu0 0.0
  %5520 = vmatpush1.msra.mxu0 0.0
  %5521 = vmatprep.subr.mxu0 0.0
  %5522 = vmatpush1.msra.mxu0 0.0
  %5523 = vmatprep.subr.mxu0 0.0
  %5524 = vmatpush1.msra.mxu0 0.0
  %5525 = vmatprep.subr.mxu0 0.0
  %5526 = vmatpush1.msra.mxu0 0.0
  %5527 = vmatprep.subr.mxu0 0.0
  %5528 = vmatpush1.msra.mxu0 0.0
  %5529 = vmatprep.subr.mxu0 0.0
  %5530 = vmatpush1.msra.mxu0 0.0
  %5531 = vmatprep.subr.mxu0 0.0
  %5532 = vmatpush1.msra.mxu0 0.0
  %5533 = vmatprep.subr.mxu0 0.0
  %5534 = vmatpush1.msra.mxu0 0.0
  %5535 = vmatprep.subr.mxu0 0.0
  %5536 = vmatpush1.msra.mxu0 0.0
  %5537 = vmatprep.subr.mxu0 0.0
  %5538 = vmatpush1.msra.mxu0 0.0
  %5539 = vmatprep.subr.mxu0 0.0
  %5540 = vmatpush1.msra.mxu0 0.0
  %5541 = vmatprep.subr.mxu0 0.0
  %5542 = vmatpush1.msra.mxu0 0.0
  %5543 = vmatprep.subr.mxu0 0.0
  %5544 = vmatpush1.msra.mxu0 0.0
  %5545 = vmatprep.subr.mxu0 0.0
  %5546 = vmatpush1.msra.mxu0 0.0
  %5547 = vmatprep.subr.mxu0 0.0
  %5548 = vmatpush1.msra.mxu0 0.0
  %5549 = vmatprep.subr.mxu0 0.0
  %5550 = vmatpush1.msra.mxu0 0.0
  %5551 = vmatprep.subr.mxu0 0.0
  %5552 = vmatpush1.msra.mxu0 0.0
  %5553 = vmatprep.subr.mxu0 0.0
  %5554 = vmatpush1.msra.mxu0 0.0
  %5555 = vmatprep.subr.mxu0 0.0
  %5556 = vmatpush1.msra.mxu0 0.0
  %5557 = vmatprep.subr.mxu0 0.0
  %5558 = vmatpush1.msra.mxu0 0.0
  %5559 = vmatprep.subr.mxu0 0.0
  %5560 = vmatpush1.msra.mxu0 0.0
  %5561 = vmatprep.subr.mxu0 0.0
  %5562 = vmatpush1.msra.mxu0 0.0
  %5563 = vmatprep.subr.mxu0 0.0
  %5564 = vmatpush1.msra.mxu0 0.0
  %5565 = vmatprep.subr.mxu0 0.0
  %5566 = vmatpush1.msra.mxu0 0.0
  %5567 = vmatprep.mubr.f32.mxu0 0.0
  %5568 = vmatmul.mubr.f32.gmra.mrb[0].mxu0 %v5269
  %v5569 = vpop.f32.mrb[0].mxu0
  %v5570 = vadd.f32 %v5266, %v5569
  %v5571 = vpop.f32.mrb[0].mxu0
  %5572 = vmatprep.mubr.f32.mxu0 0.0
  %5573 = vmatmul.mubr.f32.gmra.mrb[0].mxu0 %v5272
  %v5574 = vpop.f32.mrb[0].mxu0
  %v5575 = vadd.f32 %v5266, %v5574
  %v5576 = vpop.f32.mrb[0].mxu0
  %5577 = vmatprep.mubr.f32.mxu0 0.0
  %5578 = vmatmul.mubr.f32.gmra.mrb[0].mxu0 %v5275
  %v5579 = vpop.f32.mrb[0].mxu0
  %v5580 = vadd.f32 %v5266, %v5579
  %v5581 = vpop.f32.mrb[0].mxu0
  %5582 = vmatprep.mubr.f32.mxu0 0.0
  %5583 = vmatmul.mubr.f32.gmra.mrb[0].mxu0 %v5278
  %v5584 = vpop.f32.mrb[0].mxu0
  %v5585 = vadd.f32 %v5266, %v5584
  %v5586 = vpop.f32.mrb[0].mxu0
  %5587 = vmatprep.mubr.f32.mxu0 0.0
  %5588 = vmatmul.mubr.f32.gmra.mrb[0].mxu0 %v5281
  %v5589 = vpop.f32.mrb[0].mxu0
  %v5590 = vadd.f32 %v5266, %v5589
  %v5591 = vpop.f32.mrb[0].mxu0
  %5592 = vmatprep.mubr.f32.mxu0 0.0
  %5593 = vmatmul.mubr.f32.gmra.mrb[0].mxu0 %v5284
  %v5594 = vpop.f32.mrb[0].mxu0
  %v5595 = vadd.f32 %v5266, %v5594
  %v5596 = vpop.f32.mrb[0].mxu0
  %5597 = vmatprep.mubr.f32.mxu0 0.0
  %5598 = vmatmul.mubr.f32.gmra.mrb[0].mxu0 %v5287
  %v5599 = vpop.f32.mrb[0].mxu0
  %v5600 = vadd.f32 %v5266, %v5599
  %v5601 = vpop.f32.mrb[0].mxu0
  %5602 = vmatprep.mubr.f32.mxu0 0.0
  %5603 = vmatmul.mubr.f32.gmra.mrb[0].mxu0 %v5290
  %v5604 = vpop.f32.mrb[0].mxu0
  %v5605 = vadd.f32 %v5266, %v5604
  %v5606 = vpop.f32.mrb[0].mxu0
  %5607 = vmatprep.mubr.f32.mxu0 0.0
  %5608 = vmatmul.mubr.f32.gmra.mrb[0].mxu0 %v5293
  %v5609 = vpop.f32.mrb[0].mxu0
  %v5610 = vadd.f32 %v5266, %v5609
  %v5611 = vpop.f32.mrb[0].mxu0
  %5612 = vmatprep.mubr.f32.mxu0 0.0
  %5613 = vmatmul.mubr.f32.gmra.mrb[0].mxu0 %v5296
  %v5614 = vpop.f32.mrb[0].mxu0
  %v5615 = vadd.f32 %v5266, %v5614
  %v5616 = vpop.f32.mrb[0].mxu0
  %5617 = vmatprep.mubr.f32.mxu0 0.0
  %5618 = vmatmul.mubr.f32.gmra.mrb[0].mxu0 %v5299
  %v5619 = vpop.f32.mrb[0].mxu0
  %v5620 = vadd.f32 %v5266, %v5619
  %v5621 = vpop.f32.mrb[0].mxu0
  %5622 = vmatprep.mubr.f32.mxu0 0.0
  %5623 = vmatmul.mubr.f32.gmra.mrb[0].mxu0 %v5302
  %v5624 = vpop.f32.mrb[0].mxu0
  %v5625 = vadd.f32 %v5266, %v5624
  %v5626 = vpop.f32.mrb[0].mxu0
  %5627 = vmatprep.mubr.f32.mxu0 0.0
  %5628 = vmatmul.mubr.f32.gmra.mrb[0].mxu0 %v5305
  %v5629 = vpop.f32.mrb[0].mxu0
  %v5630 = vadd.f32 %v5266, %v5629
  %v5631 = vpop.f32.mrb[0].mxu0
  %5632 = vmatprep.mubr.f32.mxu0 0.0
  %5633 = vmatmul.mubr.f32.gmra.mrb[0].mxu0 %v5308
  %v5634 = vpop.f32.mrb[0].mxu0
  %v5635 = vadd.f32 %v5266, %v5634
  %v5636 = vpop.f32.mrb[0].mxu0
  %5637 = vmatprep.mubr.f32.mxu0 0.0
  %5638 = vmatmul.mubr.f32.gmra.mrb[0].mxu0 %v5311
  %v5639 = vpop.f32.mrb[0].mxu0
  %v5640 = vadd.f32 %v5266, %v5639
  %v5641 = vpop.f32.mrb[0].mxu0
  %5642 = vmatprep.mubr.f32.mxu0 0.0
  %5643 = vmatmul.mubr.f32.gmra.mrb[0].mxu0 %v5314
  %v5644 = vpop.f32.mrb[0].mxu0
  %v5645 = vadd.f32 %v5266, %v5644
  %v5646 = vpop.f32.mrb[0].mxu0
  %5647 = vmatprep.mubr.f32.mxu0 0.0
  %5648 = vmatmul.mubr.f32.gmra.mrb[0].mxu0 %v5317
  %v5649 = vpop.f32.mrb[0].mxu0
  %v5650 = vadd.f32 %v5266, %v5649
  %v5651 = vpop.f32.mrb[0].mxu0
  %5652 = vmatprep.mubr.f32.mxu0 0.0
  %5653 = vmatmul.mubr.f32.gmra.mrb[0].mxu0 %v5320
  %v5654 = vpop.f32.mrb[0].mxu0
  %v5655 = vadd.f32 %v5266, %v5654
  %v5656 = vpop.f32.mrb[0].mxu0
  %5657 = vmatprep.mubr.f32.mxu0 0.0
  %5658 = vmatmul.mubr.f32.gmra.mrb[0].mxu0 %v5323
  %v5659 = vpop.f32.mrb[0].mxu0
  %v5660 = vadd.f32 %v5266, %v5659
  %v5661 = vpop.f32.mrb[0].mxu0
  %5662 = vmatprep.mubr.f32.mxu0 0.0
  %5663 = vmatmul.mubr.f32.gmra.mrb[0].mxu0 %v5326
  %v5664 = vpop.f32.mrb[0].mxu0
  %v5665 = vadd.f32 %v5266, %v5664
  %v5666 = vpop.f32.mrb[0].mxu0
  %5667 = vmatprep.mubr.f32.mxu0 0.0
  %5668 = vmatmul.mubr.f32.gmra.mrb[0].mxu0 %v5329
  %v5669 = vpop.f32.mrb[0].mxu0
  %v5670 = vadd.f32 %v5266, %v5669
  %v5671 = vpop.f32.mrb[0].mxu0
  %5672 = vmatprep.mubr.f32.mxu0 0.0
  %5673 = vmatmul.mubr.f32.gmra.mrb[0].mxu0 %v5332
  %v5674 = vpop.f32.mrb[0].mxu0
  %v5675 = vadd.f32 %v5266, %v5674
  %v5676 = vpop.f32.mrb[0].mxu0
  %5677 = vmatprep.mubr.f32.mxu0 0.0
  %5678 = vmatmul.mubr.f32.gmra.mrb[0].mxu0 %v5335
  %v5679 = vpop.f32.mrb[0].mxu0
  %v5680 = vadd.f32 %v5266, %v5679
  %v5681 = vpop.f32.mrb[0].mxu0
  %5682 = vmatprep.mubr.f32.mxu0 0.0
  %5683 = vmatmul.mubr.f32.gmra.mrb[0].mxu0 %v5338
  %v5684 = vpop.f32.mrb[0].mxu0
  %v5685 = vadd.f32 %v5266, %v5684
  %v5686 = vpop.f32.mrb[0].mxu0
  %5687 = vmatprep.mubr.f32.mxu0 0.0
  %5688 = vmatmul.mubr.f32.gmra.mrb[0].mxu0 %v5341
  %v5689 = vpop.f32.mrb[0].mxu0
  %v5690 = vadd.f32 %v5266, %v5689
  %v5691 = vpop.f32.mrb[0].mxu0
  %5692 = vmatprep.mubr.f32.mxu0 0.0
  %5693 = vmatmul.mubr.f32.gmra.mrb[0].mxu0 %v5344
  %v5694 = vpop.f32.mrb[0].mxu0
  %v5695 = vadd.f32 %v5266, %v5694
  %v5696 = vpop.f32.mrb[0].mxu0
  %5697 = vmatprep.mubr.f32.mxu0 0.0
  %5698 = vmatmul.mubr.f32.gmra.mrb[0].mxu0 %v5347
  %v5699 = vpop.f32.mrb[0].mxu0
  %v5700 = vadd.f32 %v5266, %v5699
  %v5701 = vpop.f32.mrb[0].mxu0
  %5702 = vmatprep.mubr.f32.mxu0 0.0
  %5703 = vmatmul.mubr.f32.gmra.mrb[0].mxu0 %v5350
  %v5704 = vpop.f32.mrb[0].mxu0
  %v5705 = vadd.f32 %v5266, %v5704
  %v5706 = vpop.f32.mrb[0].mxu0
  %5707 = vmatprep.mubr.f32.mxu0 0.0
  %5708 = vmatmul.mubr.f32.gmra.mrb[0].mxu0 %v5353
  %v5709 = vpop.f32.mrb[0].mxu0
  %v5710 = vadd.f32 %v5266, %v5709
  %v5711 = vpop.f32.mrb[0].mxu0
  %5712 = vmatprep.mubr.f32.mxu0 0.0
  %5713 = vmatmul.mubr.f32.gmra.mrb[0].mxu0 %v5356
  %v5714 = vpop.f32.mrb[0].mxu0
  %v5715 = vadd.f32 %v5266, %v5714
  %v5716 = vpop.f32.mrb[0].mxu0
  %5717 = vmatprep.mubr.f32.mxu0 0.0
  %5718 = vmatmul.mubr.f32.gmra.mrb[0].mxu0 %v5359
  %v5719 = vpop.f32.mrb[0].mxu0
  %v5720 = vadd.f32 %v5266, %v5719
  %v5721 = vpop.f32.mrb[0].mxu0
  %5722 = vmatprep.mubr.f32.mxu0 0.0
  %5723 = vmatmul.mubr.f32.gmra.mrb[0].mxu0 %v5362
  %v5724 = vpop.f32.mrb[0].mxu0
  %v5725 = vadd.f32 %v5266, %v5724
  %v5726 = vpop.f32.mrb[0].mxu0
  %5727 = vmatprep.mubr.f32.mxu0 0.0
  %5728 = vmatmul.mubr.f32.gmra.mrb[0].mxu0 %v5365
  %v5729 = vpop.f32.mrb[0].mxu0
  %v5730 = vadd.f32 %v5266, %v5729
  %v5731 = vpop.f32.mrb[0].mxu0
  %5732 = vmatprep.mubr.f32.mxu0 0.0
  %5733 = vmatmul.mubr.f32.gmra.mrb[0].mxu0 %v5368
  %v5734 = vpop.f32.mrb[0].mxu0
  %v5735 = vadd.f32 %v5266, %v5734
  %v5736 = vpop.f32.mrb[0].mxu0
  %5737 = vmatprep.mubr.f32.mxu0 0.0
  %5738 = vmatmul.mubr.f32.gmra.mrb[0].mxu0 %v5371
  %v5739 = vpop.f32.mrb[0].mxu0
  %v5740 = vadd.f32 %v5266, %v5739
  %v5741 = vpop.f32.mrb[0].mxu0
  %5742 = vmatprep.mubr.f32.mxu0 0.0
  %5743 = vmatmul.mubr.f32.gmra.mrb[0].mxu0 %v5374
  %v5744 = vpop.f32.mrb[0].mxu0
  %v5745 = vadd.f32 %v5266, %v5744
  %v5746 = vpop.f32.mrb[0].mxu0
  %5747 = vmatprep.mubr.f32.mxu0 0.0
  %5748 = vmatmul.mubr.f32.gmra.mrb[0].mxu0 %v5377
  %v5749 = vpop.f32.mrb[0].mxu0
  %v5750 = vadd.f32 %v5266, %v5749
  %v5751 = vpop.f32.mrb[0].mxu0
  %5752 = vmatprep.mubr.f32.mxu0 0.0
  %5753 = vmatmul.mubr.f32.gmra.mrb[0].mxu0 %v5380
  %v5754 = vpop.f32.mrb[0].mxu0
  %v5755 = vadd.f32 %v5266, %v5754
  %v5756 = vpop.f32.mrb[0].mxu0
  %5757 = vmatprep.mubr.f32.mxu0 0.0
  %5758 = vmatmul.mubr.f32.gmra.mrb[0].mxu0 %v5383
  %v5759 = vpop.f32.mrb[0].mxu0
  %v5760 = vadd.f32 %v5266, %v5759
  %v5761 = vpop.f32.mrb[0].mxu0
  %5762 = vmatprep.mubr.f32.mxu0 0.0
  %5763 = vmatmul.mubr.f32.gmra.mrb[0].mxu0 %v5386
  %v5764 = vpop.f32.mrb[0].mxu0
  %v5765 = vadd.f32 %v5266, %v5764
  %v5766 = vpop.f32.mrb[0].mxu0
  %5767 = vmatprep.mubr.f32.mxu0 0.0
  %5768 = vmatmul.mubr.f32.gmra.mrb[0].mxu0 %v5389
  %v5769 = vpop.f32.mrb[0].mxu0
  %v5770 = vadd.f32 %v5266, %v5769
  %v5771 = vpop.f32.mrb[0].mxu0
  %5772 = vmatprep.mubr.f32.mxu0 0.0
  %5773 = vmatmul.mubr.f32.gmra.mrb[0].mxu0 %v5392
  %v5774 = vpop.f32.mrb[0].mxu0
  %v5775 = vadd.f32 %v5266, %v5774
  %v5776 = vpop.f32.mrb[0].mxu0
  %5777 = vmatprep.mubr.f32.mxu0 0.0
  %5778 = vmatmul.mubr.f32.gmra.mrb[0].mxu0 %v5395
  %v5779 = vpop.f32.mrb[0].mxu0
  %v5780 = vadd.f32 %v5266, %v5779
  %v5781 = vpop.f32.mrb[0].mxu0
  %5782 = vmatprep.mubr.f32.mxu0 0.0
  %5783 = vmatmul.mubr.f32.gmra.mrb[0].mxu0 %v5398
  %v5784 = vpop.f32.mrb[0].mxu0
  %v5785 = vadd.f32 %v5266, %v5784
  %v5786 = vpop.f32.mrb[0].mxu0
  %5787 = vmatprep.mubr.f32.mxu0 0.0
  %5788 = vmatmul.mubr.f32.gmra.mrb[0].mxu0 %v5401
  %v5789 = vpop.f32.mrb[0].mxu0
  %v5790 = vadd.f32 %v5266, %v5789
  %v5791 = vpop.f32.mrb[0].mxu0
  %5792 = vmatprep.mubr.f32.mxu0 0.0
  %5793 = vmatmul.mubr.f32.gmra.mrb[0].mxu0 %v5404
  %v5794 = vpop.f32.mrb[0].mxu0
  %v5795 = vadd.f32 %v5266, %v5794
  %v5796 = vpop.f32.mrb[0].mxu0
  %5797 = vmatprep.mubr.f32.mxu0 0.0
  %5798 = vmatmul.mubr.f32.gmra.mrb[0].mxu0 %v5407
  %v5799 = vpop.f32.mrb[0].mxu0
  %v5800 = vadd.f32 %v5266, %v5799
  %v5801 = vpop.f32.mrb[0].mxu0
  %5802 = vmatprep.mubr.f32.mxu0 0.0
  %5803 = vmatmul.mubr.f32.gmra.mrb[0].mxu0 %v5410
  %v5804 = vpop.f32.mrb[0].mxu0
  %v5805 = vadd.f32 %v5266, %v5804
  %v5806 = vpop.f32.mrb[0].mxu0
  %5807 = vmatprep.mubr.f32.mxu0 0.0
  %5808 = vmatmul.mubr.f32.gmra.mrb[0].mxu0 %v5413
  %v5809 = vpop.f32.mrb[0].mxu0
  %v5810 = vadd.f32 %v5266, %v5809
  %v5811 = vpop.f32.mrb[0].mxu0
  %5812 = vmatprep.mubr.f32.mxu0 0.0
  %5813 = vmatmul.mubr.f32.gmra.mrb[0].mxu0 %v5416
  %v5814 = vpop.f32.mrb[0].mxu0
  %v5815 = vadd.f32 %v5266, %v5814
  %v5816 = vpop.f32.mrb[0].mxu0
  %5817 = vmatprep.mubr.f32.mxu0 0.0
  %5818 = vmatmul.mubr.f32.gmra.mrb[0].mxu0 %v5419
  %v5819 = vpop.f32.mrb[0].mxu0
  %v5820 = vadd.f32 %v5266, %v5819
  %v5821 = vpop.f32.mrb[0].mxu0
  %5822 = vmatprep.mubr.f32.mxu0 0.0
  %5823 = vmatmul.mubr.f32.gmra.mrb[0].mxu0 %v5422
  %v5824 = vpop.f32.mrb[0].mxu0
  %v5825 = vadd.f32 %v5266, %v5824
  %v5826 = vpop.f32.mrb[0].mxu0
  %5827 = vmatprep.mubr.f32.mxu0 0.0
  %5828 = vmatmul.mubr.f32.gmra.mrb[0].mxu0 %v5425
  %v5829 = vpop.f32.mrb[0].mxu0
  %v5830 = vadd.f32 %v5266, %v5829
  %v5831 = vpop.f32.mrb[0].mxu0
  %5832 = vmatprep.mubr.f32.mxu0 0.0
  %5833 = vmatmul.mubr.f32.gmra.mrb[0].mxu0 %v5428
  %v5834 = vpop.f32.mrb[0].mxu0
  %v5835 = vadd.f32 %v5266, %v5834
  %v5836 = vpop.f32.mrb[0].mxu0
  %5837 = vmatprep.mubr.f32.mxu0 0.0
  %5838 = vmatmul.mubr.f32.gmra.mrb[0].mxu0 %v5431
  %v5839 = vpop.f32.mrb[0].mxu0
  %v5840 = vadd.f32 %v5266, %v5839
  %v5841 = vpop.f32.mrb[0].mxu0
  %5842 = vmatprep.mubr.f32.mxu0 0.0
  %5843 = vmatmul.mubr.f32.gmra.mrb[0].mxu0 %v5434
  %v5844 = vpop.f32.mrb[0].mxu0
  %v5845 = vadd.f32 %v5266, %v5844
  %v5846 = vpop.f32.mrb[0].mxu0
  %5847 = vmatprep.mubr.f32.mxu0 0.0
  %5848 = vmatmul.mubr.f32.gmra.mrb[0].mxu0 %v5437
  %v5849 = vpop.f32.mrb[0].mxu0
  %v5850 = vadd.f32 %v5266, %v5849
  %v5851 = vpop.f32.mrb[0].mxu0
  %5852 = vmatprep.mubr.f32.mxu0 0.0
  %5853 = vmatmul.mubr.f32.gmra.mrb[0].mxu0 %v5440
  %v5854 = vpop.f32.mrb[0].mxu0
  %v5855 = vadd.f32 %v5266, %v5854
  %v5856 = vpop.f32.mrb[0].mxu0
  %5857 = vmatprep.mubr.f32.mxu0 0.0
  %5858 = vmatmul.mubr.f32.gmra.mrb[0].mxu0 %v5443
  %v5859 = vpop.f32.mrb[0].mxu0
  %v5860 = vadd.f32 %v5266, %v5859
  %v5861 = vpop.f32.mrb[0].mxu0
  %5862 = vmatprep.mubr.f32.mxu0 0.0
  %5863 = vmatmul.mubr.f32.gmra.mrb[0].mxu0 %v5446
  %v5864 = vpop.f32.mrb[0].mxu0
  %v5865 = vadd.f32 %v5266, %v5864
  %v5866 = vpop.f32.mrb[0].mxu0
  %5867 = vmatprep.mubr.f32.mxu0 0.0
  %5868 = vmatmul.mubr.f32.gmra.mrb[0].mxu0 %v5449
  %v5869 = vpop.f32.mrb[0].mxu0
  %v5870 = vadd.f32 %v5266, %v5869
  %v5871 = vpop.f32.mrb[0].mxu0
  %5872 = vmatprep.mubr.f32.mxu0 0.0
  %5873 = vmatmul.mubr.f32.gmra.mrb[0].mxu0 %v5452
  %v5874 = vpop.f32.mrb[0].mxu0
  %v5875 = vadd.f32 %v5266, %v5874
  %v5876 = vpop.f32.mrb[0].mxu0
  %5877 = vmatprep.mubr.f32.mxu0 0.0
  %5878 = vmatmul.mubr.f32.gmra.mrb[0].mxu0 %v5455
  %v5879 = vpop.f32.mrb[0].mxu0
  %v5880 = vadd.f32 %v5266, %v5879
  %v5881 = vpop.f32.mrb[0].mxu0
  %5882 = vmatprep.mubr.f32.mxu0 0.0
  %5883 = vmatmul.mubr.f32.gmra.mrb[0].mxu0 %v5458
  %v5884 = vpop.f32.mrb[0].mxu0
  %v5885 = vadd.f32 %v5266, %v5884
  %v5886 = vpop.f32.mrb[0].mxu0
  %5887 = vmatprep.mubr.f32.mxu0 0.0
  %5888 = vmatmul.mubr.f32.gmra.mrb[0].mxu0 %v5461
  %v5889 = vpop.f32.mrb[0].mxu0
  %v5890 = vadd.f32 %v5266, %v5889
  %v5891 = vpop.f32.mrb[0].mxu0
  %5892 = vmatprep.mubr.f32.mxu0 0.0
  %5893 = vmatmul.mubr.f32.gmra.mrb[0].mxu0 %v5464
  %v5894 = vpop.f32.mrb[0].mxu0
  %v5895 = vadd.f32 %v5266, %v5894
  %v5896 = vpop.f32.mrb[0].mxu0
  %5897 = vmatprep.mubr.f32.mxu0 0.0
  %5898 = vmatmul.mubr.f32.gmra.mrb[0].mxu0 %v5467
  %v5899 = vpop.f32.mrb[0].mxu0
  %v5900 = vadd.f32 %v5266, %v5899
  %v5901 = vpop.f32.mrb[0].mxu0
  %5902 = vmatprep.mubr.f32.mxu0 0.0
  %5903 = vmatmul.mubr.f32.gmra.mrb[0].mxu0 %v5470
  %v5904 = vpop.f32.mrb[0].mxu0
  %v5905 = vadd.f32 %v5266, %v5904
  %v5906 = vpop.f32.mrb[0].mxu0
  %5907 = vmatprep.mubr.f32.mxu0 0.0
  %5908 = vmatmul.mubr.f32.gmra.mrb[0].mxu0 %v5473
  %v5909 = vpop.f32.mrb[0].mxu0
  %v5910 = vadd.f32 %v5266, %v5909
  %v5911 = vpop.f32.mrb[0].mxu0
  %5912 = vmatprep.mubr.f32.mxu0 0.0
  %5913 = vmatmul.mubr.f32.gmra.mrb[0].mxu0 %v5476
  %v5914 = vpop.f32.mrb[0].mxu0
  %v5915 = vadd.f32 %v5266, %v5914
  %v5916 = vpop.f32.mrb[0].mxu0
  %5917 = vmatprep.mubr.f32.mxu0 0.0
  %5918 = vmatmul.mubr.f32.gmra.mrb[0].mxu0 %v5479
  %v5919 = vpop.f32.mrb[0].mxu0
  %v5920 = vadd.f32 %v5266, %v5919
  %v5921 = vpop.f32.mrb[0].mxu0
  %5922 = vmatprep.mubr.f32.mxu0 0.0
  %5923 = vmatmul.mubr.f32.gmra.mrb[0].mxu0 %v5482
  %v5924 = vpop.f32.mrb[0].mxu0
  %v5925 = vadd.f32 %v5266, %v5924
  %v5926 = vpop.f32.mrb[0].mxu0
  %5927 = vmatprep.mubr.f32.mxu0 0.0
  %5928 = vmatmul.mubr.f32.gmra.mrb[0].mxu0 %v5485
  %v5929 = vpop.f32.mrb[0].mxu0
  %v5930 = vadd.f32 %v5266, %v5929
  %v5931 = vpop.f32.mrb[0].mxu0
  %5932 = vmatprep.mubr.f32.mxu0 0.0
  %5933 = vmatmul.mubr.f32.gmra.mrb[0].mxu0 %v5488
  %v5934 = vpop.f32.mrb[0].mxu0
  %v5935 = vadd.f32 %v5266, %v5934
  %v5936 = vpop.f32.mrb[0].mxu0
  %5937 = vmatprep.mubr.f32.mxu0 0.0
  %5938 = vmatmul.mubr.f32.gmra.mrb[0].mxu0 %v5491
  %v5939 = vpop.f32.mrb[0].mxu0
  %v5940 = vadd.f32 %v5266, %v5939
  %v5941 = vpop.f32.mrb[0].mxu0
  %5942 = vmatprep.mubr.f32.mxu0 0.0
  %5943 = vmatmul.mubr.f32.gmra.mrb[0].mxu0 %v5494
  %v5944 = vpop.f32.mrb[0].mxu0
  %v5945 = vadd.f32 %v5266, %v5944
  %v5946 = vpop.f32.mrb[0].mxu0
  %5947 = vmatprep.mubr.f32.mxu0 0.0
  %5948 = vmatmul.mubr.f32.gmra.mrb[0].mxu0 %v5497
  %v5949 = vpop.f32.mrb[0].mxu0
  %v5950 = vadd.f32 %v5266, %v5949
  %v5951 = vpop.f32.mrb[0].mxu0
  %5952 = vdwg.mxu0
  %v5953 = vmax.f32 %v5570, 0.0
  %v5954 = vmax.f32 %v5575, 0.0
  %v5955 = vmax.f32 %v5580, 0.0
  %v5956 = vmax.f32 %v5585, 0.0
  %v5957 = vmax.f32 %v5590, 0.0
  %v5958 = vmax.f32 %v5595, 0.0
  %v5959 = vmax.f32 %v5600, 0.0
  %v5960 = vmax.f32 %v5605, 0.0
  %v5961 = vmax.f32 %v5610, 0.0
  %v5962 = vmax.f32 %v5615, 0.0
  %v5963 = vmax.f32 %v5620, 0.0
  %v5964 = vmax.f32 %v5625, 0.0
  %v5965 = vmax.f32 %v5630, 0.0
  %v5966 = vmax.f32 %v5635, 0.0
  %v5967 = vmax.f32 %v5640, 0.0
  %v5968 = vmax.f32 %v5645, 0.0
  %v5969 = vmax.f32 %v5650, 0.0
  %v5970 = vmax.f32 %v5655, 0.0
  %v5971 = vmax.f32 %v5660, 0.0
  %v5972 = vmax.f32 %v5665, 0.0
  %v5973 = vmax.f32 %v5670, 0.0
  %v5974 = vmax.f32 %v5675, 0.0
  %v5975 = vmax.f32 %v5680, 0.0
  %v5976 = vmax.f32 %v5685, 0.0
  %v5977 = vmax.f32 %v5690, 0.0
  %v5978 = vmax.f32 %v5695, 0.0
  %v5979 = vmax.f32 %v5700, 0.0
  %v5980 = vmax.f32 %v5705, 0.0
  %v5981 = vmax.f32 %v5710, 0.0
  %v5982 = vmax.f32 %v5715, 0.0
  %v5983 = vmax.f32 %v5720, 0.0
  %v5984 = vmax.f32 %v5725, 0.0
  %v5985 = vmax.f32 %v5730, 0.0
  %v5986 = vmax.f32 %v5735, 0.0
  %v5987 = vmax.f32 %v5740, 0.0
  %v5988 = vmax.f32 %v5745, 0.0
  %v5989 = vmax.f32 %v5750, 0.0
  %v5990 = vmax.f32 %v5755, 0.0
  %v5991 = vmax.f32 %v5760, 0.0
  %v5992 = vmax.f32 %v5765, 0.0
  %v5993 = vmax.f32 %v5770, 0.0
  %v5994 = vmax.f32 %v5775, 0.0
  %v5995 = vmax.f32 %v5780, 0.0
  %v5996 = vmax.f32 %v5785, 0.0
  %v5997 = vmax.f32 %v5790, 0.0
  %v5998 = vmax.f32 %v5795, 0.0
  %v5999 = vmax.f32 %v5800, 0.0
  %v6000 = vmax.f32 %v5805, 0.0
  %v6001 = vmax.f32 %v5810, 0.0
  %v6002 = vmax.f32 %v5815, 0.0
  %v6003 = vmax.f32 %v5820, 0.0
  %v6004 = vmax.f32 %v5825, 0.0
  %v6005 = vmax.f32 %v5830, 0.0
  %v6006 = vmax.f32 %v5835, 0.0
  %v6007 = vmax.f32 %v5840, 0.0
  %v6008 = vmax.f32 %v5845, 0.0
  %v6009 = vmax.f32 %v5850, 0.0
  %v6010 = vmax.f32 %v5855, 0.0
  %v6011 = vmax.f32 %v5860, 0.0
  %v6012 = vmax.f32 %v5865, 0.0
  %v6013 = vmax.f32 %v5870, 0.0
  %v6014 = vmax.f32 %v5875, 0.0
  %v6015 = vmax.f32 %v5880, 0.0
  %v6016 = vmax.f32 %v5885, 0.0
  %v6017 = vmax.f32 %v5890, 0.0
  %v6018 = vmax.f32 %v5895, 0.0
  %v6019 = vmax.f32 %v5900, 0.0
  %v6020 = vmax.f32 %v5905, 0.0
  %v6021 = vmax.f32 %v5910, 0.0
  %v6022 = vmax.f32 %v5915, 0.0
  %v6023 = vmax.f32 %v5920, 0.0
  %v6024 = vmax.f32 %v5925, 0.0
  %v6025 = vmax.f32 %v5930, 0.0
  %v6026 = vmax.f32 %v5935, 0.0
  %v6027 = vmax.f32 %v5940, 0.0
  %v6028 = vmax.f32 %v5945, 0.0
  %v6029 = vmax.f32 %v5950, 0.0
  %v6030 = vmin.f32 %v5953, 6.0
  %v6031 = vmin.f32 %v5954, 6.0
  %v6032 = vmin.f32 %v5955, 6.0
  %v6033 = vmin.f32 %v5956, 6.0
  %v6034 = vmin.f32 %v5957, 6.0
  %v6035 = vmin.f32 %v5958, 6.0
  %v6036 = vmin.f32 %v5959, 6.0
  %v6037 = vmin.f32 %v5960, 6.0
  %v6038 = vmin.f32 %v5961, 6.0
  %v6039 = vmin.f32 %v5962, 6.0
  %v6040 = vmin.f32 %v5963, 6.0
  %v6041 = vmin.f32 %v5964, 6.0
  %v6042 = vmin.f32 %v5965, 6.0
  %v6043 = vmin.f32 %v5966, 6.0
  %v6044 = vmin.f32 %v5967, 6.0
  %v6045 = vmin.f32 %v5968, 6.0
  %v6046 = vmin.f32 %v5969, 6.0
  %v6047 = vmin.f32 %v5970, 6.0
  %v6048 = vmin.f32 %v5971, 6.0
  %v6049 = vmin.f32 %v5972, 6.0
  %v6050 = vmin.f32 %v5973, 6.0
  %v6051 = vmin.f32 %v5974, 6.0
  %v6052 = vmin.f32 %v5975, 6.0
  %v6053 = vmin.f32 %v5976, 6.0
  %v6054 = vmin.f32 %v5977, 6.0
  %v6055 = vmin.f32 %v5978, 6.0
  %v6056 = vmin.f32 %v5979, 6.0
  %v6057 = vmin.f32 %v5980, 6.0
  %v6058 = vmin.f32 %v5981, 6.0
  %v6059 = vmin.f32 %v5982, 6.0
  %v6060 = vmin.f32 %v5983, 6.0
  %v6061 = vmin.f32 %v5984, 6.0
  %v6062 = vmin.f32 %v5985, 6.0
  %v6063 = vmin.f32 %v5986, 6.0
  %v6064 = vmin.f32 %v5987, 6.0
  %v6065 = vmin.f32 %v5988, 6.0
  %v6066 = vmin.f32 %v5989, 6.0
  %v6067 = vmin.f32 %v5990, 6.0
  %v6068 = vmin.f32 %v5991, 6.0
  %v6069 = vmin.f32 %v5992, 6.0
  %v6070 = vmin.f32 %v5993, 6.0
  %v6071 = vmin.f32 %v5994, 6.0
  %v6072 = vmin.f32 %v5995, 6.0
  %v6073 = vmin.f32 %v5996, 6.0
  %v6074 = vmin.f32 %v5997, 6.0
  %v6075 = vmin.f32 %v5998, 6.0
  %v6076 = vmin.f32 %v5999, 6.0
  %v6077 = vmin.f32 %v6000, 6.0
  %v6078 = vmin.f32 %v6001, 6.0
  %v6079 = vmin.f32 %v6002, 6.0
  %v6080 = vmin.f32 %v6003, 6.0
  %v6081 = vmin.f32 %v6004, 6.0
  %v6082 = vmin.f32 %v6005, 6.0
  %v6083 = vmin.f32 %v6006, 6.0
  %v6084 = vmin.f32 %v6007, 6.0
  %v6085 = vmin.f32 %v6008, 6.0
  %v6086 = vmin.f32 %v6009, 6.0
  %v6087 = vmin.f32 %v6010, 6.0
  %v6088 = vmin.f32 %v6011, 6.0
  %v6089 = vmin.f32 %v6012, 6.0
  %v6090 = vmin.f32 %v6013, 6.0
  %v6091 = vmin.f32 %v6014, 6.0
  %v6092 = vmin.f32 %v6015, 6.0
  %v6093 = vmin.f32 %v6016, 6.0
  %v6094 = vmin.f32 %v6017, 6.0
  %v6095 = vmin.f32 %v6018, 6.0
  %v6096 = vmin.f32 %v6019, 6.0
  %v6097 = vmin.f32 %v6020, 6.0
  %v6098 = vmin.f32 %v6021, 6.0
  %v6099 = vmin.f32 %v6022, 6.0
  %v6100 = vmin.f32 %v6023, 6.0
  %v6101 = vmin.f32 %v6024, 6.0
  %v6102 = vmin.f32 %v6025, 6.0
  %v6103 = vmin.f32 %v6026, 6.0
  %v6104 = vmin.f32 %v6027, 6.0
  %v6105 = vmin.f32 %v6028, 6.0
  %v6106 = vmin.f32 %v6029, 6.0
  %v6107 = vmul.f32 %v6030, %v1701
  %v6108 = vmul.f32 %v6031, %v1702
  %v6109 = vmul.f32 %v6032, %v1703
  %v6110 = vmul.f32 %v6033, %v1704
  %v6111 = vmul.f32 %v6034, %v1705
  %v6112 = vmul.f32 %v6035, %v1706
  %v6113 = vmul.f32 %v6036, %v1707
  %v6114 = vmul.f32 %v6037, %v1708
  %v6115 = vmul.f32 %v6038, %v1709
  %v6116 = vmul.f32 %v6039, %v1710
  %v6117 = vmul.f32 %v6040, %v1711
  %v6118 = vmul.f32 %v6041, %v1712
  %v6119 = vmul.f32 %v6042, %v1713
  %v6120 = vmul.f32 %v6043, %v1714
  %v6121 = vmul.f32 %v6044, %v1715
  %v6122 = vmul.f32 %v6045, %v1716
  %v6123 = vmul.f32 %v6046, %v1717
  %v6124 = vmul.f32 %v6047, %v1718
  %v6125 = vmul.f32 %v6048, %v1719
  %v6126 = vmul.f32 %v6049, %v1720
  %v6127 = vmul.f32 %v6050, %v1721
  %v6128 = vmul.f32 %v6051, %v1722
  %v6129 = vmul.f32 %v6052, %v1723
  %v6130 = vmul.f32 %v6053, %v1724
  %v6131 = vmul.f32 %v6054, %v1725
  %v6132 = vmul.f32 %v6055, %v1726
  %v6133 = vmul.f32 %v6056, %v1727
  %v6134 = vmul.f32 %v6057, %v1728
  %v6135 = vmul.f32 %v6058, %v1729
  %v6136 = vmul.f32 %v6059, %v1730
  %v6137 = vmul.f32 %v6060, %v1731
  %v6138 = vmul.f32 %v6061, %v1732
  %v6139 = vmul.f32 %v6062, %v1733
  %v6140 = vmul.f32 %v6063, %v1734
  %v6141 = vmul.f32 %v6064, %v1735
  %v6142 = vmul.f32 %v6065, %v1736
  %v6143 = vmul.f32 %v6066, %v1737
  %v6144 = vmul.f32 %v6067, %v1738
  %v6145 = vmul.f32 %v6068, %v1739
  %v6146 = vmul.f32 %v6069, %v1740
  %v6147 = vmul.f32 %v6070, %v1741
  %v6148 = vmul.f32 %v6071, %v1742
  %v6149 = vmul.f32 %v6072, %v1743
  %v6150 = vmul.f32 %v6073, %v1744
  %v6151 = vmul.f32 %v6074, %v1745
  %v6152 = vmul.f32 %v6075, %v1746
  %v6153 = vmul.f32 %v6076, %v1747
  %v6154 = vmul.f32 %v6077, %v1748
  %v6155 = vmul.f32 %v6078, %v1749
  %v6156 = vmul.f32 %v6079, %v1750
  %v6157 = vmul.f32 %v6080, %v1751
  %v6158 = vmul.f32 %v6081, %v1752
  %v6159 = vmul.f32 %v6082, %v1753
  %v6160 = vmul.f32 %v6083, %v1754
  %v6161 = vmul.f32 %v6084, %v1755
  %v6162 = vmul.f32 %v6085, %v1756
  %v6163 = vmul.f32 %v6086, %v1757
  %v6164 = vmul.f32 %v6087, %v1758
  %v6165 = vmul.f32 %v6088, %v1759
  %v6166 = vmul.f32 %v6089, %v1760
  %v6167 = vmul.f32 %v6090, %v1761
  %v6168 = vmul.f32 %v6091, %v1762
  %v6169 = vmul.f32 %v6092, %v1763
  %v6170 = vmul.f32 %v6093, %v1764
  %v6171 = vmul.f32 %v6094, %v1765
  %v6172 = vmul.f32 %v6095, %v1766
  %v6173 = vmul.f32 %v6096, %v1767
  %v6174 = vmul.f32 %v6097, %v1768
  %v6175 = vmul.f32 %v6098, %v1769
  %v6176 = vmul.f32 %v6099, %v1770
  %v6177 = vmul.f32 %v6100, %v1771
  %v6178 = vmul.f32 %v6101, %v1772
  %v6179 = vmul.f32 %v6102, %v1773
  %v6180 = vmul.f32 %v6103, %v1774
  %v6181 = vmul.f32 %v6104, %v1775
  %v6182 = vmul.f32 %v6105, %v1776
  %v6183 = vmul.f32 %v6106, %v1777
  %v6184 = vsel %vm55, %v6107, 0.0
  %v6185 = vsel %vm55, %v6108, 0.0
  %v6186 = vadd.f32 %v6184, %v6185
  %v6187 = vsel %vm55, %v6109, 0.0
  %v6188 = vadd.f32 %v6186, %v6187
  %v6189 = vsel %vm55, %v6110, 0.0
  %v6190 = vadd.f32 %v6188, %v6189
  %v6191 = vsel %vm55, %v6111, 0.0
  %v6192 = vadd.f32 %v6190, %v6191
  %v6193 = vsel %vm55, %v6112, 0.0
  %v6194 = vadd.f32 %v6192, %v6193
  %v6195 = vsel %vm55, %v6113, 0.0
  %v6196 = vadd.f32 %v6194, %v6195
  %v6197 = vsel %vm55, %v6114, 0.0
  %v6198 = vadd.f32 %v6196, %v6197
  %v6199 = vsel %vm55, %v6115, 0.0
  %v6200 = vadd.f32 %v6198, %v6199
  %v6201 = vsel %vm55, %v6116, 0.0
  %v6202 = vadd.f32 %v6200, %v6201
  %v6203 = vsel %vm55, %v6117, 0.0
  %v6204 = vadd.f32 %v6202, %v6203
  %v6205 = vsel %vm55, %v6118, 0.0
  %v6206 = vadd.f32 %v6204, %v6205
  %v6207 = vsel %vm55, %v6119, 0.0
  %v6208 = vadd.f32 %v6206, %v6207
  %v6209 = vsel %vm55, %v6120, 0.0
  %v6210 = vadd.f32 %v6208, %v6209
  %v6211 = vsel %vm55, %v6121, 0.0
  %v6212 = vadd.f32 %v6210, %v6211
  %v6213 = vsel %vm55, %v6122, 0.0
  %v6214 = vadd.f32 %v6212, %v6213
  %v6215 = vsel %vm55, %v6123, 0.0
  %v6216 = vadd.f32 %v6214, %v6215
  %v6217 = vsel %vm55, %v6124, 0.0
  %v6218 = vadd.f32 %v6216, %v6217
  %v6219 = vsel %vm55, %v6125, 0.0
  %v6220 = vadd.f32 %v6218, %v6219
  %v6221 = vsel %vm55, %v6126, 0.0
  %v6222 = vadd.f32 %v6220, %v6221
  %v6223 = vsel %vm55, %v6127, 0.0
  %v6224 = vadd.f32 %v6222, %v6223
  %v6225 = vsel %vm55, %v6128, 0.0
  %v6226 = vadd.f32 %v6224, %v6225
  %v6227 = vsel %vm55, %v6129, 0.0
  %v6228 = vadd.f32 %v6226, %v6227
  %v6229 = vsel %vm55, %v6130, 0.0
  %v6230 = vadd.f32 %v6228, %v6229
  %v6231 = vsel %vm55, %v6131, 0.0
  %v6232 = vadd.f32 %v6230, %v6231
  %v6233 = vsel %vm55, %v6132, 0.0
  %v6234 = vadd.f32 %v6232, %v6233
  %v6235 = vsel %vm55, %v6133, 0.0
  %v6236 = vadd.f32 %v6234, %v6235
  %v6237 = vsel %vm55, %v6134, 0.0
  %v6238 = vadd.f32 %v6236, %v6237
  %v6239 = vsel %vm55, %v6135, 0.0
  %v6240 = vadd.f32 %v6238, %v6239
  %v6241 = vsel %vm55, %v6136, 0.0
  %v6242 = vadd.f32 %v6240, %v6241
  %v6243 = vsel %vm55, %v6137, 0.0
  %v6244 = vadd.f32 %v6242, %v6243
  %v6245 = vsel %vm55, %v6138, 0.0
  %v6246 = vadd.f32 %v6244, %v6245
  %v6247 = vsel %vm55, %v6139, 0.0
  %v6248 = vadd.f32 %v6246, %v6247
  %v6249 = vsel %vm55, %v6140, 0.0
  %v6250 = vadd.f32 %v6248, %v6249
  %v6251 = vsel %vm55, %v6141, 0.0
  %v6252 = vadd.f32 %v6250, %v6251
  %v6253 = vsel %vm55, %v6142, 0.0
  %v6254 = vadd.f32 %v6252, %v6253
  %v6255 = vsel %vm55, %v6143, 0.0
  %v6256 = vadd.f32 %v6254, %v6255
  %v6257 = vsel %vm55, %v6144, 0.0
  %v6258 = vadd.f32 %v6256, %v6257
  %v6259 = vsel %vm55, %v6145, 0.0
  %v6260 = vadd.f32 %v6258, %v6259
  %v6261 = vsel %vm55, %v6146, 0.0
  %v6262 = vadd.f32 %v6260, %v6261
  %v6263 = vsel %vm55, %v6147, 0.0
  %v6264 = vadd.f32 %v6262, %v6263
  %v6265 = vsel %vm55, %v6148, 0.0
  %v6266 = vadd.f32 %v6264, %v6265
  %v6267 = vsel %vm55, %v6149, 0.0
  %v6268 = vadd.f32 %v6266, %v6267
  %v6269 = vsel %vm55, %v6150, 0.0
  %v6270 = vadd.f32 %v6268, %v6269
  %v6271 = vsel %vm55, %v6151, 0.0
  %v6272 = vadd.f32 %v6270, %v6271
  %v6273 = vsel %vm55, %v6152, 0.0
  %v6274 = vadd.f32 %v6272, %v6273
  %v6275 = vsel %vm55, %v6153, 0.0
  %v6276 = vadd.f32 %v6274, %v6275
  %v6277 = vsel %vm55, %v6154, 0.0
  %v6278 = vadd.f32 %v6276, %v6277
  %v6279 = vsel %vm55, %v6155, 0.0
  %v6280 = vadd.f32 %v6278, %v6279
  %v6281 = vsel %vm55, %v6156, 0.0
  %v6282 = vadd.f32 %v6280, %v6281
  %v6283 = vsel %vm55, %v6157, 0.0
  %v6284 = vadd.f32 %v6282, %v6283
  %v6285 = vsel %vm55, %v6158, 0.0
  %v6286 = vadd.f32 %v6284, %v6285
  %v6287 = vsel %vm55, %v6159, 0.0
  %v6288 = vadd.f32 %v6286, %v6287
  %v6289 = vsel %vm55, %v6160, 0.0
  %v6290 = vadd.f32 %v6288, %v6289
  %v6291 = vsel %vm55, %v6161, 0.0
  %v6292 = vadd.f32 %v6290, %v6291
  %v6293 = vsel %vm55, %v6162, 0.0
  %v6294 = vadd.f32 %v6292, %v6293
  %v6295 = vsel %vm55, %v6163, 0.0
  %v6296 = vadd.f32 %v6294, %v6295
  %v6297 = vsel %vm55, %v6164, 0.0
  %v6298 = vadd.f32 %v6296, %v6297
  %v6299 = vsel %vm55, %v6165, 0.0
  %v6300 = vadd.f32 %v6298, %v6299
  %v6301 = vsel %vm55, %v6166, 0.0
  %v6302 = vadd.f32 %v6300, %v6301
  %v6303 = vsel %vm55, %v6167, 0.0
  %v6304 = vadd.f32 %v6302, %v6303
  %v6305 = vsel %vm55, %v6168, 0.0
  %v6306 = vadd.f32 %v6304, %v6305
  %v6307 = vsel %vm55, %v6169, 0.0
  %v6308 = vadd.f32 %v6306, %v6307
  %v6309 = vsel %vm55, %v6170, 0.0
  %v6310 = vadd.f32 %v6308, %v6309
  %v6311 = vsel %vm55, %v6171, 0.0
  %v6312 = vadd.f32 %v6310, %v6311
  %v6313 = vsel %vm55, %v6172, 0.0
  %v6314 = vadd.f32 %v6312, %v6313
  %v6315 = vsel %vm55, %v6173, 0.0
  %v6316 = vadd.f32 %v6314, %v6315
  %v6317 = vsel %vm55, %v6174, 0.0
  %v6318 = vadd.f32 %v6316, %v6317
  %v6319 = vsel %vm55, %v6175, 0.0
  %v6320 = vadd.f32 %v6318, %v6319
  %v6321 = vsel %vm55, %v6176, 0.0
  %v6322 = vadd.f32 %v6320, %v6321
  %v6323 = vsel %vm55, %v6177, 0.0
  %v6324 = vadd.f32 %v6322, %v6323
  %v6325 = vsel %vm55, %v6178, 0.0
  %v6326 = vadd.f32 %v6324, %v6325
  %v6327 = vsel %vm55, %v6179, 0.0
  %v6328 = vadd.f32 %v6326, %v6327
  %v6329 = vsel %vm55, %v6180, 0.0
  %v6330 = vadd.f32 %v6328, %v6329
  %v6331 = vsel %vm55, %v6181, 0.0
  %v6332 = vadd.f32 %v6330, %v6331
  %v6333 = vsel %vm55, %v6182, 0.0
  %v6334 = vadd.f32 %v6332, %v6333
  %vm6335 = vcmask 123904
  %v6336 = vsel %vm6335, %v6183, 0.0
  %v6337 = vadd.f32 %v6334, %v6336
  %v6338 = vrot.slane %v6337, 4
  %v6339 = vadd.f32 %v6337, %v6338
  %v6340 = vrot.slane %v6339, 2
  %v6341 = vadd.f32 %v6339, %v6340
  %v6342 = vrot.slane %v6341, 1
  %v6343 = vadd.f32 %v6341, %v6342
  %v6344 = vmul.f32 %v6343, 0.001953125
  %v6345 = vmul.f32 %v6107, %v6107
  %v6346 = vmul.f32 %v6108, %v6108
  %v6347 = vmul.f32 %v6109, %v6109
  %v6348 = vmul.f32 %v6110, %v6110
  %v6349 = vmul.f32 %v6111, %v6111
  %v6350 = vmul.f32 %v6112, %v6112
  %v6351 = vmul.f32 %v6113, %v6113
  %v6352 = vmul.f32 %v6114, %v6114
  %v6353 = vmul.f32 %v6115, %v6115
  %v6354 = vmul.f32 %v6116, %v6116
  %v6355 = vmul.f32 %v6117, %v6117
  %v6356 = vmul.f32 %v6118, %v6118
  %v6357 = vmul.f32 %v6119, %v6119
  %v6358 = vmul.f32 %v6120, %v6120
  %v6359 = vmul.f32 %v6121, %v6121
  %v6360 = vmul.f32 %v6122, %v6122
  %v6361 = vmul.f32 %v6123, %v6123
  %v6362 = vmul.f32 %v6124, %v6124
  %v6363 = vmul.f32 %v6125, %v6125
  %v6364 = vmul.f32 %v6126, %v6126
  %v6365 = vmul.f32 %v6127, %v6127
  %v6366 = vmul.f32 %v6128, %v6128
  %v6367 = vmul.f32 %v6129, %v6129
  %v6368 = vmul.f32 %v6130, %v6130
  %v6369 = vmul.f32 %v6131, %v6131
  %v6370 = vmul.f32 %v6132, %v6132
  %v6371 = vmul.f32 %v6133, %v6133
  %v6372 = vmul.f32 %v6134, %v6134
  %v6373 = vmul.f32 %v6135, %v6135
  %v6374 = vmul.f32 %v6136, %v6136
  %v6375 = vmul.f32 %v6137, %v6137
  %v6376 = vmul.f32 %v6138, %v6138
  %v6377 = vmul.f32 %v6139, %v6139
  %v6378 = vmul.f32 %v6140, %v6140
  %v6379 = vmul.f32 %v6141, %v6141
  %v6380 = vmul.f32 %v6142, %v6142
  %v6381 = vmul.f32 %v6143, %v6143
  %v6382 = vmul.f32 %v6144, %v6144
  %v6383 = vmul.f32 %v6145, %v6145
  %v6384 = vmul.f32 %v6146, %v6146
  %v6385 = vmul.f32 %v6147, %v6147
  %v6386 = vmul.f32 %v6148, %v6148
  %v6387 = vmul.f32 %v6149, %v6149
  %v6388 = vmul.f32 %v6150, %v6150
  %v6389 = vmul.f32 %v6151, %v6151
  %v6390 = vmul.f32 %v6152, %v6152
  %v6391 = vmul.f32 %v6153, %v6153
  %v6392 = vmul.f32 %v6154, %v6154
  %v6393 = vmul.f32 %v6155, %v6155
  %v6394 = vmul.f32 %v6156, %v6156
  %v6395 = vmul.f32 %v6157, %v6157
  %v6396 = vmul.f32 %v6158, %v6158
  %v6397 = vmul.f32 %v6159, %v6159
  %v6398 = vmul.f32 %v6160, %v6160
  %v6399 = vmul.f32 %v6161, %v6161
  %v6400 = vmul.f32 %v6162, %v6162
  %v6401 = vmul.f32 %v6163, %v6163
  %v6402 = vmul.f32 %v6164, %v6164
  %v6403 = vmul.f32 %v6165, %v6165
  %v6404 = vmul.f32 %v6166, %v6166
  %v6405 = vmul.f32 %v6167, %v6167
  %v6406 = vmul.f32 %v6168, %v6168
  %v6407 = vmul.f32 %v6169, %v6169
  %v6408 = vmul.f32 %v6170, %v6170
  %v6409 = vmul.f32 %v6171, %v6171
  %v6410 = vmul.f32 %v6172, %v6172
  %v6411 = vmul.f32 %v6173, %v6173
  %v6412 = vmul.f32 %v6174, %v6174
  %v6413 = vmul.f32 %v6175, %v6175
  %v6414 = vmul.f32 %v6176, %v6176
  %v6415 = vmul.f32 %v6177, %v6177
  %v6416 = vmul.f32 %v6178, %v6178
  %v6417 = vmul.f32 %v6179, %v6179
  %v6418 = vmul.f32 %v6180, %v6180
  %v6419 = vmul.f32 %v6181, %v6181
  %v6420 = vmul.f32 %v6182, %v6182
  %v6421 = vmul.f32 %v6183, %v6183
  %v6422 = vsel %vm55, %v6345, 0.0
  %v6423 = vsel %vm55, %v6346, 0.0
  %v6424 = vadd.f32 %v6422, %v6423
  %v6425 = vsel %vm55, %v6347, 0.0
  %v6426 = vadd.f32 %v6424, %v6425
  %v6427 = vsel %vm55, %v6348, 0.0
  %v6428 = vadd.f32 %v6426, %v6427
  %v6429 = vsel %vm55, %v6349, 0.0
  %v6430 = vadd.f32 %v6428, %v6429
  %v6431 = vsel %vm55, %v6350, 0.0
  %v6432 = vadd.f32 %v6430, %v6431
  %v6433 = vsel %vm55, %v6351, 0.0
  %v6434 = vadd.f32 %v6432, %v6433
  %v6435 = vsel %vm55, %v6352, 0.0
  %v6436 = vadd.f32 %v6434, %v6435
  %v6437 = vsel %vm55, %v6353, 0.0
  %v6438 = vadd.f32 %v6436, %v6437
  %v6439 = vsel %vm55, %v6354, 0.0
  %v6440 = vadd.f32 %v6438, %v6439
  %v6441 = vsel %vm55, %v6355, 0.0
  %v6442 = vadd.f32 %v6440, %v6441
  %v6443 = vsel %vm55, %v6356, 0.0
  %v6444 = vadd.f32 %v6442, %v6443
  %v6445 = vsel %vm55, %v6357, 0.0
  %v6446 = vadd.f32 %v6444, %v6445
  %v6447 = vsel %vm55, %v6358, 0.0
  %v6448 = vadd.f32 %v6446, %v6447
  %v6449 = vsel %vm55, %v6359, 0.0
  %v6450 = vadd.f32 %v6448, %v6449
  %v6451 = vsel %vm55, %v6360, 0.0
  %v6452 = vadd.f32 %v6450, %v6451
  %v6453 = vsel %vm55, %v6361, 0.0
  %v6454 = vadd.f32 %v6452, %v6453
  %v6455 = vsel %vm55, %v6362, 0.0
  %v6456 = vadd.f32 %v6454, %v6455
  %v6457 = vsel %vm55, %v6363, 0.0
  %v6458 = vadd.f32 %v6456, %v6457
  %v6459 = vsel %vm55, %v6364, 0.0
  %v6460 = vadd.f32 %v6458, %v6459
  %v6461 = vsel %vm55, %v6365, 0.0
  %v6462 = vadd.f32 %v6460, %v6461
  %v6463 = vsel %vm55, %v6366, 0.0
  %v6464 = vadd.f32 %v6462, %v6463
  %v6465 = vsel %vm55, %v6367, 0.0
  %v6466 = vadd.f32 %v6464, %v6465
  %v6467 = vsel %vm55, %v6368, 0.0
  %v6468 = vadd.f32 %v6466, %v6467
  %v6469 = vsel %vm55, %v6369, 0.0
  %v6470 = vadd.f32 %v6468, %v6469
  %v6471 = vsel %vm55, %v6370, 0.0
  %v6472 = vadd.f32 %v6470, %v6471
  %v6473 = vsel %vm55, %v6371, 0.0
  %v6474 = vadd.f32 %v6472, %v6473
  %v6475 = vsel %vm55, %v6372, 0.0
  %v6476 = vadd.f32 %v6474, %v6475
  %v6477 = vsel %vm55, %v6373, 0.0
  %v6478 = vadd.f32 %v6476, %v6477
  %v6479 = vsel %vm55, %v6374, 0.0
  %v6480 = vadd.f32 %v6478, %v6479
  %v6481 = vsel %vm55, %v6375, 0.0
  %v6482 = vadd.f32 %v6480, %v6481
  %v6483 = vsel %vm55, %v6376, 0.0
  %v6484 = vadd.f32 %v6482, %v6483
  %v6485 = vsel %vm55, %v6377, 0.0
  %v6486 = vadd.f32 %v6484, %v6485
  %v6487 = vsel %vm55, %v6378, 0.0
  %v6488 = vadd.f32 %v6486, %v6487
  %v6489 = vsel %vm55, %v6379, 0.0
  %v6490 = vadd.f32 %v6488, %v6489
  %v6491 = vsel %vm55, %v6380, 0.0
  %v6492 = vadd.f32 %v6490, %v6491
  %v6493 = vsel %vm55, %v6381, 0.0
  %v6494 = vadd.f32 %v6492, %v6493
  %v6495 = vsel %vm55, %v6382, 0.0
  %v6496 = vadd.f32 %v6494, %v6495
  %v6497 = vsel %vm55, %v6383, 0.0
  %v6498 = vadd.f32 %v6496, %v6497
  %v6499 = vsel %vm55, %v6384, 0.0
  %v6500 = vadd.f32 %v6498, %v6499
  %v6501 = vsel %vm55, %v6385, 0.0
  %v6502 = vadd.f32 %v6500, %v6501
  %v6503 = vsel %vm55, %v6386, 0.0
  %v6504 = vadd.f32 %v6502, %v6503
  %v6505 = vsel %vm55, %v6387, 0.0
  %v6506 = vadd.f32 %v6504, %v6505
  %v6507 = vsel %vm55, %v6388, 0.0
  %v6508 = vadd.f32 %v6506, %v6507
  %v6509 = vsel %vm55, %v6389, 0.0
  %v6510 = vadd.f32 %v6508, %v6509
  %v6511 = vsel %vm55, %v6390, 0.0
  %v6512 = vadd.f32 %v6510, %v6511
  %v6513 = vsel %vm55, %v6391, 0.0
  %v6514 = vadd.f32 %v6512, %v6513
  %v6515 = vsel %vm55, %v6392, 0.0
  %v6516 = vadd.f32 %v6514, %v6515
  %v6517 = vsel %vm55, %v6393, 0.0
  %v6518 = vadd.f32 %v6516, %v6517
  %v6519 = vsel %vm55, %v6394, 0.0
  %v6520 = vadd.f32 %v6518, %v6519
  %v6521 = vsel %vm55, %v6395, 0.0
  %v6522 = vadd.f32 %v6520, %v6521
  %v6523 = vsel %vm55, %v6396, 0.0
  %v6524 = vadd.f32 %v6522, %v6523
  %v6525 = vsel %vm55, %v6397, 0.0
  %v6526 = vadd.f32 %v6524, %v6525
  %v6527 = vsel %vm55, %v6398, 0.0
  %v6528 = vadd.f32 %v6526, %v6527
  %v6529 = vsel %vm55, %v6399, 0.0
  %v6530 = vadd.f32 %v6528, %v6529
  %v6531 = vsel %vm55, %v6400, 0.0
  %v6532 = vadd.f32 %v6530, %v6531
  %v6533 = vsel %vm55, %v6401, 0.0
  %v6534 = vadd.f32 %v6532, %v6533
  %v6535 = vsel %vm55, %v6402, 0.0
  %v6536 = vadd.f32 %v6534, %v6535
  %v6537 = vsel %vm55, %v6403, 0.0
  %v6538 = vadd.f32 %v6536, %v6537
  %v6539 = vsel %vm55, %v6404, 0.0
  %v6540 = vadd.f32 %v6538, %v6539
  %v6541 = vsel %vm55, %v6405, 0.0
  %v6542 = vadd.f32 %v6540, %v6541
  %v6543 = vsel %vm55, %v6406, 0.0
  %v6544 = vadd.f32 %v6542, %v6543
  %v6545 = vsel %vm55, %v6407, 0.0
  %v6546 = vadd.f32 %v6544, %v6545
  %v6547 = vsel %vm55, %v6408, 0.0
  %v6548 = vadd.f32 %v6546, %v6547
  %v6549 = vsel %vm55, %v6409, 0.0
  %v6550 = vadd.f32 %v6548, %v6549
  %v6551 = vsel %vm55, %v6410, 0.0
  %v6552 = vadd.f32 %v6550, %v6551
  %v6553 = vsel %vm55, %v6411, 0.0
  %v6554 = vadd.f32 %v6552, %v6553
  %v6555 = vsel %vm55, %v6412, 0.0
  %v6556 = vadd.f32 %v6554, %v6555
  %v6557 = vsel %vm55, %v6413, 0.0
  %v6558 = vadd.f32 %v6556, %v6557
  %v6559 = vsel %vm55, %v6414, 0.0
  %v6560 = vadd.f32 %v6558, %v6559
  %v6561 = vsel %vm55, %v6415, 0.0
  %v6562 = vadd.f32 %v6560, %v6561
  %v6563 = vsel %vm55, %v6416, 0.0
  %v6564 = vadd.f32 %v6562, %v6563
  %v6565 = vsel %vm55, %v6417, 0.0
  %v6566 = vadd.f32 %v6564, %v6565
  %v6567 = vsel %vm55, %v6418, 0.0
  %v6568 = vadd.f32 %v6566, %v6567
  %v6569 = vsel %vm55, %v6419, 0.0
  %v6570 = vadd.f32 %v6568, %v6569
  %v6571 = vsel %vm55, %v6420, 0.0
  %v6572 = vadd.f32 %v6570, %v6571
  %v6573 = vsel %vm6335, %v6421, 0.0
  %v6574 = vadd.f32 %v6572, %v6573
  %v6575 = vrot.slane %v6574, 4
  %v6576 = vadd.f32 %v6574, %v6575
  %v6577 = vrot.slane %v6576, 2
  %v6578 = vadd.f32 %v6576, %v6577
  %v6579 = vrot.slane %v6578, 1
  %v6580 = vadd.f32 %v6578, %v6579
  %v6581 = vmul.f32 %v6580, 0.001953125
  %v6582 = vmul.f32 %v6344, %v6344
  %v6583 = vsub.f32 %v6581, %v6582
  %v6584 = vadd.f32 %v6583, 1e-05
  %v6585 = vrsqrt.pop %v6584
  %v6586 = vmul.f32 %v46, %v6585
  %v6587 = vlaneseq
  %v6588 = vshrl.u32 %v6587, 7
  %v6589 = vsub.s32 0, %v6588
  %v6590 = vrot.slane %v6586, %v6589
  %v6591 = vmul.f32 %v6107, %v6590
  %v6592 = vmul.f32 %v6108, %v6590
  %v6593 = vmul.f32 %v6109, %v6590
  %v6594 = vmul.f32 %v6110, %v6590
  %v6595 = vmul.f32 %v6111, %v6590
  %v6596 = vmul.f32 %v6112, %v6590
  %v6597 = vmul.f32 %v6113, %v6590
  %v6598 = vmul.f32 %v6114, %v6590
  %v6599 = vmul.f32 %v6115, %v6590
  %v6600 = vmul.f32 %v6116, %v6590
  %v6601 = vmul.f32 %v6117, %v6590
  %v6602 = vmul.f32 %v6118, %v6590
  %v6603 = vmul.f32 %v6119, %v6590
  %v6604 = vmul.f32 %v6120, %v6590
  %v6605 = vmul.f32 %v6121, %v6590
  %v6606 = vmul.f32 %v6122, %v6590
  %v6607 = vmul.f32 %v6123, %v6590
  %v6608 = vmul.f32 %v6124, %v6590
  %v6609 = vmul.f32 %v6125, %v6590
  %v6610 = vmul.f32 %v6126, %v6590
  %v6611 = vmul.f32 %v6127, %v6590
  %v6612 = vmul.f32 %v6128, %v6590
  %v6613 = vmul.f32 %v6129, %v6590
  %v6614 = vmul.f32 %v6130, %v6590
  %v6615 = vmul.f32 %v6131, %v6590
  %v6616 = vmul.f32 %v6132, %v6590
  %v6617 = vmul.f32 %v6133, %v6590
  %v6618 = vmul.f32 %v6134, %v6590
  %v6619 = vmul.f32 %v6135, %v6590
  %v6620 = vmul.f32 %v6136, %v6590
  %v6621 = vmul.f32 %v6137, %v6590
  %v6622 = vmul.f32 %v6138, %v6590
  %v6623 = vmul.f32 %v6139, %v6590
  %v6624 = vmul.f32 %v6140, %v6590
  %v6625 = vmul.f32 %v6141, %v6590
  %v6626 = vmul.f32 %v6142, %v6590
  %v6627 = vmul.f32 %v6143, %v6590
  %v6628 = vmul.f32 %v6144, %v6590
  %v6629 = vmul.f32 %v6145, %v6590
  %v6630 = vmul.f32 %v6146, %v6590
  %v6631 = vmul.f32 %v6147, %v6590
  %v6632 = vmul.f32 %v6148, %v6590
  %v6633 = vmul.f32 %v6149, %v6590
  %v6634 = vmul.f32 %v6150, %v6590
  %v6635 = vmul.f32 %v6151, %v6590
  %v6636 = vmul.f32 %v6152, %v6590
  %v6637 = vmul.f32 %v6153, %v6590
  %v6638 = vmul.f32 %v6154, %v6590
  %v6639 = vmul.f32 %v6155, %v6590
  %v6640 = vmul.f32 %v6156, %v6590
  %v6641 = vmul.f32 %v6157, %v6590
  %v6642 = vmul.f32 %v6158, %v6590
  %v6643 = vmul.f32 %v6159, %v6590
  %v6644 = vmul.f32 %v6160, %v6590
  %v6645 = vmul.f32 %v6161, %v6590
  %v6646 = vmul.f32 %v6162, %v6590
  %v6647 = vmul.f32 %v6163, %v6590
  %v6648 = vmul.f32 %v6164, %v6590
  %v6649 = vmul.f32 %v6165, %v6590
  %v6650 = vmul.f32 %v6166, %v6590
  %v6651 = vmul.f32 %v6167, %v6590
  %v6652 = vmul.f32 %v6168, %v6590
  %v6653 = vmul.f32 %v6169, %v6590
  %v6654 = vmul.f32 %v6170, %v6590
  %v6655 = vmul.f32 %v6171, %v6590
  %v6656 = vmul.f32 %v6172, %v6590
  %v6657 = vmul.f32 %v6173, %v6590
  %v6658 = vmul.f32 %v6174, %v6590
  %v6659 = vmul.f32 %v6175, %v6590
  %v6660 = vmul.f32 %v6176, %v6590
  %v6661 = vmul.f32 %v6177, %v6590
  %v6662 = vmul.f32 %v6178, %v6590
  %v6663 = vmul.f32 %v6179, %v6590
  %v6664 = vmul.f32 %v6180, %v6590
  %v6665 = vmul.f32 %v6181, %v6590
  %v6666 = vmul.f32 %v6182, %v6590
  %v6667 = vmul.f32 %v6183, %v6590
  %v6668 = vmul.f32 %v6344, %v6586
  %v6669 = vsub.f32 %v47, %v6668
  %v6670 = vlaneseq
  %v6671 = vshrl.u32 %v6670, 7
  %v6672 = vsub.s32 0, %v6671
  %v6673 = vrot.slane %v6669, %v6672
  %v6674 = vadd.f32 %v6591, %v6673
  %v6675 = vadd.f32 %v6592, %v6673
  %v6676 = vadd.f32 %v6593, %v6673
  %v6677 = vadd.f32 %v6594, %v6673
  %v6678 = vadd.f32 %v6595, %v6673
  %v6679 = vadd.f32 %v6596, %v6673
  %v6680 = vadd.f32 %v6597, %v6673
  %v6681 = vadd.f32 %v6598, %v6673
  %v6682 = vadd.f32 %v6599, %v6673
  %v6683 = vadd.f32 %v6600, %v6673
  %v6684 = vadd.f32 %v6601, %v6673
  %v6685 = vadd.f32 %v6602, %v6673
  %v6686 = vadd.f32 %v6603, %v6673
  %v6687 = vadd.f32 %v6604, %v6673
  %v6688 = vadd.f32 %v6605, %v6673
  %v6689 = vadd.f32 %v6606, %v6673
  %v6690 = vadd.f32 %v6607, %v6673
  %v6691 = vadd.f32 %v6608, %v6673
  %v6692 = vadd.f32 %v6609, %v6673
  %v6693 = vadd.f32 %v6610, %v6673
  %v6694 = vadd.f32 %v6611, %v6673
  %v6695 = vadd.f32 %v6612, %v6673
  %v6696 = vadd.f32 %v6613, %v6673
  %v6697 = vadd.f32 %v6614, %v6673
  %v6698 = vadd.f32 %v6615, %v6673
  %v6699 = vadd.f32 %v6616, %v6673
  %v6700 = vadd.f32 %v6617, %v6673
  %v6701 = vadd.f32 %v6618, %v6673
  %v6702 = vadd.f32 %v6619, %v6673
  %v6703 = vadd.f32 %v6620, %v6673
  %v6704 = vadd.f32 %v6621, %v6673
  %v6705 = vadd.f32 %v6622, %v6673
  %v6706 = vadd.f32 %v6623, %v6673
  %v6707 = vadd.f32 %v6624, %v6673
  %v6708 = vadd.f32 %v6625, %v6673
  %v6709 = vadd.f32 %v6626, %v6673
  %v6710 = vadd.f32 %v6627, %v6673
  %v6711 = vadd.f32 %v6628, %v6673
  %v6712 = vadd.f32 %v6629, %v6673
  %v6713 = vadd.f32 %v6630, %v6673
  %v6714 = vadd.f32 %v6631, %v6673
  %v6715 = vadd.f32 %v6632, %v6673
  %v6716 = vadd.f32 %v6633, %v6673
  %v6717 = vadd.f32 %v6634, %v6673
  %v6718 = vadd.f32 %v6635, %v6673
  %v6719 = vadd.f32 %v6636, %v6673
  %v6720 = vadd.f32 %v6637, %v6673
  %v6721 = vadd.f32 %v6638, %v6673
  %v6722 = vadd.f32 %v6639, %v6673
  %v6723 = vadd.f32 %v6640, %v6673
  %v6724 = vadd.f32 %v6641, %v6673
  %v6725 = vadd.f32 %v6642, %v6673
  %v6726 = vadd.f32 %v6643, %v6673
  %v6727 = vadd.f32 %v6644, %v6673
  %v6728 = vadd.f32 %v6645, %v6673
  %v6729 = vadd.f32 %v6646, %v6673
  %v6730 = vadd.f32 %v6647, %v6673
  %v6731 = vadd.f32 %v6648, %v6673
  %v6732 = vadd.f32 %v6649, %v6673
  %v6733 = vadd.f32 %v6650, %v6673
  %v6734 = vadd.f32 %v6651, %v6673
  %v6735 = vadd.f32 %v6652, %v6673
  %v6736 = vadd.f32 %v6653, %v6673
  %v6737 = vadd.f32 %v6654, %v6673
  %v6738 = vadd.f32 %v6655, %v6673
  %v6739 = vadd.f32 %v6656, %v6673
  %v6740 = vadd.f32 %v6657, %v6673
  %v6741 = vadd.f32 %v6658, %v6673
  %v6742 = vadd.f32 %v6659, %v6673
  %v6743 = vadd.f32 %v6660, %v6673
  %v6744 = vadd.f32 %v6661, %v6673
  %v6745 = vadd.f32 %v6662, %v6673
  %v6746 = vadd.f32 %v6663, %v6673
  %v6747 = vadd.f32 %v6664, %v6673
  %v6748 = vadd.f32 %v6665, %v6673
  %v6749 = vadd.f32 %v6666, %v6673
  %v6750 = vadd.f32 %v6667, %v6673
  %6751 = vst.msk [vmem:[#allocation2 + $0x18] sm:$0xff] %vm55, %v6674
  %6752 = vst.msk [vmem:[#allocation2 + $0x20] sm:$0xff] %vm55, %v6675
  %6753 = vst.msk [vmem:[#allocation2 + $0x28] sm:$0xff] %vm55, %v6676
  %6754 = vst.msk [vmem:[#allocation2 + $0x30] sm:$0xff] %vm55, %v6677
  %6755 = vst.msk [vmem:[#allocation2 + $0x38] sm:$0xff] %vm55, %v6678
  %6756 = vst.msk [vmem:[#allocation2 + $0x40] sm:$0xff] %vm55, %v6679
  %6757 = vst.msk [vmem:[#allocation2 + $0x48] sm:$0xff] %vm55, %v6680
  %6758 = vst.msk [vmem:[#allocation2 + $0x50] sm:$0xff] %vm55, %v6681
  %6759 = vst.msk [vmem:[#allocation2 + $0x58] sm:$0xff] %vm55, %v6682
  %6760 = vst.msk [vmem:[#allocation2 + $0x60] sm:$0xff] %vm55, %v6683
  %6761 = vst.msk [vmem:[#allocation2 + $0x68] sm:$0xff] %vm55, %v6684
  %6762 = vst.msk [vmem:[#allocation2 + $0x70] sm:$0xff] %vm55, %v6685
  %6763 = vst.msk [vmem:[#allocation2 + $0x78] sm:$0xff] %vm55, %v6686
  %6764 = vst.msk [vmem:[#allocation2 + $0x80] sm:$0xff] %vm55, %v6687
  %6765 = vst.msk [vmem:[#allocation2 + $0x88] sm:$0xff] %vm55, %v6688
  %6766 = vst.msk [vmem:[#allocation2 + $0x90] sm:$0xff] %vm55, %v6689
  %6767 = vst.msk [vmem:[#allocation2 + $0x98] sm:$0xff] %vm55, %v6690
  %6768 = vst.msk [vmem:[#allocation2 + $0xa0] sm:$0xff] %vm55, %v6691
  %6769 = vst.msk [vmem:[#allocation2 + $0xa8] sm:$0xff] %vm55, %v6692
  %6770 = vst.msk [vmem:[#allocation2 + $0xb0] sm:$0xff] %vm55, %v6693
  %6771 = vst.msk [vmem:[#allocation2 + $0xb8] sm:$0xff] %vm55, %v6694
  %6772 = vst.msk [vmem:[#allocation2 + $0xc0] sm:$0xff] %vm55, %v6695
  %6773 = vst.msk [vmem:[#allocation2 + $0xc8] sm:$0xff] %vm55, %v6696
  %6774 = vst.msk [vmem:[#allocation2 + $0xd0] sm:$0xff] %vm55, %v6697
  %6775 = vst.msk [vmem:[#allocation2 + $0xd8] sm:$0xff] %vm55, %v6698
  %6776 = vst.msk [vmem:[#allocation2 + $0xe0] sm:$0xff] %vm55, %v6699
  %6777 = vst.msk [vmem:[#allocation2 + $0xe8] sm:$0xff] %vm55, %v6700
  %6778 = vst.msk [vmem:[#allocation2 + $0xf0] sm:$0xff] %vm55, %v6701
  %6779 = vst.msk [vmem:[#allocation2 + $0xf8] sm:$0xff] %vm55, %v6702
  %6780 = vst.msk [vmem:[#allocation2 + $0x100] sm:$0xff] %vm55, %v6703
  %6781 = vst.msk [vmem:[#allocation2 + $0x108] sm:$0xff] %vm55, %v6704
  %6782 = vst.msk [vmem:[#allocation2 + $0x110] sm:$0xff] %vm55, %v6705
  %6783 = vst.msk [vmem:[#allocation2 + $0x118] sm:$0xff] %vm55, %v6706
  %6784 = vst.msk [vmem:[#allocation2 + $0x120] sm:$0xff] %vm55, %v6707
  %6785 = vst.msk [vmem:[#allocation2 + $0x128] sm:$0xff] %vm55, %v6708
  %6786 = vst.msk [vmem:[#allocation2 + $0x130] sm:$0xff] %vm55, %v6709
  %6787 = vst.msk [vmem:[#allocation2 + $0x138] sm:$0xff] %vm55, %v6710
  %6788 = vst.msk [vmem:[#allocation2 + $0x140] sm:$0xff] %vm55, %v6711
  %6789 = vst.msk [vmem:[#allocation2 + $0x148] sm:$0xff] %vm55, %v6712
  %6790 = vst.msk [vmem:[#allocation2 + $0x150] sm:$0xff] %vm55, %v6713
  %6791 = vst.msk [vmem:[#allocation2 + $0x158] sm:$0xff] %vm55, %v6714
  %6792 = vst.msk [vmem:[#allocation2 + $0x160] sm:$0xff] %vm55, %v6715
  %6793 = vst.msk [vmem:[#allocation2 + $0x168] sm:$0xff] %vm55, %v6716
  %6794 = vst.msk [vmem:[#allocation2 + $0x170] sm:$0xff] %vm55, %v6717
  %6795 = vst.msk [vmem:[#allocation2 + $0x178] sm:$0xff] %vm55, %v6718
  %6796 = vst.msk [vmem:[#allocation2 + $0x180] sm:$0xff] %vm55, %v6719
  %6797 = vst.msk [vmem:[#allocation2 + $0x188] sm:$0xff] %vm55, %v6720
  %6798 = vst.msk [vmem:[#allocation2 + $0x190] sm:$0xff] %vm55, %v6721
  %6799 = vst.msk [vmem:[#allocation2 + $0x198] sm:$0xff] %vm55, %v6722
  %6800 = vst.msk [vmem:[#allocation2 + $0x1a0] sm:$0xff] %vm55, %v6723
  %6801 = vst.msk [vmem:[#allocation2 + $0x1a8] sm:$0xff] %vm55, %v6724
  %6802 = vst.msk [vmem:[#allocation2 + $0x1b0] sm:$0xff] %vm55, %v6725
  %6803 = vst.msk [vmem:[#allocation2 + $0x1b8] sm:$0xff] %vm55, %v6726
  %6804 = vst.msk [vmem:[#allocation2 + $0x1c0] sm:$0xff] %vm55, %v6727
  %6805 = vst.msk [vmem:[#allocation2 + $0x1c8] sm:$0xff] %vm55, %v6728
  %6806 = vst.msk [vmem:[#allocation2 + $0x1d0] sm:$0xff] %vm55, %v6729
  %6807 = vst.msk [vmem:[#allocation2 + $0x1d8] sm:$0xff] %vm55, %v6730
  %6808 = vst.msk [vmem:[#allocation2 + $0x1e0] sm:$0xff] %vm55, %v6731
  %6809 = vst.msk [vmem:[#allocation2 + $0x1e8] sm:$0xff] %vm55, %v6732
  %6810 = vst.msk [vmem:[#allocation2 + $0x1f0] sm:$0xff] %vm55, %v6733
  %6811 = vst.msk [vmem:[#allocation2 + $0x1f8] sm:$0xff] %vm55, %v6734
  %6812 = vst.msk [vmem:[#allocation2 + $0x200] sm:$0xff] %vm55, %v6735
  %6813 = vst.msk [vmem:[#allocation2 + $0x208] sm:$0xff] %vm55, %v6736
  %6814 = vst.msk [vmem:[#allocation2 + $0x210] sm:$0xff] %vm55, %v6737
  %6815 = vst.msk [vmem:[#allocation2 + $0x218] sm:$0xff] %vm55, %v6738
  %6816 = vst.msk [vmem:[#allocation2 + $0x220] sm:$0xff] %vm55, %v6739
  %6817 = vst.msk [vmem:[#allocation2 + $0x228] sm:$0xff] %vm55, %v6740
  %6818 = vst.msk [vmem:[#allocation2 + $0x230] sm:$0xff] %vm55, %v6741
  %6819 = vst.msk [vmem:[#allocation2 + $0x238] sm:$0xff] %vm55, %v6742
  %6820 = vst.msk [vmem:[#allocation2 + $0x240] sm:$0xff] %vm55, %v6743
  %6821 = vst.msk [vmem:[#allocation2 + $0x248] sm:$0xff] %vm55, %v6744
  %6822 = vst.msk [vmem:[#allocation2 + $0x250] sm:$0xff] %vm55, %v6745
  %6823 = vst.msk [vmem:[#allocation2 + $0x258] sm:$0xff] %vm55, %v6746
  %6824 = vst.msk [vmem:[#allocation2 + $0x260] sm:$0xff] %vm55, %v6747
  %6825 = vst.msk [vmem:[#allocation2 + $0x268] sm:$0xff] %vm55, %v6748
  %6826 = vst.msk [vmem:[#allocation2 + $0x270] sm:$0xff] %vm55, %v6749
  %6827 = vst.msk [vmem:[#allocation2 + $0x278] sm:$0x3] %vm6335, %v6750
  %s6828 = scalar_lea.vmem [#allocation2], 24
  %v6829 = vld [vmem:[%s6828] ss:$2 sm:$0xff]
  %s6830 = scalar_lea.vmem [#allocation2], 25
  %v6831 = vld [vmem:[%s6830] ss:$2 sm:$0xff]
  %v6832 = vmax.f32 %v6829, %v6831
  %s6833 = scalar_lea.vmem [#allocation2], 42
  %v6834 = vld [vmem:[%s6833] ss:$2 sm:$0xff]
  %s6835 = scalar_lea.vmem [#allocation2], 43
  %v6836 = vld [vmem:[%s6835] ss:$2 sm:$0xff]
  %v6837 = vmax.f32 %v6834, %v6836
  %v6838 = vmax.f32 %v6832, %v6837
  %6839 = vst.msk [vmem:[#allocation2 + $0x29b] sm:$0xff] %vm55, %v6838
  %s6840 = scalar_lea.vmem [#allocation2], 60
  %v6841 = vld [vmem:[%s6840] ss:$2 sm:$0xff]
  %s6842 = scalar_lea.vmem [#allocation2], 61
  %v6843 = vld [vmem:[%s6842] ss:$2 sm:$0xff]
  %v6844 = vmax.f32 %v6841, %v6843
  %s6845 = scalar_lea.vmem [#allocation2], 78
  %v6846 = vld [vmem:[%s6845] ss:$2 sm:$0xff]
  %s6847 = scalar_lea.vmem [#allocation2], 79
  %v6848 = vld [vmem:[%s6847] ss:$2 sm:$0xff]
  %v6849 = vmax.f32 %v6846, %v6848
  %v6850 = vmax.f32 %v6844, %v6849
  %6851 = vst.msk [vmem:[#allocation2 + $0x2a5] sm:$0xff] %vm55, %v6850
  %s6852 = scalar_lea.vmem [#allocation2], 96
  %v6853 = vld [vmem:[%s6852] ss:$2 sm:$0xff]
  %s6854 = scalar_lea.vmem [#allocation2], 97
  %v6855 = vld [vmem:[%s6854] ss:$2 sm:$0xff]
  %v6856 = vmax.f32 %v6853, %v6855
  %s6857 = scalar_lea.vmem [#allocation2], 114
  %v6858 = vld [vmem:[%s6857] ss:$2 sm:$0xff]
  %s6859 = scalar_lea.vmem [#allocation2], 115
  %v6860 = vld [vmem:[%s6859] ss:$2 sm:$0xff]
  %v6861 = vmax.f32 %v6858, %v6860
  %v6862 = vmax.f32 %v6856, %v6861
  %6863 = vst.msk [vmem:[#allocation2 + $0x2af] sm:$0xff] %vm55, %v6862
  %s6864 = scalar_lea.vmem [#allocation2], 132
  %v6865 = vld [vmem:[%s6864] ss:$2 sm:$0xff]
  %s6866 = scalar_lea.vmem [#allocation2], 133
  %v6867 = vld [vmem:[%s6866] ss:$2 sm:$0xff]
  %v6868 = vmax.f32 %v6865, %v6867
  %s6869 = scalar_lea.vmem [#allocation2], 150
  %v6870 = vld [vmem:[%s6869] ss:$2 sm:$0xff]
  %s6871 = scalar_lea.vmem [#allocation2], 151
  %v6872 = vld [vmem:[%s6871] ss:$2 sm:$0xff]
  %v6873 = vmax.f32 %v6870, %v6872
  %v6874 = vmax.f32 %v6868, %v6873
  %6875 = vst.msk [vmem:[#allocation2 + $0x2b9] sm:$0xff] %vm55, %v6874
  %s6876 = scalar_lea.vmem [#allocation2], 168
  %v6877 = vld [vmem:[%s6876] ss:$2 sm:$0xff]
  %s6878 = scalar_lea.vmem [#allocation2], 169
  %v6879 = vld [vmem:[%s6878] ss:$2 sm:$0xff]
  %v6880 = vmax.f32 %v6877, %v6879
  %s6881 = scalar_lea.vmem [#allocation2], 186
  %v6882 = vld [vmem:[%s6881] ss:$2 sm:$0xff]
  %s6883 = scalar_lea.vmem [#allocation2], 187
  %v6884 = vld [vmem:[%s6883] ss:$2 sm:$0xff]
  %v6885 = vmax.f32 %v6882, %v6884
  %v6886 = vmax.f32 %v6880, %v6885
  %6887 = vst.msk [vmem:[#allocation2 + $0x2c3] sm:$0xff] %vm55, %v6886
  %s6888 = scalar_lea.vmem [#allocation2], 204
  %v6889 = vld [vmem:[%s6888] ss:$2 sm:$0xff]
  %s6890 = scalar_lea.vmem [#allocation2], 205
  %v6891 = vld [vmem:[%s6890] ss:$2 sm:$0xff]
  %v6892 = vmax.f32 %v6889, %v6891
  %s6893 = scalar_lea.vmem [#allocation2], 222
  %v6894 = vld [vmem:[%s6893] ss:$2 sm:$0xff]
  %s6895 = scalar_lea.vmem [#allocation2], 223
  %v6896 = vld [vmem:[%s6895] ss:$2 sm:$0xff]
  %v6897 = vmax.f32 %v6894, %v6896
  %v6898 = vmax.f32 %v6892, %v6897
  %6899 = vst.msk [vmem:[#allocation2 + $0x2cd] sm:$0xff] %vm55, %v6898
  %s6900 = scalar_lea.vmem [#allocation2], 240
  %v6901 = vld [vmem:[%s6900] ss:$2 sm:$0xff]
  %s6902 = scalar_lea.vmem [#allocation2], 241
  %v6903 = vld [vmem:[%s6902] ss:$2 sm:$0xff]
  %v6904 = vmax.f32 %v6901, %v6903
  %s6905 = scalar_lea.vmem [#allocation2], 258
  %v6906 = vld [vmem:[%s6905] ss:$2 sm:$0xff]
  %s6907 = scalar_lea.vmem [#allocation2], 259
  %v6908 = vld [vmem:[%s6907] ss:$2 sm:$0xff]
  %v6909 = vmax.f32 %v6906, %v6908
  %v6910 = vmax.f32 %v6904, %v6909
  %6911 = vst.msk [vmem:[#allocation2 + $0x2d7] sm:$0xff] %vm55, %v6910
  %s6912 = scalar_lea.vmem [#allocation2], 276
  %v6913 = vld [vmem:[%s6912] ss:$2 sm:$0xff]
  %s6914 = scalar_lea.vmem [#allocation2], 277
  %v6915 = vld [vmem:[%s6914] ss:$2 sm:$0xff]
  %v6916 = vmax.f32 %v6913, %v6915
  %s6917 = scalar_lea.vmem [#allocation2], 294
  %v6918 = vld [vmem:[%s6917] ss:$2 sm:$0xff]
  %s6919 = scalar_lea.vmem [#allocation2], 295
  %v6920 = vld [vmem:[%s6919] ss:$2 sm:$0xff]
  %v6921 = vmax.f32 %v6918, %v6920
  %v6922 = vmax.f32 %v6916, %v6921
  %6923 = vst.msk [vmem:[#allocation2 + $0x2e1] sm:$0xff] %vm55, %v6922
  %s6924 = scalar_lea.vmem [#allocation2], 348
  %v6925 = vld [vmem:[%s6924] ss:$2 sm:$0xff]
  %s6926 = scalar_lea.vmem [#allocation2], 349
  %v6927 = vld [vmem:[%s6926] ss:$2 sm:$0xff]
  %v6928 = vmax.f32 %v6925, %v6927
  %s6929 = scalar_lea.vmem [#allocation2], 366
  %v6930 = vld [vmem:[%s6929] ss:$2 sm:$0xff]
  %s6931 = scalar_lea.vmem [#allocation2], 367
  %v6932 = vld [vmem:[%s6931] ss:$2 sm:$0xff]
  %v6933 = vmax.f32 %v6930, %v6932
  %v6934 = vmax.f32 %v6928, %v6933
  %6935 = vst.msk [vmem:[#allocation2 + $0x2ff] sm:$0xff] %vm55, %v6934
  %s6936 = scalar_lea.vmem [#allocation2], 384
  %v6937 = vld [vmem:[%s6936] ss:$2 sm:$0xff]
  %s6938 = scalar_lea.vmem [#allocation2], 385
  %v6939 = vld [vmem:[%s6938] ss:$2 sm:$0xff]
  %v6940 = vmax.f32 %v6937, %v6939
  %s6941 = scalar_lea.vmem [#allocation2], 402
  %v6942 = vld [vmem:[%s6941] ss:$2 sm:$0xff]
  %s6943 = scalar_lea.vmem [#allocation2], 403
  %v6944 = vld [vmem:[%s6943] ss:$2 sm:$0xff]
  %v6945 = vmax.f32 %v6942, %v6944
  %v6946 = vmax.f32 %v6940, %v6945
  %6947 = vst.msk [vmem:[#allocation2 + $0x309] sm:$0xff] %vm55, %v6946
  %s6948 = scalar_lea.vmem [#allocation2], 420
  %v6949 = vld [vmem:[%s6948] ss:$2 sm:$0xff]
  %s6950 = scalar_lea.vmem [#allocation2], 421
  %v6951 = vld [vmem:[%s6950] ss:$2 sm:$0xff]
  %v6952 = vmax.f32 %v6949, %v6951
  %s6953 = scalar_lea.vmem [#allocation2], 438
  %v6954 = vld [vmem:[%s6953] ss:$2 sm:$0xff]
  %s6955 = scalar_lea.vmem [#allocation2], 439
  %v6956 = vld [vmem:[%s6955] ss:$2 sm:$0xff]
  %v6957 = vmax.f32 %v6954, %v6956
  %v6958 = vmax.f32 %v6952, %v6957
  %6959 = vst.msk [vmem:[#allocation2 + $0x313] sm:$0xff] %vm55, %v6958
  %s6960 = scalar_lea.vmem [#allocation2], 456
  %v6961 = vld [vmem:[%s6960] ss:$2 sm:$0xff]
  %s6962 = scalar_lea.vmem [#allocation2], 457
  %v6963 = vld [vmem:[%s6962] ss:$2 sm:$0xff]
  %v6964 = vmax.f32 %v6961, %v6963
  %s6965 = scalar_lea.vmem [#allocation2], 474
  %v6966 = vld [vmem:[%s6965] ss:$2 sm:$0xff]
  %s6967 = scalar_lea.vmem [#allocation2], 475
  %v6968 = vld [vmem:[%s6967] ss:$2 sm:$0xff]
  %v6969 = vmax.f32 %v6966, %v6968
  %v6970 = vmax.f32 %v6964, %v6969
  %6971 = vst.msk [vmem:[#allocation2 + $0x31d] sm:$0xff] %vm55, %v6970
  %s6972 = scalar_lea.vmem [#allocation2], 492
  %v6973 = vld [vmem:[%s6972] ss:$2 sm:$0xff]
  %s6974 = scalar_lea.vmem [#allocation2], 493
  %v6975 = vld [vmem:[%s6974] ss:$2 sm:$0xff]
  %v6976 = vmax.f32 %v6973, %v6975
  %s6977 = scalar_lea.vmem [#allocation2], 510
  %v6978 = vld [vmem:[%s6977] ss:$2 sm:$0xff]
  %s6979 = scalar_lea.vmem [#allocation2], 511
  %v6980 = vld [vmem:[%s6979] ss:$2 sm:$0xff]
  %v6981 = vmax.f32 %v6978, %v6980
  %v6982 = vmax.f32 %v6976, %v6981
  %6983 = vst.msk [vmem:[#allocation2 + $0x327] sm:$0xff] %vm55, %v6982
  %s6984 = scalar_lea.vmem [#allocation2], 528
  %v6985 = vld [vmem:[%s6984] ss:$2 sm:$0xff]
  %s6986 = scalar_lea.vmem [#allocation2], 529
  %v6987 = vld [vmem:[%s6986] ss:$2 sm:$0xff]
  %v6988 = vmax.f32 %v6985, %v6987
  %s6989 = scalar_lea.vmem [#allocation2], 546
  %v6990 = vld [vmem:[%s6989] ss:$2 sm:$0xff]
  %s6991 = scalar_lea.vmem [#allocation2], 547
  %v6992 = vld [vmem:[%s6991] ss:$2 sm:$0xff]
  %v6993 = vmax.f32 %v6990, %v6992
  %v6994 = vmax.f32 %v6988, %v6993
  %6995 = vst.msk [vmem:[#allocation2 + $0x331] sm:$0xff] %vm55, %v6994
  %s6996 = scalar_lea.vmem [#allocation2], 564
  %v6997 = vld [vmem:[%s6996] ss:$2 sm:$0xff]
  %s6998 = scalar_lea.vmem [#allocation2], 565
  %v6999 = vld [vmem:[%s6998] ss:$2 sm:$0xff]
  %v7000 = vmax.f32 %v6997, %v6999
  %s7001 = scalar_lea.vmem [#allocation2], 582
  %v7002 = vld [vmem:[%s7001] ss:$2 sm:$0xff]
  %s7003 = scalar_lea.vmem [#allocation2], 583
  %v7004 = vld [vmem:[%s7003] ss:$2 sm:$0xff]
  %v7005 = vmax.f32 %v7002, %v7004
  %v7006 = vmax.f32 %v7000, %v7005
  %7007 = vst.msk [vmem:[#allocation2 + $0x33b] sm:$0xff] %vm55, %v7006
  %s7008 = scalar_lea.vmem [#allocation2], 600
  %v7009 = vld [vmem:[%s7008] ss:$2 sm:$0xff]
  %s7010 = scalar_lea.vmem [#allocation2], 601
  %v7011 = vld [vmem:[%s7010] ss:$2 sm:$0xff]
  %v7012 = vmax.f32 %v7009, %v7011
  %s7013 = scalar_lea.vmem [#allocation2], 618
  %v7014 = vld [vmem:[%s7013] ss:$2 sm:$0xff]
  %s7015 = scalar_lea.vmem [#allocation2], 619
  %v7016 = vld [vmem:[%s7015] ss:$2 sm:$0xff]
  %v7017 = vmax.f32 %v7014, %v7016
  %v7018 = vmax.f32 %v7012, %v7017
  %7019 = vst.msk [vmem:[#allocation2 + $0x345] sm:$0xff] %vm55, %v7018
  %v7020 = vadd.f32 %v159, 11.0
  %v7021 = vadd.f32 %v160, 11.0
  %v7022 = vadd.f32 %v161, 11.0
  %v7023 = vadd.f32 %v162, 11.0
  %v7024 = vadd.f32 %v163, 11.0
  %v7025 = vadd.f32 %v164, 11.0
  %v7026 = vadd.f32 %v165, 11.0
  %v7027 = vadd.f32 %v166, 11.0
  %v7028 = vadd.f32 %v167, 11.0
  %v7029 = vadd.f32 %v168, 11.0
  %v7030 = vadd.f32 %v169, 11.0
  %v7031 = vadd.f32 %v170, 11.0
  %v7032 = vadd.f32 %v171, 11.0
  %v7033 = vadd.f32 %v172, 11.0
  %v7034 = vadd.f32 %v173, 11.0
  %v7035 = vadd.f32 %v174, 11.0
  %v7036 = vadd.f32 %v175, 11.0
  %v7037 = vadd.f32 %v176, 11.0
  %v7038 = vadd.f32 %v177, 11.0
  %v7039 = vadd.f32 %v178, 11.0
  %v7040 = vadd.f32 %v179, 11.0
  %v7041 = vadd.f32 %v180, 11.0
  %v7042 = vadd.f32 %v181, 11.0
  %v7043 = vadd.f32 %v7020, 0.5
  %v7044 = vadd.f32 %v7021, 0.5
  %v7045 = vadd.f32 %v7022, 0.5
  %v7046 = vadd.f32 %v7023, 0.5
  %v7047 = vadd.f32 %v7024, 0.5
  %v7048 = vadd.f32 %v7025, 0.5
  %v7049 = vadd.f32 %v7026, 0.5
  %v7050 = vadd.f32 %v7027, 0.5
  %v7051 = vadd.f32 %v7028, 0.5
  %v7052 = vadd.f32 %v7029, 0.5
  %v7053 = vadd.f32 %v7030, 0.5
  %v7054 = vadd.f32 %v7031, 0.5
  %v7055 = vadd.f32 %v7032, 0.5
  %v7056 = vadd.f32 %v7033, 0.5
  %v7057 = vadd.f32 %v7034, 0.5
  %v7058 = vadd.f32 %v7035, 0.5
  %v7059 = vadd.f32 %v7036, 0.5
  %v7060 = vadd.f32 %v7037, 0.5
  %v7061 = vadd.f32 %v7038, 0.5
  %v7062 = vadd.f32 %v7039, 0.5
  %v7063 = vadd.f32 %v7040, 0.5
  %v7064 = vadd.f32 %v7041, 0.5
  %v7065 = vadd.f32 %v7042, 0.5
  %v7066 = vrcp.pop 100.0
  %v7067 = vmul.f32 %v7043, %v7066
  %v7068 = vmul.f32 %v7044, %v7066
  %v7069 = vmul.f32 %v7045, %v7066
  %v7070 = vmul.f32 %v7046, %v7066
  %v7071 = vmul.f32 %v7047, %v7066
  %v7072 = vmul.f32 %v7048, %v7066
  %v7073 = vmul.f32 %v7049, %v7066
  %v7074 = vmul.f32 %v7050, %v7066
  %v7075 = vmul.f32 %v7051, %v7066
  %v7076 = vmul.f32 %v7052, %v7066
  %v7077 = vmul.f32 %v7053, %v7066
  %v7078 = vmul.f32 %v7054, %v7066
  %v7079 = vmul.f32 %v7055, %v7066
  %v7080 = vmul.f32 %v7056, %v7066
  %v7081 = vmul.f32 %v7057, %v7066
  %v7082 = vmul.f32 %v7058, %v7066
  %v7083 = vmul.f32 %v7059, %v7066
  %v7084 = vmul.f32 %v7060, %v7066
  %v7085 = vmul.f32 %v7061, %v7066
  %v7086 = vmul.f32 %v7062, %v7066
  %v7087 = vmul.f32 %v7063, %v7066
  %v7088 = vmul.f32 %v7064, %v7066
  %v7089 = vmul.f32 %v7065, %v7066
  %v7090 = vfloor.f32 %v7067
  %v7091 = vfloor.f32 %v7068
  %v7092 = vfloor.f32 %v7069
  %v7093 = vfloor.f32 %v7070
  %v7094 = vfloor.f32 %v7071
  %v7095 = vfloor.f32 %v7072
  %v7096 = vfloor.f32 %v7073
  %v7097 = vfloor.f32 %v7074
  %v7098 = vfloor.f32 %v7075
  %v7099 = vfloor.f32 %v7076
  %v7100 = vfloor.f32 %v7077
  %v7101 = vfloor.f32 %v7078
  %v7102 = vfloor.f32 %v7079
  %v7103 = vfloor.f32 %v7080
  %v7104 = vfloor.f32 %v7081
  %v7105 = vfloor.f32 %v7082
  %v7106 = vfloor.f32 %v7083
  %v7107 = vfloor.f32 %v7084
  %v7108 = vfloor.f32 %v7085
  %v7109 = vfloor.f32 %v7086
  %v7110 = vfloor.f32 %v7087
  %v7111 = vfloor.f32 %v7088
  %v7112 = vfloor.f32 %v7089
  %v7113 = vmul.f32 %v7090, 100.0
  %v7114 = vmul.f32 %v7091, 100.0
  %v7115 = vmul.f32 %v7092, 100.0
  %v7116 = vmul.f32 %v7093, 100.0
  %v7117 = vmul.f32 %v7094, 100.0
  %v7118 = vmul.f32 %v7095, 100.0
  %v7119 = vmul.f32 %v7096, 100.0
  %v7120 = vmul.f32 %v7097, 100.0
  %v7121 = vmul.f32 %v7098, 100.0
  %v7122 = vmul.f32 %v7099, 100.0
  %v7123 = vmul.f32 %v7100, 100.0
  %v7124 = vmul.f32 %v7101, 100.0
  %v7125 = vmul.f32 %v7102, 100.0
  %v7126 = vmul.f32 %v7103, 100.0
  %v7127 = vmul.f32 %v7104, 100.0
  %v7128 = vmul.f32 %v7105, 100.0
  %v7129 = vmul.f32 %v7106, 100.0
  %v7130 = vmul.f32 %v7107, 100.0
  %v7131 = vmul.f32 %v7108, 100.0
  %v7132 = vmul.f32 %v7109, 100.0
  %v7133 = vmul.f32 %v7110, 100.0
  %v7134 = vmul.f32 %v7111, 100.0
  %v7135 = vmul.f32 %v7112, 100.0
  %v7136 = vsub.f32 %v7020, %v7113
  %v7137 = vsub.f32 %v7021, %v7114
  %v7138 = vsub.f32 %v7022, %v7115
  %v7139 = vsub.f32 %v7023, %v7116
  %v7140 = vsub.f32 %v7024, %v7117
  %v7141 = vsub.f32 %v7025, %v7118
  %v7142 = vsub.f32 %v7026, %v7119
  %v7143 = vsub.f32 %v7027, %v7120
  %v7144 = vsub.f32 %v7028, %v7121
  %v7145 = vsub.f32 %v7029, %v7122
  %v7146 = vsub.f32 %v7030, %v7123
  %v7147 = vsub.f32 %v7031, %v7124
  %v7148 = vsub.f32 %v7032, %v7125
  %v7149 = vsub.f32 %v7033, %v7126
  %v7150 = vsub.f32 %v7034, %v7127
  %v7151 = vsub.f32 %v7035, %v7128
  %v7152 = vsub.f32 %v7036, %v7129
  %v7153 = vsub.f32 %v7037, %v7130
  %v7154 = vsub.f32 %v7038, %v7131
  %v7155 = vsub.f32 %v7039, %v7132
  %v7156 = vsub.f32 %v7040, %v7133
  %v7157 = vsub.f32 %v7041, %v7134
  %v7158 = vsub.f32 %v7042, %v7135
  %v7159 = vadd.f32 %v7136, 0.5
  %v7160 = vadd.f32 %v7137, 0.5
  %v7161 = vadd.f32 %v7138, 0.5
  %v7162 = vadd.f32 %v7139, 0.5
  %v7163 = vadd.f32 %v7140, 0.5
  %v7164 = vadd.f32 %v7141, 0.5
  %v7165 = vadd.f32 %v7142, 0.5
  %v7166 = vadd.f32 %v7143, 0.5
  %v7167 = vadd.f32 %v7144, 0.5
  %v7168 = vadd.f32 %v7145, 0.5
  %v7169 = vadd.f32 %v7146, 0.5
  %v7170 = vadd.f32 %v7147, 0.5
  %v7171 = vadd.f32 %v7148, 0.5
  %v7172 = vadd.f32 %v7149, 0.5
  %v7173 = vadd.f32 %v7150, 0.5
  %v7174 = vadd.f32 %v7151, 0.5
  %v7175 = vadd.f32 %v7152, 0.5
  %v7176 = vadd.f32 %v7153, 0.5
  %v7177 = vadd.f32 %v7154, 0.5
  %v7178 = vadd.f32 %v7155, 0.5
  %v7179 = vadd.f32 %v7156, 0.5
  %v7180 = vadd.f32 %v7157, 0.5
  %v7181 = vadd.f32 %v7158, 0.5
  %v7182 = vrcp.pop 10.0
  %v7183 = vmul.f32 %v7159, %v7182
  %v7184 = vmul.f32 %v7160, %v7182
  %v7185 = vmul.f32 %v7161, %v7182
  %v7186 = vmul.f32 %v7162, %v7182
  %v7187 = vmul.f32 %v7163, %v7182
  %v7188 = vmul.f32 %v7164, %v7182
  %v7189 = vmul.f32 %v7165, %v7182
  %v7190 = vmul.f32 %v7166, %v7182
  %v7191 = vmul.f32 %v7167, %v7182
  %v7192 = vmul.f32 %v7168, %v7182
  %v7193 = vmul.f32 %v7169, %v7182
  %v7194 = vmul.f32 %v7170, %v7182
  %v7195 = vmul.f32 %v7171, %v7182
  %v7196 = vmul.f32 %v7172, %v7182
  %v7197 = vmul.f32 %v7173, %v7182
  %v7198 = vmul.f32 %v7174, %v7182
  %v7199 = vmul.f32 %v7175, %v7182
  %v7200 = vmul.f32 %v7176, %v7182
  %v7201 = vmul.f32 %v7177, %v7182
  %v7202 = vmul.f32 %v7178, %v7182
  %v7203 = vmul.f32 %v7179, %v7182
  %v7204 = vmul.f32 %v7180, %v7182
  %v7205 = vmul.f32 %v7181, %v7182
  %v7206 = vfloor.f32 %v7183
  %v7207 = vfloor.f32 %v7184
  %v7208 = vfloor.f32 %v7185
  %v7209 = vfloor.f32 %v7186
  %v7210 = vfloor.f32 %v7187
  %v7211 = vfloor.f32 %v7188
  %v7212 = vfloor.f32 %v7189
  %v7213 = vfloor.f32 %v7190
  %v7214 = vfloor.f32 %v7191
  %v7215 = vfloor.f32 %v7192
  %v7216 = vfloor.f32 %v7193
  %v7217 = vfloor.f32 %v7194
  %v7218 = vfloor.f32 %v7195
  %v7219 = vfloor.f32 %v7196
  %v7220 = vfloor.f32 %v7197
  %v7221 = vfloor.f32 %v7198
  %v7222 = vfloor.f32 %v7199
  %v7223 = vfloor.f32 %v7200
  %v7224 = vfloor.f32 %v7201
  %v7225 = vfloor.f32 %v7202
  %v7226 = vfloor.f32 %v7203
  %v7227 = vfloor.f32 %v7204
  %v7228 = vfloor.f32 %v7205
  %v7229 = vmul.f32 %v7206, 10.0
  %v7230 = vmul.f32 %v7207, 10.0
  %v7231 = vmul.f32 %v7208, 10.0
  %v7232 = vmul.f32 %v7209, 10.0
  %v7233 = vmul.f32 %v7210, 10.0
  %v7234 = vmul.f32 %v7211, 10.0
  %v7235 = vmul.f32 %v7212, 10.0
  %v7236 = vmul.f32 %v7213, 10.0
  %v7237 = vmul.f32 %v7214, 10.0
  %v7238 = vmul.f32 %v7215, 10.0
  %v7239 = vmul.f32 %v7216, 10.0
  %v7240 = vmul.f32 %v7217, 10.0
  %v7241 = vmul.f32 %v7218, 10.0
  %v7242 = vmul.f32 %v7219, 10.0
  %v7243 = vmul.f32 %v7220, 10.0
  %v7244 = vmul.f32 %v7221, 10.0
  %v7245 = vmul.f32 %v7222, 10.0
  %v7246 = vmul.f32 %v7223, 10.0
  %v7247 = vmul.f32 %v7224, 10.0
  %v7248 = vmul.f32 %v7225, 10.0
  %v7249 = vmul.f32 %v7226, 10.0
  %v7250 = vmul.f32 %v7227, 10.0
  %v7251 = vmul.f32 %v7228, 10.0
  %v7252 = vsub.f32 %v7136, %v7229
  %v7253 = vsub.f32 %v7137, %v7230
  %v7254 = vsub.f32 %v7138, %v7231
  %v7255 = vsub.f32 %v7139, %v7232
  %v7256 = vsub.f32 %v7140, %v7233
  %v7257 = vsub.f32 %v7141, %v7234
  %v7258 = vsub.f32 %v7142, %v7235
  %v7259 = vsub.f32 %v7143, %v7236
  %v7260 = vsub.f32 %v7144, %v7237
  %v7261 = vsub.f32 %v7145, %v7238
  %v7262 = vsub.f32 %v7146, %v7239
  %v7263 = vsub.f32 %v7147, %v7240
  %v7264 = vsub.f32 %v7148, %v7241
  %v7265 = vsub.f32 %v7149, %v7242
  %v7266 = vsub.f32 %v7150, %v7243
  %v7267 = vsub.f32 %v7151, %v7244
  %v7268 = vsub.f32 %v7152, %v7245
  %v7269 = vsub.f32 %v7153, %v7246
  %v7270 = vsub.f32 %v7154, %v7247
  %v7271 = vsub.f32 %v7155, %v7248
  %v7272 = vsub.f32 %v7156, %v7249
  %v7273 = vsub.f32 %v7157, %v7250
  %v7274 = vsub.f32 %v7158, %v7251
  %vm7275 = vcmp.ge.f32.partialorder %v7136, 10.0
  %vm7276 = vcmp.ge.f32.partialorder %v7137, 10.0
  %vm7277 = vcmp.ge.f32.partialorder %v7138, 10.0
  %vm7278 = vcmp.ge.f32.partialorder %v7139, 10.0
  %vm7279 = vcmp.ge.f32.partialorder %v7140, 10.0
  %vm7280 = vcmp.ge.f32.partialorder %v7141, 10.0
  %vm7281 = vcmp.ge.f32.partialorder %v7142, 10.0
  %vm7282 = vcmp.ge.f32.partialorder %v7143, 10.0
  %vm7283 = vcmp.ge.f32.partialorder %v7144, 10.0
  %vm7284 = vcmp.ge.f32.partialorder %v7145, 10.0
  %vm7285 = vcmp.ge.f32.partialorder %v7146, 10.0
  %vm7286 = vcmp.ge.f32.partialorder %v7147, 10.0
  %vm7287 = vcmp.ge.f32.partialorder %v7148, 10.0
  %vm7288 = vcmp.ge.f32.partialorder %v7149, 10.0
  %vm7289 = vcmp.ge.f32.partialorder %v7150, 10.0
  %vm7290 = vcmp.ge.f32.partialorder %v7151, 10.0
  %vm7291 = vcmp.ge.f32.partialorder %v7152, 10.0
  %vm7292 = vcmp.ge.f32.partialorder %v7153, 10.0
  %vm7293 = vcmp.ge.f32.partialorder %v7154, 10.0
  %vm7294 = vcmp.ge.f32.partialorder %v7155, 10.0
  %vm7295 = vcmp.ge.f32.partialorder %v7156, 10.0
  %vm7296 = vcmp.ge.f32.partialorder %v7157, 10.0
  %vm7297 = vcmp.ge.f32.partialorder %v7158, 10.0
  %vm7298 = vcmp.lt.f32.partialorder %v7136, 90.0
  %vm7299 = vcmp.lt.f32.partialorder %v7137, 90.0
  %vm7300 = vcmp.lt.f32.partialorder %v7138, 90.0
  %vm7301 = vcmp.lt.f32.partialorder %v7139, 90.0
  %vm7302 = vcmp.lt.f32.partialorder %v7140, 90.0
  %vm7303 = vcmp.lt.f32.partialorder %v7141, 90.0
  %vm7304 = vcmp.lt.f32.partialorder %v7142, 90.0
  %vm7305 = vcmp.lt.f32.partialorder %v7143, 90.0
  %vm7306 = vcmp.lt.f32.partialorder %v7144, 90.0
  %vm7307 = vcmp.lt.f32.partialorder %v7145, 90.0
  %vm7308 = vcmp.lt.f32.partialorder %v7146, 90.0
  %vm7309 = vcmp.lt.f32.partialorder %v7147, 90.0
  %vm7310 = vcmp.lt.f32.partialorder %v7148, 90.0
  %vm7311 = vcmp.lt.f32.partialorder %v7149, 90.0
  %vm7312 = vcmp.lt.f32.partialorder %v7150, 90.0
  %vm7313 = vcmp.lt.f32.partialorder %v7151, 90.0
  %vm7314 = vcmp.lt.f32.partialorder %v7152, 90.0
  %vm7315 = vcmp.lt.f32.partialorder %v7153, 90.0
  %vm7316 = vcmp.lt.f32.partialorder %v7154, 90.0
  %vm7317 = vcmp.lt.f32.partialorder %v7155, 90.0
  %vm7318 = vcmp.lt.f32.partialorder %v7156, 90.0
  %vm7319 = vcmp.lt.f32.partialorder %v7157, 90.0
  %vm7320 = vcmp.lt.f32.partialorder %v7158, 90.0
  %vm7321 = vmand %vm7275, %vm7298
  %vm7322 = vmand %vm7276, %vm7299
  %vm7323 = vmand %vm7277, %vm7300
  %vm7324 = vmand %vm7278, %vm7301
  %vm7325 = vmand %vm7279, %vm7302
  %vm7326 = vmand %vm7280, %vm7303
  %vm7327 = vmand %vm7281, %vm7304
  %vm7328 = vmand %vm7282, %vm7305
  %vm7329 = vmand %vm7283, %vm7306
  %vm7330 = vmand %vm7284, %vm7307
  %vm7331 = vmand %vm7285, %vm7308
  %vm7332 = vmand %vm7286, %vm7309
  %vm7333 = vmand %vm7287, %vm7310
  %vm7334 = vmand %vm7288, %vm7311
  %vm7335 = vmand %vm7289, %vm7312
  %vm7336 = vmand %vm7290, %vm7313
  %vm7337 = vmand %vm7291, %vm7314
  %vm7338 = vmand %vm7292, %vm7315
  %vm7339 = vmand %vm7293, %vm7316
  %vm7340 = vmand %vm7294, %vm7317
  %vm7341 = vmand %vm7295, %vm7318
  %vm7342 = vmand %vm7296, %vm7319
  %vm7343 = vmand %vm7297, %vm7320
  %vm7344 = vcmp.ge.f32.partialorder %v7252, 1.0
  %vm7345 = vcmp.ge.f32.partialorder %v7253, 1.0
  %vm7346 = vcmp.ge.f32.partialorder %v7254, 1.0
  %vm7347 = vcmp.ge.f32.partialorder %v7255, 1.0
  %vm7348 = vcmp.ge.f32.partialorder %v7256, 1.0
  %vm7349 = vcmp.ge.f32.partialorder %v7257, 1.0
  %vm7350 = vcmp.ge.f32.partialorder %v7258, 1.0
  %vm7351 = vcmp.ge.f32.partialorder %v7259, 1.0
  %vm7352 = vcmp.ge.f32.partialorder %v7260, 1.0
  %vm7353 = vcmp.ge.f32.partialorder %v7261, 1.0
  %vm7354 = vcmp.ge.f32.partialorder %v7262, 1.0
  %vm7355 = vcmp.ge.f32.partialorder %v7263, 1.0
  %vm7356 = vcmp.ge.f32.partialorder %v7264, 1.0
  %vm7357 = vcmp.ge.f32.partialorder %v7265, 1.0
  %vm7358 = vcmp.ge.f32.partialorder %v7266, 1.0
  %vm7359 = vcmp.ge.f32.partialorder %v7267, 1.0
  %vm7360 = vcmp.ge.f32.partialorder %v7268, 1.0
  %vm7361 = vcmp.ge.f32.partialorder %v7269, 1.0
  %vm7362 = vcmp.ge.f32.partialorder %v7270, 1.0
  %vm7363 = vcmp.ge.f32.partialorder %v7271, 1.0
  %vm7364 = vcmp.ge.f32.partialorder %v7272, 1.0
  %vm7365 = vcmp.ge.f32.partialorder %v7273, 1.0
  %vm7366 = vcmp.ge.f32.partialorder %v7274, 1.0
  %vm7367 = vmand %vm7321, %vm7344
  %vm7368 = vmand %vm7322, %vm7345
  %vm7369 = vmand %vm7323, %vm7346
  %vm7370 = vmand %vm7324, %vm7347
  %vm7371 = vmand %vm7325, %vm7348
  %vm7372 = vmand %vm7326, %vm7349
  %vm7373 = vmand %vm7327, %vm7350
  %vm7374 = vmand %vm7328, %vm7351
  %vm7375 = vmand %vm7329, %vm7352
  %vm7376 = vmand %vm7330, %vm7353
  %vm7377 = vmand %vm7331, %vm7354
  %vm7378 = vmand %vm7332, %vm7355
  %vm7379 = vmand %vm7333, %vm7356
  %vm7380 = vmand %vm7334, %vm7357
  %vm7381 = vmand %vm7335, %vm7358
  %vm7382 = vmand %vm7336, %vm7359
  %vm7383 = vmand %vm7337, %vm7360
  %vm7384 = vmand %vm7338, %vm7361
  %vm7385 = vmand %vm7339, %vm7362
  %vm7386 = vmand %vm7340, %vm7363
  %vm7387 = vmand %vm7341, %vm7364
  %vm7388 = vmand %vm7342, %vm7365
  %vm7389 = vmand %vm7343, %vm7366
  %vm7390 = vcmp.le.f32.partialorder %v7252, 8.0
  %vm7391 = vcmp.le.f32.partialorder %v7253, 8.0
  %vm7392 = vcmp.le.f32.partialorder %v7254, 8.0
  %vm7393 = vcmp.le.f32.partialorder %v7255, 8.0
  %vm7394 = vcmp.le.f32.partialorder %v7256, 8.0
  %vm7395 = vcmp.le.f32.partialorder %v7257, 8.0
  %vm7396 = vcmp.le.f32.partialorder %v7258, 8.0
  %vm7397 = vcmp.le.f32.partialorder %v7259, 8.0
  %vm7398 = vcmp.le.f32.partialorder %v7260, 8.0
  %vm7399 = vcmp.le.f32.partialorder %v7261, 8.0
  %vm7400 = vcmp.le.f32.partialorder %v7262, 8.0
  %vm7401 = vcmp.le.f32.partialorder %v7263, 8.0
  %vm7402 = vcmp.le.f32.partialorder %v7264, 8.0
  %vm7403 = vcmp.le.f32.partialorder %v7265, 8.0
  %vm7404 = vcmp.le.f32.partialorder %v7266, 8.0
  %vm7405 = vcmp.le.f32.partialorder %v7267, 8.0
  %vm7406 = vcmp.le.f32.partialorder %v7268, 8.0
  %vm7407 = vcmp.le.f32.partialorder %v7269, 8.0
  %vm7408 = vcmp.le.f32.partialorder %v7270, 8.0
  %vm7409 = vcmp.le.f32.partialorder %v7271, 8.0
  %vm7410 = vcmp.le.f32.partialorder %v7272, 8.0
  %vm7411 = vcmp.le.f32.partialorder %v7273, 8.0
  %vm7412 = vcmp.le.f32.partialorder %v7274, 8.0
  %vm7413 = vmand %vm7367, %vm7390
  %vm7414 = vmand %vm7368, %vm7391
  %vm7415 = vmand %vm7369, %vm7392
  %vm7416 = vmand %vm7370, %vm7393
  %vm7417 = vmand %vm7371, %vm7394
  %vm7418 = vmand %vm7372, %vm7395
  %vm7419 = vmand %vm7373, %vm7396
  %vm7420 = vmand %vm7374, %vm7397
  %vm7421 = vmand %vm7375, %vm7398
  %vm7422 = vmand %vm7376, %vm7399
  %vm7423 = vmand %vm7377, %vm7400
  %vm7424 = vmand %vm7378, %vm7401
  %vm7425 = vmand %vm7379, %vm7402
  %vm7426 = vmand %vm7380, %vm7403
  %vm7427 = vmand %vm7381, %vm7404
  %vm7428 = vmand %vm7382, %vm7405
  %vm7429 = vmand %vm7383, %vm7406
  %vm7430 = vmand %vm7384, %vm7407
  %vm7431 = vmand %vm7385, %vm7408
  %vm7432 = vmand %vm7386, %vm7409
  %vm7433 = vmand %vm7387, %vm7410
  %vm7434 = vmand %vm7388, %vm7411
  %vm7435 = vmand %vm7389, %vm7412
  %v7436 = vsel %vm7413, 1, 0
  %v7437 = vsel %vm7414, 1, 0
  %v7438 = vsel %vm7415, 1, 0
  %v7439 = vsel %vm7416, 1, 0
  %v7440 = vsel %vm7417, 1, 0
  %v7441 = vsel %vm7418, 1, 0
  %v7442 = vsel %vm7419, 1, 0
  %v7443 = vsel %vm7420, 1, 0
  %v7444 = vsel %vm7421, 1, 0
  %v7445 = vsel %vm7422, 1, 0
  %v7446 = vsel %vm7423, 1, 0
  %v7447 = vsel %vm7424, 1, 0
  %v7448 = vsel %vm7425, 1, 0
  %v7449 = vsel %vm7426, 1, 0
  %v7450 = vsel %vm7427, 1, 0
  %v7451 = vsel %vm7428, 1, 0
  %v7452 = vsel %vm7429, 1, 0
  %v7453 = vsel %vm7430, 1, 0
  %v7454 = vsel %vm7431, 1, 0
  %v7455 = vsel %vm7432, 1, 0
  %v7456 = vsel %vm7433, 1, 0
  %v7457 = vsel %vm7434, 1, 0
  %v7458 = vsel %vm7435, 1, 0
  %v7459 = vcvt.s32.f32 %v7436
  %v7460 = vcvt.s32.f32 %v7437
  %v7461 = vcvt.s32.f32 %v7438
  %v7462 = vcvt.s32.f32 %v7439
  %v7463 = vcvt.s32.f32 %v7440
  %v7464 = vcvt.s32.f32 %v7441
  %v7465 = vcvt.s32.f32 %v7442
  %v7466 = vcvt.s32.f32 %v7443
  %v7467 = vcvt.s32.f32 %v7444
  %v7468 = vcvt.s32.f32 %v7445
  %v7469 = vcvt.s32.f32 %v7446
  %v7470 = vcvt.s32.f32 %v7447
  %v7471 = vcvt.s32.f32 %v7448
  %v7472 = vcvt.s32.f32 %v7449
  %v7473 = vcvt.s32.f32 %v7450
  %v7474 = vcvt.s32.f32 %v7451
  %v7475 = vcvt.s32.f32 %v7452
  %v7476 = vcvt.s32.f32 %v7453
  %v7477 = vcvt.s32.f32 %v7454
  %v7478 = vcvt.s32.f32 %v7455
  %v7479 = vcvt.s32.f32 %v7456
  %v7480 = vcvt.s32.f32 %v7457
  %v7481 = vcvt.s32.f32 %v7458
  %v7482 = vld [vmem:[#allocation2 + $0x290] sm:$0xff]
  %v7483 = vld [vmem:[#allocation2 + $0x298] sm:$0xff]
  %v7484 = vld [vmem:[#allocation2 + $0x2a0] sm:$0xff]
  %v7485 = vld [vmem:[#allocation2 + $0x2a8] sm:$0xff]
  %v7486 = vld [vmem:[#allocation2 + $0x2b0] sm:$0xff]
  %v7487 = vld [vmem:[#allocation2 + $0x2b8] sm:$0xff]
  %v7488 = vld [vmem:[#allocation2 + $0x2c0] sm:$0xff]
  %v7489 = vld [vmem:[#allocation2 + $0x2c8] sm:$0xff]
  %v7490 = vld [vmem:[#allocation2 + $0x2d0] sm:$0xff]
  %v7491 = vld [vmem:[#allocation2 + $0x2d8] sm:$0xff]
  %v7492 = vld [vmem:[#allocation2 + $0x2e0] sm:$0xff]
  %v7493 = vld [vmem:[#allocation2 + $0x2e8] sm:$0xff]
  %v7494 = vld [vmem:[#allocation2 + $0x2f0] sm:$0xff]
  %v7495 = vld [vmem:[#allocation2 + $0x2f8] sm:$0xff]
  %v7496 = vld [vmem:[#allocation2 + $0x300] sm:$0xff]
  %v7497 = vld [vmem:[#allocation2 + $0x308] sm:$0xff]
  %v7498 = vld [vmem:[#allocation2 + $0x310] sm:$0xff]
  %v7499 = vld [vmem:[#allocation2 + $0x318] sm:$0xff]
  %v7500 = vld [vmem:[#allocation2 + $0x320] sm:$0xff]
  %v7501 = vld [vmem:[#allocation2 + $0x328] sm:$0xff]
  %v7502 = vld [vmem:[#allocation2 + $0x330] sm:$0xff]
  %v7503 = vld [vmem:[#allocation2 + $0x338] sm:$0xff]
  %v7504 = vld [vmem:[#allocation2 + $0x340] sm:$0x3]
  %v7505 = vld [vmem:[#allocation2 + $0x291] sm:$0xff]
  %v7506 = vld [vmem:[#allocation2 + $0x299] sm:$0xff]
  %v7507 = vld [vmem:[#allocation2 + $0x2a1] sm:$0xff]
  %v7508 = vld [vmem:[#allocation2 + $0x2a9] sm:$0xff]
  %v7509 = vld [vmem:[#allocation2 + $0x2b1] sm:$0xff]
  %v7510 = vld [vmem:[#allocation2 + $0x2b9] sm:$0xff]
  %v7511 = vld [vmem:[#allocation2 + $0x2c1] sm:$0xff]
  %v7512 = vld [vmem:[#allocation2 + $0x2c9] sm:$0xff]
  %v7513 = vld [vmem:[#allocation2 + $0x2d1] sm:$0xff]
  %v7514 = vld [vmem:[#allocation2 + $0x2d9] sm:$0xff]
  %v7515 = vld [vmem:[#allocation2 + $0x2e1] sm:$0xff]
  %v7516 = vld [vmem:[#allocation2 + $0x2e9] sm:$0xff]
  %v7517 = vld [vmem:[#allocation2 + $0x2f1] sm:$0xff]
  %v7518 = vld [vmem:[#allocation2 + $0x2f9] sm:$0xff]
  %v7519 = vld [vmem:[#allocation2 + $0x301] sm:$0xff]
  %v7520 = vld [vmem:[#allocation2 + $0x309] sm:$0xff]
  %v7521 = vld [vmem:[#allocation2 + $0x311] sm:$0xff]
  %v7522 = vld [vmem:[#allocation2 + $0x319] sm:$0xff]
  %v7523 = vld [vmem:[#allocation2 + $0x321] sm:$0xff]
  %v7524 = vld [vmem:[#allocation2 + $0x329] sm:$0xff]
  %v7525 = vld [vmem:[#allocation2 + $0x331] sm:$0xff]
  %v7526 = vld [vmem:[#allocation2 + $0x339] sm:$0xff]
  %v7527 = vld [vmem:[#allocation2 + $0x341] sm:$0x3]
  %v7528 = vld [vmem:[#allocation2 + $0x292] sm:$0xff]
  %v7529 = vld [vmem:[#allocation2 + $0x29a] sm:$0xff]
  %v7530 = vld [vmem:[#allocation2 + $0x2a2] sm:$0xff]
  %v7531 = vld [vmem:[#allocation2 + $0x2aa] sm:$0xff]
  %v7532 = vld [vmem:[#allocation2 + $0x2b2] sm:$0xff]
  %v7533 = vld [vmem:[#allocation2 + $0x2ba] sm:$0xff]
  %v7534 = vld [vmem:[#allocation2 + $0x2c2] sm:$0xff]
  %v7535 = vld [vmem:[#allocation2 + $0x2ca] sm:$0xff]
  %v7536 = vld [vmem:[#allocation2 + $0x2d2] sm:$0xff]
  %v7537 = vld [vmem:[#allocation2 + $0x2da] sm:$0xff]
  %v7538 = vld [vmem:[#allocation2 + $0x2e2] sm:$0xff]
  %v7539 = vld [vmem:[#allocation2 + $0x2ea] sm:$0xff]
  %v7540 = vld [vmem:[#allocation2 + $0x2f2] sm:$0xff]
  %v7541 = vld [vmem:[#allocation2 + $0x2fa] sm:$0xff]
  %v7542 = vld [vmem:[#allocation2 + $0x302] sm:$0xff]
  %v7543 = vld [vmem:[#allocation2 + $0x30a] sm:$0xff]
  %v7544 = vld [vmem:[#allocation2 + $0x312] sm:$0xff]
  %v7545 = vld [vmem:[#allocation2 + $0x31a] sm:$0xff]
  %v7546 = vld [vmem:[#allocation2 + $0x322] sm:$0xff]
  %v7547 = vld [vmem:[#allocation2 + $0x32a] sm:$0xff]
  %v7548 = vld [vmem:[#allocation2 + $0x332] sm:$0xff]
  %v7549 = vld [vmem:[#allocation2 + $0x33a] sm:$0xff]
  %v7550 = vld [vmem:[#allocation2 + $0x342] sm:$0x3]
  %v7551 = vld [vmem:[#allocation2 + $0x342] sm:$0xff]
  %v7552 = vld [vmem:[#allocation2 + $0x34a] sm:$0x3]
  %v7553 = vld [vmem:[#allocation2 + $0x29b] sm:$0xff]
  %v7554 = vld [vmem:[#allocation2 + $0x2a3] sm:$0xff]
  %v7555 = vld [vmem:[#allocation2 + $0x2ab] sm:$0xff]
  %v7556 = vld [vmem:[#allocation2 + $0x2b3] sm:$0xff]
  %v7557 = vld [vmem:[#allocation2 + $0x2bb] sm:$0xff]
  %v7558 = vld [vmem:[#allocation2 + $0x2c3] sm:$0xff]
  %v7559 = vld [vmem:[#allocation2 + $0x2cb] sm:$0xff]
  %v7560 = vld [vmem:[#allocation2 + $0x2d3] sm:$0xff]
  %v7561 = vld [vmem:[#allocation2 + $0x2db] sm:$0xff]
  %v7562 = vld [vmem:[#allocation2 + $0x2e3] sm:$0xff]
  %v7563 = vld [vmem:[#allocation2 + $0x2eb] sm:$0xff]
  %v7564 = vld [vmem:[#allocation2 + $0x2f3] sm:$0xff]
  %v7565 = vld [vmem:[#allocation2 + $0x2fb] sm:$0xff]
  %v7566 = vld [vmem:[#allocation2 + $0x303] sm:$0xff]
  %v7567 = vld [vmem:[#allocation2 + $0x30b] sm:$0xff]
  %v7568 = vld [vmem:[#allocation2 + $0x313] sm:$0xff]
  %v7569 = vld [vmem:[#allocation2 + $0x31b] sm:$0xff]
  %v7570 = vld [vmem:[#allocation2 + $0x323] sm:$0xff]
  %v7571 = vld [vmem:[#allocation2 + $0x32b] sm:$0xff]
  %v7572 = vld [vmem:[#allocation2 + $0x333] sm:$0xff]
  %v7573 = vld [vmem:[#allocation2 + $0x33b] sm:$0xff]
  %v7574 = vld [vmem:[#allocation2 + $0x343] sm:$0xff]
  %v7575 = vld [vmem:[#allocation2 + $0x34b] sm:$0x3]
  %v7576 = vld [vmem:[#allocation2 + $0x29c] sm:$0xff]
  %v7577 = vld [vmem:[#allocation2 + $0x2a4] sm:$0xff]
  %v7578 = vld [vmem:[#allocation2 + $0x2ac] sm:$0xff]
  %v7579 = vld [vmem:[#allocation2 + $0x2b4] sm:$0xff]
  %v7580 = vld [vmem:[#allocation2 + $0x2bc] sm:$0xff]
  %v7581 = vld [vmem:[#allocation2 + $0x2c4] sm:$0xff]
  %v7582 = vld [vmem:[#allocation2 + $0x2cc] sm:$0xff]
  %v7583 = vld [vmem:[#allocation2 + $0x2d4] sm:$0xff]
  %v7584 = vld [vmem:[#allocation2 + $0x2dc] sm:$0xff]
  %v7585 = vld [vmem:[#allocation2 + $0x2e4] sm:$0xff]
  %v7586 = vld [vmem:[#allocation2 + $0x2ec] sm:$0xff]
  %v7587 = vld [vmem:[#allocation2 + $0x2f4] sm:$0xff]
  %v7588 = vld [vmem:[#allocation2 + $0x2fc] sm:$0xff]
  %v7589 = vld [vmem:[#allocation2 + $0x304] sm:$0xff]
  %v7590 = vld [vmem:[#allocation2 + $0x30c] sm:$0xff]
  %v7591 = vld [vmem:[#allocation2 + $0x314] sm:$0xff]
  %v7592 = vld [vmem:[#allocation2 + $0x31c] sm:$0xff]
  %v7593 = vld [vmem:[#allocation2 + $0x324] sm:$0xff]
  %v7594 = vld [vmem:[#allocation2 + $0x32c] sm:$0xff]
  %v7595 = vld [vmem:[#allocation2 + $0x334] sm:$0xff]
  %v7596 = vld [vmem:[#allocation2 + $0x33c] sm:$0xff]
  %v7597 = vld [vmem:[#allocation2 + $0x344] sm:$0xff]
  %v7598 = vld [vmem:[#allocation2 + $0x34c] sm:$0x3]
  %v7599 = vld [vmem:[#allocation2 + $0x34c] sm:$0xff]
  %v7600 = vld [vmem:[#allocation2 + $0x354] sm:$0x3]
  %v7601 = vld [vmem:[#allocation2 + $0x2a5] sm:$0xff]
  %v7602 = vld [vmem:[#allocation2 + $0x2ad] sm:$0xff]
  %v7603 = vld [vmem:[#allocation2 + $0x2b5] sm:$0xff]
  %v7604 = vld [vmem:[#allocation2 + $0x2bd] sm:$0xff]
  %v7605 = vld [vmem:[#allocation2 + $0x2c5] sm:$0xff]
  %v7606 = vld [vmem:[#allocation2 + $0x2cd] sm:$0xff]
  %v7607 = vld [vmem:[#allocation2 + $0x2d5] sm:$0xff]
  %v7608 = vld [vmem:[#allocation2 + $0x2dd] sm:$0xff]
  %v7609 = vld [vmem:[#allocation2 + $0x2e5] sm:$0xff]
  %v7610 = vld [vmem:[#allocation2 + $0x2ed] sm:$0xff]
  %v7611 = vld [vmem:[#allocation2 + $0x2f5] sm:$0xff]
  %v7612 = vld [vmem:[#allocation2 + $0x2fd] sm:$0xff]
  %v7613 = vld [vmem:[#allocation2 + $0x305] sm:$0xff]
  %v7614 = vld [vmem:[#allocation2 + $0x30d] sm:$0xff]
  %v7615 = vld [vmem:[#allocation2 + $0x315] sm:$0xff]
  %v7616 = vld [vmem:[#allocation2 + $0x31d] sm:$0xff]
  %v7617 = vld [vmem:[#allocation2 + $0x325] sm:$0xff]
  %v7618 = vld [vmem:[#allocation2 + $0x32d] sm:$0xff]
  %v7619 = vld [vmem:[#allocation2 + $0x335] sm:$0xff]
  %v7620 = vld [vmem:[#allocation2 + $0x33d] sm:$0xff]
  %v7621 = vld [vmem:[#allocation2 + $0x345] sm:$0xff]
  %v7622 = vld [vmem:[#allocation2 + $0x34d] sm:$0xff]
  %v7623 = vld [vmem:[#allocation2 + $0x355] sm:$0x3]
  %v7624 = vld [vmem:[#allocation2 + $0x2a6] sm:$0xff]
  %v7625 = vld [vmem:[#allocation2 + $0x2ae] sm:$0xff]
  %v7626 = vld [vmem:[#allocation2 + $0x2b6] sm:$0xff]
  %v7627 = vld [vmem:[#allocation2 + $0x2be] sm:$0xff]
  %v7628 = vld [vmem:[#allocation2 + $0x2c6] sm:$0xff]
  %v7629 = vld [vmem:[#allocation2 + $0x2ce] sm:$0xff]
  %v7630 = vld [vmem:[#allocation2 + $0x2d6] sm:$0xff]
  %v7631 = vld [vmem:[#allocation2 + $0x2de] sm:$0xff]
  %v7632 = vld [vmem:[#allocation2 + $0x2e6] sm:$0xff]
  %v7633 = vld [vmem:[#allocation2 + $0x2ee] sm:$0xff]
  %v7634 = vld [vmem:[#allocation2 + $0x2f6] sm:$0xff]
  %v7635 = vld [vmem:[#allocation2 + $0x2fe] sm:$0xff]
  %v7636 = vld [vmem:[#allocation2 + $0x306] sm:$0xff]
  %v7637 = vld [vmem:[#allocation2 + $0x30e] sm:$0xff]
  %v7638 = vld [vmem:[#allocation2 + $0x316] sm:$0xff]
  %v7639 = vld [vmem:[#allocation2 + $0x31e] sm:$0xff]
  %v7640 = vld [vmem:[#allocation2 + $0x326] sm:$0xff]
  %v7641 = vld [vmem:[#allocation2 + $0x32e] sm:$0xff]
  %v7642 = vld [vmem:[#allocation2 + $0x336] sm:$0xff]
  %v7643 = vld [vmem:[#allocation2 + $0x33e] sm:$0xff]
  %v7644 = vld [vmem:[#allocation2 + $0x346] sm:$0xff]
  %v7645 = vld [vmem:[#allocation2 + $0x34e] sm:$0xff]
  %v7646 = vld [vmem:[#allocation2 + $0x356] sm:$0x3]
  %7670 = vrot.lane.b32.xlu0 %v7505, 16
  %v7671 = vpop.permute.xlu0 %7670
  %7672 = vrot.lane.b32.xlu0 %v7506, 16
  %v7673 = vpop.permute.xlu0 %7672
  %7674 = vrot.lane.b32.xlu0 %v7507, 16
  %v7675 = vpop.permute.xlu0 %7674
  %7676 = vrot.lane.b32.xlu0 %v7508, 16
  %v7677 = vpop.permute.xlu0 %7676
  %7678 = vrot.lane.b32.xlu0 %v7509, 16
  %v7679 = vpop.permute.xlu0 %7678
  %7680 = vrot.lane.b32.xlu0 %v7510, 16
  %v7681 = vpop.permute.xlu0 %7680
  %7682 = vrot.lane.b32.xlu0 %v7511, 16
  %v7683 = vpop.permute.xlu0 %7682
  %7684 = vrot.lane.b32.xlu0 %v7512, 16
  %v7685 = vpop.permute.xlu0 %7684
  %7686 = vrot.lane.b32.xlu0 %v7513, 16
  %v7687 = vpop.permute.xlu0 %7686
  %7688 = vrot.lane.b32.xlu0 %v7514, 16
  %v7689 = vpop.permute.xlu0 %7688
  %7690 = vrot.lane.b32.xlu0 %v7515, 16
  %v7691 = vpop.permute.xlu0 %7690
  %7692 = vrot.lane.b32.xlu0 %v7516, 16
  %v7693 = vpop.permute.xlu0 %7692
  %7694 = vrot.lane.b32.xlu0 %v7517, 16
  %v7695 = vpop.permute.xlu0 %7694
  %7696 = vrot.lane.b32.xlu0 %v7518, 16
  %v7697 = vpop.permute.xlu0 %7696
  %7698 = vrot.lane.b32.xlu0 %v7519, 16
  %v7699 = vpop.permute.xlu0 %7698
  %7700 = vrot.lane.b32.xlu0 %v7520, 16
  %v7701 = vpop.permute.xlu0 %7700
  %7702 = vrot.lane.b32.xlu0 %v7521, 16
  %v7703 = vpop.permute.xlu0 %7702
  %7704 = vrot.lane.b32.xlu0 %v7522, 16
  %v7705 = vpop.permute.xlu0 %7704
  %7706 = vrot.lane.b32.xlu0 %v7523, 16
  %v7707 = vpop.permute.xlu0 %7706
  %7708 = vrot.lane.b32.xlu0 %v7524, 16
  %v7709 = vpop.permute.xlu0 %7708
  %7710 = vrot.lane.b32.xlu0 %v7525, 16
  %v7711 = vpop.permute.xlu0 %7710
  %7712 = vrot.lane.b32.xlu0 %v7526, 16
  %v7713 = vpop.permute.xlu0 %7712
  %7714 = vrot.lane.b32.xlu0 %v7527, 16
  %v7715 = vpop.permute.xlu0 %7714
  %7762 = vrot.lane.b32.xlu0 %v7528, 32
  %v7763 = vpop.permute.xlu0 %7762
  %7764 = vrot.lane.b32.xlu0 %v7529, 32
  %v7765 = vpop.permute.xlu0 %7764
  %7766 = vrot.lane.b32.xlu0 %v7530, 32
  %v7767 = vpop.permute.xlu0 %7766
  %7768 = vrot.lane.b32.xlu0 %v7531, 32
  %v7769 = vpop.permute.xlu0 %7768
  %7770 = vrot.lane.b32.xlu0 %v7532, 32
  %v7771 = vpop.permute.xlu0 %7770
  %7772 = vrot.lane.b32.xlu0 %v7533, 32
  %v7773 = vpop.permute.xlu0 %7772
  %7774 = vrot.lane.b32.xlu0 %v7534, 32
  %v7775 = vpop.permute.xlu0 %7774
  %7776 = vrot.lane.b32.xlu0 %v7535, 32
  %v7777 = vpop.permute.xlu0 %7776
  %7778 = vrot.lane.b32.xlu0 %v7536, 32
  %v7779 = vpop.permute.xlu0 %7778
  %7780 = vrot.lane.b32.xlu0 %v7537, 32
  %v7781 = vpop.permute.xlu0 %7780
  %7782 = vrot.lane.b32.xlu0 %v7538, 32
  %v7783 = vpop.permute.xlu0 %7782
  %7784 = vrot.lane.b32.xlu0 %v7539, 32
  %v7785 = vpop.permute.xlu0 %7784
  %7786 = vrot.lane.b32.xlu0 %v7540, 32
  %v7787 = vpop.permute.xlu0 %7786
  %7788 = vrot.lane.b32.xlu0 %v7541, 32
  %v7789 = vpop.permute.xlu0 %7788
  %7790 = vrot.lane.b32.xlu0 %v7542, 32
  %v7791 = vpop.permute.xlu0 %7790
  %7792 = vrot.lane.b32.xlu0 %v7543, 32
  %v7793 = vpop.permute.xlu0 %7792
  %7794 = vrot.lane.b32.xlu0 %v7544, 32
  %v7795 = vpop.permute.xlu0 %7794
  %7796 = vrot.lane.b32.xlu0 %v7545, 32
  %v7797 = vpop.permute.xlu0 %7796
  %7798 = vrot.lane.b32.xlu0 %v7546, 32
  %v7799 = vpop.permute.xlu0 %7798
  %7800 = vrot.lane.b32.xlu0 %v7547, 32
  %v7801 = vpop.permute.xlu0 %7800
  %7802 = vrot.lane.b32.xlu0 %v7548, 32
  %v7803 = vpop.permute.xlu0 %7802
  %7804 = vrot.lane.b32.xlu0 %v7549, 32
  %v7805 = vpop.permute.xlu0 %7804
  %7806 = vrot.lane.b32.xlu0 %v7550, 32
  %v7807 = vpop.permute.xlu0 %7806
  %7833 = vrot.lane.b32.xlu0 %v7529, 48
  %v7834 = vpop.permute.xlu0 %7833
  %7835 = vrot.lane.b32.xlu0 %v7530, 48
  %v7836 = vpop.permute.xlu0 %7835
  %7837 = vrot.lane.b32.xlu0 %v7531, 48
  %v7838 = vpop.permute.xlu0 %7837
  %7839 = vrot.lane.b32.xlu0 %v7532, 48
  %v7840 = vpop.permute.xlu0 %7839
  %7841 = vrot.lane.b32.xlu0 %v7533, 48
  %v7842 = vpop.permute.xlu0 %7841
  %7843 = vrot.lane.b32.xlu0 %v7534, 48
  %v7844 = vpop.permute.xlu0 %7843
  %7845 = vrot.lane.b32.xlu0 %v7535, 48
  %v7846 = vpop.permute.xlu0 %7845
  %7847 = vrot.lane.b32.xlu0 %v7536, 48
  %v7848 = vpop.permute.xlu0 %7847
  %7849 = vrot.lane.b32.xlu0 %v7537, 48
  %v7850 = vpop.permute.xlu0 %7849
  %7851 = vrot.lane.b32.xlu0 %v7538, 48
  %v7852 = vpop.permute.xlu0 %7851
  %7853 = vrot.lane.b32.xlu0 %v7539, 48
  %v7854 = vpop.permute.xlu0 %7853
  %7855 = vrot.lane.b32.xlu0 %v7540, 48
  %v7856 = vpop.permute.xlu0 %7855
  %7857 = vrot.lane.b32.xlu0 %v7541, 48
  %v7858 = vpop.permute.xlu0 %7857
  %7859 = vrot.lane.b32.xlu0 %v7542, 48
  %v7860 = vpop.permute.xlu0 %7859
  %7861 = vrot.lane.b32.xlu0 %v7543, 48
  %v7862 = vpop.permute.xlu0 %7861
  %7863 = vrot.lane.b32.xlu0 %v7544, 48
  %v7864 = vpop.permute.xlu0 %7863
  %7865 = vrot.lane.b32.xlu0 %v7545, 48
  %v7866 = vpop.permute.xlu0 %7865
  %7867 = vrot.lane.b32.xlu0 %v7546, 48
  %v7868 = vpop.permute.xlu0 %7867
  %7869 = vrot.lane.b32.xlu0 %v7547, 48
  %v7870 = vpop.permute.xlu0 %7869
  %7871 = vrot.lane.b32.xlu0 %v7548, 48
  %v7872 = vpop.permute.xlu0 %7871
  %7873 = vrot.lane.b32.xlu0 %v7549, 48
  %v7874 = vpop.permute.xlu0 %7873
  %7875 = vrot.lane.b32.xlu0 %v7551, 48
  %v7876 = vpop.permute.xlu0 %7875
  %7877 = vrot.lane.b32.xlu0 %v7552, 48
  %v7878 = vpop.permute.xlu0 %7877
  %7925 = vrot.lane.b32.xlu0 %v7553, 64
  %v7926 = vpop.permute.xlu0 %7925
  %7927 = vrot.lane.b32.xlu0 %v7554, 64
  %v7928 = vpop.permute.xlu0 %7927
  %7929 = vrot.lane.b32.xlu0 %v7555, 64
  %v7930 = vpop.permute.xlu0 %7929
  %7931 = vrot.lane.b32.xlu0 %v7556, 64
  %v7932 = vpop.permute.xlu0 %7931
  %7933 = vrot.lane.b32.xlu0 %v7557, 64
  %v7934 = vpop.permute.xlu0 %7933
  %7935 = vrot.lane.b32.xlu0 %v7558, 64
  %v7936 = vpop.permute.xlu0 %7935
  %7937 = vrot.lane.b32.xlu0 %v7559, 64
  %v7938 = vpop.permute.xlu0 %7937
  %7939 = vrot.lane.b32.xlu0 %v7560, 64
  %v7940 = vpop.permute.xlu0 %7939
  %7941 = vrot.lane.b32.xlu0 %v7561, 64
  %v7942 = vpop.permute.xlu0 %7941
  %7943 = vrot.lane.b32.xlu0 %v7562, 64
  %v7944 = vpop.permute.xlu0 %7943
  %7945 = vrot.lane.b32.xlu0 %v7563, 64
  %v7946 = vpop.permute.xlu0 %7945
  %7947 = vrot.lane.b32.xlu0 %v7564, 64
  %v7948 = vpop.permute.xlu0 %7947
  %7949 = vrot.lane.b32.xlu0 %v7565, 64
  %v7950 = vpop.permute.xlu0 %7949
  %7951 = vrot.lane.b32.xlu0 %v7566, 64
  %v7952 = vpop.permute.xlu0 %7951
  %7953 = vrot.lane.b32.xlu0 %v7567, 64
  %v7954 = vpop.permute.xlu0 %7953
  %7955 = vrot.lane.b32.xlu0 %v7568, 64
  %v7956 = vpop.permute.xlu0 %7955
  %7957 = vrot.lane.b32.xlu0 %v7569, 64
  %v7958 = vpop.permute.xlu0 %7957
  %7959 = vrot.lane.b32.xlu0 %v7570, 64
  %v7960 = vpop.permute.xlu0 %7959
  %7961 = vrot.lane.b32.xlu0 %v7571, 64
  %v7962 = vpop.permute.xlu0 %7961
  %7963 = vrot.lane.b32.xlu0 %v7572, 64
  %v7964 = vpop.permute.xlu0 %7963
  %7965 = vrot.lane.b32.xlu0 %v7573, 64
  %v7966 = vpop.permute.xlu0 %7965
  %7967 = vrot.lane.b32.xlu0 %v7574, 64
  %v7968 = vpop.permute.xlu0 %7967
  %7969 = vrot.lane.b32.xlu0 %v7575, 64
  %v7970 = vpop.permute.xlu0 %7969
  %8017 = vrot.lane.b32.xlu0 %v7576, 80
  %v8018 = vpop.permute.xlu0 %8017
  %8019 = vrot.lane.b32.xlu0 %v7577, 80
  %v8020 = vpop.permute.xlu0 %8019
  %8021 = vrot.lane.b32.xlu0 %v7578, 80
  %v8022 = vpop.permute.xlu0 %8021
  %8023 = vrot.lane.b32.xlu0 %v7579, 80
  %v8024 = vpop.permute.xlu0 %8023
  %8025 = vrot.lane.b32.xlu0 %v7580, 80
  %v8026 = vpop.permute.xlu0 %8025
  %8027 = vrot.lane.b32.xlu0 %v7581, 80
  %v8028 = vpop.permute.xlu0 %8027
  %8029 = vrot.lane.b32.xlu0 %v7582, 80
  %v8030 = vpop.permute.xlu0 %8029
  %8031 = vrot.lane.b32.xlu0 %v7583, 80
  %v8032 = vpop.permute.xlu0 %8031
  %8033 = vrot.lane.b32.xlu0 %v7584, 80
  %v8034 = vpop.permute.xlu0 %8033
  %8035 = vrot.lane.b32.xlu0 %v7585, 80
  %v8036 = vpop.permute.xlu0 %8035
  %8037 = vrot.lane.b32.xlu0 %v7586, 80
  %v8038 = vpop.permute.xlu0 %8037
  %8039 = vrot.lane.b32.xlu0 %v7587, 80
  %v8040 = vpop.permute.xlu0 %8039
  %8041 = vrot.lane.b32.xlu0 %v7588, 80
  %v8042 = vpop.permute.xlu0 %8041
  %8043 = vrot.lane.b32.xlu0 %v7589, 80
  %v8044 = vpop.permute.xlu0 %8043
  %8045 = vrot.lane.b32.xlu0 %v7590, 80
  %v8046 = vpop.permute.xlu0 %8045
  %8047 = vrot.lane.b32.xlu0 %v7591, 80
  %v8048 = vpop.permute.xlu0 %8047
  %8049 = vrot.lane.b32.xlu0 %v7592, 80
  %v8050 = vpop.permute.xlu0 %8049
  %8051 = vrot.lane.b32.xlu0 %v7593, 80
  %v8052 = vpop.permute.xlu0 %8051
  %8053 = vrot.lane.b32.xlu0 %v7594, 80
  %v8054 = vpop.permute.xlu0 %8053
  %8055 = vrot.lane.b32.xlu0 %v7595, 80
  %v8056 = vpop.permute.xlu0 %8055
  %8057 = vrot.lane.b32.xlu0 %v7596, 80
  %v8058 = vpop.permute.xlu0 %8057
  %8059 = vrot.lane.b32.xlu0 %v7597, 80
  %v8060 = vpop.permute.xlu0 %8059
  %8061 = vrot.lane.b32.xlu0 %v7598, 80
  %v8062 = vpop.permute.xlu0 %8061
  %8088 = vrot.lane.b32.xlu0 %v7577, 96
  %v8089 = vpop.permute.xlu0 %8088
  %8090 = vrot.lane.b32.xlu0 %v7578, 96
  %v8091 = vpop.permute.xlu0 %8090
  %8092 = vrot.lane.b32.xlu0 %v7579, 96
  %v8093 = vpop.permute.xlu0 %8092
  %8094 = vrot.lane.b32.xlu0 %v7580, 96
  %v8095 = vpop.permute.xlu0 %8094
  %8096 = vrot.lane.b32.xlu0 %v7581, 96
  %v8097 = vpop.permute.xlu0 %8096
  %8098 = vrot.lane.b32.xlu0 %v7582, 96
  %v8099 = vpop.permute.xlu0 %8098
  %8100 = vrot.lane.b32.xlu0 %v7583, 96
  %v8101 = vpop.permute.xlu0 %8100
  %8102 = vrot.lane.b32.xlu0 %v7584, 96
  %v8103 = vpop.permute.xlu0 %8102
  %8104 = vrot.lane.b32.xlu0 %v7585, 96
  %v8105 = vpop.permute.xlu0 %8104
  %8106 = vrot.lane.b32.xlu0 %v7586, 96
  %v8107 = vpop.permute.xlu0 %8106
  %8108 = vrot.lane.b32.xlu0 %v7587, 96
  %v8109 = vpop.permute.xlu0 %8108
  %8110 = vrot.lane.b32.xlu0 %v7588, 96
  %v8111 = vpop.permute.xlu0 %8110
  %8112 = vrot.lane.b32.xlu0 %v7589, 96
  %v8113 = vpop.permute.xlu0 %8112
  %8114 = vrot.lane.b32.xlu0 %v7590, 96
  %v8115 = vpop.permute.xlu0 %8114
  %8116 = vrot.lane.b32.xlu0 %v7591, 96
  %v8117 = vpop.permute.xlu0 %8116
  %8118 = vrot.lane.b32.xlu0 %v7592, 96
  %v8119 = vpop.permute.xlu0 %8118
  %8120 = vrot.lane.b32.xlu0 %v7593, 96
  %v8121 = vpop.permute.xlu0 %8120
  %8122 = vrot.lane.b32.xlu0 %v7594, 96
  %v8123 = vpop.permute.xlu0 %8122
  %8124 = vrot.lane.b32.xlu0 %v7595, 96
  %v8125 = vpop.permute.xlu0 %8124
  %8126 = vrot.lane.b32.xlu0 %v7596, 96
  %v8127 = vpop.permute.xlu0 %8126
  %8128 = vrot.lane.b32.xlu0 %v7597, 96
  %v8129 = vpop.permute.xlu0 %8128
  %8130 = vrot.lane.b32.xlu0 %v7599, 96
  %v8131 = vpop.permute.xlu0 %8130
  %8132 = vrot.lane.b32.xlu0 %v7600, 96
  %v8133 = vpop.permute.xlu0 %8132
  %8180 = vrot.lane.b32.xlu0 %v7601, 112
  %v8181 = vpop.permute.xlu0 %8180
  %8182 = vrot.lane.b32.xlu0 %v7602, 112
  %v8183 = vpop.permute.xlu0 %8182
  %8184 = vrot.lane.b32.xlu0 %v7603, 112
  %v8185 = vpop.permute.xlu0 %8184
  %8186 = vrot.lane.b32.xlu0 %v7604, 112
  %v8187 = vpop.permute.xlu0 %8186
  %8188 = vrot.lane.b32.xlu0 %v7605, 112
  %v8189 = vpop.permute.xlu0 %8188
  %8190 = vrot.lane.b32.xlu0 %v7606, 112
  %v8191 = vpop.permute.xlu0 %8190
  %8192 = vrot.lane.b32.xlu0 %v7607, 112
  %v8193 = vpop.permute.xlu0 %8192
  %8194 = vrot.lane.b32.xlu0 %v7608, 112
  %v8195 = vpop.permute.xlu0 %8194
  %8196 = vrot.lane.b32.xlu0 %v7609, 112
  %v8197 = vpop.permute.xlu0 %8196
  %8198 = vrot.lane.b32.xlu0 %v7610, 112
  %v8199 = vpop.permute.xlu0 %8198
  %8200 = vrot.lane.b32.xlu0 %v7611, 112
  %v8201 = vpop.permute.xlu0 %8200
  %8202 = vrot.lane.b32.xlu0 %v7612, 112
  %v8203 = vpop.permute.xlu0 %8202
  %8204 = vrot.lane.b32.xlu0 %v7613, 112
  %v8205 = vpop.permute.xlu0 %8204
  %8206 = vrot.lane.b32.xlu0 %v7614, 112
  %v8207 = vpop.permute.xlu0 %8206
  %8208 = vrot.lane.b32.xlu0 %v7615, 112
  %v8209 = vpop.permute.xlu0 %8208
  %8210 = vrot.lane.b32.xlu0 %v7616, 112
  %v8211 = vpop.permute.xlu0 %8210
  %8212 = vrot.lane.b32.xlu0 %v7617, 112
  %v8213 = vpop.permute.xlu0 %8212
  %8214 = vrot.lane.b32.xlu0 %v7618, 112
  %v8215 = vpop.permute.xlu0 %8214
  %8216 = vrot.lane.b32.xlu0 %v7619, 112
  %v8217 = vpop.permute.xlu0 %8216
  %8218 = vrot.lane.b32.xlu0 %v7620, 112
  %v8219 = vpop.permute.xlu0 %8218
  %8220 = vrot.lane.b32.xlu0 %v7621, 112
  %v8221 = vpop.permute.xlu0 %8220
  %8222 = vrot.lane.b32.xlu0 %v7622, 112
  %v8223 = vpop.permute.xlu0 %8222
  %8224 = vrot.lane.b32.xlu0 %v7623, 112
  %v8225 = vpop.permute.xlu0 %8224
  %v8249 = vsel %vm55, %v7482, %v7671
  %v8250 = vsel %vm55, %v7483, %v7673
  %v8251 = vsel %vm55, %v7484, %v7675
  %v8252 = vsel %vm55, %v7485, %v7677
  %v8253 = vsel %vm55, %v7486, %v7679
  %v8254 = vsel %vm55, %v7487, %v7681
  %v8255 = vsel %vm55, %v7488, %v7683
  %v8256 = vsel %vm55, %v7489, %v7685
  %v8257 = vsel %vm55, %v7490, %v7687
  %v8258 = vsel %vm55, %v7491, %v7689
  %v8259 = vsel %vm55, %v7492, %v7691
  %v8260 = vsel %vm55, %v7493, %v7693
  %v8261 = vsel %vm55, %v7494, %v7695
  %v8262 = vsel %vm55, %v7495, %v7697
  %v8263 = vsel %vm55, %v7496, %v7699
  %v8264 = vsel %vm55, %v7497, %v7701
  %v8265 = vsel %vm55, %v7498, %v7703
  %v8266 = vsel %vm55, %v7499, %v7705
  %v8267 = vsel %vm55, %v7500, %v7707
  %v8268 = vsel %vm55, %v7501, %v7709
  %v8269 = vsel %vm55, %v7502, %v7711
  %v8270 = vsel %vm55, %v7503, %v7713
  %v8271 = vsel %vm55, %v7504, %v7715
  %vm8272 = vcmask 261120
  %v8273 = vsel %vm8272, %v8249, %v7763
  %v8274 = vsel %vm8272, %v8250, %v7765
  %v8275 = vsel %vm8272, %v8251, %v7767
  %v8276 = vsel %vm8272, %v8252, %v7769
  %v8277 = vsel %vm8272, %v8253, %v7771
  %v8278 = vsel %vm8272, %v8254, %v7773
  %v8279 = vsel %vm8272, %v8255, %v7775
  %v8280 = vsel %vm8272, %v8256, %v7777
  %v8281 = vsel %vm8272, %v8257, %v7779
  %v8282 = vsel %vm8272, %v8258, %v7781
  %v8283 = vsel %vm8272, %v8259, %v7783
  %v8284 = vsel %vm8272, %v8260, %v7785
  %v8285 = vsel %vm8272, %v8261, %v7787
  %v8286 = vsel %vm8272, %v8262, %v7789
  %v8287 = vsel %vm8272, %v8263, %v7791
  %v8288 = vsel %vm8272, %v8264, %v7793
  %v8289 = vsel %vm8272, %v8265, %v7795
  %v8290 = vsel %vm8272, %v8266, %v7797
  %v8291 = vsel %vm8272, %v8267, %v7799
  %v8292 = vsel %vm8272, %v8268, %v7801
  %v8293 = vsel %vm8272, %v8269, %v7803
  %v8294 = vsel %vm8272, %v8270, %v7805
  %v8295 = vsel %vm8272, %v8271, %v7807
  %vm8296 = vcmask 392192
  %v8297 = vsel %vm8296, %v8273, %v7834
  %v8298 = vsel %vm8296, %v8274, %v7836
  %v8299 = vsel %vm8296, %v8275, %v7838
  %v8300 = vsel %vm8296, %v8276, %v7840
  %v8301 = vsel %vm8296, %v8277, %v7842
  %v8302 = vsel %vm8296, %v8278, %v7844
  %v8303 = vsel %vm8296, %v8279, %v7846
  %v8304 = vsel %vm8296, %v8280, %v7848
  %v8305 = vsel %vm8296, %v8281, %v7850
  %v8306 = vsel %vm8296, %v8282, %v7852
  %v8307 = vsel %vm8296, %v8283, %v7854
  %v8308 = vsel %vm8296, %v8284, %v7856
  %v8309 = vsel %vm8296, %v8285, %v7858
  %v8310 = vsel %vm8296, %v8286, %v7860
  %v8311 = vsel %vm8296, %v8287, %v7862
  %v8312 = vsel %vm8296, %v8288, %v7864
  %v8313 = vsel %vm8296, %v8289, %v7866
  %v8314 = vsel %vm8296, %v8290, %v7868
  %v8315 = vsel %vm8296, %v8291, %v7870
  %v8316 = vsel %vm8296, %v8292, %v7872
  %v8317 = vsel %vm8296, %v8293, %v7874
  %v8318 = vsel %vm8296, %v8294, %v7876
  %v8319 = vsel %vm8296, %v8295, %v7878
  %vm8320 = vcmask 523264
  %v8321 = vsel %vm8320, %v8297, %v7926
  %v8322 = vsel %vm8320, %v8298, %v7928
  %v8323 = vsel %vm8320, %v8299, %v7930
  %v8324 = vsel %vm8320, %v8300, %v7932
  %v8325 = vsel %vm8320, %v8301, %v7934
  %v8326 = vsel %vm8320, %v8302, %v7936
  %v8327 = vsel %vm8320, %v8303, %v7938
  %v8328 = vsel %vm8320, %v8304, %v7940
  %v8329 = vsel %vm8320, %v8305, %v7942
  %v8330 = vsel %vm8320, %v8306, %v7944
  %v8331 = vsel %vm8320, %v8307, %v7946
  %v8332 = vsel %vm8320, %v8308, %v7948
  %v8333 = vsel %vm8320, %v8309, %v7950
  %v8334 = vsel %vm8320, %v8310, %v7952
  %v8335 = vsel %vm8320, %v8311, %v7954
  %v8336 = vsel %vm8320, %v8312, %v7956
  %v8337 = vsel %vm8320, %v8313, %v7958
  %v8338 = vsel %vm8320, %v8314, %v7960
  %v8339 = vsel %vm8320, %v8315, %v7962
  %v8340 = vsel %vm8320, %v8316, %v7964
  %v8341 = vsel %vm8320, %v8317, %v7966
  %v8342 = vsel %vm8320, %v8318, %v7968
  %v8343 = vsel %vm8320, %v8319, %v7970
  %vm8344 = vcmask 654336
  %v8345 = vsel %vm8344, %v8321, %v8018
  %v8346 = vsel %vm8344, %v8322, %v8020
  %v8347 = vsel %vm8344, %v8323, %v8022
  %v8348 = vsel %vm8344, %v8324, %v8024
  %v8349 = vsel %vm8344, %v8325, %v8026
  %v8350 = vsel %vm8344, %v8326, %v8028
  %v8351 = vsel %vm8344, %v8327, %v8030
  %v8352 = vsel %vm8344, %v8328, %v8032
  %v8353 = vsel %vm8344, %v8329, %v8034
  %v8354 = vsel %vm8344, %v8330, %v8036
  %v8355 = vsel %vm8344, %v8331, %v8038
  %v8356 = vsel %vm8344, %v8332, %v8040
  %v8357 = vsel %vm8344, %v8333, %v8042
  %v8358 = vsel %vm8344, %v8334, %v8044
  %v8359 = vsel %vm8344, %v8335, %v8046
  %v8360 = vsel %vm8344, %v8336, %v8048
  %v8361 = vsel %vm8344, %v8337, %v8050
  %v8362 = vsel %vm8344, %v8338, %v8052
  %v8363 = vsel %vm8344, %v8339, %v8054
  %v8364 = vsel %vm8344, %v8340, %v8056
  %v8365 = vsel %vm8344, %v8341, %v8058
  %v8366 = vsel %vm8344, %v8342, %v8060
  %v8367 = vsel %vm8344, %v8343, %v8062
  %vm8368 = vcmask 785408
  %v8369 = vsel %vm8368, %v8345, %v8089
  %v8370 = vsel %vm8368, %v8346, %v8091
  %v8371 = vsel %vm8368, %v8347, %v8093
  %v8372 = vsel %vm8368, %v8348, %v8095
  %v8373 = vsel %vm8368, %v8349, %v8097
  %v8374 = vsel %vm8368, %v8350, %v8099
  %v8375 = vsel %vm8368, %v8351, %v8101
  %v8376 = vsel %vm8368, %v8352, %v8103
  %v8377 = vsel %vm8368, %v8353, %v8105
  %v8378 = vsel %vm8368, %v8354, %v8107
  %v8379 = vsel %vm8368, %v8355, %v8109
  %v8380 = vsel %vm8368, %v8356, %v8111
  %v8381 = vsel %vm8368, %v8357, %v8113
  %v8382 = vsel %vm8368, %v8358, %v8115
  %v8383 = vsel %vm8368, %v8359, %v8117
  %v8384 = vsel %vm8368, %v8360, %v8119
  %v8385 = vsel %vm8368, %v8361, %v8121
  %v8386 = vsel %vm8368, %v8362, %v8123
  %v8387 = vsel %vm8368, %v8363, %v8125
  %v8388 = vsel %vm8368, %v8364, %v8127
  %v8389 = vsel %vm8368, %v8365, %v8129
  %v8390 = vsel %vm8368, %v8366, %v8131
  %v8391 = vsel %vm8368, %v8367, %v8133
  %vm8392 = vcmask 916480
  %v8393 = vsel %vm8392, %v8369, %v8181
  %v8394 = vsel %vm8392, %v8370, %v8183
  %v8395 = vsel %vm8392, %v8371, %v8185
  %v8396 = vsel %vm8392, %v8372, %v8187
  %v8397 = vsel %vm8392, %v8373, %v8189
  %v8398 = vsel %vm8392, %v8374, %v8191
  %v8399 = vsel %vm8392, %v8375, %v8193
  %v8400 = vsel %vm8392, %v8376, %v8195
  %v8401 = vsel %vm8392, %v8377, %v8197
  %v8402 = vsel %vm8392, %v8378, %v8199
  %v8403 = vsel %vm8392, %v8379, %v8201
  %v8404 = vsel %vm8392, %v8380, %v8203
  %v8405 = vsel %vm8392, %v8381, %v8205
  %v8406 = vsel %vm8392, %v8382, %v8207
  %v8407 = vsel %vm8392, %v8383, %v8209
  %v8408 = vsel %vm8392, %v8384, %v8211
  %v8409 = vsel %vm8392, %v8385, %v8213
  %v8410 = vsel %vm8392, %v8386, %v8215
  %v8411 = vsel %vm8392, %v8387, %v8217
  %v8412 = vsel %vm8392, %v8388, %v8219
  %v8413 = vsel %vm8392, %v8389, %v8221
  %v8414 = vsel %vm8392, %v8390, %v8223
  %v8415 = vsel %vm8392, %v8391, %v8225
  %v8416 = vlaneseq
  %v8417 = vshrl.u32 %v8416, 7
  %v8418 = vsub.s32 0, %v8417
  %v8419 = vrot.slane %v48, %v8418
  %v8421 = vsel %vm55, %v7624, 0
  %v8424 = vsel %vm55, %v7625, 0
  %v8427 = vsel %vm55, %v7626, 0
  %v8430 = vsel %vm55, %v7627, 0
  %v8433 = vsel %vm55, %v7628, 0
  %v8436 = vsel %vm55, %v7629, 0
  %v8439 = vsel %vm55, %v7630, 0
  %v8442 = vsel %vm55, %v7631, 0
  %v8445 = vsel %vm55, %v7632, 0
  %v8448 = vsel %vm55, %v7633, 0
  %v8451 = vsel %vm55, %v7634, 0
  %v8454 = vsel %vm55, %v7635, 0
  %v8457 = vsel %vm55, %v7636, 0
  %v8460 = vsel %vm55, %v7637, 0
  %v8463 = vsel %vm55, %v7638, 0
  %v8466 = vsel %vm55, %v7639, 0
  %v8469 = vsel %vm55, %v7640, 0
  %v8472 = vsel %vm55, %v7641, 0
  %v8475 = vsel %vm55, %v7642, 0
  %v8478 = vsel %vm55, %v7643, 0
  %v8481 = vsel %vm55, %v7644, 0
  %v8484 = vsel %vm55, %v7645, 0
  %v8487 = vsel %vm55, %v7646, 0
  %8489 = vmatprep.subr.mxu0 0.0
  %8490 = vmatpush1.msra.mxu0 %v18
  %8491 = vmatprep.subr.mxu0 0.0
  %8492 = vmatpush1.msra.mxu0 %v19
  %8493 = vmatprep.subr.mxu0 0.0
  %8494 = vmatpush1.msra.mxu0 %v20
  %8495 = vmatprep.subr.mxu0 0.0
  %8496 = vmatpush1.msra.mxu0 %v21
  %8497 = vmatprep.subr.mxu0 0.0
  %8498 = vmatpush1.msra.mxu0 %v22
  %8499 = vmatprep.subr.mxu0 0.0
  %8500 = vmatpush1.msra.mxu0 %v23
  %8501 = vmatprep.subr.mxu0 0.0
  %8502 = vmatpush1.msra.mxu0 %v24
  %8503 = vmatprep.subr.mxu0 0.0
  %8504 = vmatpush1.msra.mxu0 %v25
  %8505 = vmatprep.subr.mxu0 0.0
  %8506 = vmatpush1.msra.mxu0 %v26
  %8507 = vmatprep.subr.mxu0 0.0
  %8508 = vmatpush1.msra.mxu0 %v27
  %8509 = vmatprep.subr.mxu0 0.0
  %8510 = vmatpush1.msra.mxu0 %v28
  %8511 = vmatprep.subr.mxu0 0.0
  %8512 = vmatpush1.msra.mxu0 %v29
  %8513 = vmatprep.subr.mxu0 0.0
  %8514 = vmatpush1.msra.mxu0 %v30
  %8515 = vmatprep.subr.mxu0 0.0
  %8516 = vmatpush1.msra.mxu0 %v31
  %8517 = vmatprep.subr.mxu0 0.0
  %8518 = vmatpush1.msra.mxu0 %v32
  %8519 = vmatprep.subr.mxu0 0.0
  %8520 = vmatpush1.msra.mxu0 %v33
  %8521 = vmatprep.subr.mxu0 0.0
  %8522 = vmatpush1.msra.mxu0 %v34
  %8523 = vmatprep.subr.mxu0 0.0
  %8524 = vmatpush1.msra.mxu0 %v35
  %8525 = vmatprep.subr.mxu0 0.0
  %8526 = vmatpush1.msra.mxu0 0.0
  %8527 = vmatprep.subr.mxu0 0.0
  %8528 = vmatpush1.msra.mxu0 0.0
  %8529 = vmatprep.subr.mxu0 0.0
  %8530 = vmatpush1.msra.mxu0 0.0
  %8531 = vmatprep.subr.mxu0 0.0
  %8532 = vmatpush1.msra.mxu0 0.0
  %8533 = vmatprep.subr.mxu0 0.0
  %8534 = vmatpush1.msra.mxu0 0.0
  %8535 = vmatprep.subr.mxu0 0.0
  %8536 = vmatpush1.msra.mxu0 0.0
  %8537 = vmatprep.subr.mxu0 0.0
  %8538 = vmatpush1.msra.mxu0 0.0
  %8539 = vmatprep.subr.mxu0 0.0
  %8540 = vmatpush1.msra.mxu0 0.0
  %8541 = vmatprep.subr.mxu0 0.0
  %8542 = vmatpush1.msra.mxu0 0.0
  %8543 = vmatprep.subr.mxu0 0.0
  %8544 = vmatpush1.msra.mxu0 0.0
  %8545 = vmatprep.subr.mxu0 0.0
  %8546 = vmatpush1.msra.mxu0 0.0
  %8547 = vmatprep.subr.mxu0 0.0
  %8548 = vmatpush1.msra.mxu0 0.0
  %8549 = vmatprep.subr.mxu0 0.0
  %8550 = vmatpush1.msra.mxu0 0.0
  %8551 = vmatprep.subr.mxu0 0.0
  %8552 = vmatpush1.msra.mxu0 0.0
  %8553 = vmatprep.mubr.f32.mxu0 %v8421
  %8554 = vmatmul.mubr.f32.gmra.mrb[0].mxu0 %v8393
  %v8555 = vpop.f32.mrb[0].mxu0
  %v8556 = vadd.f32 %v8419, %v8555
  %v8557 = vpop.f32.mrb[0].mxu0
  %8558 = vmatprep.mubr.f32.mxu0 %v8424
  %8559 = vmatmul.mubr.f32.gmra.mrb[0].mxu0 %v8394
  %v8560 = vpop.f32.mrb[0].mxu0
  %v8561 = vadd.f32 %v8419, %v8560
  %v8562 = vpop.f32.mrb[0].mxu0
  %8563 = vmatprep.mubr.f32.mxu0 %v8427
  %8564 = vmatmul.mubr.f32.gmra.mrb[0].mxu0 %v8395
  %v8565 = vpop.f32.mrb[0].mxu0
  %v8566 = vadd.f32 %v8419, %v8565
  %v8567 = vpop.f32.mrb[0].mxu0
  %8568 = vmatprep.mubr.f32.mxu0 %v8430
  %8569 = vmatmul.mubr.f32.gmra.mrb[0].mxu0 %v8396
  %v8570 = vpop.f32.mrb[0].mxu0
  %v8571 = vadd.f32 %v8419, %v8570
  %v8572 = vpop.f32.mrb[0].mxu0
  %8573 = vmatprep.mubr.f32.mxu0 %v8433
  %8574 = vmatmul.mubr.f32.gmra.mrb[0].mxu0 %v8397
  %v8575 = vpop.f32.mrb[0].mxu0
  %v8576 = vadd.f32 %v8419, %v8575
  %v8577 = vpop.f32.mrb[0].mxu0
  %8578 = vmatprep.mubr.f32.mxu0 %v8436
  %8579 = vmatmul.mubr.f32.gmra.mrb[0].mxu0 %v8398
  %v8580 = vpop.f32.mrb[0].mxu0
  %v8581 = vadd.f32 %v8419, %v8580
  %v8582 = vpop.f32.mrb[0].mxu0
  %8583 = vmatprep.mubr.f32.mxu0 %v8439
  %8584 = vmatmul.mubr.f32.gmra.mrb[0].mxu0 %v8399
  %v8585 = vpop.f32.mrb[0].mxu0
  %v8586 = vadd.f32 %v8419, %v8585
  %v8587 = vpop.f32.mrb[0].mxu0
  %8588 = vmatprep.mubr.f32.mxu0 %v8442
  %8589 = vmatmul.mubr.f32.gmra.mrb[0].mxu0 %v8400
  %v8590 = vpop.f32.mrb[0].mxu0
  %v8591 = vadd.f32 %v8419, %v8590
  %v8592 = vpop.f32.mrb[0].mxu0
  %8593 = vmatprep.mubr.f32.mxu0 %v8445
  %8594 = vmatmul.mubr.f32.gmra.mrb[0].mxu0 %v8401
  %v8595 = vpop.f32.mrb[0].mxu0
  %v8596 = vadd.f32 %v8419, %v8595
  %v8597 = vpop.f32.mrb[0].mxu0
  %8598 = vmatprep.mubr.f32.mxu0 %v8448
  %8599 = vmatmul.mubr.f32.gmra.mrb[0].mxu0 %v8402
  %v8600 = vpop.f32.mrb[0].mxu0
  %v8601 = vadd.f32 %v8419, %v8600
  %v8602 = vpop.f32.mrb[0].mxu0
  %8603 = vmatprep.mubr.f32.mxu0 %v8451
  %8604 = vmatmul.mubr.f32.gmra.mrb[0].mxu0 %v8403
  %v8605 = vpop.f32.mrb[0].mxu0
  %v8606 = vadd.f32 %v8419, %v8605
  %v8607 = vpop.f32.mrb[0].mxu0
  %8608 = vmatprep.mubr.f32.mxu0 %v8454
  %8609 = vmatmul.mubr.f32.gmra.mrb[0].mxu0 %v8404
  %v8610 = vpop.f32.mrb[0].mxu0
  %v8611 = vadd.f32 %v8419, %v8610
  %v8612 = vpop.f32.mrb[0].mxu0
  %8613 = vmatprep.mubr.f32.mxu0 %v8457
  %8614 = vmatmul.mubr.f32.gmra.mrb[0].mxu0 %v8405
  %v8615 = vpop.f32.mrb[0].mxu0
  %v8616 = vadd.f32 %v8419, %v8615
  %v8617 = vpop.f32.mrb[0].mxu0
  %8618 = vmatprep.mubr.f32.mxu0 %v8460
  %8619 = vmatmul.mubr.f32.gmra.mrb[0].mxu0 %v8406
  %v8620 = vpop.f32.mrb[0].mxu0
  %v8621 = vadd.f32 %v8419, %v8620
  %v8622 = vpop.f32.mrb[0].mxu0
  %8623 = vmatprep.mubr.f32.mxu0 %v8463
  %8624 = vmatmul.mubr.f32.gmra.mrb[0].mxu0 %v8407
  %v8625 = vpop.f32.mrb[0].mxu0
  %v8626 = vadd.f32 %v8419, %v8625
  %v8627 = vpop.f32.mrb[0].mxu0
  %8628 = vmatprep.mubr.f32.mxu0 %v8466
  %8629 = vmatmul.mubr.f32.gmra.mrb[0].mxu0 %v8408
  %v8630 = vpop.f32.mrb[0].mxu0
  %v8631 = vadd.f32 %v8419, %v8630
  %v8632 = vpop.f32.mrb[0].mxu0
  %8633 = vmatprep.mubr.f32.mxu0 %v8469
  %8634 = vmatmul.mubr.f32.gmra.mrb[0].mxu0 %v8409
  %v8635 = vpop.f32.mrb[0].mxu0
  %v8636 = vadd.f32 %v8419, %v8635
  %v8637 = vpop.f32.mrb[0].mxu0
  %8638 = vmatprep.mubr.f32.mxu0 %v8472
  %8639 = vmatmul.mubr.f32.gmra.mrb[0].mxu0 %v8410
  %v8640 = vpop.f32.mrb[0].mxu0
  %v8641 = vadd.f32 %v8419, %v8640
  %v8642 = vpop.f32.mrb[0].mxu0
  %8643 = vmatprep.mubr.f32.mxu0 %v8475
  %8644 = vmatmul.mubr.f32.gmra.mrb[0].mxu0 %v8411
  %v8645 = vpop.f32.mrb[0].mxu0
  %v8646 = vadd.f32 %v8419, %v8645
  %v8647 = vpop.f32.mrb[0].mxu0
  %8648 = vmatprep.mubr.f32.mxu0 %v8478
  %8649 = vmatmul.mubr.f32.gmra.mrb[0].mxu0 %v8412
  %v8650 = vpop.f32.mrb[0].mxu0
  %v8651 = vadd.f32 %v8419, %v8650
  %v8652 = vpop.f32.mrb[0].mxu0
  %8653 = vmatprep.mubr.f32.mxu0 %v8481
  %8654 = vmatmul.mubr.f32.gmra.mrb[0].mxu0 %v8413
  %v8655 = vpop.f32.mrb[0].mxu0
  %v8656 = vadd.f32 %v8419, %v8655
  %v8657 = vpop.f32.mrb[0].mxu0
  %8658 = vmatprep.mubr.f32.mxu0 %v8484
  %8659 = vmatmul.mubr.f32.gmra.mrb[0].mxu0 %v8414
  %v8660 = vpop.f32.mrb[0].mxu0
  %v8661 = vadd.f32 %v8419, %v8660
  %v8662 = vpop.f32.mrb[0].mxu0
  %8663 = vmatprep.mubr.f32.mxu0 %v8487
  %8664 = vmatmul.mubr.f32.gmra.mrb[0].mxu0 %v8415
  %v8665 = vpop.f32.mrb[0].mxu0
  %v8666 = vadd.f32 %v8419, %v8665
  %v8667 = vpop.f32.mrb[0].mxu0
  %8668 = vdwg.mxu0
  %v8669 = vmax.f32 %v8556, 0.0
  %v8670 = vmax.f32 %v8561, 0.0
  %v8671 = vmax.f32 %v8566, 0.0
  %v8672 = vmax.f32 %v8571, 0.0
  %v8673 = vmax.f32 %v8576, 0.0
  %v8674 = vmax.f32 %v8581, 0.0
  %v8675 = vmax.f32 %v8586, 0.0
  %v8676 = vmax.f32 %v8591, 0.0
  %v8677 = vmax.f32 %v8596, 0.0
  %v8678 = vmax.f32 %v8601, 0.0
  %v8679 = vmax.f32 %v8606, 0.0
  %v8680 = vmax.f32 %v8611, 0.0
  %v8681 = vmax.f32 %v8616, 0.0
  %v8682 = vmax.f32 %v8621, 0.0
  %v8683 = vmax.f32 %v8626, 0.0
  %v8684 = vmax.f32 %v8631, 0.0
  %v8685 = vmax.f32 %v8636, 0.0
  %v8686 = vmax.f32 %v8641, 0.0
  %v8687 = vmax.f32 %v8646, 0.0
  %v8688 = vmax.f32 %v8651, 0.0
  %v8689 = vmax.f32 %v8656, 0.0
  %v8690 = vmax.f32 %v8661, 0.0
  %v8691 = vmax.f32 %v8666, 0.0
  %v8692 = vmin.f32 %v8669, 6.0
  %v8693 = vmin.f32 %v8670, 6.0
  %v8694 = vmin.f32 %v8671, 6.0
  %v8695 = vmin.f32 %v8672, 6.0
  %v8696 = vmin.f32 %v8673, 6.0
  %v8697 = vmin.f32 %v8674, 6.0
  %v8698 = vmin.f32 %v8675, 6.0
  %v8699 = vmin.f32 %v8676, 6.0
  %v8700 = vmin.f32 %v8677, 6.0
  %v8701 = vmin.f32 %v8678, 6.0
  %v8702 = vmin.f32 %v8679, 6.0
  %v8703 = vmin.f32 %v8680, 6.0
  %v8704 = vmin.f32 %v8681, 6.0
  %v8705 = vmin.f32 %v8682, 6.0
  %v8706 = vmin.f32 %v8683, 6.0
  %v8707 = vmin.f32 %v8684, 6.0
  %v8708 = vmin.f32 %v8685, 6.0
  %v8709 = vmin.f32 %v8686, 6.0
  %v8710 = vmin.f32 %v8687, 6.0
  %v8711 = vmin.f32 %v8688, 6.0
  %v8712 = vmin.f32 %v8689, 6.0
  %v8713 = vmin.f32 %v8690, 6.0
  %v8714 = vmin.f32 %v8691, 6.0
  %v8715 = vmul.f32 %v8692, %v7459
  %v8716 = vmul.f32 %v8693, %v7460
  %v8717 = vmul.f32 %v8694, %v7461
  %v8718 = vmul.f32 %v8695, %v7462
  %v8719 = vmul.f32 %v8696, %v7463
  %v8720 = vmul.f32 %v8697, %v7464
  %v8721 = vmul.f32 %v8698, %v7465
  %v8722 = vmul.f32 %v8699, %v7466
  %v8723 = vmul.f32 %v8700, %v7467
  %v8724 = vmul.f32 %v8701, %v7468
  %v8725 = vmul.f32 %v8702, %v7469
  %v8726 = vmul.f32 %v8703, %v7470
  %v8727 = vmul.f32 %v8704, %v7471
  %v8728 = vmul.f32 %v8705, %v7472
  %v8729 = vmul.f32 %v8706, %v7473
  %v8730 = vmul.f32 %v8707, %v7474
  %v8731 = vmul.f32 %v8708, %v7475
  %v8732 = vmul.f32 %v8709, %v7476
  %v8733 = vmul.f32 %v8710, %v7477
  %v8734 = vmul.f32 %v8711, %v7478
  %v8735 = vmul.f32 %v8712, %v7479
  %v8736 = vmul.f32 %v8713, %v7480
  %v8737 = vmul.f32 %v8714, %v7481
  %vm8738 = vcmask 31744
  %v8739 = vsel %vm8738, %v8715, 0.0
  %v8740 = vsel %vm8738, %v8716, 0.0
  %v8741 = vadd.f32 %v8739, %v8740
  %v8742 = vsel %vm8738, %v8717, 0.0
  %v8743 = vadd.f32 %v8741, %v8742
  %v8744 = vsel %vm8738, %v8718, 0.0
  %v8745 = vadd.f32 %v8743, %v8744
  %v8746 = vsel %vm8738, %v8719, 0.0
  %v8747 = vadd.f32 %v8745, %v8746
  %v8748 = vsel %vm8738, %v8720, 0.0
  %v8749 = vadd.f32 %v8747, %v8748
  %v8750 = vsel %vm8738, %v8721, 0.0
  %v8751 = vadd.f32 %v8749, %v8750
  %v8752 = vsel %vm8738, %v8722, 0.0
  %v8753 = vadd.f32 %v8751, %v8752
  %v8754 = vsel %vm8738, %v8723, 0.0
  %v8755 = vadd.f32 %v8753, %v8754
  %v8756 = vsel %vm8738, %v8724, 0.0
  %v8757 = vadd.f32 %v8755, %v8756
  %v8758 = vsel %vm8738, %v8725, 0.0
  %v8759 = vadd.f32 %v8757, %v8758
  %v8760 = vsel %vm8738, %v8726, 0.0
  %v8761 = vadd.f32 %v8759, %v8760
  %v8762 = vsel %vm8738, %v8727, 0.0
  %v8763 = vadd.f32 %v8761, %v8762
  %v8764 = vsel %vm8738, %v8728, 0.0
  %v8765 = vadd.f32 %v8763, %v8764
  %v8766 = vsel %vm8738, %v8729, 0.0
  %v8767 = vadd.f32 %v8765, %v8766
  %v8768 = vsel %vm8738, %v8730, 0.0
  %v8769 = vadd.f32 %v8767, %v8768
  %v8770 = vsel %vm8738, %v8731, 0.0
  %v8771 = vadd.f32 %v8769, %v8770
  %v8772 = vsel %vm8738, %v8732, 0.0
  %v8773 = vadd.f32 %v8771, %v8772
  %v8774 = vsel %vm8738, %v8733, 0.0
  %v8775 = vadd.f32 %v8773, %v8774
  %v8776 = vsel %vm8738, %v8734, 0.0
  %v8777 = vadd.f32 %v8775, %v8776
  %v8778 = vsel %vm8738, %v8735, 0.0
  %v8779 = vadd.f32 %v8777, %v8778
  %v8780 = vsel %vm8738, %v8736, 0.0
  %v8781 = vadd.f32 %v8779, %v8780
  %vm8782 = vcmask 25600
  %v8783 = vsel %vm8782, %v8737, 0.0
  %v8784 = vadd.f32 %v8781, %v8783
  %v8785 = vrot.slane %v8784, 4
  %v8786 = vadd.f32 %v8784, %v8785
  %v8787 = vrot.slane %v8786, 2
  %v8788 = vadd.f32 %v8786, %v8787
  %v8789 = vrot.slane %v8788, 1
  %v8790 = vadd.f32 %v8788, %v8789
  %v8791 = vmul.f32 %v8790, 0.0078125
  %v8792 = vmul.f32 %v8715, %v8715
  %v8793 = vmul.f32 %v8716, %v8716
  %v8794 = vmul.f32 %v8717, %v8717
  %v8795 = vmul.f32 %v8718, %v8718
  %v8796 = vmul.f32 %v8719, %v8719
  %v8797 = vmul.f32 %v8720, %v8720
  %v8798 = vmul.f32 %v8721, %v8721
  %v8799 = vmul.f32 %v8722, %v8722
  %v8800 = vmul.f32 %v8723, %v8723
  %v8801 = vmul.f32 %v8724, %v8724
  %v8802 = vmul.f32 %v8725, %v8725
  %v8803 = vmul.f32 %v8726, %v8726
  %v8804 = vmul.f32 %v8727, %v8727
  %v8805 = vmul.f32 %v8728, %v8728
  %v8806 = vmul.f32 %v8729, %v8729
  %v8807 = vmul.f32 %v8730, %v8730
  %v8808 = vmul.f32 %v8731, %v8731
  %v8809 = vmul.f32 %v8732, %v8732
  %v8810 = vmul.f32 %v8733, %v8733
  %v8811 = vmul.f32 %v8734, %v8734
  %v8812 = vmul.f32 %v8735, %v8735
  %v8813 = vmul.f32 %v8736, %v8736
  %v8814 = vmul.f32 %v8737, %v8737
  %v8815 = vsel %vm8738, %v8792, 0.0
  %v8816 = vsel %vm8738, %v8793, 0.0
  %v8817 = vadd.f32 %v8815, %v8816
  %v8818 = vsel %vm8738, %v8794, 0.0
  %v8819 = vadd.f32 %v8817, %v8818
  %v8820 = vsel %vm8738, %v8795, 0.0
  %v8821 = vadd.f32 %v8819, %v8820
  %v8822 = vsel %vm8738, %v8796, 0.0
  %v8823 = vadd.f32 %v8821, %v8822
  %v8824 = vsel %vm8738, %v8797, 0.0
  %v8825 = vadd.f32 %v8823, %v8824
  %v8826 = vsel %vm8738, %v8798, 0.0
  %v8827 = vadd.f32 %v8825, %v8826
  %v8828 = vsel %vm8738, %v8799, 0.0
  %v8829 = vadd.f32 %v8827, %v8828
  %v8830 = vsel %vm8738, %v8800, 0.0
  %v8831 = vadd.f32 %v8829, %v8830
  %v8832 = vsel %vm8738, %v8801, 0.0
  %v8833 = vadd.f32 %v8831, %v8832
  %v8834 = vsel %vm8738, %v8802, 0.0
  %v8835 = vadd.f32 %v8833, %v8834
  %v8836 = vsel %vm8738, %v8803, 0.0
  %v8837 = vadd.f32 %v8835, %v8836
  %v8838 = vsel %vm8738, %v8804, 0.0
  %v8839 = vadd.f32 %v8837, %v8838
  %v8840 = vsel %vm8738, %v8805, 0.0
  %v8841 = vadd.f32 %v8839, %v8840
  %v8842 = vsel %vm8738, %v8806, 0.0
  %v8843 = vadd.f32 %v8841, %v8842
  %v8844 = vsel %vm8738, %v8807, 0.0
  %v8845 = vadd.f32 %v8843, %v8844
  %v8846 = vsel %vm8738, %v8808, 0.0
  %v8847 = vadd.f32 %v8845, %v8846
  %v8848 = vsel %vm8738, %v8809, 0.0
  %v8849 = vadd.f32 %v8847, %v8848
  %v8850 = vsel %vm8738, %v8810, 0.0
  %v8851 = vadd.f32 %v8849, %v8850
  %v8852 = vsel %vm8738, %v8811, 0.0
  %v8853 = vadd.f32 %v8851, %v8852
  %v8854 = vsel %vm8738, %v8812, 0.0
  %v8855 = vadd.f32 %v8853, %v8854
  %v8856 = vsel %vm8738, %v8813, 0.0
  %v8857 = vadd.f32 %v8855, %v8856
  %v8858 = vsel %vm8782, %v8814, 0.0
  %v8859 = vadd.f32 %v8857, %v8858
  %v8860 = vrot.slane %v8859, 4
  %v8861 = vadd.f32 %v8859, %v8860
  %v8862 = vrot.slane %v8861, 2
  %v8863 = vadd.f32 %v8861, %v8862
  %v8864 = vrot.slane %v8863, 1
  %v8865 = vadd.f32 %v8863, %v8864
  %v8866 = vmul.f32 %v8865, 0.0078125
  %v8867 = vmul.f32 %v8791, %v8791
  %v8868 = vsub.f32 %v8866, %v8867
  %v8869 = vadd.f32 %v8868, 1e-05
  %v8870 = vrsqrt.pop %v8869
  %v8871 = vmul.f32 %v49, %v8870
  %v8872 = vlaneseq
  %v8873 = vshrl.u32 %v8872, 7
  %v8874 = vsub.s32 0, %v8873
  %v8875 = vrot.slane %v8871, %v8874
  %v8876 = vmul.f32 %v8715, %v8875
  %v8877 = vmul.f32 %v8716, %v8875
  %v8878 = vmul.f32 %v8717, %v8875
  %v8879 = vmul.f32 %v8718, %v8875
  %v8880 = vmul.f32 %v8719, %v8875
  %v8881 = vmul.f32 %v8720, %v8875
  %v8882 = vmul.f32 %v8721, %v8875
  %v8883 = vmul.f32 %v8722, %v8875
  %v8884 = vmul.f32 %v8723, %v8875
  %v8885 = vmul.f32 %v8724, %v8875
  %v8886 = vmul.f32 %v8725, %v8875
  %v8887 = vmul.f32 %v8726, %v8875
  %v8888 = vmul.f32 %v8727, %v8875
  %v8889 = vmul.f32 %v8728, %v8875
  %v8890 = vmul.f32 %v8729, %v8875
  %v8891 = vmul.f32 %v8730, %v8875
  %v8892 = vmul.f32 %v8731, %v8875
  %v8893 = vmul.f32 %v8732, %v8875
  %v8894 = vmul.f32 %v8733, %v8875
  %v8895 = vmul.f32 %v8734, %v8875
  %v8896 = vmul.f32 %v8735, %v8875
  %v8897 = vmul.f32 %v8736, %v8875
  %v8898 = vmul.f32 %v8737, %v8875
  %v8899 = vmul.f32 %v8791, %v8871
  %v8900 = vsub.f32 %v50, %v8899
  %v8901 = vlaneseq
  %v8902 = vshrl.u32 %v8901, 7
  %v8903 = vsub.s32 0, %v8902
  %v8904 = vrot.slane %v8900, %v8903
  %v8905 = vadd.f32 %v8876, %v8904
  %v8906 = vadd.f32 %v8877, %v8904
  %v8907 = vadd.f32 %v8878, %v8904
  %v8908 = vadd.f32 %v8879, %v8904
  %v8909 = vadd.f32 %v8880, %v8904
  %v8910 = vadd.f32 %v8881, %v8904
  %v8911 = vadd.f32 %v8882, %v8904
  %v8912 = vadd.f32 %v8883, %v8904
  %v8913 = vadd.f32 %v8884, %v8904
  %v8914 = vadd.f32 %v8885, %v8904
  %v8915 = vadd.f32 %v8886, %v8904
  %v8916 = vadd.f32 %v8887, %v8904
  %v8917 = vadd.f32 %v8888, %v8904
  %v8918 = vadd.f32 %v8889, %v8904
  %v8919 = vadd.f32 %v8890, %v8904
  %v8920 = vadd.f32 %v8891, %v8904
  %v8921 = vadd.f32 %v8892, %v8904
  %v8922 = vadd.f32 %v8893, %v8904
  %v8923 = vadd.f32 %v8894, %v8904
  %v8924 = vadd.f32 %v8895, %v8904
  %v8925 = vadd.f32 %v8896, %v8904
  %v8926 = vadd.f32 %v8897, %v8904
  %v8927 = vadd.f32 %v8898, %v8904
  %8928 = vst.msk [vmem:[#allocation2 + $0x368] sm:$0xff] %vm8738, %v8905
  %8929 = vst.msk [vmem:[#allocation2 + $0x370] sm:$0xff] %vm8738, %v8906
  %8930 = vst.msk [vmem:[#allocation2 + $0x378] sm:$0xff] %vm8738, %v8907
  %8931 = vst.msk [vmem:[#allocation2 + $0x380] sm:$0xff] %vm8738, %v8908
  %8932 = vst.msk [vmem:[#allocation2 + $0x388] sm:$0xff] %vm8738, %v8909
  %8933 = vst.msk [vmem:[#allocation2 + $0x390] sm:$0xff] %vm8738, %v8910
  %8934 = vst.msk [vmem:[#allocation2 + $0x398] sm:$0xff] %vm8738, %v8911
  %8935 = vst.msk [vmem:[#allocation2 + $0x3a0] sm:$0xff] %vm8738, %v8912
  %8936 = vst.msk [vmem:[#allocation2 + $0x3a8] sm:$0xff] %vm8738, %v8913
  %8937 = vst.msk [vmem:[#allocation2 + $0x3b0] sm:$0xff] %vm8738, %v8914
  %8938 = vst.msk [vmem:[#allocation2 + $0x3b8] sm:$0xff] %vm8738, %v8915
  %8939 = vst.msk [vmem:[#allocation2 + $0x3c0] sm:$0xff] %vm8738, %v8916
  %8940 = vst.msk [vmem:[#allocation2 + $0x3c8] sm:$0xff] %vm8738, %v8917
  %8941 = vst.msk [vmem:[#allocation2 + $0x3d0] sm:$0xff] %vm8738, %v8918
  %8942 = vst.msk [vmem:[#allocation2 + $0x3d8] sm:$0xff] %vm8738, %v8919
  %8943 = vst.msk [vmem:[#allocation2 + $0x3e0] sm:$0xff] %vm8738, %v8920
  %8944 = vst.msk [vmem:[#allocation2 + $0x3e8] sm:$0xff] %vm8738, %v8921
  %8945 = vst.msk [vmem:[#allocation2 + $0x3f0] sm:$0xff] %vm8738, %v8922
  %8946 = vst.msk [vmem:[#allocation2 + $0x3f8] sm:$0xff] %vm8738, %v8923
  %8947 = vst.msk [vmem:[#allocation2 + $0x400] sm:$0xff] %vm8738, %v8924
  %8948 = vst.msk [vmem:[#allocation2 + $0x408] sm:$0xff] %vm8738, %v8925
  %8949 = vst.msk [vmem:[#allocation2 + $0x410] sm:$0xff] %vm8738, %v8926
  %8950 = vst.msk [vmem:[#allocation2 + $0x418] sm:$0x3] %vm8782, %v8927
  %s8951 = scalar_lea.vmem [#allocation2], 872
  %v8952 = vld [vmem:[%s8951] ss:$2 sm:$0xf]
  %s8953 = scalar_lea.vmem [#allocation2], 873
  %v8954 = vld [vmem:[%s8953] ss:$2 sm:$0xf]
  %v8955 = vmax.f32 %v8952, %v8954
  %s8956 = scalar_lea.vmem [#allocation2], 882
  %v8957 = vld [vmem:[%s8956] ss:$2 sm:$0xf]
  %s8958 = scalar_lea.vmem [#allocation2], 883
  %v8959 = vld [vmem:[%s8958] ss:$2 sm:$0xf]
  %v8960 = vmax.f32 %v8957, %v8959
  %v8961 = vmax.f32 %v8955, %v8960
  %s8962 = scalar_lea.vmem [#allocation2], 892
  %v8963 = vld [vmem:[%s8962] ss:$2 sm:$0xf]
  %s8964 = scalar_lea.vmem [#allocation2], 893
  %v8965 = vld [vmem:[%s8964] ss:$2 sm:$0xf]
  %v8966 = vmax.f32 %v8963, %v8965
  %s8967 = scalar_lea.vmem [#allocation2], 902
  %v8968 = vld [vmem:[%s8967] ss:$2 sm:$0xf]
  %s8969 = scalar_lea.vmem [#allocation2], 903
  %v8970 = vld [vmem:[%s8969] ss:$2 sm:$0xf]
  %v8971 = vmax.f32 %v8968, %v8970
  %v8972 = vmax.f32 %v8966, %v8971
  %s8973 = scalar_lea.vmem [#allocation2], 912
  %v8974 = vld [vmem:[%s8973] ss:$2 sm:$0xf]
  %s8975 = scalar_lea.vmem [#allocation2], 913
  %v8976 = vld [vmem:[%s8975] ss:$2 sm:$0xf]
  %v8977 = vmax.f32 %v8974, %v8976
  %s8978 = scalar_lea.vmem [#allocation2], 922
  %v8979 = vld [vmem:[%s8978] ss:$2 sm:$0xf]
  %s8980 = scalar_lea.vmem [#allocation2], 923
  %v8981 = vld [vmem:[%s8980] ss:$2 sm:$0xf]
  %v8982 = vmax.f32 %v8979, %v8981
  %v8983 = vmax.f32 %v8977, %v8982
  %s8984 = scalar_lea.vmem [#allocation2], 932
  %v8985 = vld [vmem:[%s8984] ss:$2 sm:$0xf]
  %s8986 = scalar_lea.vmem [#allocation2], 933
  %v8987 = vld [vmem:[%s8986] ss:$2 sm:$0xf]
  %v8988 = vmax.f32 %v8985, %v8987
  %s8989 = scalar_lea.vmem [#allocation2], 942
  %v8990 = vld [vmem:[%s8989] ss:$2 sm:$0xf]
  %s8991 = scalar_lea.vmem [#allocation2], 943
  %v8992 = vld [vmem:[%s8991] ss:$2 sm:$0xf]
  %v8993 = vmax.f32 %v8990, %v8992
  %v8994 = vmax.f32 %v8988, %v8993
  %s8995 = scalar_lea.vmem [#allocation2], 972
  %v8996 = vld [vmem:[%s8995] ss:$2 sm:$0xf]
  %s8997 = scalar_lea.vmem [#allocation2], 973
  %v8998 = vld [vmem:[%s8997] ss:$2 sm:$0xf]
  %v8999 = vmax.f32 %v8996, %v8998
  %s9000 = scalar_lea.vmem [#allocation2], 982
  %v9001 = vld [vmem:[%s9000] ss:$2 sm:$0xf]
  %s9002 = scalar_lea.vmem [#allocation2], 983
  %v9003 = vld [vmem:[%s9002] ss:$2 sm:$0xf]
  %v9004 = vmax.f32 %v9001, %v9003
  %v9005 = vmax.f32 %v8999, %v9004
  %s9006 = scalar_lea.vmem [#allocation2], 992
  %v9007 = vld [vmem:[%s9006] ss:$2 sm:$0xf]
  %s9008 = scalar_lea.vmem [#allocation2], 993
  %v9009 = vld [vmem:[%s9008] ss:$2 sm:$0xf]
  %v9010 = vmax.f32 %v9007, %v9009
  %s9011 = scalar_lea.vmem [#allocation2], 1002
  %v9012 = vld [vmem:[%s9011] ss:$2 sm:$0xf]
  %s9013 = scalar_lea.vmem [#allocation2], 1003
  %v9014 = vld [vmem:[%s9013] ss:$2 sm:$0xf]
  %v9015 = vmax.f32 %v9012, %v9014
  %v9016 = vmax.f32 %v9010, %v9015
  %s9017 = scalar_lea.vmem [#allocation2], 1012
  %v9018 = vld [vmem:[%s9017] ss:$2 sm:$0xf]
  %s9019 = scalar_lea.vmem [#allocation2], 1013
  %v9020 = vld [vmem:[%s9019] ss:$2 sm:$0xf]
  %v9021 = vmax.f32 %v9018, %v9020
  %s9022 = scalar_lea.vmem [#allocation2], 1022
  %v9023 = vld [vmem:[%s9022] ss:$2 sm:$0xf]
  %s9024 = scalar_lea.vmem [#allocation2], 1023
  %v9025 = vld [vmem:[%s9024] ss:$2 sm:$0xf]
  %v9026 = vmax.f32 %v9023, %v9025
  %v9027 = vmax.f32 %v9021, %v9026
  %s9028 = scalar_lea.vmem [#allocation2], 1032
  %v9029 = vld [vmem:[%s9028] ss:$2 sm:$0xf]
  %s9030 = scalar_lea.vmem [#allocation2], 1033
  %v9031 = vld [vmem:[%s9030] ss:$2 sm:$0xf]
  %v9032 = vmax.f32 %v9029, %v9031
  %s9033 = scalar_lea.vmem [#allocation2], 1042
  %v9034 = vld [vmem:[%s9033] ss:$2 sm:$0xf]
  %s9035 = scalar_lea.vmem [#allocation2], 1043
  %v9036 = vld [vmem:[%s9035] ss:$2 sm:$0xf]
  %v9037 = vmax.f32 %v9034, %v9036
  %v9038 = vmax.f32 %v9032, %v9037
  %v9040 = vrot.slane %v8972, 4
  %v9043 = vrot.slane %v8994, 4
  %v9046 = vrot.slane %v9016, 4
  %v9049 = vrot.slane %v9038, 4
  %vm9051 = vcmask 1043456
  %v9052 = vsel %vm9051, %v8961, %v9040
  %v9053 = vsel %vm9051, %v8983, %v9043
  %v9054 = vsel %vm9051, %v9005, %v9046
  %v9055 = vsel %vm9051, %v9027, %v9049
  %v9056 = vlaneseq
  %v9057 = vshrl.u32 %v9056, 7
  %v9058 = vsub.s32 0, %v9057
  %v9059 = vrot.slane %v51, %v9058
  %v9061 = vsel %vm8738, %v9052, 0
  %v9064 = vsel %vm8738, %v9053, 0
  %v9067 = vsel %vm8738, %v9054, 0
  %v9070 = vsel %vm8738, %v9055, 0
  %v9073 = vsel %vm9051, %v36, 0
  %9075 = vmatprep.subr.mxu0 0.0
  %9076 = vmatpush1.msra.mxu0 %v9073
  %9077 = vmatprep.subr.mxu0 0.0
  %9078 = vmatpush1.msra.mxu0 0.0
  %9079 = vmatprep.subr.mxu0 0.0
  %9080 = vmatpush1.msra.mxu0 0.0
  %9081 = vmatprep.subr.mxu0 0.0
  %9082 = vmatpush1.msra.mxu0 0.0
  %9083 = vmatprep.subr.mxu0 0.0
  %9084 = vmatpush1.msra.mxu0 0.0
  %9085 = vmatprep.subr.mxu0 0.0
  %9086 = vmatpush1.msra.mxu0 0.0
  %9087 = vmatprep.subr.mxu0 0.0
  %9088 = vmatpush1.msra.mxu0 0.0
  %9089 = vmatprep.subr.mxu0 0.0
  %9090 = vmatpush1.msra.mxu0 0.0
  %9091 = vmatprep.subr.mxu0 0.0
  %9092 = vmatpush1.msra.mxu0 0.0
  %9093 = vmatprep.subr.mxu0 0.0
  %9094 = vmatpush1.msra.mxu0 0.0
  %9095 = vmatprep.subr.mxu0 0.0
  %9096 = vmatpush1.msra.mxu0 0.0
  %9097 = vmatprep.subr.mxu0 0.0
  %9098 = vmatpush1.msra.mxu0 0.0
  %9099 = vmatprep.subr.mxu0 0.0
  %9100 = vmatpush1.msra.mxu0 0.0
  %9101 = vmatprep.subr.mxu0 0.0
  %9102 = vmatpush1.msra.mxu0 0.0
  %9103 = vmatprep.subr.mxu0 0.0
  %9104 = vmatpush1.msra.mxu0 0.0
  %9105 = vmatprep.subr.mxu0 0.0
  %9106 = vmatpush1.msra.mxu0 0.0
  %9107 = vmatprep.subr.mxu0 0.0
  %9108 = vmatpush1.msra.mxu0 0.0
  %9109 = vmatprep.subr.mxu0 0.0
  %9110 = vmatpush1.msra.mxu0 0.0
  %9111 = vmatprep.subr.mxu0 0.0
  %9112 = vmatpush1.msra.mxu0 0.0
  %9113 = vmatprep.subr.mxu0 0.0
  %9114 = vmatpush1.msra.mxu0 0.0
  %9115 = vmatprep.subr.mxu0 0.0
  %9116 = vmatpush1.msra.mxu0 0.0
  %9117 = vmatprep.subr.mxu0 0.0
  %9118 = vmatpush1.msra.mxu0 0.0
  %9119 = vmatprep.subr.mxu0 0.0
  %9120 = vmatpush1.msra.mxu0 0.0
  %9121 = vmatprep.subr.mxu0 0.0
  %9122 = vmatpush1.msra.mxu0 0.0
  %9123 = vmatprep.subr.mxu0 0.0
  %9124 = vmatpush1.msra.mxu0 0.0
  %9125 = vmatprep.subr.mxu0 0.0
  %9126 = vmatpush1.msra.mxu0 0.0
  %9127 = vmatprep.subr.mxu0 0.0
  %9128 = vmatpush1.msra.mxu0 0.0
  %9129 = vmatprep.subr.mxu0 0.0
  %9130 = vmatpush1.msra.mxu0 0.0
  %9131 = vmatprep.subr.mxu0 0.0
  %9132 = vmatpush1.msra.mxu0 0.0
  %9133 = vmatprep.subr.mxu0 0.0
  %9134 = vmatpush1.msra.mxu0 0.0
  %9135 = vmatprep.subr.mxu0 0.0
  %9136 = vmatpush1.msra.mxu0 0.0
  %9137 = vmatprep.subr.mxu0 0.0
  %9138 = vmatpush1.msra.mxu0 0.0
  %9139 = vmatprep.mubr.f32.mxu0 0.0
  %9140 = vmatmul.mubr.f32.gmra.mrb[0].mxu0 %v9061
  %v9141 = vpop.f32.mrb[0].mxu0
  %v9142 = vadd.f32 %v9059, %v9141
  %v9143 = vpop.f32.mrb[0].mxu0
  %9144 = vmatprep.mubr.f32.mxu0 0.0
  %9145 = vmatmul.mubr.f32.gmra.mrb[0].mxu0 %v9064
  %v9146 = vpop.f32.mrb[0].mxu0
  %v9147 = vadd.f32 %v9059, %v9146
  %v9148 = vpop.f32.mrb[0].mxu0
  %9149 = vmatprep.mubr.f32.mxu0 0.0
  %9150 = vmatmul.mubr.f32.gmra.mrb[0].mxu0 %v9067
  %v9151 = vpop.f32.mrb[0].mxu0
  %v9152 = vadd.f32 %v9059, %v9151
  %v9153 = vpop.f32.mrb[0].mxu0
  %9154 = vmatprep.mubr.f32.mxu0 0.0
  %9155 = vmatmul.mubr.f32.gmra.mrb[0].mxu0 %v9070
  %v9156 = vpop.f32.mrb[0].mxu0
  %v9157 = vadd.f32 %v9059, %v9156
  %v9158 = vpop.f32.mrb[0].mxu0
  %9159 = vdwg.mxu0
  %v9160 = vmax.f32 %v9142, 0.0
  %v9161 = vmax.f32 %v9147, 0.0
  %v9162 = vmax.f32 %v9152, 0.0
  %v9163 = vmax.f32 %v9157, 0.0
  %v9164 = vmin.f32 %v9160, 6.0
  %v9165 = vmin.f32 %v9161, 6.0
  %v9166 = vmin.f32 %v9162, 6.0
  %v9167 = vmin.f32 %v9163, 6.0
  %v9168 = vsel %vm8320, %v9164, 0.0
  %v9169 = vsel %vm8320, %v9165, 0.0
  %v9170 = vadd.f32 %v9168, %v9169
  %v9171 = vsel %vm8320, %v9166, 0.0
  %v9172 = vadd.f32 %v9170, %v9171
  %v9173 = vsel %vm8320, %v9167, 0.0
  %v9174 = vadd.f32 %v9172, %v9173
  %v9175 = vrot.slane %v9174, 4
  %v9176 = vadd.f32 %v9174, %v9175
  %v9177 = vrot.slane %v9176, 2
  %v9178 = vadd.f32 %v9176, %v9177
  %v9179 = vrot.slane %v9178, 1
  %v9180 = vadd.f32 %v9178, %v9179
  %v9181 = vmul.f32 %v9164, %v9164
  %v9182 = vmul.f32 %v9165, %v9165
  %v9183 = vmul.f32 %v9166, %v9166
  %v9184 = vmul.f32 %v9167, %v9167
  %v9185 = vsel %vm8320, %v9181, 0.0
  %v9186 = vsel %vm8320, %v9182, 0.0
  %v9187 = vadd.f32 %v9185, %v9186
  %v9188 = vsel %vm8320, %v9183, 0.0
  %v9189 = vadd.f32 %v9187, %v9188
  %v9190 = vsel %vm8320, %v9184, 0.0
  %v9191 = vadd.f32 %v9189, %v9190
  %v9192 = vrot.slane %v9191, 4
  %v9193 = vadd.f32 %v9191, %v9192
  %v9194 = vrot.slane %v9193, 2
  %v9195 = vadd.f32 %v9193, %v9194
  %v9196 = vrot.slane %v9195, 1
  %v9197 = vadd.f32 %v9195, %v9196
  %9199 = vrot.lane.b32.xlu0 %v9180, 112
  %v9200 = vpop.permute.xlu0 %9199
  %v9202 = vadd.f32 %v9180, %v9200
  %9203 = vrot.lane.b32.xlu0 %v9180, 96
  %v9204 = vpop.permute.xlu0 %9203
  %v9206 = vadd.f32 %v9202, %v9204
  %9207 = vrot.lane.b32.xlu0 %v9180, 80
  %v9208 = vpop.permute.xlu0 %9207
  %v9210 = vadd.f32 %v9206, %v9208
  %9212 = vrot.lane.b32.xlu0 %v9197, 112
  %v9213 = vpop.permute.xlu0 %9212
  %v9215 = vadd.f32 %v9197, %v9213
  %9216 = vrot.lane.b32.xlu0 %v9197, 96
  %v9217 = vpop.permute.xlu0 %9216
  %v9219 = vadd.f32 %v9215, %v9217
  %9220 = vrot.lane.b32.xlu0 %v9197, 80
  %v9221 = vpop.permute.xlu0 %9220
  %v9223 = vadd.f32 %v9219, %v9221
  %v9224 = vmul.f32 %v9210, 0.0078125
  %v9225 = vmul.f32 %v9223, 0.0078125
  %v9226 = vmul.f32 %v9224, %v9224
  %v9227 = vsub.f32 %v9225, %v9226
  %v9228 = vadd.f32 %v9227, 1e-05
  %v9229 = vrsqrt.pop %v9228
  %v9230 = vmul.f32 %v52, %v9229
  %v9231 = vmul.f32 %v9224, %v9230
  %v9232 = vsub.f32 %v53, %v9231
  %9234 = vrot.lane.b32.xlu0 %v9230, 16
  %v9235 = vpop.permute.xlu0 %9234
  %9237 = vrot.lane.b32.xlu0 %v9230, 32
  %v9238 = vpop.permute.xlu0 %9237
  %9240 = vrot.lane.b32.xlu0 %v9230, 48
  %v9241 = vpop.permute.xlu0 %9240
  %v9243 = vsel %vm55, %v9230, %v9235
  %v9244 = vsel %vm8272, %v9243, %v9238
  %v9245 = vsel %vm8296, %v9244, %v9241
  %v9246 = vlaneseq
  %v9247 = vshrl.u32 %v9246, 7
  %v9248 = vsub.s32 0, %v9247
  %v9249 = vrot.slane %v9245, %v9248
  %v9250 = vmul.f32 %v9164, %v9249
  %v9251 = vmul.f32 %v9165, %v9249
  %v9252 = vmul.f32 %v9166, %v9249
  %v9253 = vmul.f32 %v9167, %v9249
  %9255 = vrot.lane.b32.xlu0 %v9232, 16
  %v9256 = vpop.permute.xlu0 %9255
  %9258 = vrot.lane.b32.xlu0 %v9232, 32
  %v9259 = vpop.permute.xlu0 %9258
  %9261 = vrot.lane.b32.xlu0 %v9232, 48
  %v9262 = vpop.permute.xlu0 %9261
  %v9264 = vsel %vm55, %v9232, %v9256
  %v9265 = vsel %vm8272, %v9264, %v9259
  %v9266 = vsel %vm8296, %v9265, %v9262
  %v9267 = vlaneseq
  %v9268 = vshrl.u32 %v9267, 7
  %v9269 = vsub.s32 0, %v9268
  %v9270 = vrot.slane %v9266, %v9269
  %v9271 = vadd.f32 %v9250, %v9270
  %v9272 = vadd.f32 %v9251, %v9270
  %v9273 = vadd.f32 %v9252, %v9270
  %v9274 = vadd.f32 %v9253, %v9270
  %v9275 = vlaneseq
  %v9276 = vshrl.u32 %v9275, 7
  %v9277 = vsub.s32 0, %v9276
  %v9278 = vrot.slane %v54, %v9277
  %v9280 = vsel %vm8320, %v9271, 0
  %v9283 = vsel %vm8320, %v9272, 0
  %v9286 = vsel %vm8320, %v9273, 0
  %v9289 = vsel %vm8320, %v9274, 0
  %9291 = vmatprep.subr.mxu0 0.0
  %9292 = vmatpush1.msra.mxu0 %v37
  %9293 = vmatprep.subr.mxu0 0.0
  %9294 = vmatpush1.msra.mxu0 %v38
  %9295 = vmatprep.subr.mxu0 0.0
  %9296 = vmatpush1.msra.mxu0 %v39
  %9297 = vmatprep.subr.mxu0 0.0
  %9298 = vmatpush1.msra.mxu0 %v40
  %9299 = vmatprep.subr.mxu0 0.0
  %9300 = vmatpush1.msra.mxu0 %v41
  %9301 = vmatprep.subr.mxu0 0.0
  %9302 = vmatpush1.msra.mxu0 %v42
  %9303 = vmatprep.subr.mxu0 0.0
  %9304 = vmatpush1.msra.mxu0 %v43
  %9305 = vmatprep.subr.mxu0 0.0
  %9306 = vmatpush1.msra.mxu0 %v44
  %9307 = vmatprep.subr.mxu0 0.0
  %9308 = vmatpush1.msra.mxu0 0.0
  %9309 = vmatprep.subr.mxu0 0.0
  %9310 = vmatpush1.msra.mxu0 0.0
  %9311 = vmatprep.subr.mxu0 0.0
  %9312 = vmatpush1.msra.mxu0 0.0
  %9313 = vmatprep.subr.mxu0 0.0
  %9314 = vmatpush1.msra.mxu0 0.0
  %9315 = vmatprep.subr.mxu0 0.0
  %9316 = vmatpush1.msra.mxu0 0.0
  %9317 = vmatprep.subr.mxu0 0.0
  %9318 = vmatpush1.msra.mxu0 0.0
  %9319 = vmatprep.subr.mxu0 0.0
  %9320 = vmatpush1.msra.mxu0 0.0
  %9321 = vmatprep.subr.mxu0 0.0
  %9322 = vmatpush1.msra.mxu0 0.0
  %9323 = vmatprep.subr.mxu0 0.0
  %9324 = vmatpush1.msra.mxu0 0.0
  %9325 = vmatprep.subr.mxu0 0.0
  %9326 = vmatpush1.msra.mxu0 0.0
  %9327 = vmatprep.subr.mxu0 0.0
  %9328 = vmatpush1.msra.mxu0 0.0
  %9329 = vmatprep.subr.mxu0 0.0
  %9330 = vmatpush1.msra.mxu0 0.0
  %9331 = vmatprep.subr.mxu0 0.0
  %9332 = vmatpush1.msra.mxu0 0.0
  %9333 = vmatprep.subr.mxu0 0.0
  %9334 = vmatpush1.msra.mxu0 0.0
  %9335 = vmatprep.subr.mxu0 0.0
  %9336 = vmatpush1.msra.mxu0 0.0
  %9337 = vmatprep.subr.mxu0 0.0
  %9338 = vmatpush1.msra.mxu0 0.0
  %9339 = vmatprep.subr.mxu0 0.0
  %9340 = vmatpush1.msra.mxu0 0.0
  %9341 = vmatprep.subr.mxu0 0.0
  %9342 = vmatpush1.msra.mxu0 0.0
  %9343 = vmatprep.subr.mxu0 0.0
  %9344 = vmatpush1.msra.mxu0 0.0
  %9345 = vmatprep.subr.mxu0 0.0
  %9346 = vmatpush1.msra.mxu0 0.0
  %9347 = vmatprep.subr.mxu0 0.0
  %9348 = vmatpush1.msra.mxu0 0.0
  %9349 = vmatprep.subr.mxu0 0.0
  %9350 = vmatpush1.msra.mxu0 0.0
  %9351 = vmatprep.subr.mxu0 0.0
  %9352 = vmatpush1.msra.mxu0 0.0
  %9353 = vmatprep.subr.mxu0 0.0
  %9354 = vmatpush1.msra.mxu0 0.0
  %9355 = vmatprep.mubr.f32.mxu0 0.0
  %9356 = vmatmul.mubr.f32.gmra.mrb[0].mxu0 %v9280
  %v9357 = vpop.f32.mrb[0].mxu0
  %v9358 = vadd.f32 %v9278, %v9357
  %v9359 = vpop.f32.mrb[0].mxu0
  %9360 = vmatprep.mubr.f32.mxu0 0.0
  %9361 = vmatmul.mubr.f32.gmra.mrb[0].mxu0 %v9283
  %v9362 = vpop.f32.mrb[0].mxu0
  %v9363 = vadd.f32 %v9278, %v9362
  %v9364 = vpop.f32.mrb[0].mxu0
  %9365 = vmatprep.mubr.f32.mxu0 0.0
  %9366 = vmatmul.mubr.f32.gmra.mrb[0].mxu0 %v9286
  %v9367 = vpop.f32.mrb[0].mxu0
  %v9368 = vadd.f32 %v9278, %v9367
  %v9369 = vpop.f32.mrb[0].mxu0
  %9370 = vmatprep.mubr.f32.mxu0 0.0
  %9371 = vmatmul.mubr.f32.gmra.mrb[0].mxu0 %v9289
  %v9372 = vpop.f32.mrb[0].mxu0
  %v9373 = vadd.f32 %v9278, %v9372
  %v9374 = vpop.f32.mrb[0].mxu0
  %9375 = vdwg.mxu0
  %v9376 = vsub.f32 0.0, %v9358
  %v9377 = vsub.f32 0.0, %v9363
  %v9378 = vsub.f32 0.0, %v9368
  %v9379 = vsub.f32 0.0, %v9373
  %v9380 = vmul.f32 %v9376, 1.442695
  %v9381 = vpow.pop %v9380
  %v9382 = vmul.f32 %v9377, 1.442695
  %v9383 = vpow.pop %v9382
  %v9384 = vmul.f32 %v9378, 1.442695
  %v9385 = vpow.pop %v9384
  %v9386 = vmul.f32 %v9379, 1.442695
  %v9387 = vpow.pop %v9386
  %v9388 = vadd.f32 %v9381, 1.0
  %v9389 = vadd.f32 %v9383, 1.0
  %v9390 = vadd.f32 %v9385, 1.0
  %v9391 = vadd.f32 %v9387, 1.0
  %v9392 = vrcp.pop %v9388
  %v9393 = vrcp.pop %v9389
  %v9394 = vrcp.pop %v9390
  %v9395 = vrcp.pop %v9391
  %v9396 = vmul.f32 %v9388, %v9392
  %v9397 = vmul.f32 %v9389, %v9393
  %v9398 = vmul.f32 %v9390, %v9394
  %v9399 = vmul.f32 %v9391, %v9395
  %v9400 = vsub.f32 2.0, %v9396
  %v9401 = vsub.f32 2.0, %v9397
  %v9402 = vsub.f32 2.0, %v9398
  %v9403 = vsub.f32 2.0, %v9399
  %v9404 = vmul.f32 %v9392, %v9400
  %v9405 = vmul.f32 %v9393, %v9401
  %v9406 = vmul.f32 %v9394, %v9402
  %v9407 = vmul.f32 %v9395, %v9403
  %9408 = vst.msk [vmem:[%s3] sm:$0xff] %vm8296, %v9404
  %9409 = vst.msk [vmem:[%s3 + $0x8] sm:$0xff] %vm8296, %v9405
  %9410 = vst.msk [vmem:[%s3 + $0x10] sm:$0xff] %vm8296, %v9406
  %9411 = vst.msk [vmem:[%s3 + $0x18] sm:$0xff] %vm8296, %v9407
  // Predicated region
  $region14: #{mynet_forward.1} parent=0 // pred_check
    _
  $region15: #{mynet_forward.1} parent=0 // pred_check_branch
    %9413 = sbr.rel (0) target = $region17
  $region16: #{mynet_forward.1} parent=0 // pred_region
    _
  $region17: #{mynet_forward.1} parent=0 // pred_fallthru
    _
  // Predicated region
  $region18: #{mynet_forward.1} parent=0 // pred_check
    _
  $region19: #{mynet_forward.1} parent=0 // pred_check_branch
    %9415 = sbr.rel (0) target = $region21
  $region20: #{mynet_forward.1} parent=0 // pred_region
    _
  $region21: #{mynet_forward.1} parent=0 // pred_fallthru
    _

</llo_original>
